<compile_context>
chip_gen: v7x
topology: tpu7x:2x2x1
jax: 0.10.0
libtpu: 0.0.40
codegen_flags: <defaults>
</compile_context>

<pallas_src>
import jax
import jax.numpy as jnp
from jax.experimental import pallas as pl
from jax.experimental.pallas import tpu as pltpu

HP = 128          # hidden channels padded to a full 128-lane vreg width
CP = 128          # class dim padded so the final store is lane-dense
BN_EPS = 1e-5     # BatchNorm eps (eval mode, fresh running stats)
IN_EPS = 1e-5     # InstanceNorm eps


# ----------------------------- in-kernel helpers -----------------------------

def _sigmoid(x):
    return 1.0 / (1.0 + jnp.exp(-x))


def _elu(x):
    return jnp.where(x > 0.0, x, jnp.exp(jnp.minimum(x, 0.0)) - 1.0)


def _softplus(x):
    return jnp.maximum(x, 0.0) + jnp.log(1.0 + jnp.exp(-jnp.abs(x)))


def _mm(a, b):
    """MXU matmul: bf16 operands, f32 accumulation."""
    return jnp.dot(a.astype(jnp.bfloat16), b.astype(jnp.bfloat16),
                   preferred_element_type=jnp.float32)


def _gru_cell(m, h, w_ih, w_hh, b_ih, b_hh):
    """torch.nn.GRUCell(m, h); weights are [HP, 3*HP] (input-major), gate order r|z|n."""
    gi = _mm(m, w_ih) + b_ih
    gh = _mm(h, w_hh) + b_hh
    r = _sigmoid(gi[:, :HP] + gh[:, :HP])
    z = _sigmoid(gi[:, HP:2 * HP] + gh[:, HP:2 * HP])
    n = jnp.tanh(gi[:, 2 * HP:] + r * gh[:, 2 * HP:])
    return (1.0 - z) * n + z * h


def _min_aggr(m, adj, has_in):
    """out[t] = min over sources s with adj[t, s] > 0 of m[s]; empty neighbourhood -> 0."""
    big = jnp.where(adj[:, :, None] > 0.0, m[None, :, :], jnp.inf)
    return jnp.where(has_in, jnp.min(big, axis=1), 0.0)


def _mul_aggr(m, adj):
    """out[t] = product of m[s] over incoming edges (t, s), with edge multiplicity.

    Exact sign / zero / log-magnitude decomposition so the masked product runs on
    the MXU. Empty neighbourhoods give the multiplicative identity 1.
    TODO(synk): PyG's fill value for empty MulAggregation neighbourhoods is assumed = 1.
    """
    neg = (m < 0.0).astype(jnp.float32)
    zero = (m == 0.0).astype(jnp.float32)
    logmag = jnp.log(jnp.where(m == 0.0, 1.0, jnp.abs(m)))
    n_neg = _mm(adj, neg)          # number of negative factors (with multiplicity)
    n_zero = _mm(adj, zero)        # number of zero factors
    logsum = _mm(adj, logmag)      # sum of log|m| over incoming edges
    sign = 1.0 - 2.0 * (n_neg - 2.0 * jnp.floor(n_neg * 0.5))
    return jnp.where(n_zero > 0.5, 0.0, sign * jnp.exp(logsum))


# --------------------------------- the kernel --------------------------------

def _gcn_fused_kernel(adj_ref, adj_tag_ref, pool_ref, h0_ref,
                      w1_ref, g1_wi_ref, g1_wh_ref, g1_bi_ref, g1_bh_ref,
                      w2_rel_ref, b2_rel_ref, w2_root_ref,
                      bn2_scale_ref, bn2_shift_ref,
                      w3_ref, g3_wi_ref, g3_wh_ref, g3_bi_ref, g3_bh_ref,
                      w_l3_ref, b_l3_ref,
                      w4_ref, b4_ref,
                      w_l4_ref, b_l4_ref,
                      w5_l_ref, b5_l_ref, w5_r_ref,
                      w_l5_ref, b_l5_ref,
                      w_out_ref, b_out_ref,
                      out_ref):
    adj = adj_ref[...].astype(jnp.float32)        # [N, N] edge counts (row = target)
    adj_tag = adj_tag_ref[...]                    # [N, N] bf16 D^-1/2 A D^-1/2 (TAGConv)
    pool = pool_ref[...]                          # [B, N] graph membership one-hot
    x = h0_ref[...]                               # [N, HP] f32, VMEM/vreg resident throughout

    in_deg = jnp.sum(adj, axis=1, keepdims=True)  # [N, 1]
    has_in = in_deg > 0.0

    # ---- conv1: GatedGraphConv(H, 4 steps, MinAggregation) -> relu ----
    g1_wi, g1_wh = g1_wi_ref[...], g1_wh_ref[...]
    g1_bi, g1_bh = g1_bi_ref[...], g1_bh_ref[...]
    for i in range(4):
        m = _mm(x, w1_ref[i])
        x = _gru_cell(_min_aggr(m, adj, has_in), x, g1_wi, g1_wh, g1_bi, g1_bh)
    x = jnp.maximum(x, 0.0)

    # ---- conv2: GraphConv(sum) -> elu -> BatchNorm (eval: folded scale/shift) ----
    x = _mm(_mm(adj, x), w2_rel_ref[...]) + b2_rel_ref[...] + _mm(x, w2_root_ref[...])
    x = _elu(x) * bn2_scale_ref[...] + bn2_shift_ref[...]

    # ---- conv3: GatedGraphConv(H, 5 steps, MulAggregation) -> lin3 -> relu ----
    g3_wi, g3_wh = g3_wi_ref[...], g3_wh_ref[...]
    g3_bi, g3_bh = g3_bi_ref[...], g3_bh_ref[...]
    for i in range(5):
        m = _mm(x, w3_ref[i])
        x = _gru_cell(_mul_aggr(m, adj), x, g3_wi, g3_wh, g3_bi, g3_bh)
    x = jnp.maximum(_mm(x, w_l3_ref[...]) + b_l3_ref[...], 0.0)

    # ---- conv4: TAGConv(K=7) -> lin4 -> softplus ----
    out4 = _mm(x, w4_ref[0])
    xk = x
    for k in range(1, 8):
        xk = _mm(adj_tag, xk)
        out4 = out4 + _mm(xk, w4_ref[k])
    x = out4 + b4_ref[...]
    x = _softplus(_mm(x, w_l4_ref[...]) + b_l4_ref[...])

    # ---- conv5: SAGEConv(VarAggregation) -> lin5 -> softplus -> InstanceNorm ----
    mean_adj = adj / jnp.maximum(in_deg, 1.0)
    mean_x = _mm(mean_adj, x)
    var = _mm(mean_adj, x * x) - mean_x * mean_x
    x = _mm(var, w5_l_ref[...]) + b5_l_ref[...] + _mm(x, w5_r_ref[...])
    x = _softplus(_mm(x, w_l5_ref[...]) + b_l5_ref[...])
    mu = jnp.mean(x, axis=0, keepdims=True)
    xc = x - mu
    x = xc * jax.lax.rsqrt(jnp.mean(xc * xc, axis=0, keepdims=True) + IN_EPS)

    # ---- dropout (eval: identity) -> global_max_pool -> dropout -> Linear(H, C) ----
    big = jnp.where(pool[:, :, None] > 0.0, x[None, :, :], -jnp.inf)
    pooled = jnp.max(big, axis=1)
    pooled = jnp.where(jnp.sum(pool, axis=1, keepdims=True) > 0.0, pooled, 0.0)
    out_ref[...] = (_mm(pooled, w_out_ref[...]) + b_out_ref[...]).astype(out_ref.dtype)


# ------------------------------ params / packing -----------------------------

def _pad2(a, rows, cols):
    return jnp.zeros((rows, cols), a.dtype).at[:a.shape[0], :a.shape[1]].set(a)


def _pad3(a, rows, cols):
    return jnp.zeros((a.shape[0], rows, cols), a.dtype).at[:, :a.shape[1], :a.shape[2]].set(a)


def _pack_gru(g):
    wi = jnp.concatenate([_pad2(g["w_ih"][k], HP, HP) for k in range(3)], axis=1)
    wh = jnp.concatenate([_pad2(g["w_hh"][k], HP, HP) for k in range(3)], axis=1)
    bi = jnp.concatenate([_pad2(g["b_ih"][k][None, :], 1, HP) for k in range(3)], axis=1)
    bh = jnp.concatenate([_pad2(g["b_hh"][k][None, :], 1, HP) for k in range(3)], axis=1)
    return wi.astype(jnp.bfloat16), wh.astype(jnp.bfloat16), bi, bh


def init_params(key, hidden, num_classes, num_feats=9, vocab=100):
    kit = iter(jax.random.split(key, 40))
    s = 1.0 / jnp.sqrt(jnp.float32(hidden))

    def mat(*shape):
        return s * jax.random.normal(next(kit), shape, jnp.float32)

    def gru():
        return dict(w_ih=mat(3, hidden, hidden), w_hh=mat(3, hidden, hidden),
                    b_ih=mat(3, hidden), b_hh=mat(3, hidden))

    p = {}
    p["emb"] = [0.1 * jax.random.normal(next(kit), (vocab, hidden), jnp.float32)
                for _ in range(num_feats)]
    p["w1"], p["gru1"] = mat(4, hidden, hidden), gru()
    p["w2_rel"], p["b2_rel"] = mat(hidden, hidden), jnp.zeros((hidden,), jnp.float32)
    p["w2_root"] = mat(hidden, hidden)
    p["w3"], p["gru3"] = mat(5, hidden, hidden), gru()
    p["w_l3"], p["b_l3"] = mat(hidden, hidden), jnp.zeros((hidden,), jnp.float32)
    p["w4"], p["b4"] = mat(8, hidden, hidden), jnp.zeros((hidden,), jnp.float32)
    p["w_l4"], p["b_l4"] = mat(hidden, hidden), jnp.zeros((hidden,), jnp.float32)
    p["w5_l"], p["b5_l"] = mat(hidden, hidden), jnp.zeros((hidden,), jnp.float32)
    p["w5_r"] = mat(hidden, hidden)
    p["w_l5"], p["b_l5"] = mat(hidden, hidden), jnp.zeros((hidden,), jnp.float32)
    p["w_out"], p["b_out"] = mat(hidden, num_classes), jnp.zeros((num_classes,), jnp.float32)
    return p


def pack_params(p, hidden):
    """Zero-pad every parameter to lane-dense widths; weights -> bf16, biases/affine -> f32."""
    bf16 = jnp.bfloat16

    def w(a):
        return _pad2(a, HP, HP).astype(bf16)

    def b(a):
        return _pad2(a[None, :], 1, HP)

    # BatchNorm eval with fresh running stats (mean=0, var=1, gamma=1, beta=0).
    bn_scale = _pad2(jnp.full((1, hidden), 1.0 / (1.0 + BN_EPS) ** 0.5, jnp.float32), 1, HP)
    bn_shift = jnp.zeros((1, HP), jnp.float32)
    return (
        _pad3(p["w1"], HP, HP).astype(bf16), *_pack_gru(p["gru1"]),
        w(p["w2_rel"]), b(p["b2_rel"]), w(p["w2_root"]),
        bn_scale, bn_shift,
        _pad3(p["w3"], HP, HP).astype(bf16), *_pack_gru(p["gru3"]),
        w(p["w_l3"]), b(p["b_l3"]),
        _pad3(p["w4"], HP, HP).astype(bf16), b(p["b4"]),
        w(p["w_l4"]), b(p["b_l4"]),
        w(p["w5_l"]), b(p["b5_l"]), w(p["w5_r"]),
        w(p["w_l5"]), b(p["b_l5"]),
        _pad2(p["w_out"], HP, CP).astype(bf16), _pad2(p["b_out"][None, :], 1, CP),
    )


# ------------------------------- forward (glue) -------------------------------

def gcn_forward(params, x_feat, edge_index, batch_vec, num_graphs, num_classes):
    n = x_feat.shape[0]
    hidden = params["w2_rel"].shape[0]

    # AtomEncoder: sum of 9 per-column embedding lookups (gather stays in JAX glue).
    h = jnp.zeros((n, hidden), jnp.float32)
    for i in range(x_feat.shape[1]):
        h = h + jnp.take(params["emb"][i], x_feat[:, i], axis=0)
    h_pad = _pad2(h, n, HP)

    # Dense adjacency with edge multiplicity (row = target, col = source).
    src, dst = edge_index[0], edge_index[1]
    adj = jnp.zeros((n, n), jnp.float32).at[dst, src].add(1.0)

    # TAGConv gcn_norm (no self loops): D^-1/2 A D^-1/2 with in-degree, isolated nodes -> 0.
    deg = adj.sum(axis=1)
    dinv = jnp.where(deg > 0, 1.0 / jnp.sqrt(jnp.maximum(deg, 1.0)), 0.0)
    adj_tag = dinv[:, None] * adj * dinv[None, :]

    # global_max_pool membership matrix.
    pool = (batch_vec[None, :] == jnp.arange(num_graphs)[:, None]).astype(jnp.float32)

    flat = pack_params(params, hidden)
    vmem = pl.BlockSpec(memory_space=pltpu.MemorySpace.VMEM)
    out_pad = pl.pallas_call(
        _gcn_fused_kernel,
        out_shape=jax.ShapeDtypeStruct((num_graphs, CP), jnp.float32),
        in_specs=[vmem] * (4 + len(flat)),
        out_specs=vmem,
    )(adj.astype(jnp.bfloat16), adj_tag.astype(jnp.bfloat16), pool, h_pad, *flat)
    return out_pad[:, :num_classes]


# ----------------------------------- main -------------------------------------

if __name__ == "__main__":
    key = jax.random.PRNGKey(0)
    k_feat, k_edge, k_param = jax.random.split(key, 3)

    num_nodes = 16
    num_feats = 9          # AtomEncoder: 9 categorical columns, vocab 100
    hidden = 32
    num_classes = 3
    num_graphs = 2
    num_edges = 40

    # integer node features in [0, 100)
    x_feat = jax.random.randint(k_feat, (num_nodes, num_feats), 0, 100, jnp.int32)

    # 40 unique directed edges over 16 nodes (deterministic)
    pair_ids = jax.random.permutation(k_edge, num_nodes * num_nodes)[:num_edges]
    edge_index = jnp.stack([pair_ids // num_nodes, pair_ids % num_nodes]).astype(jnp.int32)

    # node -> graph assignment: first 8 nodes graph 0, last 8 nodes graph 1
    batch_vec = jnp.concatenate(
        [jnp.zeros((8,), jnp.int32), jnp.ones((8,), jnp.int32)])

    params = init_params(k_param, hidden, num_classes, num_feats)

    out = gcn_forward(params, x_feat, edge_index, batch_vec, num_graphs, num_classes)
    out = jax.block_until_ready(out)
    assert out.shape == (num_graphs, num_classes)
    assert bool(jnp.all(jnp.isfinite(out)))
    print("KERNEL_OK")
</pallas_src>

<mosaic_0001>
module attributes {stable_mosaic.version = 11 : i64} {
  func.func @_gcn_fused_kernel(%arg0: memref<16x16xbf16, #tpu.memory_space<vmem>>, %arg1: memref<16x16xbf16, #tpu.memory_space<vmem>>, %arg2: memref<2x16xf32, #tpu.memory_space<vmem>>, %arg3: memref<16x128xf32, #tpu.memory_space<vmem>>, %arg4: memref<4x128x128xbf16, #tpu.memory_space<vmem>>, %arg5: memref<128x384xbf16, #tpu.memory_space<vmem>>, %arg6: memref<128x384xbf16, #tpu.memory_space<vmem>>, %arg7: memref<1x384xf32, #tpu.memory_space<vmem>>, %arg8: memref<1x384xf32, #tpu.memory_space<vmem>>, %arg9: memref<128x128xbf16, #tpu.memory_space<vmem>>, %arg10: memref<1x128xf32, #tpu.memory_space<vmem>>, %arg11: memref<128x128xbf16, #tpu.memory_space<vmem>>, %arg12: memref<1x128xf32, #tpu.memory_space<vmem>>, %arg13: memref<1x128xf32, #tpu.memory_space<vmem>>, %arg14: memref<5x128x128xbf16, #tpu.memory_space<vmem>>, %arg15: memref<128x384xbf16, #tpu.memory_space<vmem>>, %arg16: memref<128x384xbf16, #tpu.memory_space<vmem>>, %arg17: memref<1x384xf32, #tpu.memory_space<vmem>>, %arg18: memref<1x384xf32, #tpu.memory_space<vmem>>, %arg19: memref<128x128xbf16, #tpu.memory_space<vmem>>, %arg20: memref<1x128xf32, #tpu.memory_space<vmem>>, %arg21: memref<8x128x128xbf16, #tpu.memory_space<vmem>>, %arg22: memref<1x128xf32, #tpu.memory_space<vmem>>, %arg23: memref<128x128xbf16, #tpu.memory_space<vmem>>, %arg24: memref<1x128xf32, #tpu.memory_space<vmem>>, %arg25: memref<128x128xbf16, #tpu.memory_space<vmem>>, %arg26: memref<1x128xf32, #tpu.memory_space<vmem>>, %arg27: memref<128x128xbf16, #tpu.memory_space<vmem>>, %arg28: memref<128x128xbf16, #tpu.memory_space<vmem>>, %arg29: memref<1x128xf32, #tpu.memory_space<vmem>>, %arg30: memref<128x128xbf16, #tpu.memory_space<vmem>>, %arg31: memref<1x128xf32, #tpu.memory_space<vmem>>, %arg32: memref<2x128xf32, #tpu.memory_space<vmem>>) attributes {dimension_semantics = [], scalar_prefetch = 0 : i64, scratch_operands = 0 : i64, tpu.core_type = #tpu.core_type<tc>} {
    %c0 = arith.constant 0 : index
    %c0_0 = arith.constant 0 : index
    %0 = vector.load %arg0[%c0, %c0_0] : memref<16x16xbf16, #tpu.memory_space<vmem>>, vector<16x16xbf16>
    %1 = arith.extf %0 : vector<16x16xbf16> to vector<16x16xf32>
    %c0_1 = arith.constant 0 : index
    %c0_2 = arith.constant 0 : index
    %2 = vector.load %arg1[%c0_1, %c0_2] : memref<16x16xbf16, #tpu.memory_space<vmem>>, vector<16x16xbf16>
    %c0_3 = arith.constant 0 : index
    %c0_4 = arith.constant 0 : index
    %3 = vector.load %arg2[%c0_3, %c0_4] : memref<2x16xf32, #tpu.memory_space<vmem>>, vector<2x16xf32>
    %c0_5 = arith.constant 0 : index
    %c0_6 = arith.constant 0 : index
    %4 = vector.load %arg3[%c0_5, %c0_6] : memref<16x128xf32, #tpu.memory_space<vmem>>, vector<16x128xf32>
    %cst = arith.constant dense<0.000000e+00> : vector<16xf32>
    %5 = vector.multi_reduction <add>, %1, %cst [1] : vector<16x16xf32> to vector<16xf32>
    %6 = vector.shape_cast %5 : vector<16xf32> to vector<16x1xf32>
    %cst_7 = arith.constant 0.000000e+00 : f32
    %7 = vector.broadcast %cst_7 : f32 to vector<16x1xf32>
    %8 = arith.cmpf ogt, %6, %7 : vector<16x1xf32>
    %c0_8 = arith.constant 0 : index
    %c0_9 = arith.constant 0 : index
    %9 = vector.load %arg5[%c0_8, %c0_9] : memref<128x384xbf16, #tpu.memory_space<vmem>>, vector<128x384xbf16>
    %c0_10 = arith.constant 0 : index
    %c0_11 = arith.constant 0 : index
    %10 = vector.load %arg6[%c0_10, %c0_11] : memref<128x384xbf16, #tpu.memory_space<vmem>>, vector<128x384xbf16>
    %c0_12 = arith.constant 0 : index
    %c0_13 = arith.constant 0 : index
    %11 = vector.load %arg7[%c0_12, %c0_13] : memref<1x384xf32, #tpu.memory_space<vmem>>, vector<1x384xf32>
    %c0_14 = arith.constant 0 : index
    %c0_15 = arith.constant 0 : index
    %12 = vector.load %arg8[%c0_14, %c0_15] : memref<1x384xf32, #tpu.memory_space<vmem>>, vector<1x384xf32>
    %c0_16 = arith.constant 0 : index
    %c0_17 = arith.constant 0 : index
    %c0_18 = arith.constant 0 : index
    %13 = vector.load %arg4[%c0_16, %c0_17, %c0_18] : memref<4x128x128xbf16, #tpu.memory_space<vmem>>, vector<1x128x128xbf16>
    %14 = vector.shape_cast %13 : vector<1x128x128xbf16> to vector<128x128xbf16>
    %15 = arith.truncf %4 : vector<16x128xf32> to vector<16x128xbf16>
    %cst_19 = arith.constant dense<0.000000e+00> : vector<16x128xf32>
    %16 = tpu.matmul %15, %14, %cst_19 {dimension_numbers = #tpu.dot_dimension_numbers<[1], [0], [0], [1], [0, 0, 1, 1], [], []>} : vector<16x128xbf16>, vector<128x128xbf16>, vector<16x128xf32> -> vector<16x128xf32>
    %17 = vector.shape_cast %1 : vector<16x16xf32> to vector<16x16x1xf32>
    %cst_20 = arith.constant 0.000000e+00 : f32
    %18 = vector.broadcast %cst_20 : f32 to vector<16x16x1xf32>
    %19 = arith.cmpf ogt, %17, %18 : vector<16x16x1xf32>
    %20 = vector.shape_cast %16 : vector<16x128xf32> to vector<1x16x128xf32>
    %cst_21 = arith.constant 0x7F800000 : f32
    %21 = vector.shape_cast %19 : vector<16x16x1xi1> to vector<16x16x1xi1>
    %22 = vector.broadcast %21 : vector<16x16x1xi1> to vector<16x16x128xi1>
    %23 = vector.shape_cast %20 : vector<1x16x128xf32> to vector<1x16x128xf32>
    %24 = vector.broadcast %23 : vector<1x16x128xf32> to vector<16x16x128xf32>
    %25 = vector.broadcast %cst_21 : f32 to vector<16x16x128xf32>
    %26 = arith.select %22, %24, %25 : vector<16x16x128xi1>, vector<16x16x128xf32>
    %cst_22 = arith.constant dense<0x7F800000> : vector<16x128xf32>
    %27 = vector.multi_reduction <minimumf>, %26, %cst_22 [1] : vector<16x16x128xf32> to vector<16x128xf32>
    %cst_23 = arith.constant 0.000000e+00 : f32
    %28 = vector.shape_cast %8 : vector<16x1xi1> to vector<16x1xi1>
    %29 = vector.broadcast %28 : vector<16x1xi1> to vector<16x128xi1>
    %30 = vector.broadcast %cst_23 : f32 to vector<16x128xf32>
    %31 = arith.select %29, %27, %30 : vector<16x128xi1>, vector<16x128xf32>
    %32 = arith.truncf %31 : vector<16x128xf32> to vector<16x128xbf16>
    %cst_24 = arith.constant dense<0.000000e+00> : vector<16x384xf32>
    %33 = tpu.matmul %32, %9, %cst_24 {dimension_numbers = #tpu.dot_dimension_numbers<[1], [0], [0], [1], [0, 0, 1, 1], [], []>} : vector<16x128xbf16>, vector<128x384xbf16>, vector<16x384xf32> -> vector<16x384xf32>
    %34 = vector.broadcast %11 : vector<1x384xf32> to vector<16x384xf32>
    %35 = arith.addf %33, %34 : vector<16x384xf32>
    %36 = arith.truncf %4 : vector<16x128xf32> to vector<16x128xbf16>
    %cst_25 = arith.constant dense<0.000000e+00> : vector<16x384xf32>
    %37 = tpu.matmul %36, %10, %cst_25 {dimension_numbers = #tpu.dot_dimension_numbers<[1], [0], [0], [1], [0, 0, 1, 1], [], []>} : vector<16x128xbf16>, vector<128x384xbf16>, vector<16x384xf32> -> vector<16x384xf32>
    %38 = vector.broadcast %12 : vector<1x384xf32> to vector<16x384xf32>
    %39 = arith.addf %37, %38 : vector<16x384xf32>
    %40 = vector.extract_strided_slice %35 {offsets = [0, 0], sizes = [16, 128], strides = [1, 1]} : vector<16x384xf32> to vector<16x128xf32>
    %41 = vector.extract_strided_slice %39 {offsets = [0, 0], sizes = [16, 128], strides = [1, 1]} : vector<16x384xf32> to vector<16x128xf32>
    %42 = arith.addf %40, %41 : vector<16x128xf32>
    %cst_26 = arith.constant 0.000000e+00 : f32
    %43 = vector.broadcast %cst_26 : f32 to vector<16x128xf32>
    %44 = arith.subf %43, %42 : vector<16x128xf32>
    %45 = math.exp %44 : vector<16x128xf32>
    %cst_27 = arith.constant 1.000000e+00 : f32
    %46 = vector.broadcast %cst_27 : f32 to vector<16x128xf32>
    %47 = arith.addf %46, %45 : vector<16x128xf32>
    %cst_28 = arith.constant 1.000000e+00 : f32
    %48 = vector.broadcast %cst_28 : f32 to vector<16x128xf32>
    %49 = arith.divf %48, %47 : vector<16x128xf32>
    %50 = vector.extract_strided_slice %35 {offsets = [0, 128], sizes = [16, 128], strides = [1, 1]} : vector<16x384xf32> to vector<16x128xf32>
    %51 = vector.extract_strided_slice %39 {offsets = [0, 128], sizes = [16, 128], strides = [1, 1]} : vector<16x384xf32> to vector<16x128xf32>
    %52 = arith.addf %50, %51 : vector<16x128xf32>
    %cst_29 = arith.constant 0.000000e+00 : f32
    %53 = vector.broadcast %cst_29 : f32 to vector<16x128xf32>
    %54 = arith.subf %53, %52 : vector<16x128xf32>
    %55 = math.exp %54 : vector<16x128xf32>
    %cst_30 = arith.constant 1.000000e+00 : f32
    %56 = vector.broadcast %cst_30 : f32 to vector<16x128xf32>
    %57 = arith.addf %56, %55 : vector<16x128xf32>
    %cst_31 = arith.constant 1.000000e+00 : f32
    %58 = vector.broadcast %cst_31 : f32 to vector<16x128xf32>
    %59 = arith.divf %58, %57 : vector<16x128xf32>
    %60 = vector.extract_strided_slice %35 {offsets = [0, 256], sizes = [16, 128], strides = [1, 1]} : vector<16x384xf32> to vector<16x128xf32>
    %61 = vector.extract_strided_slice %39 {offsets = [0, 256], sizes = [16, 128], strides = [1, 1]} : vector<16x384xf32> to vector<16x128xf32>
    %62 = arith.mulf %49, %61 : vector<16x128xf32>
    %63 = arith.addf %60, %62 : vector<16x128xf32>
    %64 = math.tanh %63 : vector<16x128xf32>
    %cst_32 = arith.constant 1.000000e+00 : f32
    %65 = vector.broadcast %cst_32 : f32 to vector<16x128xf32>
    %66 = arith.subf %65, %59 : vector<16x128xf32>
    %67 = arith.mulf %66, %64 : vector<16x128xf32>
    %68 = arith.mulf %59, %4 : vector<16x128xf32>
    %69 = arith.addf %67, %68 : vector<16x128xf32>
    %c1 = arith.constant 1 : index
    %c0_33 = arith.constant 0 : index
    %c0_34 = arith.constant 0 : index
    %70 = vector.load %arg4[%c1, %c0_33, %c0_34] : memref<4x128x128xbf16, #tpu.memory_space<vmem>>, vector<1x128x128xbf16>
    %71 = vector.shape_cast %70 : vector<1x128x128xbf16> to vector<128x128xbf16>
    %72 = arith.truncf %69 : vector<16x128xf32> to vector<16x128xbf16>
    %cst_35 = arith.constant dense<0.000000e+00> : vector<16x128xf32>
    %73 = tpu.matmul %72, %71, %cst_35 {dimension_numbers = #tpu.dot_dimension_numbers<[1], [0], [0], [1], [0, 0, 1, 1], [], []>} : vector<16x128xbf16>, vector<128x128xbf16>, vector<16x128xf32> -> vector<16x128xf32>
    %74 = vector.shape_cast %1 : vector<16x16xf32> to vector<16x16x1xf32>
    %cst_36 = arith.constant 0.000000e+00 : f32
    %75 = vector.broadcast %cst_36 : f32 to vector<16x16x1xf32>
    %76 = arith.cmpf ogt, %74, %75 : vector<16x16x1xf32>
    %77 = vector.shape_cast %73 : vector<16x128xf32> to vector<1x16x128xf32>
    %cst_37 = arith.constant 0x7F800000 : f32
    %78 = vector.shape_cast %76 : vector<16x16x1xi1> to vector<16x16x1xi1>
    %79 = vector.broadcast %78 : vector<16x16x1xi1> to vector<16x16x128xi1>
    %80 = vector.shape_cast %77 : vector<1x16x128xf32> to vector<1x16x128xf32>
    %81 = vector.broadcast %80 : vector<1x16x128xf32> to vector<16x16x128xf32>
    %82 = vector.broadcast %cst_37 : f32 to vector<16x16x128xf32>
    %83 = arith.select %79, %81, %82 : vector<16x16x128xi1>, vector<16x16x128xf32>
    %cst_38 = arith.constant dense<0x7F800000> : vector<16x128xf32>
    %84 = vector.multi_reduction <minimumf>, %83, %cst_38 [1] : vector<16x16x128xf32> to vector<16x128xf32>
    %cst_39 = arith.constant 0.000000e+00 : f32
    %85 = vector.shape_cast %8 : vector<16x1xi1> to vector<16x1xi1>
    %86 = vector.broadcast %85 : vector<16x1xi1> to vector<16x128xi1>
    %87 = vector.broadcast %cst_39 : f32 to vector<16x128xf32>
    %88 = arith.select %86, %84, %87 : vector<16x128xi1>, vector<16x128xf32>
    %89 = arith.truncf %88 : vector<16x128xf32> to vector<16x128xbf16>
    %cst_40 = arith.constant dense<0.000000e+00> : vector<16x384xf32>
    %90 = tpu.matmul %89, %9, %cst_40 {dimension_numbers = #tpu.dot_dimension_numbers<[1], [0], [0], [1], [0, 0, 1, 1], [], []>} : vector<16x128xbf16>, vector<128x384xbf16>, vector<16x384xf32> -> vector<16x384xf32>
    %91 = vector.broadcast %11 : vector<1x384xf32> to vector<16x384xf32>
    %92 = arith.addf %90, %91 : vector<16x384xf32>
    %93 = arith.truncf %69 : vector<16x128xf32> to vector<16x128xbf16>
    %cst_41 = arith.constant dense<0.000000e+00> : vector<16x384xf32>
    %94 = tpu.matmul %93, %10, %cst_41 {dimension_numbers = #tpu.dot_dimension_numbers<[1], [0], [0], [1], [0, 0, 1, 1], [], []>} : vector<16x128xbf16>, vector<128x384xbf16>, vector<16x384xf32> -> vector<16x384xf32>
    %95 = vector.broadcast %12 : vector<1x384xf32> to vector<16x384xf32>
    %96 = arith.addf %94, %95 : vector<16x384xf32>
    %97 = vector.extract_strided_slice %92 {offsets = [0, 0], sizes = [16, 128], strides = [1, 1]} : vector<16x384xf32> to vector<16x128xf32>
    %98 = vector.extract_strided_slice %96 {offsets = [0, 0], sizes = [16, 128], strides = [1, 1]} : vector<16x384xf32> to vector<16x128xf32>
    %99 = arith.addf %97, %98 : vector<16x128xf32>
    %cst_42 = arith.constant 0.000000e+00 : f32
    %100 = vector.broadcast %cst_42 : f32 to vector<16x128xf32>
    %101 = arith.subf %100, %99 : vector<16x128xf32>
    %102 = math.exp %101 : vector<16x128xf32>
    %cst_43 = arith.constant 1.000000e+00 : f32
    %103 = vector.broadcast %cst_43 : f32 to vector<16x128xf32>
    %104 = arith.addf %103, %102 : vector<16x128xf32>
    %cst_44 = arith.constant 1.000000e+00 : f32
    %105 = vector.broadcast %cst_44 : f32 to vector<16x128xf32>
    %106 = arith.divf %105, %104 : vector<16x128xf32>
    %107 = vector.extract_strided_slice %92 {offsets = [0, 128], sizes = [16, 128], strides = [1, 1]} : vector<16x384xf32> to vector<16x128xf32>
    %108 = vector.extract_strided_slice %96 {offsets = [0, 128], sizes = [16, 128], strides = [1, 1]} : vector<16x384xf32> to vector<16x128xf32>
    %109 = arith.addf %107, %108 : vector<16x128xf32>
    %cst_45 = arith.constant 0.000000e+00 : f32
    %110 = vector.broadcast %cst_45 : f32 to vector<16x128xf32>
    %111 = arith.subf %110, %109 : vector<16x128xf32>
    %112 = math.exp %111 : vector<16x128xf32>
    %cst_46 = arith.constant 1.000000e+00 : f32
    %113 = vector.broadcast %cst_46 : f32 to vector<16x128xf32>
    %114 = arith.addf %113, %112 : vector<16x128xf32>
    %cst_47 = arith.constant 1.000000e+00 : f32
    %115 = vector.broadcast %cst_47 : f32 to vector<16x128xf32>
    %116 = arith.divf %115, %114 : vector<16x128xf32>
    %117 = vector.extract_strided_slice %92 {offsets = [0, 256], sizes = [16, 128], strides = [1, 1]} : vector<16x384xf32> to vector<16x128xf32>
    %118 = vector.extract_strided_slice %96 {offsets = [0, 256], sizes = [16, 128], strides = [1, 1]} : vector<16x384xf32> to vector<16x128xf32>
    %119 = arith.mulf %106, %118 : vector<16x128xf32>
    %120 = arith.addf %117, %119 : vector<16x128xf32>
    %121 = math.tanh %120 : vector<16x128xf32>
    %cst_48 = arith.constant 1.000000e+00 : f32
    %122 = vector.broadcast %cst_48 : f32 to vector<16x128xf32>
    %123 = arith.subf %122, %116 : vector<16x128xf32>
    %124 = arith.mulf %123, %121 : vector<16x128xf32>
    %125 = arith.mulf %116, %69 : vector<16x128xf32>
    %126 = arith.addf %124, %125 : vector<16x128xf32>
    %c2 = arith.constant 2 : index
    %c0_49 = arith.constant 0 : index
    %c0_50 = arith.constant 0 : index
    %127 = vector.load %arg4[%c2, %c0_49, %c0_50] : memref<4x128x128xbf16, #tpu.memory_space<vmem>>, vector<1x128x128xbf16>
    %128 = vector.shape_cast %127 : vector<1x128x128xbf16> to vector<128x128xbf16>
    %129 = arith.truncf %126 : vector<16x128xf32> to vector<16x128xbf16>
    %cst_51 = arith.constant dense<0.000000e+00> : vector<16x128xf32>
    %130 = tpu.matmul %129, %128, %cst_51 {dimension_numbers = #tpu.dot_dimension_numbers<[1], [0], [0], [1], [0, 0, 1, 1], [], []>} : vector<16x128xbf16>, vector<128x128xbf16>, vector<16x128xf32> -> vector<16x128xf32>
    %131 = vector.shape_cast %1 : vector<16x16xf32> to vector<16x16x1xf32>
    %cst_52 = arith.constant 0.000000e+00 : f32
    %132 = vector.broadcast %cst_52 : f32 to vector<16x16x1xf32>
    %133 = arith.cmpf ogt, %131, %132 : vector<16x16x1xf32>
    %134 = vector.shape_cast %130 : vector<16x128xf32> to vector<1x16x128xf32>
    %cst_53 = arith.constant 0x7F800000 : f32
    %135 = vector.shape_cast %133 : vector<16x16x1xi1> to vector<16x16x1xi1>
    %136 = vector.broadcast %135 : vector<16x16x1xi1> to vector<16x16x128xi1>
    %137 = vector.shape_cast %134 : vector<1x16x128xf32> to vector<1x16x128xf32>
    %138 = vector.broadcast %137 : vector<1x16x128xf32> to vector<16x16x128xf32>
    %139 = vector.broadcast %cst_53 : f32 to vector<16x16x128xf32>
    %140 = arith.select %136, %138, %139 : vector<16x16x128xi1>, vector<16x16x128xf32>
    %cst_54 = arith.constant dense<0x7F800000> : vector<16x128xf32>
    %141 = vector.multi_reduction <minimumf>, %140, %cst_54 [1] : vector<16x16x128xf32> to vector<16x128xf32>
    %cst_55 = arith.constant 0.000000e+00 : f32
    %142 = vector.shape_cast %8 : vector<16x1xi1> to vector<16x1xi1>
    %143 = vector.broadcast %142 : vector<16x1xi1> to vector<16x128xi1>
    %144 = vector.broadcast %cst_55 : f32 to vector<16x128xf32>
    %145 = arith.select %143, %141, %144 : vector<16x128xi1>, vector<16x128xf32>
    %146 = arith.truncf %145 : vector<16x128xf32> to vector<16x128xbf16>
    %cst_56 = arith.constant dense<0.000000e+00> : vector<16x384xf32>
    %147 = tpu.matmul %146, %9, %cst_56 {dimension_numbers = #tpu.dot_dimension_numbers<[1], [0], [0], [1], [0, 0, 1, 1], [], []>} : vector<16x128xbf16>, vector<128x384xbf16>, vector<16x384xf32> -> vector<16x384xf32>
    %148 = vector.broadcast %11 : vector<1x384xf32> to vector<16x384xf32>
    %149 = arith.addf %147, %148 : vector<16x384xf32>
    %150 = arith.truncf %126 : vector<16x128xf32> to vector<16x128xbf16>
    %cst_57 = arith.constant dense<0.000000e+00> : vector<16x384xf32>
    %151 = tpu.matmul %150, %10, %cst_57 {dimension_numbers = #tpu.dot_dimension_numbers<[1], [0], [0], [1], [0, 0, 1, 1], [], []>} : vector<16x128xbf16>, vector<128x384xbf16>, vector<16x384xf32> -> vector<16x384xf32>
    %152 = vector.broadcast %12 : vector<1x384xf32> to vector<16x384xf32>
    %153 = arith.addf %151, %152 : vector<16x384xf32>
    %154 = vector.extract_strided_slice %149 {offsets = [0, 0], sizes = [16, 128], strides = [1, 1]} : vector<16x384xf32> to vector<16x128xf32>
    %155 = vector.extract_strided_slice %153 {offsets = [0, 0], sizes = [16, 128], strides = [1, 1]} : vector<16x384xf32> to vector<16x128xf32>
    %156 = arith.addf %154, %155 : vector<16x128xf32>
    %cst_58 = arith.constant 0.000000e+00 : f32
    %157 = vector.broadcast %cst_58 : f32 to vector<16x128xf32>
    %158 = arith.subf %157, %156 : vector<16x128xf32>
    %159 = math.exp %158 : vector<16x128xf32>
    %cst_59 = arith.constant 1.000000e+00 : f32
    %160 = vector.broadcast %cst_59 : f32 to vector<16x128xf32>
    %161 = arith.addf %160, %159 : vector<16x128xf32>
    %cst_60 = arith.constant 1.000000e+00 : f32
    %162 = vector.broadcast %cst_60 : f32 to vector<16x128xf32>
    %163 = arith.divf %162, %161 : vector<16x128xf32>
    %164 = vector.extract_strided_slice %149 {offsets = [0, 128], sizes = [16, 128], strides = [1, 1]} : vector<16x384xf32> to vector<16x128xf32>
    %165 = vector.extract_strided_slice %153 {offsets = [0, 128], sizes = [16, 128], strides = [1, 1]} : vector<16x384xf32> to vector<16x128xf32>
    %166 = arith.addf %164, %165 : vector<16x128xf32>
    %cst_61 = arith.constant 0.000000e+00 : f32
    %167 = vector.broadcast %cst_61 : f32 to vector<16x128xf32>
    %168 = arith.subf %167, %166 : vector<16x128xf32>
    %169 = math.exp %168 : vector<16x128xf32>
    %cst_62 = arith.constant 1.000000e+00 : f32
    %170 = vector.broadcast %cst_62 : f32 to vector<16x128xf32>
    %171 = arith.addf %170, %169 : vector<16x128xf32>
    %cst_63 = arith.constant 1.000000e+00 : f32
    %172 = vector.broadcast %cst_63 : f32 to vector<16x128xf32>
    %173 = arith.divf %172, %171 : vector<16x128xf32>
    %174 = vector.extract_strided_slice %149 {offsets = [0, 256], sizes = [16, 128], strides = [1, 1]} : vector<16x384xf32> to vector<16x128xf32>
    %175 = vector.extract_strided_slice %153 {offsets = [0, 256], sizes = [16, 128], strides = [1, 1]} : vector<16x384xf32> to vector<16x128xf32>
    %176 = arith.mulf %163, %175 : vector<16x128xf32>
    %177 = arith.addf %174, %176 : vector<16x128xf32>
    %178 = math.tanh %177 : vector<16x128xf32>
    %cst_64 = arith.constant 1.000000e+00 : f32
    %179 = vector.broadcast %cst_64 : f32 to vector<16x128xf32>
    %180 = arith.subf %179, %173 : vector<16x128xf32>
    %181 = arith.mulf %180, %178 : vector<16x128xf32>
    %182 = arith.mulf %173, %126 : vector<16x128xf32>
    %183 = arith.addf %181, %182 : vector<16x128xf32>
    %c3 = arith.constant 3 : index
    %c0_65 = arith.constant 0 : index
    %c0_66 = arith.constant 0 : index
    %184 = vector.load %arg4[%c3, %c0_65, %c0_66] : memref<4x128x128xbf16, #tpu.memory_space<vmem>>, vector<1x128x128xbf16>
    %185 = vector.shape_cast %184 : vector<1x128x128xbf16> to vector<128x128xbf16>
    %186 = arith.truncf %183 : vector<16x128xf32> to vector<16x128xbf16>
    %cst_67 = arith.constant dense<0.000000e+00> : vector<16x128xf32>
    %187 = tpu.matmul %186, %185, %cst_67 {dimension_numbers = #tpu.dot_dimension_numbers<[1], [0], [0], [1], [0, 0, 1, 1], [], []>} : vector<16x128xbf16>, vector<128x128xbf16>, vector<16x128xf32> -> vector<16x128xf32>
    %188 = vector.shape_cast %1 : vector<16x16xf32> to vector<16x16x1xf32>
    %cst_68 = arith.constant 0.000000e+00 : f32
    %189 = vector.broadcast %cst_68 : f32 to vector<16x16x1xf32>
    %190 = arith.cmpf ogt, %188, %189 : vector<16x16x1xf32>
    %191 = vector.shape_cast %187 : vector<16x128xf32> to vector<1x16x128xf32>
    %cst_69 = arith.constant 0x7F800000 : f32
    %192 = vector.shape_cast %190 : vector<16x16x1xi1> to vector<16x16x1xi1>
    %193 = vector.broadcast %192 : vector<16x16x1xi1> to vector<16x16x128xi1>
    %194 = vector.shape_cast %191 : vector<1x16x128xf32> to vector<1x16x128xf32>
    %195 = vector.broadcast %194 : vector<1x16x128xf32> to vector<16x16x128xf32>
    %196 = vector.broadcast %cst_69 : f32 to vector<16x16x128xf32>
    %197 = arith.select %193, %195, %196 : vector<16x16x128xi1>, vector<16x16x128xf32>
    %cst_70 = arith.constant dense<0x7F800000> : vector<16x128xf32>
    %198 = vector.multi_reduction <minimumf>, %197, %cst_70 [1] : vector<16x16x128xf32> to vector<16x128xf32>
    %cst_71 = arith.constant 0.000000e+00 : f32
    %199 = vector.shape_cast %8 : vector<16x1xi1> to vector<16x1xi1>
    %200 = vector.broadcast %199 : vector<16x1xi1> to vector<16x128xi1>
    %201 = vector.broadcast %cst_71 : f32 to vector<16x128xf32>
    %202 = arith.select %200, %198, %201 : vector<16x128xi1>, vector<16x128xf32>
    %203 = arith.truncf %202 : vector<16x128xf32> to vector<16x128xbf16>
    %cst_72 = arith.constant dense<0.000000e+00> : vector<16x384xf32>
    %204 = tpu.matmul %203, %9, %cst_72 {dimension_numbers = #tpu.dot_dimension_numbers<[1], [0], [0], [1], [0, 0, 1, 1], [], []>} : vector<16x128xbf16>, vector<128x384xbf16>, vector<16x384xf32> -> vector<16x384xf32>
    %205 = vector.broadcast %11 : vector<1x384xf32> to vector<16x384xf32>
    %206 = arith.addf %204, %205 : vector<16x384xf32>
    %207 = arith.truncf %183 : vector<16x128xf32> to vector<16x128xbf16>
    %cst_73 = arith.constant dense<0.000000e+00> : vector<16x384xf32>
    %208 = tpu.matmul %207, %10, %cst_73 {dimension_numbers = #tpu.dot_dimension_numbers<[1], [0], [0], [1], [0, 0, 1, 1], [], []>} : vector<16x128xbf16>, vector<128x384xbf16>, vector<16x384xf32> -> vector<16x384xf32>
    %209 = vector.broadcast %12 : vector<1x384xf32> to vector<16x384xf32>
    %210 = arith.addf %208, %209 : vector<16x384xf32>
    %211 = vector.extract_strided_slice %206 {offsets = [0, 0], sizes = [16, 128], strides = [1, 1]} : vector<16x384xf32> to vector<16x128xf32>
    %212 = vector.extract_strided_slice %210 {offsets = [0, 0], sizes = [16, 128], strides = [1, 1]} : vector<16x384xf32> to vector<16x128xf32>
    %213 = arith.addf %211, %212 : vector<16x128xf32>
    %cst_74 = arith.constant 0.000000e+00 : f32
    %214 = vector.broadcast %cst_74 : f32 to vector<16x128xf32>
    %215 = arith.subf %214, %213 : vector<16x128xf32>
    %216 = math.exp %215 : vector<16x128xf32>
    %cst_75 = arith.constant 1.000000e+00 : f32
    %217 = vector.broadcast %cst_75 : f32 to vector<16x128xf32>
    %218 = arith.addf %217, %216 : vector<16x128xf32>
    %cst_76 = arith.constant 1.000000e+00 : f32
    %219 = vector.broadcast %cst_76 : f32 to vector<16x128xf32>
    %220 = arith.divf %219, %218 : vector<16x128xf32>
    %221 = vector.extract_strided_slice %206 {offsets = [0, 128], sizes = [16, 128], strides = [1, 1]} : vector<16x384xf32> to vector<16x128xf32>
    %222 = vector.extract_strided_slice %210 {offsets = [0, 128], sizes = [16, 128], strides = [1, 1]} : vector<16x384xf32> to vector<16x128xf32>
    %223 = arith.addf %221, %222 : vector<16x128xf32>
    %cst_77 = arith.constant 0.000000e+00 : f32
    %224 = vector.broadcast %cst_77 : f32 to vector<16x128xf32>
    %225 = arith.subf %224, %223 : vector<16x128xf32>
    %226 = math.exp %225 : vector<16x128xf32>
    %cst_78 = arith.constant 1.000000e+00 : f32
    %227 = vector.broadcast %cst_78 : f32 to vector<16x128xf32>
    %228 = arith.addf %227, %226 : vector<16x128xf32>
    %cst_79 = arith.constant 1.000000e+00 : f32
    %229 = vector.broadcast %cst_79 : f32 to vector<16x128xf32>
    %230 = arith.divf %229, %228 : vector<16x128xf32>
    %231 = vector.extract_strided_slice %206 {offsets = [0, 256], sizes = [16, 128], strides = [1, 1]} : vector<16x384xf32> to vector<16x128xf32>
    %232 = vector.extract_strided_slice %210 {offsets = [0, 256], sizes = [16, 128], strides = [1, 1]} : vector<16x384xf32> to vector<16x128xf32>
    %233 = arith.mulf %220, %232 : vector<16x128xf32>
    %234 = arith.addf %231, %233 : vector<16x128xf32>
    %235 = math.tanh %234 : vector<16x128xf32>
    %cst_80 = arith.constant 1.000000e+00 : f32
    %236 = vector.broadcast %cst_80 : f32 to vector<16x128xf32>
    %237 = arith.subf %236, %230 : vector<16x128xf32>
    %238 = arith.mulf %237, %235 : vector<16x128xf32>
    %239 = arith.mulf %230, %183 : vector<16x128xf32>
    %240 = arith.addf %238, %239 : vector<16x128xf32>
    %cst_81 = arith.constant 0.000000e+00 : f32
    %241 = vector.broadcast %cst_81 : f32 to vector<16x128xf32>
    %242 = arith.maximumf %240, %241 : vector<16x128xf32>
    %243 = arith.truncf %1 : vector<16x16xf32> to vector<16x16xbf16>
    %244 = arith.truncf %242 : vector<16x128xf32> to vector<16x128xbf16>
    %cst_82 = arith.constant dense<0.000000e+00> : vector<16x128xf32>
    %245 = tpu.matmul %243, %244, %cst_82 {dimension_numbers = #tpu.dot_dimension_numbers<[1], [0], [0], [1], [0, 0, 1, 1], [], []>} : vector<16x16xbf16>, vector<16x128xbf16>, vector<16x128xf32> -> vector<16x128xf32>
    %c0_83 = arith.constant 0 : index
    %c0_84 = arith.constant 0 : index
    %246 = vector.load %arg9[%c0_83, %c0_84] : memref<128x128xbf16, #tpu.memory_space<vmem>>, vector<128x128xbf16>
    %247 = arith.truncf %245 : vector<16x128xf32> to vector<16x128xbf16>
    %cst_85 = arith.constant dense<0.000000e+00> : vector<16x128xf32>
    %248 = tpu.matmul %247, %246, %cst_85 {dimension_numbers = #tpu.dot_dimension_numbers<[1], [0], [0], [1], [0, 0, 1, 1], [], []>} : vector<16x128xbf16>, vector<128x128xbf16>, vector<16x128xf32> -> vector<16x128xf32>
    %c0_86 = arith.constant 0 : index
    %c0_87 = arith.constant 0 : index
    %249 = vector.load %arg10[%c0_86, %c0_87] : memref<1x128xf32, #tpu.memory_space<vmem>>, vector<1x128xf32>
    %250 = vector.broadcast %249 : vector<1x128xf32> to vector<16x128xf32>
    %251 = arith.addf %248, %250 : vector<16x128xf32>
    %c0_88 = arith.constant 0 : index
    %c0_89 = arith.constant 0 : index
    %252 = vector.load %arg11[%c0_88, %c0_89] : memref<128x128xbf16, #tpu.memory_space<vmem>>, vector<128x128xbf16>
    %253 = arith.truncf %242 : vector<16x128xf32> to vector<16x128xbf16>
    %cst_90 = arith.constant dense<0.000000e+00> : vector<16x128xf32>
    %254 = tpu.matmul %253, %252, %cst_90 {dimension_numbers = #tpu.dot_dimension_numbers<[1], [0], [0], [1], [0, 0, 1, 1], [], []>} : vector<16x128xbf16>, vector<128x128xbf16>, vector<16x128xf32> -> vector<16x128xf32>
    %255 = arith.addf %251, %254 : vector<16x128xf32>
    %cst_91 = arith.constant 0.000000e+00 : f32
    %256 = vector.broadcast %cst_91 : f32 to vector<16x128xf32>
    %257 = arith.cmpf ogt, %255, %256 : vector<16x128xf32>
    %cst_92 = arith.constant 0.000000e+00 : f32
    %258 = vector.broadcast %cst_92 : f32 to vector<16x128xf32>
    %259 = arith.minimumf %255, %258 : vector<16x128xf32>
    %260 = math.exp %259 : vector<16x128xf32>
    %cst_93 = arith.constant 1.000000e+00 : f32
    %261 = vector.broadcast %cst_93 : f32 to vector<16x128xf32>
    %262 = arith.subf %260, %261 : vector<16x128xf32>
    %263 = arith.select %257, %255, %262 : vector<16x128xi1>, vector<16x128xf32>
    %c0_94 = arith.constant 0 : index
    %c0_95 = arith.constant 0 : index
    %264 = vector.load %arg12[%c0_94, %c0_95] : memref<1x128xf32, #tpu.memory_space<vmem>>, vector<1x128xf32>
    %265 = vector.broadcast %264 : vector<1x128xf32> to vector<16x128xf32>
    %266 = arith.mulf %263, %265 : vector<16x128xf32>
    %c0_96 = arith.constant 0 : index
    %c0_97 = arith.constant 0 : index
    %267 = vector.load %arg13[%c0_96, %c0_97] : memref<1x128xf32, #tpu.memory_space<vmem>>, vector<1x128xf32>
    %268 = vector.broadcast %267 : vector<1x128xf32> to vector<16x128xf32>
    %269 = arith.addf %266, %268 : vector<16x128xf32>
    %c0_98 = arith.constant 0 : index
    %c0_99 = arith.constant 0 : index
    %270 = vector.load %arg15[%c0_98, %c0_99] : memref<128x384xbf16, #tpu.memory_space<vmem>>, vector<128x384xbf16>
    %c0_100 = arith.constant 0 : index
    %c0_101 = arith.constant 0 : index
    %271 = vector.load %arg16[%c0_100, %c0_101] : memref<128x384xbf16, #tpu.memory_space<vmem>>, vector<128x384xbf16>
    %c0_102 = arith.constant 0 : index
    %c0_103 = arith.constant 0 : index
    %272 = vector.load %arg17[%c0_102, %c0_103] : memref<1x384xf32, #tpu.memory_space<vmem>>, vector<1x384xf32>
    %c0_104 = arith.constant 0 : index
    %c0_105 = arith.constant 0 : index
    %273 = vector.load %arg18[%c0_104, %c0_105] : memref<1x384xf32, #tpu.memory_space<vmem>>, vector<1x384xf32>
    %c0_106 = arith.constant 0 : index
    %c0_107 = arith.constant 0 : index
    %c0_108 = arith.constant 0 : index
    %274 = vector.load %arg14[%c0_106, %c0_107, %c0_108] : memref<5x128x128xbf16, #tpu.memory_space<vmem>>, vector<1x128x128xbf16>
    %275 = vector.shape_cast %274 : vector<1x128x128xbf16> to vector<128x128xbf16>
    %276 = arith.truncf %269 : vector<16x128xf32> to vector<16x128xbf16>
    %cst_109 = arith.constant dense<0.000000e+00> : vector<16x128xf32>
    %277 = tpu.matmul %276, %275, %cst_109 {dimension_numbers = #tpu.dot_dimension_numbers<[1], [0], [0], [1], [0, 0, 1, 1], [], []>} : vector<16x128xbf16>, vector<128x128xbf16>, vector<16x128xf32> -> vector<16x128xf32>
    %cst_110 = arith.constant 0.000000e+00 : f32
    %278 = vector.broadcast %cst_110 : f32 to vector<16x128xf32>
    %279 = arith.cmpf olt, %277, %278 : vector<16x128xf32>
    %280 = arith.extui %279 : vector<16x128xi1> to vector<16x128xi32>
    %281 = arith.sitofp %280 : vector<16x128xi32> to vector<16x128xf32>
    %cst_111 = arith.constant 0.000000e+00 : f32
    %282 = vector.broadcast %cst_111 : f32 to vector<16x128xf32>
    %283 = arith.cmpf oeq, %277, %282 : vector<16x128xf32>
    %284 = arith.extui %283 : vector<16x128xi1> to vector<16x128xi32>
    %285 = arith.sitofp %284 : vector<16x128xi32> to vector<16x128xf32>
    %cst_112 = arith.constant 0.000000e+00 : f32
    %286 = vector.broadcast %cst_112 : f32 to vector<16x128xf32>
    %287 = arith.cmpf oeq, %277, %286 : vector<16x128xf32>
    %288 = math.absf %277 : vector<16x128xf32>
    %cst_113 = arith.constant 1.000000e+00 : f32
    %289 = vector.broadcast %cst_113 : f32 to vector<16x128xf32>
    %290 = arith.select %287, %289, %288 : vector<16x128xi1>, vector<16x128xf32>
    %291 = math.log %290 : vector<16x128xf32>
    %292 = arith.truncf %1 : vector<16x16xf32> to vector<16x16xbf16>
    %293 = arith.truncf %281 : vector<16x128xf32> to vector<16x128xbf16>
    %cst_114 = arith.constant dense<0.000000e+00> : vector<16x128xf32>
    %294 = tpu.matmul %292, %293, %cst_114 {dimension_numbers = #tpu.dot_dimension_numbers<[1], [0], [0], [1], [0, 0, 1, 1], [], []>} : vector<16x16xbf16>, vector<16x128xbf16>, vector<16x128xf32> -> vector<16x128xf32>
    %295 = arith.truncf %1 : vector<16x16xf32> to vector<16x16xbf16>
    %296 = arith.truncf %285 : vector<16x128xf32> to vector<16x128xbf16>
    %cst_115 = arith.constant dense<0.000000e+00> : vector<16x128xf32>
    %297 = tpu.matmul %295, %296, %cst_115 {dimension_numbers = #tpu.dot_dimension_numbers<[1], [0], [0], [1], [0, 0, 1, 1], [], []>} : vector<16x16xbf16>, vector<16x128xbf16>, vector<16x128xf32> -> vector<16x128xf32>
    %298 = arith.truncf %1 : vector<16x16xf32> to vector<16x16xbf16>
    %299 = arith.truncf %291 : vector<16x128xf32> to vector<16x128xbf16>
    %cst_116 = arith.constant dense<0.000000e+00> : vector<16x128xf32>
    %300 = tpu.matmul %298, %299, %cst_116 {dimension_numbers = #tpu.dot_dimension_numbers<[1], [0], [0], [1], [0, 0, 1, 1], [], []>} : vector<16x16xbf16>, vector<16x128xbf16>, vector<16x128xf32> -> vector<16x128xf32>
    %cst_117 = arith.constant 5.000000e-01 : f32
    %301 = vector.broadcast %cst_117 : f32 to vector<16x128xf32>
    %302 = arith.mulf %294, %301 : vector<16x128xf32>
    %303 = math.floor %302 : vector<16x128xf32>
    %cst_118 = arith.constant 2.000000e+00 : f32
    %304 = vector.broadcast %cst_118 : f32 to vector<16x128xf32>
    %305 = arith.mulf %304, %303 : vector<16x128xf32>
    %306 = arith.subf %294, %305 : vector<16x128xf32>
    %cst_119 = arith.constant 2.000000e+00 : f32
    %307 = vector.broadcast %cst_119 : f32 to vector<16x128xf32>
    %308 = arith.mulf %307, %306 : vector<16x128xf32>
    %cst_120 = arith.constant 1.000000e+00 : f32
    %309 = vector.broadcast %cst_120 : f32 to vector<16x128xf32>
    %310 = arith.subf %309, %308 : vector<16x128xf32>
    %cst_121 = arith.constant 5.000000e-01 : f32
    %311 = vector.broadcast %cst_121 : f32 to vector<16x128xf32>
    %312 = arith.cmpf ogt, %297, %311 : vector<16x128xf32>
    %313 = math.exp %300 : vector<16x128xf32>
    %314 = arith.mulf %310, %313 : vector<16x128xf32>
    %cst_122 = arith.constant 0.000000e+00 : f32
    %315 = vector.broadcast %cst_122 : f32 to vector<16x128xf32>
    %316 = arith.select %312, %315, %314 : vector<16x128xi1>, vector<16x128xf32>
    %317 = arith.truncf %316 : vector<16x128xf32> to vector<16x128xbf16>
    %cst_123 = arith.constant dense<0.000000e+00> : vector<16x384xf32>
    %318 = tpu.matmul %317, %270, %cst_123 {dimension_numbers = #tpu.dot_dimension_numbers<[1], [0], [0], [1], [0, 0, 1, 1], [], []>} : vector<16x128xbf16>, vector<128x384xbf16>, vector<16x384xf32> -> vector<16x384xf32>
    %319 = vector.broadcast %272 : vector<1x384xf32> to vector<16x384xf32>
    %320 = arith.addf %318, %319 : vector<16x384xf32>
    %321 = arith.truncf %269 : vector<16x128xf32> to vector<16x128xbf16>
    %cst_124 = arith.constant dense<0.000000e+00> : vector<16x384xf32>
    %322 = tpu.matmul %321, %271, %cst_124 {dimension_numbers = #tpu.dot_dimension_numbers<[1], [0], [0], [1], [0, 0, 1, 1], [], []>} : vector<16x128xbf16>, vector<128x384xbf16>, vector<16x384xf32> -> vector<16x384xf32>
    %323 = vector.broadcast %273 : vector<1x384xf32> to vector<16x384xf32>
    %324 = arith.addf %322, %323 : vector<16x384xf32>
    %325 = vector.extract_strided_slice %320 {offsets = [0, 0], sizes = [16, 128], strides = [1, 1]} : vector<16x384xf32> to vector<16x128xf32>
    %326 = vector.extract_strided_slice %324 {offsets = [0, 0], sizes = [16, 128], strides = [1, 1]} : vector<16x384xf32> to vector<16x128xf32>
    %327 = arith.addf %325, %326 : vector<16x128xf32>
    %cst_125 = arith.constant 0.000000e+00 : f32
    %328 = vector.broadcast %cst_125 : f32 to vector<16x128xf32>
    %329 = arith.subf %328, %327 : vector<16x128xf32>
    %330 = math.exp %329 : vector<16x128xf32>
    %cst_126 = arith.constant 1.000000e+00 : f32
    %331 = vector.broadcast %cst_126 : f32 to vector<16x128xf32>
    %332 = arith.addf %331, %330 : vector<16x128xf32>
    %cst_127 = arith.constant 1.000000e+00 : f32
    %333 = vector.broadcast %cst_127 : f32 to vector<16x128xf32>
    %334 = arith.divf %333, %332 : vector<16x128xf32>
    %335 = vector.extract_strided_slice %320 {offsets = [0, 128], sizes = [16, 128], strides = [1, 1]} : vector<16x384xf32> to vector<16x128xf32>
    %336 = vector.extract_strided_slice %324 {offsets = [0, 128], sizes = [16, 128], strides = [1, 1]} : vector<16x384xf32> to vector<16x128xf32>
    %337 = arith.addf %335, %336 : vector<16x128xf32>
    %cst_128 = arith.constant 0.000000e+00 : f32
    %338 = vector.broadcast %cst_128 : f32 to vector<16x128xf32>
    %339 = arith.subf %338, %337 : vector<16x128xf32>
    %340 = math.exp %339 : vector<16x128xf32>
    %cst_129 = arith.constant 1.000000e+00 : f32
    %341 = vector.broadcast %cst_129 : f32 to vector<16x128xf32>
    %342 = arith.addf %341, %340 : vector<16x128xf32>
    %cst_130 = arith.constant 1.000000e+00 : f32
    %343 = vector.broadcast %cst_130 : f32 to vector<16x128xf32>
    %344 = arith.divf %343, %342 : vector<16x128xf32>
    %345 = vector.extract_strided_slice %320 {offsets = [0, 256], sizes = [16, 128], strides = [1, 1]} : vector<16x384xf32> to vector<16x128xf32>
    %346 = vector.extract_strided_slice %324 {offsets = [0, 256], sizes = [16, 128], strides = [1, 1]} : vector<16x384xf32> to vector<16x128xf32>
    %347 = arith.mulf %334, %346 : vector<16x128xf32>
    %348 = arith.addf %345, %347 : vector<16x128xf32>
    %349 = math.tanh %348 : vector<16x128xf32>
    %cst_131 = arith.constant 1.000000e+00 : f32
    %350 = vector.broadcast %cst_131 : f32 to vector<16x128xf32>
    %351 = arith.subf %350, %344 : vector<16x128xf32>
    %352 = arith.mulf %351, %349 : vector<16x128xf32>
    %353 = arith.mulf %344, %269 : vector<16x128xf32>
    %354 = arith.addf %352, %353 : vector<16x128xf32>
    %c1_132 = arith.constant 1 : index
    %c0_133 = arith.constant 0 : index
    %c0_134 = arith.constant 0 : index
    %355 = vector.load %arg14[%c1_132, %c0_133, %c0_134] : memref<5x128x128xbf16, #tpu.memory_space<vmem>>, vector<1x128x128xbf16>
    %356 = vector.shape_cast %355 : vector<1x128x128xbf16> to vector<128x128xbf16>
    %357 = arith.truncf %354 : vector<16x128xf32> to vector<16x128xbf16>
    %cst_135 = arith.constant dense<0.000000e+00> : vector<16x128xf32>
    %358 = tpu.matmul %357, %356, %cst_135 {dimension_numbers = #tpu.dot_dimension_numbers<[1], [0], [0], [1], [0, 0, 1, 1], [], []>} : vector<16x128xbf16>, vector<128x128xbf16>, vector<16x128xf32> -> vector<16x128xf32>
    %cst_136 = arith.constant 0.000000e+00 : f32
    %359 = vector.broadcast %cst_136 : f32 to vector<16x128xf32>
    %360 = arith.cmpf olt, %358, %359 : vector<16x128xf32>
    %361 = arith.extui %360 : vector<16x128xi1> to vector<16x128xi32>
    %362 = arith.sitofp %361 : vector<16x128xi32> to vector<16x128xf32>
    %cst_137 = arith.constant 0.000000e+00 : f32
    %363 = vector.broadcast %cst_137 : f32 to vector<16x128xf32>
    %364 = arith.cmpf oeq, %358, %363 : vector<16x128xf32>
    %365 = arith.extui %364 : vector<16x128xi1> to vector<16x128xi32>
    %366 = arith.sitofp %365 : vector<16x128xi32> to vector<16x128xf32>
    %cst_138 = arith.constant 0.000000e+00 : f32
    %367 = vector.broadcast %cst_138 : f32 to vector<16x128xf32>
    %368 = arith.cmpf oeq, %358, %367 : vector<16x128xf32>
    %369 = math.absf %358 : vector<16x128xf32>
    %cst_139 = arith.constant 1.000000e+00 : f32
    %370 = vector.broadcast %cst_139 : f32 to vector<16x128xf32>
    %371 = arith.select %368, %370, %369 : vector<16x128xi1>, vector<16x128xf32>
    %372 = math.log %371 : vector<16x128xf32>
    %373 = arith.truncf %1 : vector<16x16xf32> to vector<16x16xbf16>
    %374 = arith.truncf %362 : vector<16x128xf32> to vector<16x128xbf16>
    %cst_140 = arith.constant dense<0.000000e+00> : vector<16x128xf32>
    %375 = tpu.matmul %373, %374, %cst_140 {dimension_numbers = #tpu.dot_dimension_numbers<[1], [0], [0], [1], [0, 0, 1, 1], [], []>} : vector<16x16xbf16>, vector<16x128xbf16>, vector<16x128xf32> -> vector<16x128xf32>
    %376 = arith.truncf %1 : vector<16x16xf32> to vector<16x16xbf16>
    %377 = arith.truncf %366 : vector<16x128xf32> to vector<16x128xbf16>
    %cst_141 = arith.constant dense<0.000000e+00> : vector<16x128xf32>
    %378 = tpu.matmul %376, %377, %cst_141 {dimension_numbers = #tpu.dot_dimension_numbers<[1], [0], [0], [1], [0, 0, 1, 1], [], []>} : vector<16x16xbf16>, vector<16x128xbf16>, vector<16x128xf32> -> vector<16x128xf32>
    %379 = arith.truncf %1 : vector<16x16xf32> to vector<16x16xbf16>
    %380 = arith.truncf %372 : vector<16x128xf32> to vector<16x128xbf16>
    %cst_142 = arith.constant dense<0.000000e+00> : vector<16x128xf32>
    %381 = tpu.matmul %379, %380, %cst_142 {dimension_numbers = #tpu.dot_dimension_numbers<[1], [0], [0], [1], [0, 0, 1, 1], [], []>} : vector<16x16xbf16>, vector<16x128xbf16>, vector<16x128xf32> -> vector<16x128xf32>
    %cst_143 = arith.constant 5.000000e-01 : f32
    %382 = vector.broadcast %cst_143 : f32 to vector<16x128xf32>
    %383 = arith.mulf %375, %382 : vector<16x128xf32>
    %384 = math.floor %383 : vector<16x128xf32>
    %cst_144 = arith.constant 2.000000e+00 : f32
    %385 = vector.broadcast %cst_144 : f32 to vector<16x128xf32>
    %386 = arith.mulf %385, %384 : vector<16x128xf32>
    %387 = arith.subf %375, %386 : vector<16x128xf32>
    %cst_145 = arith.constant 2.000000e+00 : f32
    %388 = vector.broadcast %cst_145 : f32 to vector<16x128xf32>
    %389 = arith.mulf %388, %387 : vector<16x128xf32>
    %cst_146 = arith.constant 1.000000e+00 : f32
    %390 = vector.broadcast %cst_146 : f32 to vector<16x128xf32>
    %391 = arith.subf %390, %389 : vector<16x128xf32>
    %cst_147 = arith.constant 5.000000e-01 : f32
    %392 = vector.broadcast %cst_147 : f32 to vector<16x128xf32>
    %393 = arith.cmpf ogt, %378, %392 : vector<16x128xf32>
    %394 = math.exp %381 : vector<16x128xf32>
    %395 = arith.mulf %391, %394 : vector<16x128xf32>
    %cst_148 = arith.constant 0.000000e+00 : f32
    %396 = vector.broadcast %cst_148 : f32 to vector<16x128xf32>
    %397 = arith.select %393, %396, %395 : vector<16x128xi1>, vector<16x128xf32>
    %398 = arith.truncf %397 : vector<16x128xf32> to vector<16x128xbf16>
    %cst_149 = arith.constant dense<0.000000e+00> : vector<16x384xf32>
    %399 = tpu.matmul %398, %270, %cst_149 {dimension_numbers = #tpu.dot_dimension_numbers<[1], [0], [0], [1], [0, 0, 1, 1], [], []>} : vector<16x128xbf16>, vector<128x384xbf16>, vector<16x384xf32> -> vector<16x384xf32>
    %400 = vector.broadcast %272 : vector<1x384xf32> to vector<16x384xf32>
    %401 = arith.addf %399, %400 : vector<16x384xf32>
    %402 = arith.truncf %354 : vector<16x128xf32> to vector<16x128xbf16>
    %cst_150 = arith.constant dense<0.000000e+00> : vector<16x384xf32>
    %403 = tpu.matmul %402, %271, %cst_150 {dimension_numbers = #tpu.dot_dimension_numbers<[1], [0], [0], [1], [0, 0, 1, 1], [], []>} : vector<16x128xbf16>, vector<128x384xbf16>, vector<16x384xf32> -> vector<16x384xf32>
    %404 = vector.broadcast %273 : vector<1x384xf32> to vector<16x384xf32>
    %405 = arith.addf %403, %404 : vector<16x384xf32>
    %406 = vector.extract_strided_slice %401 {offsets = [0, 0], sizes = [16, 128], strides = [1, 1]} : vector<16x384xf32> to vector<16x128xf32>
    %407 = vector.extract_strided_slice %405 {offsets = [0, 0], sizes = [16, 128], strides = [1, 1]} : vector<16x384xf32> to vector<16x128xf32>
    %408 = arith.addf %406, %407 : vector<16x128xf32>
    %cst_151 = arith.constant 0.000000e+00 : f32
    %409 = vector.broadcast %cst_151 : f32 to vector<16x128xf32>
    %410 = arith.subf %409, %408 : vector<16x128xf32>
    %411 = math.exp %410 : vector<16x128xf32>
    %cst_152 = arith.constant 1.000000e+00 : f32
    %412 = vector.broadcast %cst_152 : f32 to vector<16x128xf32>
    %413 = arith.addf %412, %411 : vector<16x128xf32>
    %cst_153 = arith.constant 1.000000e+00 : f32
    %414 = vector.broadcast %cst_153 : f32 to vector<16x128xf32>
    %415 = arith.divf %414, %413 : vector<16x128xf32>
    %416 = vector.extract_strided_slice %401 {offsets = [0, 128], sizes = [16, 128], strides = [1, 1]} : vector<16x384xf32> to vector<16x128xf32>
    %417 = vector.extract_strided_slice %405 {offsets = [0, 128], sizes = [16, 128], strides = [1, 1]} : vector<16x384xf32> to vector<16x128xf32>
    %418 = arith.addf %416, %417 : vector<16x128xf32>
    %cst_154 = arith.constant 0.000000e+00 : f32
    %419 = vector.broadcast %cst_154 : f32 to vector<16x128xf32>
    %420 = arith.subf %419, %418 : vector<16x128xf32>
    %421 = math.exp %420 : vector<16x128xf32>
    %cst_155 = arith.constant 1.000000e+00 : f32
    %422 = vector.broadcast %cst_155 : f32 to vector<16x128xf32>
    %423 = arith.addf %422, %421 : vector<16x128xf32>
    %cst_156 = arith.constant 1.000000e+00 : f32
    %424 = vector.broadcast %cst_156 : f32 to vector<16x128xf32>
    %425 = arith.divf %424, %423 : vector<16x128xf32>
    %426 = vector.extract_strided_slice %401 {offsets = [0, 256], sizes = [16, 128], strides = [1, 1]} : vector<16x384xf32> to vector<16x128xf32>
    %427 = vector.extract_strided_slice %405 {offsets = [0, 256], sizes = [16, 128], strides = [1, 1]} : vector<16x384xf32> to vector<16x128xf32>
    %428 = arith.mulf %415, %427 : vector<16x128xf32>
    %429 = arith.addf %426, %428 : vector<16x128xf32>
    %430 = math.tanh %429 : vector<16x128xf32>
    %cst_157 = arith.constant 1.000000e+00 : f32
    %431 = vector.broadcast %cst_157 : f32 to vector<16x128xf32>
    %432 = arith.subf %431, %425 : vector<16x128xf32>
    %433 = arith.mulf %432, %430 : vector<16x128xf32>
    %434 = arith.mulf %425, %354 : vector<16x128xf32>
    %435 = arith.addf %433, %434 : vector<16x128xf32>
    %c2_158 = arith.constant 2 : index
    %c0_159 = arith.constant 0 : index
    %c0_160 = arith.constant 0 : index
    %436 = vector.load %arg14[%c2_158, %c0_159, %c0_160] : memref<5x128x128xbf16, #tpu.memory_space<vmem>>, vector<1x128x128xbf16>
    %437 = vector.shape_cast %436 : vector<1x128x128xbf16> to vector<128x128xbf16>
    %438 = arith.truncf %435 : vector<16x128xf32> to vector<16x128xbf16>
    %cst_161 = arith.constant dense<0.000000e+00> : vector<16x128xf32>
    %439 = tpu.matmul %438, %437, %cst_161 {dimension_numbers = #tpu.dot_dimension_numbers<[1], [0], [0], [1], [0, 0, 1, 1], [], []>} : vector<16x128xbf16>, vector<128x128xbf16>, vector<16x128xf32> -> vector<16x128xf32>
    %cst_162 = arith.constant 0.000000e+00 : f32
    %440 = vector.broadcast %cst_162 : f32 to vector<16x128xf32>
    %441 = arith.cmpf olt, %439, %440 : vector<16x128xf32>
    %442 = arith.extui %441 : vector<16x128xi1> to vector<16x128xi32>
    %443 = arith.sitofp %442 : vector<16x128xi32> to vector<16x128xf32>
    %cst_163 = arith.constant 0.000000e+00 : f32
    %444 = vector.broadcast %cst_163 : f32 to vector<16x128xf32>
    %445 = arith.cmpf oeq, %439, %444 : vector<16x128xf32>
    %446 = arith.extui %445 : vector<16x128xi1> to vector<16x128xi32>
    %447 = arith.sitofp %446 : vector<16x128xi32> to vector<16x128xf32>
    %cst_164 = arith.constant 0.000000e+00 : f32
    %448 = vector.broadcast %cst_164 : f32 to vector<16x128xf32>
    %449 = arith.cmpf oeq, %439, %448 : vector<16x128xf32>
    %450 = math.absf %439 : vector<16x128xf32>
    %cst_165 = arith.constant 1.000000e+00 : f32
    %451 = vector.broadcast %cst_165 : f32 to vector<16x128xf32>
    %452 = arith.select %449, %451, %450 : vector<16x128xi1>, vector<16x128xf32>
    %453 = math.log %452 : vector<16x128xf32>
    %454 = arith.truncf %1 : vector<16x16xf32> to vector<16x16xbf16>
    %455 = arith.truncf %443 : vector<16x128xf32> to vector<16x128xbf16>
    %cst_166 = arith.constant dense<0.000000e+00> : vector<16x128xf32>
    %456 = tpu.matmul %454, %455, %cst_166 {dimension_numbers = #tpu.dot_dimension_numbers<[1], [0], [0], [1], [0, 0, 1, 1], [], []>} : vector<16x16xbf16>, vector<16x128xbf16>, vector<16x128xf32> -> vector<16x128xf32>
    %457 = arith.truncf %1 : vector<16x16xf32> to vector<16x16xbf16>
    %458 = arith.truncf %447 : vector<16x128xf32> to vector<16x128xbf16>
    %cst_167 = arith.constant dense<0.000000e+00> : vector<16x128xf32>
    %459 = tpu.matmul %457, %458, %cst_167 {dimension_numbers = #tpu.dot_dimension_numbers<[1], [0], [0], [1], [0, 0, 1, 1], [], []>} : vector<16x16xbf16>, vector<16x128xbf16>, vector<16x128xf32> -> vector<16x128xf32>
    %460 = arith.truncf %1 : vector<16x16xf32> to vector<16x16xbf16>
    %461 = arith.truncf %453 : vector<16x128xf32> to vector<16x128xbf16>
    %cst_168 = arith.constant dense<0.000000e+00> : vector<16x128xf32>
    %462 = tpu.matmul %460, %461, %cst_168 {dimension_numbers = #tpu.dot_dimension_numbers<[1], [0], [0], [1], [0, 0, 1, 1], [], []>} : vector<16x16xbf16>, vector<16x128xbf16>, vector<16x128xf32> -> vector<16x128xf32>
    %cst_169 = arith.constant 5.000000e-01 : f32
    %463 = vector.broadcast %cst_169 : f32 to vector<16x128xf32>
    %464 = arith.mulf %456, %463 : vector<16x128xf32>
    %465 = math.floor %464 : vector<16x128xf32>
    %cst_170 = arith.constant 2.000000e+00 : f32
    %466 = vector.broadcast %cst_170 : f32 to vector<16x128xf32>
    %467 = arith.mulf %466, %465 : vector<16x128xf32>
    %468 = arith.subf %456, %467 : vector<16x128xf32>
    %cst_171 = arith.constant 2.000000e+00 : f32
    %469 = vector.broadcast %cst_171 : f32 to vector<16x128xf32>
    %470 = arith.mulf %469, %468 : vector<16x128xf32>
    %cst_172 = arith.constant 1.000000e+00 : f32
    %471 = vector.broadcast %cst_172 : f32 to vector<16x128xf32>
    %472 = arith.subf %471, %470 : vector<16x128xf32>
    %cst_173 = arith.constant 5.000000e-01 : f32
    %473 = vector.broadcast %cst_173 : f32 to vector<16x128xf32>
    %474 = arith.cmpf ogt, %459, %473 : vector<16x128xf32>
    %475 = math.exp %462 : vector<16x128xf32>
    %476 = arith.mulf %472, %475 : vector<16x128xf32>
    %cst_174 = arith.constant 0.000000e+00 : f32
    %477 = vector.broadcast %cst_174 : f32 to vector<16x128xf32>
    %478 = arith.select %474, %477, %476 : vector<16x128xi1>, vector<16x128xf32>
    %479 = arith.truncf %478 : vector<16x128xf32> to vector<16x128xbf16>
    %cst_175 = arith.constant dense<0.000000e+00> : vector<16x384xf32>
    %480 = tpu.matmul %479, %270, %cst_175 {dimension_numbers = #tpu.dot_dimension_numbers<[1], [0], [0], [1], [0, 0, 1, 1], [], []>} : vector<16x128xbf16>, vector<128x384xbf16>, vector<16x384xf32> -> vector<16x384xf32>
    %481 = vector.broadcast %272 : vector<1x384xf32> to vector<16x384xf32>
    %482 = arith.addf %480, %481 : vector<16x384xf32>
    %483 = arith.truncf %435 : vector<16x128xf32> to vector<16x128xbf16>
    %cst_176 = arith.constant dense<0.000000e+00> : vector<16x384xf32>
    %484 = tpu.matmul %483, %271, %cst_176 {dimension_numbers = #tpu.dot_dimension_numbers<[1], [0], [0], [1], [0, 0, 1, 1], [], []>} : vector<16x128xbf16>, vector<128x384xbf16>, vector<16x384xf32> -> vector<16x384xf32>
    %485 = vector.broadcast %273 : vector<1x384xf32> to vector<16x384xf32>
    %486 = arith.addf %484, %485 : vector<16x384xf32>
    %487 = vector.extract_strided_slice %482 {offsets = [0, 0], sizes = [16, 128], strides = [1, 1]} : vector<16x384xf32> to vector<16x128xf32>
    %488 = vector.extract_strided_slice %486 {offsets = [0, 0], sizes = [16, 128], strides = [1, 1]} : vector<16x384xf32> to vector<16x128xf32>
    %489 = arith.addf %487, %488 : vector<16x128xf32>
    %cst_177 = arith.constant 0.000000e+00 : f32
    %490 = vector.broadcast %cst_177 : f32 to vector<16x128xf32>
    %491 = arith.subf %490, %489 : vector<16x128xf32>
    %492 = math.exp %491 : vector<16x128xf32>
    %cst_178 = arith.constant 1.000000e+00 : f32
    %493 = vector.broadcast %cst_178 : f32 to vector<16x128xf32>
    %494 = arith.addf %493, %492 : vector<16x128xf32>
    %cst_179 = arith.constant 1.000000e+00 : f32
    %495 = vector.broadcast %cst_179 : f32 to vector<16x128xf32>
    %496 = arith.divf %495, %494 : vector<16x128xf32>
    %497 = vector.extract_strided_slice %482 {offsets = [0, 128], sizes = [16, 128], strides = [1, 1]} : vector<16x384xf32> to vector<16x128xf32>
    %498 = vector.extract_strided_slice %486 {offsets = [0, 128], sizes = [16, 128], strides = [1, 1]} : vector<16x384xf32> to vector<16x128xf32>
    %499 = arith.addf %497, %498 : vector<16x128xf32>
    %cst_180 = arith.constant 0.000000e+00 : f32
    %500 = vector.broadcast %cst_180 : f32 to vector<16x128xf32>
    %501 = arith.subf %500, %499 : vector<16x128xf32>
    %502 = math.exp %501 : vector<16x128xf32>
    %cst_181 = arith.constant 1.000000e+00 : f32
    %503 = vector.broadcast %cst_181 : f32 to vector<16x128xf32>
    %504 = arith.addf %503, %502 : vector<16x128xf32>
    %cst_182 = arith.constant 1.000000e+00 : f32
    %505 = vector.broadcast %cst_182 : f32 to vector<16x128xf32>
    %506 = arith.divf %505, %504 : vector<16x128xf32>
    %507 = vector.extract_strided_slice %482 {offsets = [0, 256], sizes = [16, 128], strides = [1, 1]} : vector<16x384xf32> to vector<16x128xf32>
    %508 = vector.extract_strided_slice %486 {offsets = [0, 256], sizes = [16, 128], strides = [1, 1]} : vector<16x384xf32> to vector<16x128xf32>
    %509 = arith.mulf %496, %508 : vector<16x128xf32>
    %510 = arith.addf %507, %509 : vector<16x128xf32>
    %511 = math.tanh %510 : vector<16x128xf32>
    %cst_183 = arith.constant 1.000000e+00 : f32
    %512 = vector.broadcast %cst_183 : f32 to vector<16x128xf32>
    %513 = arith.subf %512, %506 : vector<16x128xf32>
    %514 = arith.mulf %513, %511 : vector<16x128xf32>
    %515 = arith.mulf %506, %435 : vector<16x128xf32>
    %516 = arith.addf %514, %515 : vector<16x128xf32>
    %c3_184 = arith.constant 3 : index
    %c0_185 = arith.constant 0 : index
    %c0_186 = arith.constant 0 : index
    %517 = vector.load %arg14[%c3_184, %c0_185, %c0_186] : memref<5x128x128xbf16, #tpu.memory_space<vmem>>, vector<1x128x128xbf16>
    %518 = vector.shape_cast %517 : vector<1x128x128xbf16> to vector<128x128xbf16>
    %519 = arith.truncf %516 : vector<16x128xf32> to vector<16x128xbf16>
    %cst_187 = arith.constant dense<0.000000e+00> : vector<16x128xf32>
    %520 = tpu.matmul %519, %518, %cst_187 {dimension_numbers = #tpu.dot_dimension_numbers<[1], [0], [0], [1], [0, 0, 1, 1], [], []>} : vector<16x128xbf16>, vector<128x128xbf16>, vector<16x128xf32> -> vector<16x128xf32>
    %cst_188 = arith.constant 0.000000e+00 : f32
    %521 = vector.broadcast %cst_188 : f32 to vector<16x128xf32>
    %522 = arith.cmpf olt, %520, %521 : vector<16x128xf32>
    %523 = arith.extui %522 : vector<16x128xi1> to vector<16x128xi32>
    %524 = arith.sitofp %523 : vector<16x128xi32> to vector<16x128xf32>
    %cst_189 = arith.constant 0.000000e+00 : f32
    %525 = vector.broadcast %cst_189 : f32 to vector<16x128xf32>
    %526 = arith.cmpf oeq, %520, %525 : vector<16x128xf32>
    %527 = arith.extui %526 : vector<16x128xi1> to vector<16x128xi32>
    %528 = arith.sitofp %527 : vector<16x128xi32> to vector<16x128xf32>
    %cst_190 = arith.constant 0.000000e+00 : f32
    %529 = vector.broadcast %cst_190 : f32 to vector<16x128xf32>
    %530 = arith.cmpf oeq, %520, %529 : vector<16x128xf32>
    %531 = math.absf %520 : vector<16x128xf32>
    %cst_191 = arith.constant 1.000000e+00 : f32
    %532 = vector.broadcast %cst_191 : f32 to vector<16x128xf32>
    %533 = arith.select %530, %532, %531 : vector<16x128xi1>, vector<16x128xf32>
    %534 = math.log %533 : vector<16x128xf32>
    %535 = arith.truncf %1 : vector<16x16xf32> to vector<16x16xbf16>
    %536 = arith.truncf %524 : vector<16x128xf32> to vector<16x128xbf16>
    %cst_192 = arith.constant dense<0.000000e+00> : vector<16x128xf32>
    %537 = tpu.matmul %535, %536, %cst_192 {dimension_numbers = #tpu.dot_dimension_numbers<[1], [0], [0], [1], [0, 0, 1, 1], [], []>} : vector<16x16xbf16>, vector<16x128xbf16>, vector<16x128xf32> -> vector<16x128xf32>
    %538 = arith.truncf %1 : vector<16x16xf32> to vector<16x16xbf16>
    %539 = arith.truncf %528 : vector<16x128xf32> to vector<16x128xbf16>
    %cst_193 = arith.constant dense<0.000000e+00> : vector<16x128xf32>
    %540 = tpu.matmul %538, %539, %cst_193 {dimension_numbers = #tpu.dot_dimension_numbers<[1], [0], [0], [1], [0, 0, 1, 1], [], []>} : vector<16x16xbf16>, vector<16x128xbf16>, vector<16x128xf32> -> vector<16x128xf32>
    %541 = arith.truncf %1 : vector<16x16xf32> to vector<16x16xbf16>
    %542 = arith.truncf %534 : vector<16x128xf32> to vector<16x128xbf16>
    %cst_194 = arith.constant dense<0.000000e+00> : vector<16x128xf32>
    %543 = tpu.matmul %541, %542, %cst_194 {dimension_numbers = #tpu.dot_dimension_numbers<[1], [0], [0], [1], [0, 0, 1, 1], [], []>} : vector<16x16xbf16>, vector<16x128xbf16>, vector<16x128xf32> -> vector<16x128xf32>
    %cst_195 = arith.constant 5.000000e-01 : f32
    %544 = vector.broadcast %cst_195 : f32 to vector<16x128xf32>
    %545 = arith.mulf %537, %544 : vector<16x128xf32>
    %546 = math.floor %545 : vector<16x128xf32>
    %cst_196 = arith.constant 2.000000e+00 : f32
    %547 = vector.broadcast %cst_196 : f32 to vector<16x128xf32>
    %548 = arith.mulf %547, %546 : vector<16x128xf32>
    %549 = arith.subf %537, %548 : vector<16x128xf32>
    %cst_197 = arith.constant 2.000000e+00 : f32
    %550 = vector.broadcast %cst_197 : f32 to vector<16x128xf32>
    %551 = arith.mulf %550, %549 : vector<16x128xf32>
    %cst_198 = arith.constant 1.000000e+00 : f32
    %552 = vector.broadcast %cst_198 : f32 to vector<16x128xf32>
    %553 = arith.subf %552, %551 : vector<16x128xf32>
    %cst_199 = arith.constant 5.000000e-01 : f32
    %554 = vector.broadcast %cst_199 : f32 to vector<16x128xf32>
    %555 = arith.cmpf ogt, %540, %554 : vector<16x128xf32>
    %556 = math.exp %543 : vector<16x128xf32>
    %557 = arith.mulf %553, %556 : vector<16x128xf32>
    %cst_200 = arith.constant 0.000000e+00 : f32
    %558 = vector.broadcast %cst_200 : f32 to vector<16x128xf32>
    %559 = arith.select %555, %558, %557 : vector<16x128xi1>, vector<16x128xf32>
    %560 = arith.truncf %559 : vector<16x128xf32> to vector<16x128xbf16>
    %cst_201 = arith.constant dense<0.000000e+00> : vector<16x384xf32>
    %561 = tpu.matmul %560, %270, %cst_201 {dimension_numbers = #tpu.dot_dimension_numbers<[1], [0], [0], [1], [0, 0, 1, 1], [], []>} : vector<16x128xbf16>, vector<128x384xbf16>, vector<16x384xf32> -> vector<16x384xf32>
    %562 = vector.broadcast %272 : vector<1x384xf32> to vector<16x384xf32>
    %563 = arith.addf %561, %562 : vector<16x384xf32>
    %564 = arith.truncf %516 : vector<16x128xf32> to vector<16x128xbf16>
    %cst_202 = arith.constant dense<0.000000e+00> : vector<16x384xf32>
    %565 = tpu.matmul %564, %271, %cst_202 {dimension_numbers = #tpu.dot_dimension_numbers<[1], [0], [0], [1], [0, 0, 1, 1], [], []>} : vector<16x128xbf16>, vector<128x384xbf16>, vector<16x384xf32> -> vector<16x384xf32>
    %566 = vector.broadcast %273 : vector<1x384xf32> to vector<16x384xf32>
    %567 = arith.addf %565, %566 : vector<16x384xf32>
    %568 = vector.extract_strided_slice %563 {offsets = [0, 0], sizes = [16, 128], strides = [1, 1]} : vector<16x384xf32> to vector<16x128xf32>
    %569 = vector.extract_strided_slice %567 {offsets = [0, 0], sizes = [16, 128], strides = [1, 1]} : vector<16x384xf32> to vector<16x128xf32>
    %570 = arith.addf %568, %569 : vector<16x128xf32>
    %cst_203 = arith.constant 0.000000e+00 : f32
    %571 = vector.broadcast %cst_203 : f32 to vector<16x128xf32>
    %572 = arith.subf %571, %570 : vector<16x128xf32>
    %573 = math.exp %572 : vector<16x128xf32>
    %cst_204 = arith.constant 1.000000e+00 : f32
    %574 = vector.broadcast %cst_204 : f32 to vector<16x128xf32>
    %575 = arith.addf %574, %573 : vector<16x128xf32>
    %cst_205 = arith.constant 1.000000e+00 : f32
    %576 = vector.broadcast %cst_205 : f32 to vector<16x128xf32>
    %577 = arith.divf %576, %575 : vector<16x128xf32>
    %578 = vector.extract_strided_slice %563 {offsets = [0, 128], sizes = [16, 128], strides = [1, 1]} : vector<16x384xf32> to vector<16x128xf32>
    %579 = vector.extract_strided_slice %567 {offsets = [0, 128], sizes = [16, 128], strides = [1, 1]} : vector<16x384xf32> to vector<16x128xf32>
    %580 = arith.addf %578, %579 : vector<16x128xf32>
    %cst_206 = arith.constant 0.000000e+00 : f32
    %581 = vector.broadcast %cst_206 : f32 to vector<16x128xf32>
    %582 = arith.subf %581, %580 : vector<16x128xf32>
    %583 = math.exp %582 : vector<16x128xf32>
    %cst_207 = arith.constant 1.000000e+00 : f32
    %584 = vector.broadcast %cst_207 : f32 to vector<16x128xf32>
    %585 = arith.addf %584, %583 : vector<16x128xf32>
    %cst_208 = arith.constant 1.000000e+00 : f32
    %586 = vector.broadcast %cst_208 : f32 to vector<16x128xf32>
    %587 = arith.divf %586, %585 : vector<16x128xf32>
    %588 = vector.extract_strided_slice %563 {offsets = [0, 256], sizes = [16, 128], strides = [1, 1]} : vector<16x384xf32> to vector<16x128xf32>
    %589 = vector.extract_strided_slice %567 {offsets = [0, 256], sizes = [16, 128], strides = [1, 1]} : vector<16x384xf32> to vector<16x128xf32>
    %590 = arith.mulf %577, %589 : vector<16x128xf32>
    %591 = arith.addf %588, %590 : vector<16x128xf32>
    %592 = math.tanh %591 : vector<16x128xf32>
    %cst_209 = arith.constant 1.000000e+00 : f32
    %593 = vector.broadcast %cst_209 : f32 to vector<16x128xf32>
    %594 = arith.subf %593, %587 : vector<16x128xf32>
    %595 = arith.mulf %594, %592 : vector<16x128xf32>
    %596 = arith.mulf %587, %516 : vector<16x128xf32>
    %597 = arith.addf %595, %596 : vector<16x128xf32>
    %c4 = arith.constant 4 : index
    %c0_210 = arith.constant 0 : index
    %c0_211 = arith.constant 0 : index
    %598 = vector.load %arg14[%c4, %c0_210, %c0_211] : memref<5x128x128xbf16, #tpu.memory_space<vmem>>, vector<1x128x128xbf16>
    %599 = vector.shape_cast %598 : vector<1x128x128xbf16> to vector<128x128xbf16>
    %600 = arith.truncf %597 : vector<16x128xf32> to vector<16x128xbf16>
    %cst_212 = arith.constant dense<0.000000e+00> : vector<16x128xf32>
    %601 = tpu.matmul %600, %599, %cst_212 {dimension_numbers = #tpu.dot_dimension_numbers<[1], [0], [0], [1], [0, 0, 1, 1], [], []>} : vector<16x128xbf16>, vector<128x128xbf16>, vector<16x128xf32> -> vector<16x128xf32>
    %cst_213 = arith.constant 0.000000e+00 : f32
    %602 = vector.broadcast %cst_213 : f32 to vector<16x128xf32>
    %603 = arith.cmpf olt, %601, %602 : vector<16x128xf32>
    %604 = arith.extui %603 : vector<16x128xi1> to vector<16x128xi32>
    %605 = arith.sitofp %604 : vector<16x128xi32> to vector<16x128xf32>
    %cst_214 = arith.constant 0.000000e+00 : f32
    %606 = vector.broadcast %cst_214 : f32 to vector<16x128xf32>
    %607 = arith.cmpf oeq, %601, %606 : vector<16x128xf32>
    %608 = arith.extui %607 : vector<16x128xi1> to vector<16x128xi32>
    %609 = arith.sitofp %608 : vector<16x128xi32> to vector<16x128xf32>
    %cst_215 = arith.constant 0.000000e+00 : f32
    %610 = vector.broadcast %cst_215 : f32 to vector<16x128xf32>
    %611 = arith.cmpf oeq, %601, %610 : vector<16x128xf32>
    %612 = math.absf %601 : vector<16x128xf32>
    %cst_216 = arith.constant 1.000000e+00 : f32
    %613 = vector.broadcast %cst_216 : f32 to vector<16x128xf32>
    %614 = arith.select %611, %613, %612 : vector<16x128xi1>, vector<16x128xf32>
    %615 = math.log %614 : vector<16x128xf32>
    %616 = arith.truncf %1 : vector<16x16xf32> to vector<16x16xbf16>
    %617 = arith.truncf %605 : vector<16x128xf32> to vector<16x128xbf16>
    %cst_217 = arith.constant dense<0.000000e+00> : vector<16x128xf32>
    %618 = tpu.matmul %616, %617, %cst_217 {dimension_numbers = #tpu.dot_dimension_numbers<[1], [0], [0], [1], [0, 0, 1, 1], [], []>} : vector<16x16xbf16>, vector<16x128xbf16>, vector<16x128xf32> -> vector<16x128xf32>
    %619 = arith.truncf %1 : vector<16x16xf32> to vector<16x16xbf16>
    %620 = arith.truncf %609 : vector<16x128xf32> to vector<16x128xbf16>
    %cst_218 = arith.constant dense<0.000000e+00> : vector<16x128xf32>
    %621 = tpu.matmul %619, %620, %cst_218 {dimension_numbers = #tpu.dot_dimension_numbers<[1], [0], [0], [1], [0, 0, 1, 1], [], []>} : vector<16x16xbf16>, vector<16x128xbf16>, vector<16x128xf32> -> vector<16x128xf32>
    %622 = arith.truncf %1 : vector<16x16xf32> to vector<16x16xbf16>
    %623 = arith.truncf %615 : vector<16x128xf32> to vector<16x128xbf16>
    %cst_219 = arith.constant dense<0.000000e+00> : vector<16x128xf32>
    %624 = tpu.matmul %622, %623, %cst_219 {dimension_numbers = #tpu.dot_dimension_numbers<[1], [0], [0], [1], [0, 0, 1, 1], [], []>} : vector<16x16xbf16>, vector<16x128xbf16>, vector<16x128xf32> -> vector<16x128xf32>
    %cst_220 = arith.constant 5.000000e-01 : f32
    %625 = vector.broadcast %cst_220 : f32 to vector<16x128xf32>
    %626 = arith.mulf %618, %625 : vector<16x128xf32>
    %627 = math.floor %626 : vector<16x128xf32>
    %cst_221 = arith.constant 2.000000e+00 : f32
    %628 = vector.broadcast %cst_221 : f32 to vector<16x128xf32>
    %629 = arith.mulf %628, %627 : vector<16x128xf32>
    %630 = arith.subf %618, %629 : vector<16x128xf32>
    %cst_222 = arith.constant 2.000000e+00 : f32
    %631 = vector.broadcast %cst_222 : f32 to vector<16x128xf32>
    %632 = arith.mulf %631, %630 : vector<16x128xf32>
    %cst_223 = arith.constant 1.000000e+00 : f32
    %633 = vector.broadcast %cst_223 : f32 to vector<16x128xf32>
    %634 = arith.subf %633, %632 : vector<16x128xf32>
    %cst_224 = arith.constant 5.000000e-01 : f32
    %635 = vector.broadcast %cst_224 : f32 to vector<16x128xf32>
    %636 = arith.cmpf ogt, %621, %635 : vector<16x128xf32>
    %637 = math.exp %624 : vector<16x128xf32>
    %638 = arith.mulf %634, %637 : vector<16x128xf32>
    %cst_225 = arith.constant 0.000000e+00 : f32
    %639 = vector.broadcast %cst_225 : f32 to vector<16x128xf32>
    %640 = arith.select %636, %639, %638 : vector<16x128xi1>, vector<16x128xf32>
    %641 = arith.truncf %640 : vector<16x128xf32> to vector<16x128xbf16>
    %cst_226 = arith.constant dense<0.000000e+00> : vector<16x384xf32>
    %642 = tpu.matmul %641, %270, %cst_226 {dimension_numbers = #tpu.dot_dimension_numbers<[1], [0], [0], [1], [0, 0, 1, 1], [], []>} : vector<16x128xbf16>, vector<128x384xbf16>, vector<16x384xf32> -> vector<16x384xf32>
    %643 = vector.broadcast %272 : vector<1x384xf32> to vector<16x384xf32>
    %644 = arith.addf %642, %643 : vector<16x384xf32>
    %645 = arith.truncf %597 : vector<16x128xf32> to vector<16x128xbf16>
    %cst_227 = arith.constant dense<0.000000e+00> : vector<16x384xf32>
    %646 = tpu.matmul %645, %271, %cst_227 {dimension_numbers = #tpu.dot_dimension_numbers<[1], [0], [0], [1], [0, 0, 1, 1], [], []>} : vector<16x128xbf16>, vector<128x384xbf16>, vector<16x384xf32> -> vector<16x384xf32>
    %647 = vector.broadcast %273 : vector<1x384xf32> to vector<16x384xf32>
    %648 = arith.addf %646, %647 : vector<16x384xf32>
    %649 = vector.extract_strided_slice %644 {offsets = [0, 0], sizes = [16, 128], strides = [1, 1]} : vector<16x384xf32> to vector<16x128xf32>
    %650 = vector.extract_strided_slice %648 {offsets = [0, 0], sizes = [16, 128], strides = [1, 1]} : vector<16x384xf32> to vector<16x128xf32>
    %651 = arith.addf %649, %650 : vector<16x128xf32>
    %cst_228 = arith.constant 0.000000e+00 : f32
    %652 = vector.broadcast %cst_228 : f32 to vector<16x128xf32>
    %653 = arith.subf %652, %651 : vector<16x128xf32>
    %654 = math.exp %653 : vector<16x128xf32>
    %cst_229 = arith.constant 1.000000e+00 : f32
    %655 = vector.broadcast %cst_229 : f32 to vector<16x128xf32>
    %656 = arith.addf %655, %654 : vector<16x128xf32>
    %cst_230 = arith.constant 1.000000e+00 : f32
    %657 = vector.broadcast %cst_230 : f32 to vector<16x128xf32>
    %658 = arith.divf %657, %656 : vector<16x128xf32>
    %659 = vector.extract_strided_slice %644 {offsets = [0, 128], sizes = [16, 128], strides = [1, 1]} : vector<16x384xf32> to vector<16x128xf32>
    %660 = vector.extract_strided_slice %648 {offsets = [0, 128], sizes = [16, 128], strides = [1, 1]} : vector<16x384xf32> to vector<16x128xf32>
    %661 = arith.addf %659, %660 : vector<16x128xf32>
    %cst_231 = arith.constant 0.000000e+00 : f32
    %662 = vector.broadcast %cst_231 : f32 to vector<16x128xf32>
    %663 = arith.subf %662, %661 : vector<16x128xf32>
    %664 = math.exp %663 : vector<16x128xf32>
    %cst_232 = arith.constant 1.000000e+00 : f32
    %665 = vector.broadcast %cst_232 : f32 to vector<16x128xf32>
    %666 = arith.addf %665, %664 : vector<16x128xf32>
    %cst_233 = arith.constant 1.000000e+00 : f32
    %667 = vector.broadcast %cst_233 : f32 to vector<16x128xf32>
    %668 = arith.divf %667, %666 : vector<16x128xf32>
    %669 = vector.extract_strided_slice %644 {offsets = [0, 256], sizes = [16, 128], strides = [1, 1]} : vector<16x384xf32> to vector<16x128xf32>
    %670 = vector.extract_strided_slice %648 {offsets = [0, 256], sizes = [16, 128], strides = [1, 1]} : vector<16x384xf32> to vector<16x128xf32>
    %671 = arith.mulf %658, %670 : vector<16x128xf32>
    %672 = arith.addf %669, %671 : vector<16x128xf32>
    %673 = math.tanh %672 : vector<16x128xf32>
    %cst_234 = arith.constant 1.000000e+00 : f32
    %674 = vector.broadcast %cst_234 : f32 to vector<16x128xf32>
    %675 = arith.subf %674, %668 : vector<16x128xf32>
    %676 = arith.mulf %675, %673 : vector<16x128xf32>
    %677 = arith.mulf %668, %597 : vector<16x128xf32>
    %678 = arith.addf %676, %677 : vector<16x128xf32>
    %c0_235 = arith.constant 0 : index
    %c0_236 = arith.constant 0 : index
    %679 = vector.load %arg19[%c0_235, %c0_236] : memref<128x128xbf16, #tpu.memory_space<vmem>>, vector<128x128xbf16>
    %680 = arith.truncf %678 : vector<16x128xf32> to vector<16x128xbf16>
    %cst_237 = arith.constant dense<0.000000e+00> : vector<16x128xf32>
    %681 = tpu.matmul %680, %679, %cst_237 {dimension_numbers = #tpu.dot_dimension_numbers<[1], [0], [0], [1], [0, 0, 1, 1], [], []>} : vector<16x128xbf16>, vector<128x128xbf16>, vector<16x128xf32> -> vector<16x128xf32>
    %c0_238 = arith.constant 0 : index
    %c0_239 = arith.constant 0 : index
    %682 = vector.load %arg20[%c0_238, %c0_239] : memref<1x128xf32, #tpu.memory_space<vmem>>, vector<1x128xf32>
    %683 = vector.broadcast %682 : vector<1x128xf32> to vector<16x128xf32>
    %684 = arith.addf %681, %683 : vector<16x128xf32>
    %cst_240 = arith.constant 0.000000e+00 : f32
    %685 = vector.broadcast %cst_240 : f32 to vector<16x128xf32>
    %686 = arith.maximumf %684, %685 : vector<16x128xf32>
    %c0_241 = arith.constant 0 : index
    %c0_242 = arith.constant 0 : index
    %c0_243 = arith.constant 0 : index
    %687 = vector.load %arg21[%c0_241, %c0_242, %c0_243] : memref<8x128x128xbf16, #tpu.memory_space<vmem>>, vector<1x128x128xbf16>
    %688 = vector.shape_cast %687 : vector<1x128x128xbf16> to vector<128x128xbf16>
    %689 = arith.truncf %686 : vector<16x128xf32> to vector<16x128xbf16>
    %cst_244 = arith.constant dense<0.000000e+00> : vector<16x128xf32>
    %690 = tpu.matmul %689, %688, %cst_244 {dimension_numbers = #tpu.dot_dimension_numbers<[1], [0], [0], [1], [0, 0, 1, 1], [], []>} : vector<16x128xbf16>, vector<128x128xbf16>, vector<16x128xf32> -> vector<16x128xf32>
    %691 = arith.truncf %686 : vector<16x128xf32> to vector<16x128xbf16>
    %cst_245 = arith.constant dense<0.000000e+00> : vector<16x128xf32>
    %692 = tpu.matmul %2, %691, %cst_245 {dimension_numbers = #tpu.dot_dimension_numbers<[1], [0], [0], [1], [0, 0, 1, 1], [], []>} : vector<16x16xbf16>, vector<16x128xbf16>, vector<16x128xf32> -> vector<16x128xf32>
    %c1_246 = arith.constant 1 : index
    %c0_247 = arith.constant 0 : index
    %c0_248 = arith.constant 0 : index
    %693 = vector.load %arg21[%c1_246, %c0_247, %c0_248] : memref<8x128x128xbf16, #tpu.memory_space<vmem>>, vector<1x128x128xbf16>
    %694 = vector.shape_cast %693 : vector<1x128x128xbf16> to vector<128x128xbf16>
    %695 = arith.truncf %692 : vector<16x128xf32> to vector<16x128xbf16>
    %cst_249 = arith.constant dense<0.000000e+00> : vector<16x128xf32>
    %696 = tpu.matmul %695, %694, %cst_249 {dimension_numbers = #tpu.dot_dimension_numbers<[1], [0], [0], [1], [0, 0, 1, 1], [], []>} : vector<16x128xbf16>, vector<128x128xbf16>, vector<16x128xf32> -> vector<16x128xf32>
    %697 = arith.addf %690, %696 : vector<16x128xf32>
    %698 = arith.truncf %692 : vector<16x128xf32> to vector<16x128xbf16>
    %cst_250 = arith.constant dense<0.000000e+00> : vector<16x128xf32>
    %699 = tpu.matmul %2, %698, %cst_250 {dimension_numbers = #tpu.dot_dimension_numbers<[1], [0], [0], [1], [0, 0, 1, 1], [], []>} : vector<16x16xbf16>, vector<16x128xbf16>, vector<16x128xf32> -> vector<16x128xf32>
    %c2_251 = arith.constant 2 : index
    %c0_252 = arith.constant 0 : index
    %c0_253 = arith.constant 0 : index
    %700 = vector.load %arg21[%c2_251, %c0_252, %c0_253] : memref<8x128x128xbf16, #tpu.memory_space<vmem>>, vector<1x128x128xbf16>
    %701 = vector.shape_cast %700 : vector<1x128x128xbf16> to vector<128x128xbf16>
    %702 = arith.truncf %699 : vector<16x128xf32> to vector<16x128xbf16>
    %cst_254 = arith.constant dense<0.000000e+00> : vector<16x128xf32>
    %703 = tpu.matmul %702, %701, %cst_254 {dimension_numbers = #tpu.dot_dimension_numbers<[1], [0], [0], [1], [0, 0, 1, 1], [], []>} : vector<16x128xbf16>, vector<128x128xbf16>, vector<16x128xf32> -> vector<16x128xf32>
    %704 = arith.addf %697, %703 : vector<16x128xf32>
    %705 = arith.truncf %699 : vector<16x128xf32> to vector<16x128xbf16>
    %cst_255 = arith.constant dense<0.000000e+00> : vector<16x128xf32>
    %706 = tpu.matmul %2, %705, %cst_255 {dimension_numbers = #tpu.dot_dimension_numbers<[1], [0], [0], [1], [0, 0, 1, 1], [], []>} : vector<16x16xbf16>, vector<16x128xbf16>, vector<16x128xf32> -> vector<16x128xf32>
    %c3_256 = arith.constant 3 : index
    %c0_257 = arith.constant 0 : index
    %c0_258 = arith.constant 0 : index
    %707 = vector.load %arg21[%c3_256, %c0_257, %c0_258] : memref<8x128x128xbf16, #tpu.memory_space<vmem>>, vector<1x128x128xbf16>
    %708 = vector.shape_cast %707 : vector<1x128x128xbf16> to vector<128x128xbf16>
    %709 = arith.truncf %706 : vector<16x128xf32> to vector<16x128xbf16>
    %cst_259 = arith.constant dense<0.000000e+00> : vector<16x128xf32>
    %710 = tpu.matmul %709, %708, %cst_259 {dimension_numbers = #tpu.dot_dimension_numbers<[1], [0], [0], [1], [0, 0, 1, 1], [], []>} : vector<16x128xbf16>, vector<128x128xbf16>, vector<16x128xf32> -> vector<16x128xf32>
    %711 = arith.addf %704, %710 : vector<16x128xf32>
    %712 = arith.truncf %706 : vector<16x128xf32> to vector<16x128xbf16>
    %cst_260 = arith.constant dense<0.000000e+00> : vector<16x128xf32>
    %713 = tpu.matmul %2, %712, %cst_260 {dimension_numbers = #tpu.dot_dimension_numbers<[1], [0], [0], [1], [0, 0, 1, 1], [], []>} : vector<16x16xbf16>, vector<16x128xbf16>, vector<16x128xf32> -> vector<16x128xf32>
    %c4_261 = arith.constant 4 : index
    %c0_262 = arith.constant 0 : index
    %c0_263 = arith.constant 0 : index
    %714 = vector.load %arg21[%c4_261, %c0_262, %c0_263] : memref<8x128x128xbf16, #tpu.memory_space<vmem>>, vector<1x128x128xbf16>
    %715 = vector.shape_cast %714 : vector<1x128x128xbf16> to vector<128x128xbf16>
    %716 = arith.truncf %713 : vector<16x128xf32> to vector<16x128xbf16>
    %cst_264 = arith.constant dense<0.000000e+00> : vector<16x128xf32>
    %717 = tpu.matmul %716, %715, %cst_264 {dimension_numbers = #tpu.dot_dimension_numbers<[1], [0], [0], [1], [0, 0, 1, 1], [], []>} : vector<16x128xbf16>, vector<128x128xbf16>, vector<16x128xf32> -> vector<16x128xf32>
    %718 = arith.addf %711, %717 : vector<16x128xf32>
    %719 = arith.truncf %713 : vector<16x128xf32> to vector<16x128xbf16>
    %cst_265 = arith.constant dense<0.000000e+00> : vector<16x128xf32>
    %720 = tpu.matmul %2, %719, %cst_265 {dimension_numbers = #tpu.dot_dimension_numbers<[1], [0], [0], [1], [0, 0, 1, 1], [], []>} : vector<16x16xbf16>, vector<16x128xbf16>, vector<16x128xf32> -> vector<16x128xf32>
    %c5 = arith.constant 5 : index
    %c0_266 = arith.constant 0 : index
    %c0_267 = arith.constant 0 : index
    %721 = vector.load %arg21[%c5, %c0_266, %c0_267] : memref<8x128x128xbf16, #tpu.memory_space<vmem>>, vector<1x128x128xbf16>
    %722 = vector.shape_cast %721 : vector<1x128x128xbf16> to vector<128x128xbf16>
    %723 = arith.truncf %720 : vector<16x128xf32> to vector<16x128xbf16>
    %cst_268 = arith.constant dense<0.000000e+00> : vector<16x128xf32>
    %724 = tpu.matmul %723, %722, %cst_268 {dimension_numbers = #tpu.dot_dimension_numbers<[1], [0], [0], [1], [0, 0, 1, 1], [], []>} : vector<16x128xbf16>, vector<128x128xbf16>, vector<16x128xf32> -> vector<16x128xf32>
    %725 = arith.addf %718, %724 : vector<16x128xf32>
    %726 = arith.truncf %720 : vector<16x128xf32> to vector<16x128xbf16>
    %cst_269 = arith.constant dense<0.000000e+00> : vector<16x128xf32>
    %727 = tpu.matmul %2, %726, %cst_269 {dimension_numbers = #tpu.dot_dimension_numbers<[1], [0], [0], [1], [0, 0, 1, 1], [], []>} : vector<16x16xbf16>, vector<16x128xbf16>, vector<16x128xf32> -> vector<16x128xf32>
    %c6 = arith.constant 6 : index
    %c0_270 = arith.constant 0 : index
    %c0_271 = arith.constant 0 : index
    %728 = vector.load %arg21[%c6, %c0_270, %c0_271] : memref<8x128x128xbf16, #tpu.memory_space<vmem>>, vector<1x128x128xbf16>
    %729 = vector.shape_cast %728 : vector<1x128x128xbf16> to vector<128x128xbf16>
    %730 = arith.truncf %727 : vector<16x128xf32> to vector<16x128xbf16>
    %cst_272 = arith.constant dense<0.000000e+00> : vector<16x128xf32>
    %731 = tpu.matmul %730, %729, %cst_272 {dimension_numbers = #tpu.dot_dimension_numbers<[1], [0], [0], [1], [0, 0, 1, 1], [], []>} : vector<16x128xbf16>, vector<128x128xbf16>, vector<16x128xf32> -> vector<16x128xf32>
    %732 = arith.addf %725, %731 : vector<16x128xf32>
    %733 = arith.truncf %727 : vector<16x128xf32> to vector<16x128xbf16>
    %cst_273 = arith.constant dense<0.000000e+00> : vector<16x128xf32>
    %734 = tpu.matmul %2, %733, %cst_273 {dimension_numbers = #tpu.dot_dimension_numbers<[1], [0], [0], [1], [0, 0, 1, 1], [], []>} : vector<16x16xbf16>, vector<16x128xbf16>, vector<16x128xf32> -> vector<16x128xf32>
    %c7 = arith.constant 7 : index
    %c0_274 = arith.constant 0 : index
    %c0_275 = arith.constant 0 : index
    %735 = vector.load %arg21[%c7, %c0_274, %c0_275] : memref<8x128x128xbf16, #tpu.memory_space<vmem>>, vector<1x128x128xbf16>
    %736 = vector.shape_cast %735 : vector<1x128x128xbf16> to vector<128x128xbf16>
    %737 = arith.truncf %734 : vector<16x128xf32> to vector<16x128xbf16>
    %cst_276 = arith.constant dense<0.000000e+00> : vector<16x128xf32>
    %738 = tpu.matmul %737, %736, %cst_276 {dimension_numbers = #tpu.dot_dimension_numbers<[1], [0], [0], [1], [0, 0, 1, 1], [], []>} : vector<16x128xbf16>, vector<128x128xbf16>, vector<16x128xf32> -> vector<16x128xf32>
    %739 = arith.addf %732, %738 : vector<16x128xf32>
    %c0_277 = arith.constant 0 : index
    %c0_278 = arith.constant 0 : index
    %740 = vector.load %arg22[%c0_277, %c0_278] : memref<1x128xf32, #tpu.memory_space<vmem>>, vector<1x128xf32>
    %741 = vector.broadcast %740 : vector<1x128xf32> to vector<16x128xf32>
    %742 = arith.addf %739, %741 : vector<16x128xf32>
    %c0_279 = arith.constant 0 : index
    %c0_280 = arith.constant 0 : index
    %743 = vector.load %arg23[%c0_279, %c0_280] : memref<128x128xbf16, #tpu.memory_space<vmem>>, vector<128x128xbf16>
    %744 = arith.truncf %742 : vector<16x128xf32> to vector<16x128xbf16>
    %cst_281 = arith.constant dense<0.000000e+00> : vector<16x128xf32>
    %745 = tpu.matmul %744, %743, %cst_281 {dimension_numbers = #tpu.dot_dimension_numbers<[1], [0], [0], [1], [0, 0, 1, 1], [], []>} : vector<16x128xbf16>, vector<128x128xbf16>, vector<16x128xf32> -> vector<16x128xf32>
    %c0_282 = arith.constant 0 : index
    %c0_283 = arith.constant 0 : index
    %746 = vector.load %arg24[%c0_282, %c0_283] : memref<1x128xf32, #tpu.memory_space<vmem>>, vector<1x128xf32>
    %747 = vector.broadcast %746 : vector<1x128xf32> to vector<16x128xf32>
    %748 = arith.addf %745, %747 : vector<16x128xf32>
    %cst_284 = arith.constant 0.000000e+00 : f32
    %749 = vector.broadcast %cst_284 : f32 to vector<16x128xf32>
    %750 = arith.maximumf %748, %749 : vector<16x128xf32>
    %751 = math.absf %748 : vector<16x128xf32>
    %cst_285 = arith.constant 0.000000e+00 : f32
    %752 = vector.broadcast %cst_285 : f32 to vector<16x128xf32>
    %753 = arith.subf %752, %751 : vector<16x128xf32>
    %754 = math.exp %753 : vector<16x128xf32>
    %cst_286 = arith.constant 1.000000e+00 : f32
    %755 = vector.broadcast %cst_286 : f32 to vector<16x128xf32>
    %756 = arith.addf %755, %754 : vector<16x128xf32>
    %757 = math.log %756 : vector<16x128xf32>
    %758 = arith.addf %750, %757 : vector<16x128xf32>
    %cst_287 = arith.constant 1.000000e+00 : f32
    %759 = vector.broadcast %cst_287 : f32 to vector<16x1xf32>
    %760 = arith.maximumf %6, %759 : vector<16x1xf32>
    %761 = vector.broadcast %760 : vector<16x1xf32> to vector<16x16xf32>
    %762 = arith.divf %1, %761 : vector<16x16xf32>
    %763 = arith.truncf %762 : vector<16x16xf32> to vector<16x16xbf16>
    %764 = arith.truncf %758 : vector<16x128xf32> to vector<16x128xbf16>
    %cst_288 = arith.constant dense<0.000000e+00> : vector<16x128xf32>
    %765 = tpu.matmul %763, %764, %cst_288 {dimension_numbers = #tpu.dot_dimension_numbers<[1], [0], [0], [1], [0, 0, 1, 1], [], []>} : vector<16x16xbf16>, vector<16x128xbf16>, vector<16x128xf32> -> vector<16x128xf32>
    %766 = arith.mulf %758, %758 : vector<16x128xf32>
    %767 = arith.truncf %762 : vector<16x16xf32> to vector<16x16xbf16>
    %768 = arith.truncf %766 : vector<16x128xf32> to vector<16x128xbf16>
    %cst_289 = arith.constant dense<0.000000e+00> : vector<16x128xf32>
    %769 = tpu.matmul %767, %768, %cst_289 {dimension_numbers = #tpu.dot_dimension_numbers<[1], [0], [0], [1], [0, 0, 1, 1], [], []>} : vector<16x16xbf16>, vector<16x128xbf16>, vector<16x128xf32> -> vector<16x128xf32>
    %770 = arith.mulf %765, %765 : vector<16x128xf32>
    %771 = arith.subf %769, %770 : vector<16x128xf32>
    %c0_290 = arith.constant 0 : index
    %c0_291 = arith.constant 0 : index
    %772 = vector.load %arg25[%c0_290, %c0_291] : memref<128x128xbf16, #tpu.memory_space<vmem>>, vector<128x128xbf16>
    %773 = arith.truncf %771 : vector<16x128xf32> to vector<16x128xbf16>
    %cst_292 = arith.constant dense<0.000000e+00> : vector<16x128xf32>
    %774 = tpu.matmul %773, %772, %cst_292 {dimension_numbers = #tpu.dot_dimension_numbers<[1], [0], [0], [1], [0, 0, 1, 1], [], []>} : vector<16x128xbf16>, vector<128x128xbf16>, vector<16x128xf32> -> vector<16x128xf32>
    %c0_293 = arith.constant 0 : index
    %c0_294 = arith.constant 0 : index
    %775 = vector.load %arg26[%c0_293, %c0_294] : memref<1x128xf32, #tpu.memory_space<vmem>>, vector<1x128xf32>
    %776 = vector.broadcast %775 : vector<1x128xf32> to vector<16x128xf32>
    %777 = arith.addf %774, %776 : vector<16x128xf32>
    %c0_295 = arith.constant 0 : index
    %c0_296 = arith.constant 0 : index
    %778 = vector.load %arg27[%c0_295, %c0_296] : memref<128x128xbf16, #tpu.memory_space<vmem>>, vector<128x128xbf16>
    %779 = arith.truncf %758 : vector<16x128xf32> to vector<16x128xbf16>
    %cst_297 = arith.constant dense<0.000000e+00> : vector<16x128xf32>
    %780 = tpu.matmul %779, %778, %cst_297 {dimension_numbers = #tpu.dot_dimension_numbers<[1], [0], [0], [1], [0, 0, 1, 1], [], []>} : vector<16x128xbf16>, vector<128x128xbf16>, vector<16x128xf32> -> vector<16x128xf32>
    %781 = arith.addf %777, %780 : vector<16x128xf32>
    %c0_298 = arith.constant 0 : index
    %c0_299 = arith.constant 0 : index
    %782 = vector.load %arg28[%c0_298, %c0_299] : memref<128x128xbf16, #tpu.memory_space<vmem>>, vector<128x128xbf16>
    %783 = arith.truncf %781 : vector<16x128xf32> to vector<16x128xbf16>
    %cst_300 = arith.constant dense<0.000000e+00> : vector<16x128xf32>
    %784 = tpu.matmul %783, %782, %cst_300 {dimension_numbers = #tpu.dot_dimension_numbers<[1], [0], [0], [1], [0, 0, 1, 1], [], []>} : vector<16x128xbf16>, vector<128x128xbf16>, vector<16x128xf32> -> vector<16x128xf32>
    %c0_301 = arith.constant 0 : index
    %c0_302 = arith.constant 0 : index
    %785 = vector.load %arg29[%c0_301, %c0_302] : memref<1x128xf32, #tpu.memory_space<vmem>>, vector<1x128xf32>
    %786 = vector.broadcast %785 : vector<1x128xf32> to vector<16x128xf32>
    %787 = arith.addf %784, %786 : vector<16x128xf32>
    %cst_303 = arith.constant 0.000000e+00 : f32
    %788 = vector.broadcast %cst_303 : f32 to vector<16x128xf32>
    %789 = arith.maximumf %787, %788 : vector<16x128xf32>
    %790 = math.absf %787 : vector<16x128xf32>
    %cst_304 = arith.constant 0.000000e+00 : f32
    %791 = vector.broadcast %cst_304 : f32 to vector<16x128xf32>
    %792 = arith.subf %791, %790 : vector<16x128xf32>
    %793 = math.exp %792 : vector<16x128xf32>
    %cst_305 = arith.constant 1.000000e+00 : f32
    %794 = vector.broadcast %cst_305 : f32 to vector<16x128xf32>
    %795 = arith.addf %794, %793 : vector<16x128xf32>
    %796 = math.log %795 : vector<16x128xf32>
    %797 = arith.addf %789, %796 : vector<16x128xf32>
    %cst_306 = arith.constant dense<0.000000e+00> : vector<128xf32>
    %798 = vector.multi_reduction <add>, %797, %cst_306 [0] : vector<16x128xf32> to vector<128xf32>
    %799 = vector.shape_cast %798 : vector<128xf32> to vector<1x128xf32>
    %cst_307 = arith.constant 1.600000e+01 : f32
    %800 = vector.broadcast %cst_307 : f32 to vector<1x128xf32>
    %801 = arith.divf %799, %800 : vector<1x128xf32>
    %802 = vector.broadcast %801 : vector<1x128xf32> to vector<16x128xf32>
    %803 = arith.subf %797, %802 : vector<16x128xf32>
    %804 = arith.mulf %803, %803 : vector<16x128xf32>
    %cst_308 = arith.constant dense<0.000000e+00> : vector<128xf32>
    %805 = vector.multi_reduction <add>, %804, %cst_308 [0] : vector<16x128xf32> to vector<128xf32>
    %806 = vector.shape_cast %805 : vector<128xf32> to vector<1x128xf32>
    %cst_309 = arith.constant 1.600000e+01 : f32
    %807 = vector.broadcast %cst_309 : f32 to vector<1x128xf32>
    %808 = arith.divf %806, %807 : vector<1x128xf32>
    %cst_310 = arith.constant 9.99999974E-6 : f32
    %809 = vector.broadcast %cst_310 : f32 to vector<1x128xf32>
    %810 = arith.addf %808, %809 : vector<1x128xf32>
    %811 = math.rsqrt %810 : vector<1x128xf32>
    %812 = vector.broadcast %811 : vector<1x128xf32> to vector<16x128xf32>
    %813 = arith.mulf %803, %812 : vector<16x128xf32>
    %814 = vector.shape_cast %3 : vector<2x16xf32> to vector<2x16x1xf32>
    %cst_311 = arith.constant 0.000000e+00 : f32
    %815 = vector.broadcast %cst_311 : f32 to vector<2x16x1xf32>
    %816 = arith.cmpf ogt, %814, %815 : vector<2x16x1xf32>
    %817 = vector.shape_cast %813 : vector<16x128xf32> to vector<1x16x128xf32>
    %cst_312 = arith.constant 0xFF800000 : f32
    %818 = vector.shape_cast %816 : vector<2x16x1xi1> to vector<2x16x1xi1>
    %819 = vector.broadcast %818 : vector<2x16x1xi1> to vector<2x16x128xi1>
    %820 = vector.shape_cast %817 : vector<1x16x128xf32> to vector<1x16x128xf32>
    %821 = vector.broadcast %820 : vector<1x16x128xf32> to vector<2x16x128xf32>
    %822 = vector.broadcast %cst_312 : f32 to vector<2x16x128xf32>
    %823 = arith.select %819, %821, %822 : vector<2x16x128xi1>, vector<2x16x128xf32>
    %cst_313 = arith.constant dense<0xFF800000> : vector<2x128xf32>
    %824 = vector.multi_reduction <maximumf>, %823, %cst_313 [1] : vector<2x16x128xf32> to vector<2x128xf32>
    %cst_314 = arith.constant dense<0.000000e+00> : vector<2xf32>
    %825 = vector.multi_reduction <add>, %3, %cst_314 [1] : vector<2x16xf32> to vector<2xf32>
    %826 = vector.shape_cast %825 : vector<2xf32> to vector<2x1xf32>
    %cst_315 = arith.constant 0.000000e+00 : f32
    %827 = vector.broadcast %cst_315 : f32 to vector<2x1xf32>
    %828 = arith.cmpf ogt, %826, %827 : vector<2x1xf32>
    %cst_316 = arith.constant 0.000000e+00 : f32
    %829 = vector.shape_cast %828 : vector<2x1xi1> to vector<2x1xi1>
    %830 = vector.broadcast %829 : vector<2x1xi1> to vector<2x128xi1>
    %831 = vector.broadcast %cst_316 : f32 to vector<2x128xf32>
    %832 = arith.select %830, %824, %831 : vector<2x128xi1>, vector<2x128xf32>
    %c0_317 = arith.constant 0 : index
    %c0_318 = arith.constant 0 : index
    %833 = vector.load %arg30[%c0_317, %c0_318] : memref<128x128xbf16, #tpu.memory_space<vmem>>, vector<128x128xbf16>
    %834 = arith.truncf %832 : vector<2x128xf32> to vector<2x128xbf16>
    %cst_319 = arith.constant dense<0.000000e+00> : vector<2x128xf32>
    %835 = tpu.matmul %834, %833, %cst_319 {dimension_numbers = #tpu.dot_dimension_numbers<[1], [0], [0], [1], [0, 0, 1, 1], [], []>} : vector<2x128xbf16>, vector<128x128xbf16>, vector<2x128xf32> -> vector<2x128xf32>
    %c0_320 = arith.constant 0 : index
    %c0_321 = arith.constant 0 : index
    %836 = vector.load %arg31[%c0_320, %c0_321] : memref<1x128xf32, #tpu.memory_space<vmem>>, vector<1x128xf32>
    %837 = vector.broadcast %836 : vector<1x128xf32> to vector<2x128xf32>
    %838 = arith.addf %835, %837 : vector<2x128xf32>
    %c0_322 = arith.constant 0 : index
    %c0_323 = arith.constant 0 : index
    %839 = vector.load %arg32[%c0_322, %c0_323] : memref<2x128xf32, #tpu.memory_space<vmem>>, vector<2x128xf32>
    tpu.vector_store %arg32[%c0_322, %c0_323], %838 {strides = array<i32>} : memref<2x128xf32, #tpu.memory_space<vmem>>, vector<2x128xf32>,
    return
  }
}

</mosaic_0001>

<llo_original>
// kernel: tpu_custom_call.1
$region0: #{tpu_custom_call.1}
  #allocation0 [shape = 'u32[]', space=smem, size = 0x4, offset = 0x4, fixed_abs, tag = 'smem constant byte address 0x4 - core index']
  #allocation1 [shape = 'u32[144,128]{1,0:T(1,128)}', space=vmem, size = 0x12000, scoped, tag = 'internal scratch']
  %s0 = inlined_call_operand.smem [shape: u32[33], index: -1, kind: input, shape index: {}]
  %s1 = sld [smem:[%s0]]
  %s2 = scalar_lea.smem %s0, 1
  %s3 = sld [smem:[%s2]]
  %s4 = scalar_lea.smem %s0, 2
  %s5 = sld [smem:[%s4]]
  %s6 = scalar_lea.smem %s0, 3
  %s7 = sld [smem:[%s6]]
  %s8 = scalar_lea.smem %s0, 4
  %s9 = sld [smem:[%s8]]
  %s10 = scalar_lea.smem %s0, 5
  %s11 = sld [smem:[%s10]]
  %s12 = scalar_lea.smem %s0, 6
  %s13 = sld [smem:[%s12]]
  %s14 = scalar_lea.smem %s0, 7
  %s15 = sld [smem:[%s14]]
  %s16 = scalar_lea.smem %s0, 8
  %s17 = sld [smem:[%s16]]
  %s18 = scalar_lea.smem %s0, 9
  %s19 = sld [smem:[%s18]]
  %s20 = scalar_lea.smem %s0, 10
  %s21 = sld [smem:[%s20]]
  %s22 = scalar_lea.smem %s0, 11
  %s23 = sld [smem:[%s22]]
  %s24 = scalar_lea.smem %s0, 12
  %s25 = sld [smem:[%s24]]
  %s26 = scalar_lea.smem %s0, 13
  %s27 = sld [smem:[%s26]]
  %s28 = scalar_lea.smem %s0, 14
  %s29 = sld [smem:[%s28]]
  %s30 = scalar_lea.smem %s0, 15
  %s31 = sld [smem:[%s30]]
  %s32 = scalar_lea.smem %s0, 16
  %s33 = sld [smem:[%s32]]
  %s34 = scalar_lea.smem %s0, 17
  %s35 = sld [smem:[%s34]]
  %s36 = scalar_lea.smem %s0, 18
  %s37 = sld [smem:[%s36]]
  %s38 = scalar_lea.smem %s0, 19
  %s39 = sld [smem:[%s38]]
  %s40 = scalar_lea.smem %s0, 20
  %s41 = sld [smem:[%s40]]
  %s42 = scalar_lea.smem %s0, 21
  %s43 = sld [smem:[%s42]]
  %s44 = scalar_lea.smem %s0, 22
  %s45 = sld [smem:[%s44]]
  %s46 = scalar_lea.smem %s0, 23
  %s47 = sld [smem:[%s46]]
  %s48 = scalar_lea.smem %s0, 24
  %s49 = sld [smem:[%s48]]
  %s50 = scalar_lea.smem %s0, 25
  %s51 = sld [smem:[%s50]]
  %s52 = scalar_lea.smem %s0, 26
  %s53 = sld [smem:[%s52]]
  %s54 = scalar_lea.smem %s0, 27
  %s55 = sld [smem:[%s54]]
  %s56 = scalar_lea.smem %s0, 28
  %s57 = sld [smem:[%s56]]
  %s58 = scalar_lea.smem %s0, 29
  %s59 = sld [smem:[%s58]]
  %s60 = scalar_lea.smem %s0, 30
  %s61 = sld [smem:[%s60]]
  %s62 = scalar_lea.smem %s0, 31
  %s63 = sld [smem:[%s62]]
  %s64 = scalar_lea.smem %s0, 32
  %s65 = sld [smem:[%s64]]
  %s66 = sld [smem:[#allocation0]]
  $region226: #{tpu_custom_call.1} parent=0
    _
  %s68 = ssub.s32 1, %s66
  %s69 = scalar_select 0, %s68, %s66
  $region1: #{tpu_custom_call.1} parent=0
    #allocation2 [shape = 'u8[4096]{0}', space=vmem, size = 0x1000, scoped, tag = 'input window, operand 0, single buffered']
    #allocation3 [shape = 's32[1]{0}', space=sflag, size = 0x4, scoped, tag = 'scoped memory for tpu_custom_call.1']
    #allocation4 [shape = 's32[1]{0}', space=sflag, size = 0x4, scoped, tag = 'scoped memory for tpu_custom_call.1']
    #allocation5 [shape = 'u8[4096]{0}', space=vmem, size = 0x1000, scoped, tag = 'input window, operand 1, single buffered']
    #allocation6 [shape = 's32[1]{0}', space=sflag, size = 0x4, scoped, tag = 'scoped memory for tpu_custom_call.1']
    #allocation7 [shape = 'u8[1024]{0}', space=vmem, size = 0x400, scoped, tag = 'input window, operand 2, single buffered']
    #allocation8 [shape = 'u8[8192]{0}', space=vmem, size = 0x2000, scoped, tag = 'input window, operand 3, single buffered']
    #allocation9 [shape = 's32[1]{0}', space=sflag, size = 0x4, scoped, tag = 'scoped memory for tpu_custom_call.1']
    #allocation10 [shape = 'u8[131072]{0}', space=vmem, size = 0x20000, scoped, tag = 'input window, operand 4, single buffered']
    #allocation11 [shape = 'u8[98304]{0}', space=vmem, size = 0x18000, scoped, tag = 'input window, operand 5, single buffered']
    #allocation12 [shape = 's32[1]{0}', space=sflag, size = 0x4, scoped, tag = 'scoped memory for tpu_custom_call.1']
    #allocation13 [shape = 'u8[98304]{0}', space=vmem, size = 0x18000, scoped, tag = 'input window, operand 6, single buffered']
    #allocation14 [shape = 'u8[32768]{0}', space=vmem, size = 0x8000, scoped, tag = 'input window, operand 9, single buffered']
    #allocation15 [shape = 's32[1]{0}', space=sflag, size = 0x4, scoped, tag = 'scoped memory for tpu_custom_call.1']
    #allocation16 [shape = 'u8[32768]{0}', space=vmem, size = 0x8000, scoped, tag = 'input window, operand 11, single buffered']
    #allocation17 [shape = 'u8[512]{0}', space=vmem, size = 0x400, scoped, tag = 'input window, operand 12, single buffered']
    #allocation18 [shape = 's32[1]{0}', space=sflag, size = 0x4, scoped, tag = 'scoped memory for tpu_custom_call.1']
    #allocation19 [shape = 'u8[512]{0}', space=vmem, size = 0x400, scoped, tag = 'input window, operand 13, single buffered']
    #allocation20 [shape = 'u8[163840]{0}', space=vmem, size = 0x28000, scoped, tag = 'input window, operand 14, single buffered']
    #allocation21 [shape = 's32[1]{0}', space=sflag, size = 0x4, scoped, tag = 'scoped memory for tpu_custom_call.1']
    #allocation22 [shape = 'u8[98304]{0}', space=vmem, size = 0x18000, scoped, tag = 'input window, operand 15, single buffered']
    #allocation23 [shape = 'u8[98304]{0}', space=vmem, size = 0x18000, scoped, tag = 'input window, operand 16, single buffered']
    #allocation24 [shape = 's32[1]{0}', space=sflag, size = 0x4, scoped, tag = 'scoped memory for tpu_custom_call.1']
    #allocation25 [shape = 'u8[1536]{0}', space=vmem, size = 0x800, scoped, tag = 'input window, operand 17, single buffered']
    #allocation26 [shape = 'u8[1536]{0}', space=vmem, size = 0x800, scoped, tag = 'input window, operand 18, single buffered']
    #allocation27 [shape = 's32[1]{0}', space=sflag, size = 0x4, scoped, tag = 'scoped memory for tpu_custom_call.1']
    #allocation28 [shape = 'u8[262144]{0}', space=vmem, size = 0x40000, scoped, tag = 'input window, operand 21, single buffered']
    #allocation29 [shape = 'u8[32768]{0}', space=vmem, size = 0x8000, scoped, tag = 'input window, operand 23, single buffered']
    #allocation30 [shape = 's32[1]{0}', space=sflag, size = 0x4, scoped, tag = 'scoped memory for tpu_custom_call.1']
    #allocation31 [shape = 'u8[32768]{0}', space=vmem, size = 0x8000, scoped, tag = 'input window, operand 25, single buffered']
    #allocation32 [shape = 'u8[32768]{0}', space=vmem, size = 0x8000, scoped, tag = 'input window, operand 27, single buffered']
    #allocation33 [shape = 's32[1]{0}', space=sflag, size = 0x4, scoped, tag = 'scoped memory for tpu_custom_call.1']
    #allocation34 [shape = 'u8[32768]{0}', space=vmem, size = 0x8000, scoped, tag = 'input window, operand 28, single buffered']
    #allocation35 [shape = 'u8[32768]{0}', space=vmem, size = 0x8000, scoped, tag = 'input window, operand 30, single buffered']
    #allocation36 [shape = 's32[1]{0}', space=sflag, size = 0x4, scoped, tag = 'scoped memory for tpu_custom_call.1']
    #allocation37 [shape = 'u8[1024]{0}', space=vmem, size = 0x400, scoped, tag = 'output window, operand 0, single buffered']
    %70 = vsyncpa [#allocation3], 0
    %71 = vsyncpa [#allocation6], 0
    %72 = vsyncpa [#allocation9], 0
    %73 = vsyncpa [#allocation12], 0
    %74 = vsyncpa [#allocation15], 0
    %75 = vsyncpa [#allocation18], 0
    %76 = vsyncpa [#allocation21], 0
    %77 = vsyncpa [#allocation24], 0
    %78 = vsyncpa [#allocation27], 0
    %79 = vsyncpa [#allocation30], 0
    %80 = vsyncpa [#allocation33], 0
    %81 = vsyncpa [#allocation36], 0
    %82 = vsyncpa [#allocation4], 0
    // Predicated region
    $region2: #{tpu_custom_call.1} parent=1 // pred_check
      _
    $region3: #{tpu_custom_call.1} parent=1 // pred_check_branch
      %84 = sbr.rel (0) target = $region5
    $region4: #{tpu_custom_call.1} parent=1 // pred_region
      %s86 = ssub.s32 128, 128
      %87 = vsyncadd [#allocation3], %s86
      %s88 = sshll.u32 [#allocation2], 4
      %s89 = int_to_ptr.vmem [resolvable:$true] %s88
      %94 = dma.hbm_to_vmem [thread:$0]  %s1, 128, %s89, [#allocation3], 64, 64, 4
    $region5: #{tpu_custom_call.1} parent=1 // pred_fallthru
      _
    // Predicated region
    $region6: #{tpu_custom_call.1} parent=1 // pred_check
      _
    $region7: #{tpu_custom_call.1} parent=1 // pred_check_branch
      %96 = sbr.rel (0) target = $region9
    $region8: #{tpu_custom_call.1} parent=1 // pred_region
      %s98 = ssub.s32 128, 128
      %99 = vsyncadd [#allocation6], %s98
      %s100 = sshll.u32 [#allocation5], 4
      %s101 = int_to_ptr.vmem [resolvable:$true] %s100
      %106 = dma.hbm_to_vmem [thread:$0]  %s3, 128, %s101, [#allocation6], 64, 64, 4
    $region9: #{tpu_custom_call.1} parent=1 // pred_fallthru
      _
    // Predicated region
    $region10: #{tpu_custom_call.1} parent=1 // pred_check
      _
    $region11: #{tpu_custom_call.1} parent=1 // pred_check_branch
      %108 = sbr.rel (0) target = $region13
    $region12: #{tpu_custom_call.1} parent=1 // pred_region
      %s110 = ssub.s32 32, 32
      %111 = vsyncadd [#allocation6], %s110
      %s113 = sshll.u32 [#allocation7], 4
      %s114 = int_to_ptr.vmem [resolvable:$true] %s113
      %116 = dma.hbm_to_vmem [thread:$0]  %s5, 32, %s114, [#allocation6]
    $region13: #{tpu_custom_call.1} parent=1 // pred_fallthru
      _
    // Predicated region
    $region14: #{tpu_custom_call.1} parent=1 // pred_check
      _
    $region15: #{tpu_custom_call.1} parent=1 // pred_check_branch
      %118 = sbr.rel (0) target = $region17
    $region16: #{tpu_custom_call.1} parent=1 // pred_region
      %s120 = ssub.s32 256, 256
      %121 = vsyncadd [#allocation9], %s120
      %s122 = sshll.u32 [#allocation8], 4
      %s123 = int_to_ptr.vmem [resolvable:$true] %s122
      %128 = dma.hbm_to_vmem [thread:$0]  %s7, 256, %s123, [#allocation9], 128, 128, 8
    $region17: #{tpu_custom_call.1} parent=1 // pred_fallthru
      _
    // Predicated region
    $region18: #{tpu_custom_call.1} parent=1 // pred_check
      _
    $region19: #{tpu_custom_call.1} parent=1 // pred_check_branch
      %130 = sbr.rel (0) target = $region21
    $region20: #{tpu_custom_call.1} parent=1 // pred_region
      %s132 = ssub.s32 4096, 4096
      %133 = vsyncadd [#allocation9], %s132
      %s134 = sshll.u32 [#allocation10], 4
      %s135 = int_to_ptr.vmem [resolvable:$true] %s134
      %140 = dma.hbm_to_vmem [thread:$0]  %s9, 4096, %s135, [#allocation9], 64, 64, 4
    $region21: #{tpu_custom_call.1} parent=1 // pred_fallthru
      _
    // Predicated region
    $region22: #{tpu_custom_call.1} parent=1 // pred_check
      _
    $region23: #{tpu_custom_call.1} parent=1 // pred_check_branch
      %142 = sbr.rel (0) target = $region25
    $region24: #{tpu_custom_call.1} parent=1 // pred_region
      %s144 = ssub.s32 3072, 3072
      %145 = vsyncadd [#allocation12], %s144
      %s146 = sshll.u32 [#allocation11], 4
      %s147 = int_to_ptr.vmem [resolvable:$true] %s146
      %152 = dma.hbm_to_vmem [thread:$0]  %s11, 3072, %s147, [#allocation12], 192, 192, 12
    $region25: #{tpu_custom_call.1} parent=1 // pred_fallthru
      _
    // Predicated region
    $region26: #{tpu_custom_call.1} parent=1 // pred_check
      _
    $region27: #{tpu_custom_call.1} parent=1 // pred_check_branch
      %154 = sbr.rel (0) target = $region29
    $region28: #{tpu_custom_call.1} parent=1 // pred_region
      %s156 = ssub.s32 3072, 3072
      %157 = vsyncadd [#allocation12], %s156
      %s158 = sshll.u32 [#allocation13], 4
      %s159 = int_to_ptr.vmem [resolvable:$true] %s158
      %164 = dma.hbm_to_vmem [thread:$0]  %s13, 3072, %s159, [#allocation12], 192, 192, 12
    $region29: #{tpu_custom_call.1} parent=1 // pred_fallthru
      _
    // Predicated region
    $region30: #{tpu_custom_call.1} parent=1 // pred_check
      _
    $region31: #{tpu_custom_call.1} parent=1 // pred_check_branch
      %166 = sbr.rel (0) target = $region33
    $region32: #{tpu_custom_call.1} parent=1 // pred_region
      _
    $region33: #{tpu_custom_call.1} parent=1 // pred_fallthru
      _
    // Predicated region
    $region34: #{tpu_custom_call.1} parent=1 // pred_check
      _
    $region35: #{tpu_custom_call.1} parent=1 // pred_check_branch
      %168 = sbr.rel (0) target = $region37
    $region36: #{tpu_custom_call.1} parent=1 // pred_region
      _
    $region37: #{tpu_custom_call.1} parent=1 // pred_fallthru
      _
    // Predicated region
    $region38: #{tpu_custom_call.1} parent=1 // pred_check
      _
    $region39: #{tpu_custom_call.1} parent=1 // pred_check_branch
      %170 = sbr.rel (0) target = $region41
    $region40: #{tpu_custom_call.1} parent=1 // pred_region
      %s172 = ssub.s32 1024, 1024
      %173 = vsyncadd [#allocation15], %s172
      %s174 = sshll.u32 [#allocation14], 4
      %s175 = int_to_ptr.vmem [resolvable:$true] %s174
      %180 = dma.hbm_to_vmem [thread:$0]  %s19, 1024, %s175, [#allocation15], 64, 64, 4
    $region41: #{tpu_custom_call.1} parent=1 // pred_fallthru
      _
    // Predicated region
    $region42: #{tpu_custom_call.1} parent=1 // pred_check
      _
    $region43: #{tpu_custom_call.1} parent=1 // pred_check_branch
      %182 = sbr.rel (0) target = $region45
    $region44: #{tpu_custom_call.1} parent=1 // pred_region
      _
    $region45: #{tpu_custom_call.1} parent=1 // pred_fallthru
      _
    // Predicated region
    $region46: #{tpu_custom_call.1} parent=1 // pred_check
      _
    $region47: #{tpu_custom_call.1} parent=1 // pred_check_branch
      %184 = sbr.rel (0) target = $region49
    $region48: #{tpu_custom_call.1} parent=1 // pred_region
      %s186 = ssub.s32 1024, 1024
      %187 = vsyncadd [#allocation15], %s186
      %s188 = sshll.u32 [#allocation16], 4
      %s189 = int_to_ptr.vmem [resolvable:$true] %s188
      %194 = dma.hbm_to_vmem [thread:$0]  %s23, 1024, %s189, [#allocation15], 64, 64, 4
    $region49: #{tpu_custom_call.1} parent=1 // pred_fallthru
      _
    // Predicated region
    $region50: #{tpu_custom_call.1} parent=1 // pred_check
      _
    $region51: #{tpu_custom_call.1} parent=1 // pred_check_branch
      %196 = sbr.rel (0) target = $region53
    $region52: #{tpu_custom_call.1} parent=1 // pred_region
      %s198 = ssub.s32 16, 16
      %199 = vsyncadd [#allocation18], %s198
      %s201 = sshll.u32 [#allocation17], 4
      %s202 = int_to_ptr.vmem [resolvable:$true] %s201
      %204 = dma.hbm_to_vmem [thread:$0]  %s25, 16, %s202, [#allocation18]
    $region53: #{tpu_custom_call.1} parent=1 // pred_fallthru
      _
    // Predicated region
    $region54: #{tpu_custom_call.1} parent=1 // pred_check
      _
    $region55: #{tpu_custom_call.1} parent=1 // pred_check_branch
      %206 = sbr.rel (0) target = $region57
    $region56: #{tpu_custom_call.1} parent=1 // pred_region
      %s208 = ssub.s32 16, 16
      %209 = vsyncadd [#allocation18], %s208
      %s211 = sshll.u32 [#allocation19], 4
      %s212 = int_to_ptr.vmem [resolvable:$true] %s211
      %214 = dma.hbm_to_vmem [thread:$0]  %s27, 16, %s212, [#allocation18]
    $region57: #{tpu_custom_call.1} parent=1 // pred_fallthru
      _
    // Predicated region
    $region58: #{tpu_custom_call.1} parent=1 // pred_check
      _
    $region59: #{tpu_custom_call.1} parent=1 // pred_check_branch
      %216 = sbr.rel (0) target = $region61
    $region60: #{tpu_custom_call.1} parent=1 // pred_region
      %s218 = ssub.s32 5120, 5120
      %219 = vsyncadd [#allocation21], %s218
      %s220 = sshll.u32 [#allocation20], 4
      %s221 = int_to_ptr.vmem [resolvable:$true] %s220
      %226 = dma.hbm_to_vmem [thread:$0]  %s29, 5120, %s221, [#allocation21], 64, 64, 4
    $region61: #{tpu_custom_call.1} parent=1 // pred_fallthru
      _
    // Predicated region
    $region62: #{tpu_custom_call.1} parent=1 // pred_check
      _
    $region63: #{tpu_custom_call.1} parent=1 // pred_check_branch
      %228 = sbr.rel (0) target = $region65
    $region64: #{tpu_custom_call.1} parent=1 // pred_region
      %s230 = ssub.s32 3072, 3072
      %231 = vsyncadd [#allocation21], %s230
      %s232 = sshll.u32 [#allocation22], 4
      %s233 = int_to_ptr.vmem [resolvable:$true] %s232
      %238 = dma.hbm_to_vmem [thread:$0]  %s31, 3072, %s233, [#allocation21], 192, 192, 12
    $region65: #{tpu_custom_call.1} parent=1 // pred_fallthru
      _
    // Predicated region
    $region66: #{tpu_custom_call.1} parent=1 // pred_check
      _
    $region67: #{tpu_custom_call.1} parent=1 // pred_check_branch
      %240 = sbr.rel (0) target = $region69
    $region68: #{tpu_custom_call.1} parent=1 // pred_region
      %s242 = ssub.s32 3072, 3072
      %243 = vsyncadd [#allocation24], %s242
      %s244 = sshll.u32 [#allocation23], 4
      %s245 = int_to_ptr.vmem [resolvable:$true] %s244
      %250 = dma.hbm_to_vmem [thread:$0]  %s33, 3072, %s245, [#allocation24], 192, 192, 12
    $region69: #{tpu_custom_call.1} parent=1 // pred_fallthru
      _
    // Predicated region
    $region70: #{tpu_custom_call.1} parent=1 // pred_check
      _
    $region71: #{tpu_custom_call.1} parent=1 // pred_check_branch
      %252 = sbr.rel (0) target = $region73
    $region72: #{tpu_custom_call.1} parent=1 // pred_region
      %s254 = ssub.s32 48, 48
      %255 = vsyncadd [#allocation24], %s254
      %s257 = sshll.u32 [#allocation25], 4
      %s258 = int_to_ptr.vmem [resolvable:$true] %s257
      %260 = dma.hbm_to_vmem [thread:$0]  %s35, 48, %s258, [#allocation24]
    $region73: #{tpu_custom_call.1} parent=1 // pred_fallthru
      _
    // Predicated region
    $region74: #{tpu_custom_call.1} parent=1 // pred_check
      _
    $region75: #{tpu_custom_call.1} parent=1 // pred_check_branch
      %262 = sbr.rel (0) target = $region77
    $region76: #{tpu_custom_call.1} parent=1 // pred_region
      %s264 = ssub.s32 48, 48
      %265 = vsyncadd [#allocation27], %s264
      %s267 = sshll.u32 [#allocation26], 4
      %s268 = int_to_ptr.vmem [resolvable:$true] %s267
      %270 = dma.hbm_to_vmem [thread:$0]  %s37, 48, %s268, [#allocation27]
    $region77: #{tpu_custom_call.1} parent=1 // pred_fallthru
      _
    // Predicated region
    $region78: #{tpu_custom_call.1} parent=1 // pred_check
      _
    $region79: #{tpu_custom_call.1} parent=1 // pred_check_branch
      %272 = sbr.rel (0) target = $region81
    $region80: #{tpu_custom_call.1} parent=1 // pred_region
      _
    $region81: #{tpu_custom_call.1} parent=1 // pred_fallthru
      _
    // Predicated region
    $region82: #{tpu_custom_call.1} parent=1 // pred_check
      _
    $region83: #{tpu_custom_call.1} parent=1 // pred_check_branch
      %274 = sbr.rel (0) target = $region85
    $region84: #{tpu_custom_call.1} parent=1 // pred_region
      _
    $region85: #{tpu_custom_call.1} parent=1 // pred_fallthru
      _
    // Predicated region
    $region86: #{tpu_custom_call.1} parent=1 // pred_check
      _
    $region87: #{tpu_custom_call.1} parent=1 // pred_check_branch
      %276 = sbr.rel (0) target = $region89
    $region88: #{tpu_custom_call.1} parent=1 // pred_region
      %s278 = ssub.s32 8192, 8192
      %279 = vsyncadd [#allocation27], %s278
      %s280 = sshll.u32 [#allocation28], 4
      %s281 = int_to_ptr.vmem [resolvable:$true] %s280
      %286 = dma.hbm_to_vmem [thread:$0]  %s43, 8192, %s281, [#allocation27], 64, 64, 4
    $region89: #{tpu_custom_call.1} parent=1 // pred_fallthru
      _
    // Predicated region
    $region90: #{tpu_custom_call.1} parent=1 // pred_check
      _
    $region91: #{tpu_custom_call.1} parent=1 // pred_check_branch
      %288 = sbr.rel (0) target = $region93
    $region92: #{tpu_custom_call.1} parent=1 // pred_region
      _
    $region93: #{tpu_custom_call.1} parent=1 // pred_fallthru
      _
    // Predicated region
    $region94: #{tpu_custom_call.1} parent=1 // pred_check
      _
    $region95: #{tpu_custom_call.1} parent=1 // pred_check_branch
      %290 = sbr.rel (0) target = $region97
    $region96: #{tpu_custom_call.1} parent=1 // pred_region
      %s292 = ssub.s32 1024, 1024
      %293 = vsyncadd [#allocation30], %s292
      %s294 = sshll.u32 [#allocation29], 4
      %s295 = int_to_ptr.vmem [resolvable:$true] %s294
      %300 = dma.hbm_to_vmem [thread:$0]  %s47, 1024, %s295, [#allocation30], 64, 64, 4
    $region97: #{tpu_custom_call.1} parent=1 // pred_fallthru
      _
    // Predicated region
    $region98: #{tpu_custom_call.1} parent=1 // pred_check
      _
    $region99: #{tpu_custom_call.1} parent=1 // pred_check_branch
      %302 = sbr.rel (0) target = $region101
    $region100: #{tpu_custom_call.1} parent=1 // pred_region
      _
    $region101: #{tpu_custom_call.1} parent=1 // pred_fallthru
      _
    // Predicated region
    $region102: #{tpu_custom_call.1} parent=1 // pred_check
      _
    $region103: #{tpu_custom_call.1} parent=1 // pred_check_branch
      %304 = sbr.rel (0) target = $region105
    $region104: #{tpu_custom_call.1} parent=1 // pred_region
      %s306 = ssub.s32 1024, 1024
      %307 = vsyncadd [#allocation30], %s306
      %s308 = sshll.u32 [#allocation31], 4
      %s309 = int_to_ptr.vmem [resolvable:$true] %s308
      %314 = dma.hbm_to_vmem [thread:$0]  %s51, 1024, %s309, [#allocation30], 64, 64, 4
    $region105: #{tpu_custom_call.1} parent=1 // pred_fallthru
      _
    // Predicated region
    $region106: #{tpu_custom_call.1} parent=1 // pred_check
      _
    $region107: #{tpu_custom_call.1} parent=1 // pred_check_branch
      %316 = sbr.rel (0) target = $region109
    $region108: #{tpu_custom_call.1} parent=1 // pred_region
      _
    $region109: #{tpu_custom_call.1} parent=1 // pred_fallthru
      _
    // Predicated region
    $region110: #{tpu_custom_call.1} parent=1 // pred_check
      _
    $region111: #{tpu_custom_call.1} parent=1 // pred_check_branch
      %318 = sbr.rel (0) target = $region113
    $region112: #{tpu_custom_call.1} parent=1 // pred_region
      %s320 = ssub.s32 1024, 1024
      %321 = vsyncadd [#allocation33], %s320
      %s322 = sshll.u32 [#allocation32], 4
      %s323 = int_to_ptr.vmem [resolvable:$true] %s322
      %328 = dma.hbm_to_vmem [thread:$0]  %s55, 1024, %s323, [#allocation33], 64, 64, 4
    $region113: #{tpu_custom_call.1} parent=1 // pred_fallthru
      _
    // Predicated region
    $region114: #{tpu_custom_call.1} parent=1 // pred_check
      _
    $region115: #{tpu_custom_call.1} parent=1 // pred_check_branch
      %330 = sbr.rel (0) target = $region117
    $region116: #{tpu_custom_call.1} parent=1 // pred_region
      %s332 = ssub.s32 1024, 1024
      %333 = vsyncadd [#allocation33], %s332
      %s334 = sshll.u32 [#allocation34], 4
      %s335 = int_to_ptr.vmem [resolvable:$true] %s334
      %340 = dma.hbm_to_vmem [thread:$0]  %s57, 1024, %s335, [#allocation33], 64, 64, 4
    $region117: #{tpu_custom_call.1} parent=1 // pred_fallthru
      _
    // Predicated region
    $region118: #{tpu_custom_call.1} parent=1 // pred_check
      _
    $region119: #{tpu_custom_call.1} parent=1 // pred_check_branch
      %342 = sbr.rel (0) target = $region121
    $region120: #{tpu_custom_call.1} parent=1 // pred_region
      _
    $region121: #{tpu_custom_call.1} parent=1 // pred_fallthru
      _
    // Predicated region
    $region122: #{tpu_custom_call.1} parent=1 // pred_check
      _
    $region123: #{tpu_custom_call.1} parent=1 // pred_check_branch
      %344 = sbr.rel (0) target = $region125
    $region124: #{tpu_custom_call.1} parent=1 // pred_region
      %s346 = ssub.s32 1024, 1024
      %347 = vsyncadd [#allocation36], %s346
      %s348 = sshll.u32 [#allocation35], 4
      %s349 = int_to_ptr.vmem [resolvable:$true] %s348
      %354 = dma.hbm_to_vmem [thread:$0]  %s61, 1024, %s349, [#allocation36], 64, 64, 4
    $region125: #{tpu_custom_call.1} parent=1 // pred_fallthru
      _
    // Predicated region
    $region126: #{tpu_custom_call.1} parent=1 // pred_check
      _
    $region127: #{tpu_custom_call.1} parent=1 // pred_check_branch
      %356 = sbr.rel (0) target = $region129
    $region128: #{tpu_custom_call.1} parent=1 // pred_region
      _
    $region129: #{tpu_custom_call.1} parent=1 // pred_fallthru
      _
    // Predicated region
    $region130: #{tpu_custom_call.1} parent=1 // pred_check
      _
    $region131: #{tpu_custom_call.1} parent=1 // pred_check_branch
      %358 = sbr.rel (0) target = $region133
    $region132: #{tpu_custom_call.1} parent=1 // pred_region
      %359 = dma.done [#allocation3], 128
    $region133: #{tpu_custom_call.1} parent=1 // pred_fallthru
      _
    // Predicated region
    $region134: #{tpu_custom_call.1} parent=1 // pred_check
      _
    $region135: #{tpu_custom_call.1} parent=1 // pred_check_branch
      %361 = sbr.rel (0) target = $region137
    $region136: #{tpu_custom_call.1} parent=1 // pred_region
      %362 = dma.done [#allocation6], 128
    $region137: #{tpu_custom_call.1} parent=1 // pred_fallthru
      _
    // Predicated region
    $region138: #{tpu_custom_call.1} parent=1 // pred_check
      _
    $region139: #{tpu_custom_call.1} parent=1 // pred_check_branch
      %364 = sbr.rel (0) target = $region141
    $region140: #{tpu_custom_call.1} parent=1 // pred_region
      %365 = dma.done [#allocation6], 32
    $region141: #{tpu_custom_call.1} parent=1 // pred_fallthru
      _
    // Predicated region
    $region142: #{tpu_custom_call.1} parent=1 // pred_check
      _
    $region143: #{tpu_custom_call.1} parent=1 // pred_check_branch
      %367 = sbr.rel (0) target = $region145
    $region144: #{tpu_custom_call.1} parent=1 // pred_region
      %368 = dma.done [#allocation9], 256
    $region145: #{tpu_custom_call.1} parent=1 // pred_fallthru
      _
    // Predicated region
    $region146: #{tpu_custom_call.1} parent=1 // pred_check
      _
    $region147: #{tpu_custom_call.1} parent=1 // pred_check_branch
      %370 = sbr.rel (0) target = $region149
    $region148: #{tpu_custom_call.1} parent=1 // pred_region
      %371 = dma.done [#allocation9], 4096
    $region149: #{tpu_custom_call.1} parent=1 // pred_fallthru
      _
    // Predicated region
    $region150: #{tpu_custom_call.1} parent=1 // pred_check
      _
    $region151: #{tpu_custom_call.1} parent=1 // pred_check_branch
      %373 = sbr.rel (0) target = $region153
    $region152: #{tpu_custom_call.1} parent=1 // pred_region
      %374 = dma.done [#allocation12], 3072
    $region153: #{tpu_custom_call.1} parent=1 // pred_fallthru
      _
    // Predicated region
    $region154: #{tpu_custom_call.1} parent=1 // pred_check
      _
    $region155: #{tpu_custom_call.1} parent=1 // pred_check_branch
      %376 = sbr.rel (0) target = $region157
    $region156: #{tpu_custom_call.1} parent=1 // pred_region
      %377 = dma.done [#allocation12], 3072
    $region157: #{tpu_custom_call.1} parent=1 // pred_fallthru
      _
    // Predicated region
    $region158: #{tpu_custom_call.1} parent=1 // pred_check
      _
    $region159: #{tpu_custom_call.1} parent=1 // pred_check_branch
      %379 = sbr.rel (0) target = $region161
    $region160: #{tpu_custom_call.1} parent=1 // pred_region
      %380 = dma.done [#allocation15], 1024
    $region161: #{tpu_custom_call.1} parent=1 // pred_fallthru
      _
    // Predicated region
    $region162: #{tpu_custom_call.1} parent=1 // pred_check
      _
    $region163: #{tpu_custom_call.1} parent=1 // pred_check_branch
      %382 = sbr.rel (0) target = $region165
    $region164: #{tpu_custom_call.1} parent=1 // pred_region
      %383 = dma.done [#allocation15], 1024
    $region165: #{tpu_custom_call.1} parent=1 // pred_fallthru
      _
    // Predicated region
    $region166: #{tpu_custom_call.1} parent=1 // pred_check
      _
    $region167: #{tpu_custom_call.1} parent=1 // pred_check_branch
      %385 = sbr.rel (0) target = $region169
    $region168: #{tpu_custom_call.1} parent=1 // pred_region
      %386 = dma.done [#allocation18], 16
    $region169: #{tpu_custom_call.1} parent=1 // pred_fallthru
      _
    // Predicated region
    $region170: #{tpu_custom_call.1} parent=1 // pred_check
      _
    $region171: #{tpu_custom_call.1} parent=1 // pred_check_branch
      %388 = sbr.rel (0) target = $region173
    $region172: #{tpu_custom_call.1} parent=1 // pred_region
      %389 = dma.done [#allocation18], 16
    $region173: #{tpu_custom_call.1} parent=1 // pred_fallthru
      _
    // Predicated region
    $region174: #{tpu_custom_call.1} parent=1 // pred_check
      _
    $region175: #{tpu_custom_call.1} parent=1 // pred_check_branch
      %391 = sbr.rel (0) target = $region177
    $region176: #{tpu_custom_call.1} parent=1 // pred_region
      %392 = dma.done [#allocation21], 5120
    $region177: #{tpu_custom_call.1} parent=1 // pred_fallthru
      _
    // Predicated region
    $region178: #{tpu_custom_call.1} parent=1 // pred_check
      _
    $region179: #{tpu_custom_call.1} parent=1 // pred_check_branch
      %394 = sbr.rel (0) target = $region181
    $region180: #{tpu_custom_call.1} parent=1 // pred_region
      %395 = dma.done [#allocation21], 3072
    $region181: #{tpu_custom_call.1} parent=1 // pred_fallthru
      _
    // Predicated region
    $region182: #{tpu_custom_call.1} parent=1 // pred_check
      _
    $region183: #{tpu_custom_call.1} parent=1 // pred_check_branch
      %397 = sbr.rel (0) target = $region185
    $region184: #{tpu_custom_call.1} parent=1 // pred_region
      %398 = dma.done [#allocation24], 3072
    $region185: #{tpu_custom_call.1} parent=1 // pred_fallthru
      _
    // Predicated region
    $region186: #{tpu_custom_call.1} parent=1 // pred_check
      _
    $region187: #{tpu_custom_call.1} parent=1 // pred_check_branch
      %400 = sbr.rel (0) target = $region189
    $region188: #{tpu_custom_call.1} parent=1 // pred_region
      %401 = dma.done [#allocation24], 48
    $region189: #{tpu_custom_call.1} parent=1 // pred_fallthru
      _
    // Predicated region
    $region190: #{tpu_custom_call.1} parent=1 // pred_check
      _
    $region191: #{tpu_custom_call.1} parent=1 // pred_check_branch
      %403 = sbr.rel (0) target = $region193
    $region192: #{tpu_custom_call.1} parent=1 // pred_region
      %404 = dma.done [#allocation27], 48
    $region193: #{tpu_custom_call.1} parent=1 // pred_fallthru
      _
    // Predicated region
    $region194: #{tpu_custom_call.1} parent=1 // pred_check
      _
    $region195: #{tpu_custom_call.1} parent=1 // pred_check_branch
      %406 = sbr.rel (0) target = $region197
    $region196: #{tpu_custom_call.1} parent=1 // pred_region
      %407 = dma.done [#allocation27], 8192
    $region197: #{tpu_custom_call.1} parent=1 // pred_fallthru
      _
    // Predicated region
    $region198: #{tpu_custom_call.1} parent=1 // pred_check
      _
    $region199: #{tpu_custom_call.1} parent=1 // pred_check_branch
      %409 = sbr.rel (0) target = $region201
    $region200: #{tpu_custom_call.1} parent=1 // pred_region
      %410 = dma.done [#allocation30], 1024
    $region201: #{tpu_custom_call.1} parent=1 // pred_fallthru
      _
    // Predicated region
    $region202: #{tpu_custom_call.1} parent=1 // pred_check
      _
    $region203: #{tpu_custom_call.1} parent=1 // pred_check_branch
      %412 = sbr.rel (0) target = $region205
    $region204: #{tpu_custom_call.1} parent=1 // pred_region
      %413 = dma.done [#allocation30], 1024
    $region205: #{tpu_custom_call.1} parent=1 // pred_fallthru
      _
    // Predicated region
    $region206: #{tpu_custom_call.1} parent=1 // pred_check
      _
    $region207: #{tpu_custom_call.1} parent=1 // pred_check_branch
      %415 = sbr.rel (0) target = $region209
    $region208: #{tpu_custom_call.1} parent=1 // pred_region
      %416 = dma.done [#allocation33], 1024
    $region209: #{tpu_custom_call.1} parent=1 // pred_fallthru
      _
    // Predicated region
    $region210: #{tpu_custom_call.1} parent=1 // pred_check
      _
    $region211: #{tpu_custom_call.1} parent=1 // pred_check_branch
      %418 = sbr.rel (0) target = $region213
    $region212: #{tpu_custom_call.1} parent=1 // pred_region
      %419 = dma.done [#allocation33], 1024
    $region213: #{tpu_custom_call.1} parent=1 // pred_fallthru
      _
    // Predicated region
    $region214: #{tpu_custom_call.1} parent=1 // pred_check
      _
    $region215: #{tpu_custom_call.1} parent=1 // pred_check_branch
      %421 = sbr.rel (0) target = $region217
    $region216: #{tpu_custom_call.1} parent=1 // pred_region
      %422 = dma.done [#allocation36], 1024
    $region217: #{tpu_custom_call.1} parent=1 // pred_fallthru
      _
    %v424 = vld [vmem:[#allocation2] sm:$0xf]
    %v425 = vld [vmem:[#allocation2 + $0x4] sm:$0xf]
    %v426 = vunpack.c.l.bf16 %v424
    %v427 = vunpack.c.l.bf16 %v425
    %v428 = vld [vmem:[#allocation5] sm:$0xf]
    %v429 = vld [vmem:[#allocation5 + $0x4] sm:$0xf]
    %v430 = vld [vmem:[#allocation7] sm:$0x3]
    %v431 = vld [vmem:[#allocation8] sm:$0xff]
    %v432 = vld [vmem:[#allocation8 + $0x8] sm:$0xff]
    %vm433 = vcmask 130048
    %v434 = vsel %vm433, %v426, 0.0
    %435 = vadd.xlane.f32.xlu0 %v434
    %v436 = vpop.xlane.xlu0 %435
    %v437 = vsel %vm433, %v427, 0.0
    %438 = vadd.xlane.f32.xlu0 %v437
    %v439 = vpop.xlane.xlu0 %438
    %vm440 = vcmp.gt.f32.partialorder %v436, 0.0
    %vm441 = vcmp.gt.f32.partialorder %v439, 0.0
    %v442 = vld [vmem:[#allocation11] sm:$0xff]
    %v443 = vld [vmem:[#allocation11 + $0x8] sm:$0xf]
    %v444 = vld [vmem:[#allocation11 + $0xc] sm:$0xff]
    %v445 = vld [vmem:[#allocation11 + $0x14] sm:$0xf]
    %v446 = vld [vmem:[#allocation11 + $0x18] sm:$0xff]
    %v447 = vld [vmem:[#allocation11 + $0x20] sm:$0xf]
    %v448 = vld [vmem:[#allocation11 + $0x24] sm:$0xff]
    %v449 = vld [vmem:[#allocation11 + $0x2c] sm:$0xf]
    %v450 = vld [vmem:[#allocation11 + $0x30] sm:$0xff]
    %v451 = vld [vmem:[#allocation11 + $0x38] sm:$0xf]
    %v452 = vld [vmem:[#allocation11 + $0x3c] sm:$0xff]
    %v453 = vld [vmem:[#allocation11 + $0x44] sm:$0xf]
    %v454 = vld [vmem:[#allocation11 + $0x48] sm:$0xff]
    %v455 = vld [vmem:[#allocation11 + $0x50] sm:$0xf]
    %v456 = vld [vmem:[#allocation11 + $0x54] sm:$0xff]
    %v457 = vld [vmem:[#allocation11 + $0x5c] sm:$0xf]
    %v458 = vld [vmem:[#allocation11 + $0x60] sm:$0xff]
    %v459 = vld [vmem:[#allocation11 + $0x68] sm:$0xf]
    %v460 = vld [vmem:[#allocation11 + $0x6c] sm:$0xff]
    %v461 = vld [vmem:[#allocation11 + $0x74] sm:$0xf]
    %v462 = vld [vmem:[#allocation11 + $0x78] sm:$0xff]
    %v463 = vld [vmem:[#allocation11 + $0x80] sm:$0xf]
    %v464 = vld [vmem:[#allocation11 + $0x84] sm:$0xff]
    %v465 = vld [vmem:[#allocation11 + $0x8c] sm:$0xf]
    %v466 = vld [vmem:[#allocation11 + $0x90] sm:$0xff]
    %v467 = vld [vmem:[#allocation11 + $0x98] sm:$0xf]
    %v468 = vld [vmem:[#allocation11 + $0x9c] sm:$0xff]
    %v469 = vld [vmem:[#allocation11 + $0xa4] sm:$0xf]
    %v470 = vld [vmem:[#allocation11 + $0xa8] sm:$0xff]
    %v471 = vld [vmem:[#allocation11 + $0xb0] sm:$0xf]
    %v472 = vld [vmem:[#allocation11 + $0xb4] sm:$0xff]
    %v473 = vld [vmem:[#allocation11 + $0xbc] sm:$0xf]
    %v474 = vld [vmem:[#allocation13] sm:$0xff]
    %v475 = vld [vmem:[#allocation13 + $0x8] sm:$0xf]
    %v476 = vld [vmem:[#allocation13 + $0xc] sm:$0xff]
    %v477 = vld [vmem:[#allocation13 + $0x14] sm:$0xf]
    %v478 = vld [vmem:[#allocation13 + $0x18] sm:$0xff]
    %v479 = vld [vmem:[#allocation13 + $0x20] sm:$0xf]
    %v480 = vld [vmem:[#allocation13 + $0x24] sm:$0xff]
    %v481 = vld [vmem:[#allocation13 + $0x2c] sm:$0xf]
    %v482 = vld [vmem:[#allocation13 + $0x30] sm:$0xff]
    %v483 = vld [vmem:[#allocation13 + $0x38] sm:$0xf]
    %v484 = vld [vmem:[#allocation13 + $0x3c] sm:$0xff]
    %v485 = vld [vmem:[#allocation13 + $0x44] sm:$0xf]
    %v486 = vld [vmem:[#allocation13 + $0x48] sm:$0xff]
    %v487 = vld [vmem:[#allocation13 + $0x50] sm:$0xf]
    %v488 = vld [vmem:[#allocation13 + $0x54] sm:$0xff]
    %v489 = vld [vmem:[#allocation13 + $0x5c] sm:$0xf]
    %v490 = vld [vmem:[#allocation13 + $0x60] sm:$0xff]
    %v491 = vld [vmem:[#allocation13 + $0x68] sm:$0xf]
    %v492 = vld [vmem:[#allocation13 + $0x6c] sm:$0xff]
    %v493 = vld [vmem:[#allocation13 + $0x74] sm:$0xf]
    %v494 = vld [vmem:[#allocation13 + $0x78] sm:$0xff]
    %v495 = vld [vmem:[#allocation13 + $0x80] sm:$0xf]
    %v496 = vld [vmem:[#allocation13 + $0x84] sm:$0xff]
    %v497 = vld [vmem:[#allocation13 + $0x8c] sm:$0xf]
    %v498 = vld [vmem:[#allocation13 + $0x90] sm:$0xff]
    %v499 = vld [vmem:[#allocation13 + $0x98] sm:$0xf]
    %v500 = vld [vmem:[#allocation13 + $0x9c] sm:$0xff]
    %v501 = vld [vmem:[#allocation13 + $0xa4] sm:$0xf]
    %v502 = vld [vmem:[#allocation13 + $0xa8] sm:$0xff]
    %v503 = vld [vmem:[#allocation13 + $0xb0] sm:$0xf]
    %v504 = vld [vmem:[#allocation13 + $0xb4] sm:$0xff]
    %v505 = vld [vmem:[#allocation13 + $0xbc] sm:$0xf]
    %v506 = vld [vmem:[%s15] sm:$0x7]
    %v507 = vld [vmem:[%s17] sm:$0x7]
    %v508 = vld [vmem:[#allocation10] sm:$0xf]
    %v509 = vld [vmem:[#allocation10 + $0x4] sm:$0xf]
    %v510 = vld [vmem:[#allocation10 + $0x8] sm:$0xf]
    %v511 = vld [vmem:[#allocation10 + $0xc] sm:$0xf]
    %v512 = vld [vmem:[#allocation10 + $0x10] sm:$0xf]
    %v513 = vld [vmem:[#allocation10 + $0x14] sm:$0xf]
    %v514 = vld [vmem:[#allocation10 + $0x18] sm:$0xf]
    %v515 = vld [vmem:[#allocation10 + $0x1c] sm:$0xf]
    %v516 = vld [vmem:[#allocation10 + $0x20] sm:$0xf]
    %v517 = vld [vmem:[#allocation10 + $0x24] sm:$0xf]
    %v518 = vld [vmem:[#allocation10 + $0x28] sm:$0xf]
    %v519 = vld [vmem:[#allocation10 + $0x2c] sm:$0xf]
    %v520 = vld [vmem:[#allocation10 + $0x30] sm:$0xf]
    %v521 = vld [vmem:[#allocation10 + $0x34] sm:$0xf]
    %v522 = vld [vmem:[#allocation10 + $0x38] sm:$0xf]
    %v523 = vld [vmem:[#allocation10 + $0x3c] sm:$0xf]
    %v524 = vpack.c.bf16 %v432, %v431
    %v541 = vunpack.c.l.b16 %v508
    %v542 = vunpack.c.l.b16 %v509
    %v543 = vunpack.c.l.b16 %v510
    %v544 = vunpack.c.l.b16 %v511
    %v545 = vunpack.c.l.b16 %v512
    %v546 = vunpack.c.l.b16 %v513
    %v547 = vunpack.c.l.b16 %v514
    %v548 = vunpack.c.l.b16 %v515
    %v549 = vunpack.c.l.b16 %v516
    %v550 = vunpack.c.l.b16 %v517
    %v551 = vunpack.c.l.b16 %v518
    %v552 = vunpack.c.l.b16 %v519
    %v553 = vunpack.c.l.b16 %v520
    %v554 = vunpack.c.l.b16 %v521
    %v555 = vunpack.c.l.b16 %v522
    %v556 = vunpack.c.l.b16 %v523
    %v557 = vpack.c.b16 %v542, %v541
    %v558 = vpack.c.b16 %v544, %v543
    %v559 = vpack.c.b16 %v546, %v545
    %v560 = vpack.c.b16 %v548, %v547
    %v561 = vpack.c.b16 %v550, %v549
    %v562 = vpack.c.b16 %v552, %v551
    %v563 = vpack.c.b16 %v554, %v553
    %v564 = vpack.c.b16 %v556, %v555
    %573 = vmatprep.subr.bf16.mxu0 0
    %574 = vmatpush1.bf16.msra.mxu0 %v557
    %575 = vmatprep.subr.bf16.mxu0 0
    %576 = vmatpush1.bf16.msra.mxu0 %v558
    %577 = vmatprep.subr.bf16.mxu0 0
    %578 = vmatpush1.bf16.msra.mxu0 %v559
    %579 = vmatprep.subr.bf16.mxu0 0
    %580 = vmatpush1.bf16.msra.mxu0 %v560
    %581 = vmatprep.subr.bf16.mxu0 0
    %582 = vmatpush1.bf16.msra.mxu0 %v561
    %583 = vmatprep.subr.bf16.mxu0 0
    %584 = vmatpush1.bf16.msra.mxu0 %v562
    %585 = vmatprep.subr.bf16.mxu0 0
    %586 = vmatpush1.bf16.msra.mxu0 %v563
    %587 = vmatprep.subr.bf16.mxu0 0
    %588 = vmatpush1.bf16.msra.mxu0 %v564
    %589 = vmatprep.subr.bf16.mxu0 0
    %590 = vmatpush1.bf16.msra.mxu0 0
    %591 = vmatprep.subr.bf16.mxu0 0
    %592 = vmatpush1.bf16.msra.mxu0 0
    %593 = vmatprep.subr.bf16.mxu0 0
    %594 = vmatpush1.bf16.msra.mxu0 0
    %595 = vmatprep.subr.bf16.mxu0 0
    %596 = vmatpush1.bf16.msra.mxu0 0
    %597 = vmatprep.subr.bf16.mxu0 0
    %598 = vmatpush1.bf16.msra.mxu0 0
    %599 = vmatprep.subr.bf16.mxu0 0
    %600 = vmatpush1.bf16.msra.mxu0 0
    %601 = vmatprep.subr.bf16.mxu0 0
    %602 = vmatpush1.bf16.msra.mxu0 0
    %603 = vmatprep.subr.bf16.mxu0 0
    %604 = vmatpush1.bf16.msra.mxu0 0
    %605 = vmatprep.mubr.bf16.mxu0 0
    %606 = vmatmul.mubr.bf16.gmra.mrb[0].mxu0 %v524
    %v607 = vpop.f32.mrb[0].mxu0
    %v608 = vadd.f32 0.0, %v607
    %v609 = vpop.f32.mrb[0].mxu0
    %v610 = vpop.f32.mrb[0].mxu0
    %v611 = vadd.f32 0.0, %v610
    %v612 = vpop.f32.mrb[0].mxu0
    %613 = vdwg.mxu0
    %v614 = vlaneseq
    %v615 = vshrl.u32 %v614, 7
    %v616 = vsub.s32 0, %v615
    %v617 = vrot.slane %v426, %v616
    %619 = vbcast.lane.b32.xlu0 %v617, 256
    %v620 = vpop.permute.xlu0 %619
    %s622 = sor.u32 256, 8
    %623 = vbcast.lane.b32.xlu0 %v617, %s622
    %v624 = vpop.permute.xlu0 %623
    %v625 = vlaneseq
    %v626 = vshrl.u32 %v625, 7
    %v627 = vsub.s32 1, %v626
    %v628 = vrot.slane %v426, %v627
    %630 = vbcast.lane.b32.xlu0 %v628, 256
    %v631 = vpop.permute.xlu0 %630
    %s633 = sor.u32 256, 8
    %634 = vbcast.lane.b32.xlu0 %v628, %s633
    %v635 = vpop.permute.xlu0 %634
    %v636 = vlaneseq
    %v637 = vshrl.u32 %v636, 7
    %v638 = vsub.s32 2, %v637
    %v639 = vrot.slane %v426, %v638
    %641 = vbcast.lane.b32.xlu0 %v639, 256
    %v642 = vpop.permute.xlu0 %641
    %s644 = sor.u32 256, 8
    %645 = vbcast.lane.b32.xlu0 %v639, %s644
    %v646 = vpop.permute.xlu0 %645
    %v647 = vlaneseq
    %v648 = vshrl.u32 %v647, 7
    %v649 = vsub.s32 3, %v648
    %v650 = vrot.slane %v426, %v649
    %652 = vbcast.lane.b32.xlu0 %v650, 256
    %v653 = vpop.permute.xlu0 %652
    %s655 = sor.u32 256, 8
    %656 = vbcast.lane.b32.xlu0 %v650, %s655
    %v657 = vpop.permute.xlu0 %656
    %v658 = vlaneseq
    %v659 = vshrl.u32 %v658, 7
    %v660 = vsub.s32 4, %v659
    %v661 = vrot.slane %v426, %v660
    %663 = vbcast.lane.b32.xlu0 %v661, 256
    %v664 = vpop.permute.xlu0 %663
    %s666 = sor.u32 256, 8
    %667 = vbcast.lane.b32.xlu0 %v661, %s666
    %v668 = vpop.permute.xlu0 %667
    %v669 = vlaneseq
    %v670 = vshrl.u32 %v669, 7
    %v671 = vsub.s32 5, %v670
    %v672 = vrot.slane %v426, %v671
    %674 = vbcast.lane.b32.xlu0 %v672, 256
    %v675 = vpop.permute.xlu0 %674
    %s677 = sor.u32 256, 8
    %678 = vbcast.lane.b32.xlu0 %v672, %s677
    %v679 = vpop.permute.xlu0 %678
    %v680 = vlaneseq
    %v681 = vshrl.u32 %v680, 7
    %v682 = vsub.s32 6, %v681
    %v683 = vrot.slane %v426, %v682
    %685 = vbcast.lane.b32.xlu0 %v683, 256
    %v686 = vpop.permute.xlu0 %685
    %s688 = sor.u32 256, 8
    %689 = vbcast.lane.b32.xlu0 %v683, %s688
    %v690 = vpop.permute.xlu0 %689
    %v691 = vlaneseq
    %v692 = vshrl.u32 %v691, 7
    %v693 = vsub.s32 7, %v692
    %v694 = vrot.slane %v426, %v693
    %696 = vbcast.lane.b32.xlu0 %v694, 256
    %v697 = vpop.permute.xlu0 %696
    %s699 = sor.u32 256, 8
    %700 = vbcast.lane.b32.xlu0 %v694, %s699
    %v701 = vpop.permute.xlu0 %700
    %v702 = vlaneseq
    %v703 = vshrl.u32 %v702, 7
    %v704 = vsub.s32 0, %v703
    %v705 = vrot.slane %v427, %v704
    %707 = vbcast.lane.b32.xlu0 %v705, 256
    %v708 = vpop.permute.xlu0 %707
    %s710 = sor.u32 256, 8
    %711 = vbcast.lane.b32.xlu0 %v705, %s710
    %v712 = vpop.permute.xlu0 %711
    %v713 = vlaneseq
    %v714 = vshrl.u32 %v713, 7
    %v715 = vsub.s32 1, %v714
    %v716 = vrot.slane %v427, %v715
    %718 = vbcast.lane.b32.xlu0 %v716, 256
    %v719 = vpop.permute.xlu0 %718
    %s721 = sor.u32 256, 8
    %722 = vbcast.lane.b32.xlu0 %v716, %s721
    %v723 = vpop.permute.xlu0 %722
    %v724 = vlaneseq
    %v725 = vshrl.u32 %v724, 7
    %v726 = vsub.s32 2, %v725
    %v727 = vrot.slane %v427, %v726
    %729 = vbcast.lane.b32.xlu0 %v727, 256
    %v730 = vpop.permute.xlu0 %729
    %s732 = sor.u32 256, 8
    %733 = vbcast.lane.b32.xlu0 %v727, %s732
    %v734 = vpop.permute.xlu0 %733
    %v735 = vlaneseq
    %v736 = vshrl.u32 %v735, 7
    %v737 = vsub.s32 3, %v736
    %v738 = vrot.slane %v427, %v737
    %740 = vbcast.lane.b32.xlu0 %v738, 256
    %v741 = vpop.permute.xlu0 %740
    %s743 = sor.u32 256, 8
    %744 = vbcast.lane.b32.xlu0 %v738, %s743
    %v745 = vpop.permute.xlu0 %744
    %v746 = vlaneseq
    %v747 = vshrl.u32 %v746, 7
    %v748 = vsub.s32 4, %v747
    %v749 = vrot.slane %v427, %v748
    %751 = vbcast.lane.b32.xlu0 %v749, 256
    %v752 = vpop.permute.xlu0 %751
    %s754 = sor.u32 256, 8
    %755 = vbcast.lane.b32.xlu0 %v749, %s754
    %v756 = vpop.permute.xlu0 %755
    %v757 = vlaneseq
    %v758 = vshrl.u32 %v757, 7
    %v759 = vsub.s32 5, %v758
    %v760 = vrot.slane %v427, %v759
    %762 = vbcast.lane.b32.xlu0 %v760, 256
    %v763 = vpop.permute.xlu0 %762
    %s765 = sor.u32 256, 8
    %766 = vbcast.lane.b32.xlu0 %v760, %s765
    %v767 = vpop.permute.xlu0 %766
    %v768 = vlaneseq
    %v769 = vshrl.u32 %v768, 7
    %v770 = vsub.s32 6, %v769
    %v771 = vrot.slane %v427, %v770
    %773 = vbcast.lane.b32.xlu0 %v771, 256
    %v774 = vpop.permute.xlu0 %773
    %s776 = sor.u32 256, 8
    %777 = vbcast.lane.b32.xlu0 %v771, %s776
    %v778 = vpop.permute.xlu0 %777
    %v779 = vlaneseq
    %v780 = vshrl.u32 %v779, 7
    %v781 = vsub.s32 7, %v780
    %v782 = vrot.slane %v427, %v781
    %784 = vbcast.lane.b32.xlu0 %v782, 256
    %v785 = vpop.permute.xlu0 %784
    %s787 = sor.u32 256, 8
    %788 = vbcast.lane.b32.xlu0 %v782, %s787
    %v789 = vpop.permute.xlu0 %788
    %vm790 = vcmp.gt.f32.partialorder %v620, 0.0
    %vm791 = vcmp.gt.f32.partialorder %v624, 0.0
    %vm792 = vcmp.gt.f32.partialorder %v631, 0.0
    %vm793 = vcmp.gt.f32.partialorder %v635, 0.0
    %vm794 = vcmp.gt.f32.partialorder %v642, 0.0
    %vm795 = vcmp.gt.f32.partialorder %v646, 0.0
    %vm796 = vcmp.gt.f32.partialorder %v653, 0.0
    %vm797 = vcmp.gt.f32.partialorder %v657, 0.0
    %vm798 = vcmp.gt.f32.partialorder %v664, 0.0
    %vm799 = vcmp.gt.f32.partialorder %v668, 0.0
    %vm800 = vcmp.gt.f32.partialorder %v675, 0.0
    %vm801 = vcmp.gt.f32.partialorder %v679, 0.0
    %vm802 = vcmp.gt.f32.partialorder %v686, 0.0
    %vm803 = vcmp.gt.f32.partialorder %v690, 0.0
    %vm804 = vcmp.gt.f32.partialorder %v697, 0.0
    %vm805 = vcmp.gt.f32.partialorder %v701, 0.0
    %vm806 = vcmp.gt.f32.partialorder %v708, 0.0
    %vm807 = vcmp.gt.f32.partialorder %v712, 0.0
    %vm808 = vcmp.gt.f32.partialorder %v719, 0.0
    %vm809 = vcmp.gt.f32.partialorder %v723, 0.0
    %vm810 = vcmp.gt.f32.partialorder %v730, 0.0
    %vm811 = vcmp.gt.f32.partialorder %v734, 0.0
    %vm812 = vcmp.gt.f32.partialorder %v741, 0.0
    %vm813 = vcmp.gt.f32.partialorder %v745, 0.0
    %vm814 = vcmp.gt.f32.partialorder %v752, 0.0
    %vm815 = vcmp.gt.f32.partialorder %v756, 0.0
    %vm816 = vcmp.gt.f32.partialorder %v763, 0.0
    %vm817 = vcmp.gt.f32.partialorder %v767, 0.0
    %vm818 = vcmp.gt.f32.partialorder %v774, 0.0
    %vm819 = vcmp.gt.f32.partialorder %v778, 0.0
    %vm820 = vcmp.gt.f32.partialorder %v785, 0.0
    %vm821 = vcmp.gt.f32.partialorder %v789, 0.0
    %v822 = vsel %vm790, 1, 0
    %v823 = vsel %vm791, 1, 0
    %v824 = vsel %vm792, 1, 0
    %v825 = vsel %vm793, 1, 0
    %v826 = vsel %vm794, 1, 0
    %v827 = vsel %vm795, 1, 0
    %v828 = vsel %vm796, 1, 0
    %v829 = vsel %vm797, 1, 0
    %v830 = vsel %vm798, 1, 0
    %v831 = vsel %vm799, 1, 0
    %v832 = vsel %vm800, 1, 0
    %v833 = vsel %vm801, 1, 0
    %v834 = vsel %vm802, 1, 0
    %v835 = vsel %vm803, 1, 0
    %v836 = vsel %vm804, 1, 0
    %v837 = vsel %vm805, 1, 0
    %v838 = vsel %vm806, 1, 0
    %v839 = vsel %vm807, 1, 0
    %v840 = vsel %vm808, 1, 0
    %v841 = vsel %vm809, 1, 0
    %v842 = vsel %vm810, 1, 0
    %v843 = vsel %vm811, 1, 0
    %v844 = vsel %vm812, 1, 0
    %v845 = vsel %vm813, 1, 0
    %v846 = vsel %vm814, 1, 0
    %v847 = vsel %vm815, 1, 0
    %v848 = vsel %vm816, 1, 0
    %v849 = vsel %vm817, 1, 0
    %v850 = vsel %vm818, 1, 0
    %v851 = vsel %vm819, 1, 0
    %v852 = vsel %vm820, 1, 0
    %v853 = vsel %vm821, 1, 0
    %vm854 = vcmp.eq.s32.totalorder %v822, 1
    %vm855 = vcmp.eq.s32.totalorder %v823, 1
    %vm856 = vcmp.eq.s32.totalorder %v824, 1
    %vm857 = vcmp.eq.s32.totalorder %v825, 1
    %vm858 = vcmp.eq.s32.totalorder %v826, 1
    %vm859 = vcmp.eq.s32.totalorder %v827, 1
    %vm860 = vcmp.eq.s32.totalorder %v828, 1
    %vm861 = vcmp.eq.s32.totalorder %v829, 1
    %vm862 = vcmp.eq.s32.totalorder %v830, 1
    %vm863 = vcmp.eq.s32.totalorder %v831, 1
    %vm864 = vcmp.eq.s32.totalorder %v832, 1
    %vm865 = vcmp.eq.s32.totalorder %v833, 1
    %vm866 = vcmp.eq.s32.totalorder %v834, 1
    %vm867 = vcmp.eq.s32.totalorder %v835, 1
    %vm868 = vcmp.eq.s32.totalorder %v836, 1
    %vm869 = vcmp.eq.s32.totalorder %v837, 1
    %vm870 = vcmp.eq.s32.totalorder %v838, 1
    %vm871 = vcmp.eq.s32.totalorder %v839, 1
    %vm872 = vcmp.eq.s32.totalorder %v840, 1
    %vm873 = vcmp.eq.s32.totalorder %v841, 1
    %vm874 = vcmp.eq.s32.totalorder %v842, 1
    %vm875 = vcmp.eq.s32.totalorder %v843, 1
    %vm876 = vcmp.eq.s32.totalorder %v844, 1
    %vm877 = vcmp.eq.s32.totalorder %v845, 1
    %vm878 = vcmp.eq.s32.totalorder %v846, 1
    %vm879 = vcmp.eq.s32.totalorder %v847, 1
    %vm880 = vcmp.eq.s32.totalorder %v848, 1
    %vm881 = vcmp.eq.s32.totalorder %v849, 1
    %vm882 = vcmp.eq.s32.totalorder %v850, 1
    %vm883 = vcmp.eq.s32.totalorder %v851, 1
    %vm884 = vcmp.eq.s32.totalorder %v852, 1
    %vm885 = vcmp.eq.s32.totalorder %v853, 1
    %v886 = vsel %vm854, %v608, inf
    %v887 = vsel %vm855, %v611, inf
    %v888 = vsel %vm856, %v608, inf
    %v889 = vsel %vm857, %v611, inf
    %v890 = vsel %vm858, %v608, inf
    %v891 = vsel %vm859, %v611, inf
    %v892 = vsel %vm860, %v608, inf
    %v893 = vsel %vm861, %v611, inf
    %v894 = vsel %vm862, %v608, inf
    %v895 = vsel %vm863, %v611, inf
    %v896 = vsel %vm864, %v608, inf
    %v897 = vsel %vm865, %v611, inf
    %v898 = vsel %vm866, %v608, inf
    %v899 = vsel %vm867, %v611, inf
    %v900 = vsel %vm868, %v608, inf
    %v901 = vsel %vm869, %v611, inf
    %v902 = vsel %vm870, %v608, inf
    %v903 = vsel %vm871, %v611, inf
    %v904 = vsel %vm872, %v608, inf
    %v905 = vsel %vm873, %v611, inf
    %v906 = vsel %vm874, %v608, inf
    %v907 = vsel %vm875, %v611, inf
    %v908 = vsel %vm876, %v608, inf
    %v909 = vsel %vm877, %v611, inf
    %v910 = vsel %vm878, %v608, inf
    %v911 = vsel %vm879, %v611, inf
    %v912 = vsel %vm880, %v608, inf
    %v913 = vsel %vm881, %v611, inf
    %v914 = vsel %vm882, %v608, inf
    %v915 = vsel %vm883, %v611, inf
    %v916 = vsel %vm884, %v608, inf
    %v917 = vsel %vm885, %v611, inf
    %v918 = vmin.f32 %v886, %v887
    %v919 = vrot.slane %v918, 4
    %v920 = vmin.f32 %v918, %v919
    %v921 = vrot.slane %v920, 2
    %v922 = vmin.f32 %v920, %v921
    %v923 = vrot.slane %v922, 1
    %v924 = vmin.f32 %v922, %v923
    %v925 = vmin.f32 %v888, %v889
    %v926 = vrot.slane %v925, 4
    %v927 = vmin.f32 %v925, %v926
    %v928 = vrot.slane %v927, 2
    %v929 = vmin.f32 %v927, %v928
    %v930 = vrot.slane %v929, 1
    %v931 = vmin.f32 %v929, %v930
    %v932 = vmin.f32 %v890, %v891
    %v933 = vrot.slane %v932, 4
    %v934 = vmin.f32 %v932, %v933
    %v935 = vrot.slane %v934, 2
    %v936 = vmin.f32 %v934, %v935
    %v937 = vrot.slane %v936, 1
    %v938 = vmin.f32 %v936, %v937
    %v939 = vmin.f32 %v892, %v893
    %v940 = vrot.slane %v939, 4
    %v941 = vmin.f32 %v939, %v940
    %v942 = vrot.slane %v941, 2
    %v943 = vmin.f32 %v941, %v942
    %v944 = vrot.slane %v943, 1
    %v945 = vmin.f32 %v943, %v944
    %v946 = vmin.f32 %v894, %v895
    %v947 = vrot.slane %v946, 4
    %v948 = vmin.f32 %v946, %v947
    %v949 = vrot.slane %v948, 2
    %v950 = vmin.f32 %v948, %v949
    %v951 = vrot.slane %v950, 1
    %v952 = vmin.f32 %v950, %v951
    %v953 = vmin.f32 %v896, %v897
    %v954 = vrot.slane %v953, 4
    %v955 = vmin.f32 %v953, %v954
    %v956 = vrot.slane %v955, 2
    %v957 = vmin.f32 %v955, %v956
    %v958 = vrot.slane %v957, 1
    %v959 = vmin.f32 %v957, %v958
    %v960 = vmin.f32 %v898, %v899
    %v961 = vrot.slane %v960, 4
    %v962 = vmin.f32 %v960, %v961
    %v963 = vrot.slane %v962, 2
    %v964 = vmin.f32 %v962, %v963
    %v965 = vrot.slane %v964, 1
    %v966 = vmin.f32 %v964, %v965
    %v967 = vmin.f32 %v900, %v901
    %v968 = vrot.slane %v967, 4
    %v969 = vmin.f32 %v967, %v968
    %v970 = vrot.slane %v969, 2
    %v971 = vmin.f32 %v969, %v970
    %v972 = vrot.slane %v971, 1
    %v973 = vmin.f32 %v971, %v972
    %v974 = vmin.f32 %v902, %v903
    %v975 = vrot.slane %v974, 4
    %v976 = vmin.f32 %v974, %v975
    %v977 = vrot.slane %v976, 2
    %v978 = vmin.f32 %v976, %v977
    %v979 = vrot.slane %v978, 1
    %v980 = vmin.f32 %v978, %v979
    %v981 = vmin.f32 %v904, %v905
    %v982 = vrot.slane %v981, 4
    %v983 = vmin.f32 %v981, %v982
    %v984 = vrot.slane %v983, 2
    %v985 = vmin.f32 %v983, %v984
    %v986 = vrot.slane %v985, 1
    %v987 = vmin.f32 %v985, %v986
    %v988 = vmin.f32 %v906, %v907
    %v989 = vrot.slane %v988, 4
    %v990 = vmin.f32 %v988, %v989
    %v991 = vrot.slane %v990, 2
    %v992 = vmin.f32 %v990, %v991
    %v993 = vrot.slane %v992, 1
    %v994 = vmin.f32 %v992, %v993
    %v995 = vmin.f32 %v908, %v909
    %v996 = vrot.slane %v995, 4
    %v997 = vmin.f32 %v995, %v996
    %v998 = vrot.slane %v997, 2
    %v999 = vmin.f32 %v997, %v998
    %v1000 = vrot.slane %v999, 1
    %v1001 = vmin.f32 %v999, %v1000
    %v1002 = vmin.f32 %v910, %v911
    %v1003 = vrot.slane %v1002, 4
    %v1004 = vmin.f32 %v1002, %v1003
    %v1005 = vrot.slane %v1004, 2
    %v1006 = vmin.f32 %v1004, %v1005
    %v1007 = vrot.slane %v1006, 1
    %v1008 = vmin.f32 %v1006, %v1007
    %v1009 = vmin.f32 %v912, %v913
    %v1010 = vrot.slane %v1009, 4
    %v1011 = vmin.f32 %v1009, %v1010
    %v1012 = vrot.slane %v1011, 2
    %v1013 = vmin.f32 %v1011, %v1012
    %v1014 = vrot.slane %v1013, 1
    %v1015 = vmin.f32 %v1013, %v1014
    %v1016 = vmin.f32 %v914, %v915
    %v1017 = vrot.slane %v1016, 4
    %v1018 = vmin.f32 %v1016, %v1017
    %v1019 = vrot.slane %v1018, 2
    %v1020 = vmin.f32 %v1018, %v1019
    %v1021 = vrot.slane %v1020, 1
    %v1022 = vmin.f32 %v1020, %v1021
    %v1023 = vmin.f32 %v916, %v917
    %v1024 = vrot.slane %v1023, 4
    %v1025 = vmin.f32 %v1023, %v1024
    %v1026 = vrot.slane %v1025, 2
    %v1027 = vmin.f32 %v1025, %v1026
    %v1028 = vrot.slane %v1027, 1
    %v1029 = vmin.f32 %v1027, %v1028
    %v1030 = vsel %vm440, 1, 0
    %v1031 = vsel %vm441, 1, 0
    %vm1032 = vcmp.eq.s32.totalorder %v1030, 1
    %vm1033 = vcmp.eq.s32.totalorder %v1031, 1
    %vm1050 = vcmask 1041409
    %v1051 = vsel %vm1050, %v931, %v924
    %vm1052 = vcmask 1042434
    %v1053 = vsel %vm1052, %v938, %v1051
    %vm1054 = vcmask 1043459
    %v1055 = vsel %vm1054, %v945, %v1053
    %vm1056 = vcmask 1044484
    %v1057 = vsel %vm1056, %v952, %v1055
    %vm1058 = vcmask 1045509
    %v1059 = vsel %vm1058, %v959, %v1057
    %vm1060 = vcmask 1046534
    %v1061 = vsel %vm1060, %v966, %v1059
    %vm1062 = vcmask 1047559
    %v1063 = vsel %vm1062, %v973, %v1061
    %v1064 = vsel %vm1050, %v987, %v980
    %v1065 = vsel %vm1052, %v994, %v1064
    %v1066 = vsel %vm1054, %v1001, %v1065
    %v1067 = vsel %vm1056, %v1008, %v1066
    %v1068 = vsel %vm1058, %v1015, %v1067
    %v1069 = vsel %vm1060, %v1022, %v1068
    %v1070 = vsel %vm1062, %v1029, %v1069
    %v1073 = vsel %vm1032, %v1063, 0.0
    %v1074 = vsel %vm1033, %v1070, 0.0
    %v1075 = vpack.c.bf16 %v1074, %v1073
    %v1077 = vlaneseq
    %v1078 = vshrl.u32 %v1077, 7
    %v1079 = vsub.s32 0, %v1078
    %v1080 = vrot.slane %v506, %v1079
    %v1081 = vlaneseq
    %v1082 = vshrl.u32 %v1081, 7
    %v1083 = vsub.s32 1, %v1082
    %v1084 = vrot.slane %v506, %v1083
    %v1085 = vlaneseq
    %v1086 = vshrl.u32 %v1085, 7
    %v1087 = vsub.s32 2, %v1086
    %v1088 = vrot.slane %v506, %v1087
    %v1124 = vunpack.c.l.b16 %v442
    %v1125 = vunpack.c.h.b16 %v442
    %v1126 = vunpack.c.l.b16 %v443
    %v1127 = vunpack.c.l.b16 %v444
    %v1128 = vunpack.c.h.b16 %v444
    %v1129 = vunpack.c.l.b16 %v445
    %v1130 = vunpack.c.l.b16 %v446
    %v1131 = vunpack.c.h.b16 %v446
    %v1132 = vunpack.c.l.b16 %v447
    %v1133 = vunpack.c.l.b16 %v448
    %v1134 = vunpack.c.h.b16 %v448
    %v1135 = vunpack.c.l.b16 %v449
    %v1136 = vunpack.c.l.b16 %v450
    %v1137 = vunpack.c.h.b16 %v450
    %v1138 = vunpack.c.l.b16 %v451
    %v1139 = vunpack.c.l.b16 %v452
    %v1140 = vunpack.c.h.b16 %v452
    %v1141 = vunpack.c.l.b16 %v453
    %v1142 = vunpack.c.l.b16 %v454
    %v1143 = vunpack.c.h.b16 %v454
    %v1144 = vunpack.c.l.b16 %v455
    %v1145 = vunpack.c.l.b16 %v456
    %v1146 = vunpack.c.h.b16 %v456
    %v1147 = vunpack.c.l.b16 %v457
    %v1148 = vunpack.c.l.b16 %v458
    %v1149 = vunpack.c.h.b16 %v458
    %v1150 = vunpack.c.l.b16 %v459
    %v1151 = vunpack.c.l.b16 %v460
    %v1152 = vunpack.c.h.b16 %v460
    %v1153 = vunpack.c.l.b16 %v461
    %v1154 = vunpack.c.l.b16 %v462
    %v1155 = vunpack.c.h.b16 %v462
    %v1156 = vunpack.c.l.b16 %v463
    %v1157 = vunpack.c.l.b16 %v464
    %v1158 = vunpack.c.h.b16 %v464
    %v1159 = vunpack.c.l.b16 %v465
    %v1160 = vunpack.c.l.b16 %v466
    %v1161 = vunpack.c.h.b16 %v466
    %v1162 = vunpack.c.l.b16 %v467
    %v1163 = vunpack.c.l.b16 %v468
    %v1164 = vunpack.c.h.b16 %v468
    %v1165 = vunpack.c.l.b16 %v469
    %v1166 = vunpack.c.l.b16 %v470
    %v1167 = vunpack.c.h.b16 %v470
    %v1168 = vunpack.c.l.b16 %v471
    %v1169 = vunpack.c.l.b16 %v472
    %v1170 = vunpack.c.h.b16 %v472
    %v1171 = vunpack.c.l.b16 %v473
    %v1172 = vpack.c.b16 %v1127, %v1124
    %v1173 = vpack.c.b16 %v1128, %v1125
    %v1174 = vpack.c.b16 %v1129, %v1126
    %v1175 = vpack.c.b16 %v1133, %v1130
    %v1176 = vpack.c.b16 %v1134, %v1131
    %v1177 = vpack.c.b16 %v1135, %v1132
    %v1178 = vpack.c.b16 %v1139, %v1136
    %v1179 = vpack.c.b16 %v1140, %v1137
    %v1180 = vpack.c.b16 %v1141, %v1138
    %v1181 = vpack.c.b16 %v1145, %v1142
    %v1182 = vpack.c.b16 %v1146, %v1143
    %v1183 = vpack.c.b16 %v1147, %v1144
    %v1184 = vpack.c.b16 %v1151, %v1148
    %v1185 = vpack.c.b16 %v1152, %v1149
    %v1186 = vpack.c.b16 %v1153, %v1150
    %v1187 = vpack.c.b16 %v1157, %v1154
    %v1188 = vpack.c.b16 %v1158, %v1155
    %v1189 = vpack.c.b16 %v1159, %v1156
    %v1190 = vpack.c.b16 %v1163, %v1160
    %v1191 = vpack.c.b16 %v1164, %v1161
    %v1192 = vpack.c.b16 %v1165, %v1162
    %v1193 = vpack.c.b16 %v1169, %v1166
    %v1194 = vpack.c.b16 %v1170, %v1167
    %v1195 = vpack.c.b16 %v1171, %v1168
    %1220 = vmatprep.subr.bf16.mxu0 %v1173
    %1221 = vmatpush1.bf16.msra.mxu0 %v1172
    %1222 = vmatprep.subr.bf16.mxu0 %v1176
    %1223 = vmatpush1.bf16.msra.mxu0 %v1175
    %1224 = vmatprep.subr.bf16.mxu0 %v1179
    %1225 = vmatpush1.bf16.msra.mxu0 %v1178
    %1226 = vmatprep.subr.bf16.mxu0 %v1182
    %1227 = vmatpush1.bf16.msra.mxu0 %v1181
    %1228 = vmatprep.subr.bf16.mxu0 %v1185
    %1229 = vmatpush1.bf16.msra.mxu0 %v1184
    %1230 = vmatprep.subr.bf16.mxu0 %v1188
    %1231 = vmatpush1.bf16.msra.mxu0 %v1187
    %1232 = vmatprep.subr.bf16.mxu0 %v1191
    %1233 = vmatpush1.bf16.msra.mxu0 %v1190
    %1234 = vmatprep.subr.bf16.mxu0 %v1194
    %1235 = vmatpush1.bf16.msra.mxu0 %v1193
    %1236 = vmatprep.subr.bf16.mxu0 0
    %1237 = vmatpush1.bf16.msra.mxu0 0
    %1238 = vmatprep.subr.bf16.mxu0 0
    %1239 = vmatpush1.bf16.msra.mxu0 0
    %1240 = vmatprep.subr.bf16.mxu0 0
    %1241 = vmatpush1.bf16.msra.mxu0 0
    %1242 = vmatprep.subr.bf16.mxu0 0
    %1243 = vmatpush1.bf16.msra.mxu0 0
    %1244 = vmatprep.subr.bf16.mxu0 0
    %1245 = vmatpush1.bf16.msra.mxu0 0
    %1246 = vmatprep.subr.bf16.mxu0 0
    %1247 = vmatpush1.bf16.msra.mxu0 0
    %1248 = vmatprep.subr.bf16.mxu0 0
    %1249 = vmatpush1.bf16.msra.mxu0 0
    %1250 = vmatprep.subr.bf16.mxu0 0
    %1251 = vmatpush1.bf16.msra.mxu0 0
    %1252 = vmatprep.mubr.bf16.mxu0 0
    %1253 = vmatmul.mubr.bf16.gmra.mrb[0].mxu0 %v1075
    %v1254 = vpop.f32.mrb[0].mxu0
    %v1255 = vadd.f32 %v1080, %v1254
    %v1256 = vpop.f32.mrb[0].mxu0
    %v1257 = vadd.f32 %v1084, %v1256
    %v1258 = vpop.f32.mrb[0].mxu0
    %v1259 = vadd.f32 %v1080, %v1258
    %v1260 = vpop.f32.mrb[0].mxu0
    %v1261 = vadd.f32 %v1084, %v1260
    %1262 = vdwg.mxu0
    %1263 = vmatprep.subr.bf16.mxu0 0
    %1264 = vmatpush1.bf16.msra.mxu0 %v1174
    %1265 = vmatprep.subr.bf16.mxu0 0
    %1266 = vmatpush1.bf16.msra.mxu0 %v1177
    %1267 = vmatprep.subr.bf16.mxu0 0
    %1268 = vmatpush1.bf16.msra.mxu0 %v1180
    %1269 = vmatprep.subr.bf16.mxu0 0
    %1270 = vmatpush1.bf16.msra.mxu0 %v1183
    %1271 = vmatprep.subr.bf16.mxu0 0
    %1272 = vmatpush1.bf16.msra.mxu0 %v1186
    %1273 = vmatprep.subr.bf16.mxu0 0
    %1274 = vmatpush1.bf16.msra.mxu0 %v1189
    %1275 = vmatprep.subr.bf16.mxu0 0
    %1276 = vmatpush1.bf16.msra.mxu0 %v1192
    %1277 = vmatprep.subr.bf16.mxu0 0
    %1278 = vmatpush1.bf16.msra.mxu0 %v1195
    %1279 = vmatprep.subr.bf16.mxu0 0
    %1280 = vmatpush1.bf16.msra.mxu0 0
    %1281 = vmatprep.subr.bf16.mxu0 0
    %1282 = vmatpush1.bf16.msra.mxu0 0
    %1283 = vmatprep.subr.bf16.mxu0 0
    %1284 = vmatpush1.bf16.msra.mxu0 0
    %1285 = vmatprep.subr.bf16.mxu0 0
    %1286 = vmatpush1.bf16.msra.mxu0 0
    %1287 = vmatprep.subr.bf16.mxu0 0
    %1288 = vmatpush1.bf16.msra.mxu0 0
    %1289 = vmatprep.subr.bf16.mxu0 0
    %1290 = vmatpush1.bf16.msra.mxu0 0
    %1291 = vmatprep.subr.bf16.mxu0 0
    %1292 = vmatpush1.bf16.msra.mxu0 0
    %1293 = vmatprep.subr.bf16.mxu0 0
    %1294 = vmatpush1.bf16.msra.mxu0 0
    %1295 = vmatprep.mubr.bf16.mxu0 0
    %1296 = vmatmul.mubr.bf16.gmra.mrb[0].mxu0 %v1075
    %v1297 = vpop.f32.mrb[0].mxu0
    %v1298 = vadd.f32 %v1088, %v1297
    %v1299 = vpop.f32.mrb[0].mxu0
    %v1300 = vpop.f32.mrb[0].mxu0
    %v1301 = vadd.f32 %v1088, %v1300
    %v1302 = vpop.f32.mrb[0].mxu0
    %1303 = vdwg.mxu0
    %v1305 = vlaneseq
    %v1306 = vshrl.u32 %v1305, 7
    %v1307 = vsub.s32 0, %v1306
    %v1308 = vrot.slane %v507, %v1307
    %v1309 = vlaneseq
    %v1310 = vshrl.u32 %v1309, 7
    %v1311 = vsub.s32 1, %v1310
    %v1312 = vrot.slane %v507, %v1311
    %v1313 = vlaneseq
    %v1314 = vshrl.u32 %v1313, 7
    %v1315 = vsub.s32 2, %v1314
    %v1316 = vrot.slane %v507, %v1315
    %v1352 = vunpack.c.l.b16 %v474
    %v1353 = vunpack.c.h.b16 %v474
    %v1354 = vunpack.c.l.b16 %v475
    %v1355 = vunpack.c.l.b16 %v476
    %v1356 = vunpack.c.h.b16 %v476
    %v1357 = vunpack.c.l.b16 %v477
    %v1358 = vunpack.c.l.b16 %v478
    %v1359 = vunpack.c.h.b16 %v478
    %v1360 = vunpack.c.l.b16 %v479
    %v1361 = vunpack.c.l.b16 %v480
    %v1362 = vunpack.c.h.b16 %v480
    %v1363 = vunpack.c.l.b16 %v481
    %v1364 = vunpack.c.l.b16 %v482
    %v1365 = vunpack.c.h.b16 %v482
    %v1366 = vunpack.c.l.b16 %v483
    %v1367 = vunpack.c.l.b16 %v484
    %v1368 = vunpack.c.h.b16 %v484
    %v1369 = vunpack.c.l.b16 %v485
    %v1370 = vunpack.c.l.b16 %v486
    %v1371 = vunpack.c.h.b16 %v486
    %v1372 = vunpack.c.l.b16 %v487
    %v1373 = vunpack.c.l.b16 %v488
    %v1374 = vunpack.c.h.b16 %v488
    %v1375 = vunpack.c.l.b16 %v489
    %v1376 = vunpack.c.l.b16 %v490
    %v1377 = vunpack.c.h.b16 %v490
    %v1378 = vunpack.c.l.b16 %v491
    %v1379 = vunpack.c.l.b16 %v492
    %v1380 = vunpack.c.h.b16 %v492
    %v1381 = vunpack.c.l.b16 %v493
    %v1382 = vunpack.c.l.b16 %v494
    %v1383 = vunpack.c.h.b16 %v494
    %v1384 = vunpack.c.l.b16 %v495
    %v1385 = vunpack.c.l.b16 %v496
    %v1386 = vunpack.c.h.b16 %v496
    %v1387 = vunpack.c.l.b16 %v497
    %v1388 = vunpack.c.l.b16 %v498
    %v1389 = vunpack.c.h.b16 %v498
    %v1390 = vunpack.c.l.b16 %v499
    %v1391 = vunpack.c.l.b16 %v500
    %v1392 = vunpack.c.h.b16 %v500
    %v1393 = vunpack.c.l.b16 %v501
    %v1394 = vunpack.c.l.b16 %v502
    %v1395 = vunpack.c.h.b16 %v502
    %v1396 = vunpack.c.l.b16 %v503
    %v1397 = vunpack.c.l.b16 %v504
    %v1398 = vunpack.c.h.b16 %v504
    %v1399 = vunpack.c.l.b16 %v505
    %v1400 = vpack.c.b16 %v1355, %v1352
    %v1401 = vpack.c.b16 %v1356, %v1353
    %v1402 = vpack.c.b16 %v1357, %v1354
    %v1403 = vpack.c.b16 %v1361, %v1358
    %v1404 = vpack.c.b16 %v1362, %v1359
    %v1405 = vpack.c.b16 %v1363, %v1360
    %v1406 = vpack.c.b16 %v1367, %v1364
    %v1407 = vpack.c.b16 %v1368, %v1365
    %v1408 = vpack.c.b16 %v1369, %v1366
    %v1409 = vpack.c.b16 %v1373, %v1370
    %v1410 = vpack.c.b16 %v1374, %v1371
    %v1411 = vpack.c.b16 %v1375, %v1372
    %v1412 = vpack.c.b16 %v1379, %v1376
    %v1413 = vpack.c.b16 %v1380, %v1377
    %v1414 = vpack.c.b16 %v1381, %v1378
    %v1415 = vpack.c.b16 %v1385, %v1382
    %v1416 = vpack.c.b16 %v1386, %v1383
    %v1417 = vpack.c.b16 %v1387, %v1384
    %v1418 = vpack.c.b16 %v1391, %v1388
    %v1419 = vpack.c.b16 %v1392, %v1389
    %v1420 = vpack.c.b16 %v1393, %v1390
    %v1421 = vpack.c.b16 %v1397, %v1394
    %v1422 = vpack.c.b16 %v1398, %v1395
    %v1423 = vpack.c.b16 %v1399, %v1396
    %1448 = vmatprep.subr.bf16.mxu0 %v1401
    %1449 = vmatpush1.bf16.msra.mxu0 %v1400
    %1450 = vmatprep.subr.bf16.mxu0 %v1404
    %1451 = vmatpush1.bf16.msra.mxu0 %v1403
    %1452 = vmatprep.subr.bf16.mxu0 %v1407
    %1453 = vmatpush1.bf16.msra.mxu0 %v1406
    %1454 = vmatprep.subr.bf16.mxu0 %v1410
    %1455 = vmatpush1.bf16.msra.mxu0 %v1409
    %1456 = vmatprep.subr.bf16.mxu0 %v1413
    %1457 = vmatpush1.bf16.msra.mxu0 %v1412
    %1458 = vmatprep.subr.bf16.mxu0 %v1416
    %1459 = vmatpush1.bf16.msra.mxu0 %v1415
    %1460 = vmatprep.subr.bf16.mxu0 %v1419
    %1461 = vmatpush1.bf16.msra.mxu0 %v1418
    %1462 = vmatprep.subr.bf16.mxu0 %v1422
    %1463 = vmatpush1.bf16.msra.mxu0 %v1421
    %1464 = vmatprep.subr.bf16.mxu0 0
    %1465 = vmatpush1.bf16.msra.mxu0 0
    %1466 = vmatprep.subr.bf16.mxu0 0
    %1467 = vmatpush1.bf16.msra.mxu0 0
    %1468 = vmatprep.subr.bf16.mxu0 0
    %1469 = vmatpush1.bf16.msra.mxu0 0
    %1470 = vmatprep.subr.bf16.mxu0 0
    %1471 = vmatpush1.bf16.msra.mxu0 0
    %1472 = vmatprep.subr.bf16.mxu0 0
    %1473 = vmatpush1.bf16.msra.mxu0 0
    %1474 = vmatprep.subr.bf16.mxu0 0
    %1475 = vmatpush1.bf16.msra.mxu0 0
    %1476 = vmatprep.subr.bf16.mxu0 0
    %1477 = vmatpush1.bf16.msra.mxu0 0
    %1478 = vmatprep.subr.bf16.mxu0 0
    %1479 = vmatpush1.bf16.msra.mxu0 0
    %1480 = vmatprep.mubr.bf16.mxu0 0
    %1481 = vmatmul.mubr.bf16.gmra.mrb[0].mxu0 %v524
    %v1482 = vpop.f32.mrb[0].mxu0
    %v1483 = vadd.f32 %v1308, %v1482
    %v1484 = vpop.f32.mrb[0].mxu0
    %v1485 = vadd.f32 %v1312, %v1484
    %v1486 = vpop.f32.mrb[0].mxu0
    %v1487 = vadd.f32 %v1308, %v1486
    %v1488 = vpop.f32.mrb[0].mxu0
    %v1489 = vadd.f32 %v1312, %v1488
    %1490 = vdwg.mxu0
    %1491 = vmatprep.subr.bf16.mxu0 0
    %1492 = vmatpush1.bf16.msra.mxu0 %v1402
    %1493 = vmatprep.subr.bf16.mxu0 0
    %1494 = vmatpush1.bf16.msra.mxu0 %v1405
    %1495 = vmatprep.subr.bf16.mxu0 0
    %1496 = vmatpush1.bf16.msra.mxu0 %v1408
    %1497 = vmatprep.subr.bf16.mxu0 0
    %1498 = vmatpush1.bf16.msra.mxu0 %v1411
    %1499 = vmatprep.subr.bf16.mxu0 0
    %1500 = vmatpush1.bf16.msra.mxu0 %v1414
    %1501 = vmatprep.subr.bf16.mxu0 0
    %1502 = vmatpush1.bf16.msra.mxu0 %v1417
    %1503 = vmatprep.subr.bf16.mxu0 0
    %1504 = vmatpush1.bf16.msra.mxu0 %v1420
    %1505 = vmatprep.subr.bf16.mxu0 0
    %1506 = vmatpush1.bf16.msra.mxu0 %v1423
    %1507 = vmatprep.subr.bf16.mxu0 0
    %1508 = vmatpush1.bf16.msra.mxu0 0
    %1509 = vmatprep.subr.bf16.mxu0 0
    %1510 = vmatpush1.bf16.msra.mxu0 0
    %1511 = vmatprep.subr.bf16.mxu0 0
    %1512 = vmatpush1.bf16.msra.mxu0 0
    %1513 = vmatprep.subr.bf16.mxu0 0
    %1514 = vmatpush1.bf16.msra.mxu0 0
    %1515 = vmatprep.subr.bf16.mxu0 0
    %1516 = vmatpush1.bf16.msra.mxu0 0
    %1517 = vmatprep.subr.bf16.mxu0 0
    %1518 = vmatpush1.bf16.msra.mxu0 0
    %1519 = vmatprep.subr.bf16.mxu0 0
    %1520 = vmatpush1.bf16.msra.mxu0 0
    %1521 = vmatprep.subr.bf16.mxu0 0
    %1522 = vmatpush1.bf16.msra.mxu0 0
    %1523 = vmatprep.mubr.bf16.mxu0 0
    %1524 = vmatmul.mubr.bf16.gmra.mrb[0].mxu0 %v524
    %v1525 = vpop.f32.mrb[0].mxu0
    %v1526 = vadd.f32 %v1316, %v1525
    %v1527 = vpop.f32.mrb[0].mxu0
    %v1528 = vpop.f32.mrb[0].mxu0
    %v1529 = vadd.f32 %v1316, %v1528
    %v1530 = vpop.f32.mrb[0].mxu0
    %1531 = vdwg.mxu0
    %v1532 = vadd.f32 %v1255, %v1483
    %v1533 = vadd.f32 %v1259, %v1487
    %v1534 = vsub.f32 0.0, %v1532
    %v1535 = vsub.f32 0.0, %v1533
    %v1536 = vmul.f32 %v1534, 1.442695
    %v1537 = vpow.pop %v1536
    %v1538 = vmul.f32 %v1535, 1.442695
    %v1539 = vpow.pop %v1538
    %v1540 = vadd.f32 %v1537, 1.0
    %v1541 = vadd.f32 %v1539, 1.0
    %v1542 = vrcp.pop %v1540
    %v1543 = vmul.f32 1.0, %v1542
    %v1544 = vrcp.pop %v1541
    %v1545 = vmul.f32 1.0, %v1544
    %v1546 = vadd.f32 %v1257, %v1485
    %v1547 = vadd.f32 %v1261, %v1489
    %v1548 = vsub.f32 0.0, %v1546
    %v1549 = vsub.f32 0.0, %v1547
    %v1550 = vmul.f32 %v1548, 1.442695
    %v1551 = vpow.pop %v1550
    %v1552 = vmul.f32 %v1549, 1.442695
    %v1553 = vpow.pop %v1552
    %v1554 = vadd.f32 %v1551, 1.0
    %v1555 = vadd.f32 %v1553, 1.0
    %v1556 = vrcp.pop %v1554
    %v1557 = vmul.f32 1.0, %v1556
    %v1558 = vrcp.pop %v1555
    %v1559 = vmul.f32 1.0, %v1558
    %v1560 = vmul.f32 %v1543, %v1526
    %v1561 = vmul.f32 %v1545, %v1529
    %v1562 = vadd.f32 %v1298, %v1560
    %v1563 = vadd.f32 %v1301, %v1561
    %v1564 = vtanh.pop %v1562
    %v1565 = vtanh.pop %v1563
    %v1566 = vsub.f32 1.0, %v1557
    %v1567 = vsub.f32 1.0, %v1559
    %v1568 = vmul.f32 %v1566, %v1564
    %v1569 = vmul.f32 %v1567, %v1565
    %v1570 = vmul.f32 %v1557, %v431
    %v1571 = vmul.f32 %v1559, %v432
    %v1572 = vadd.f32 %v1568, %v1570
    %v1573 = vadd.f32 %v1569, %v1571
    %s1574 = scalar_lea.vmem [#allocation10], 64
    %v1575 = vld [vmem:[%s1574] sm:$0xf]
    %v1576 = vld [vmem:[%s1574 + $0x4] sm:$0xf]
    %v1577 = vld [vmem:[%s1574 + $0x8] sm:$0xf]
    %v1578 = vld [vmem:[%s1574 + $0xc] sm:$0xf]
    %v1579 = vld [vmem:[%s1574 + $0x10] sm:$0xf]
    %v1580 = vld [vmem:[%s1574 + $0x14] sm:$0xf]
    %v1581 = vld [vmem:[%s1574 + $0x18] sm:$0xf]
    %v1582 = vld [vmem:[%s1574 + $0x1c] sm:$0xf]
    %v1583 = vld [vmem:[%s1574 + $0x20] sm:$0xf]
    %v1584 = vld [vmem:[%s1574 + $0x24] sm:$0xf]
    %v1585 = vld [vmem:[%s1574 + $0x28] sm:$0xf]
    %v1586 = vld [vmem:[%s1574 + $0x2c] sm:$0xf]
    %v1587 = vld [vmem:[%s1574 + $0x30] sm:$0xf]
    %v1588 = vld [vmem:[%s1574 + $0x34] sm:$0xf]
    %v1589 = vld [vmem:[%s1574 + $0x38] sm:$0xf]
    %v1590 = vld [vmem:[%s1574 + $0x3c] sm:$0xf]
    %v1591 = vpack.c.bf16 %v1573, %v1572
    %v1608 = vunpack.c.l.b16 %v1575
    %v1609 = vunpack.c.l.b16 %v1576
    %v1610 = vunpack.c.l.b16 %v1577
    %v1611 = vunpack.c.l.b16 %v1578
    %v1612 = vunpack.c.l.b16 %v1579
    %v1613 = vunpack.c.l.b16 %v1580
    %v1614 = vunpack.c.l.b16 %v1581
    %v1615 = vunpack.c.l.b16 %v1582
    %v1616 = vunpack.c.l.b16 %v1583
    %v1617 = vunpack.c.l.b16 %v1584
    %v1618 = vunpack.c.l.b16 %v1585
    %v1619 = vunpack.c.l.b16 %v1586
    %v1620 = vunpack.c.l.b16 %v1587
    %v1621 = vunpack.c.l.b16 %v1588
    %v1622 = vunpack.c.l.b16 %v1589
    %v1623 = vunpack.c.l.b16 %v1590
    %v1624 = vpack.c.b16 %v1609, %v1608
    %v1625 = vpack.c.b16 %v1611, %v1610
    %v1626 = vpack.c.b16 %v1613, %v1612
    %v1627 = vpack.c.b16 %v1615, %v1614
    %v1628 = vpack.c.b16 %v1617, %v1616
    %v1629 = vpack.c.b16 %v1619, %v1618
    %v1630 = vpack.c.b16 %v1621, %v1620
    %v1631 = vpack.c.b16 %v1623, %v1622
    %1640 = vmatprep.subr.bf16.mxu0 0
    %1641 = vmatpush1.bf16.msra.mxu0 %v1624
    %1642 = vmatprep.subr.bf16.mxu0 0
    %1643 = vmatpush1.bf16.msra.mxu0 %v1625
    %1644 = vmatprep.subr.bf16.mxu0 0
    %1645 = vmatpush1.bf16.msra.mxu0 %v1626
    %1646 = vmatprep.subr.bf16.mxu0 0
    %1647 = vmatpush1.bf16.msra.mxu0 %v1627
    %1648 = vmatprep.subr.bf16.mxu0 0
    %1649 = vmatpush1.bf16.msra.mxu0 %v1628
    %1650 = vmatprep.subr.bf16.mxu0 0
    %1651 = vmatpush1.bf16.msra.mxu0 %v1629
    %1652 = vmatprep.subr.bf16.mxu0 0
    %1653 = vmatpush1.bf16.msra.mxu0 %v1630
    %1654 = vmatprep.subr.bf16.mxu0 0
    %1655 = vmatpush1.bf16.msra.mxu0 %v1631
    %1656 = vmatprep.subr.bf16.mxu0 0
    %1657 = vmatpush1.bf16.msra.mxu0 0
    %1658 = vmatprep.subr.bf16.mxu0 0
    %1659 = vmatpush1.bf16.msra.mxu0 0
    %1660 = vmatprep.subr.bf16.mxu0 0
    %1661 = vmatpush1.bf16.msra.mxu0 0
    %1662 = vmatprep.subr.bf16.mxu0 0
    %1663 = vmatpush1.bf16.msra.mxu0 0
    %1664 = vmatprep.subr.bf16.mxu0 0
    %1665 = vmatpush1.bf16.msra.mxu0 0
    %1666 = vmatprep.subr.bf16.mxu0 0
    %1667 = vmatpush1.bf16.msra.mxu0 0
    %1668 = vmatprep.subr.bf16.mxu0 0
    %1669 = vmatpush1.bf16.msra.mxu0 0
    %1670 = vmatprep.subr.bf16.mxu0 0
    %1671 = vmatpush1.bf16.msra.mxu0 0
    %1672 = vmatprep.mubr.bf16.mxu0 0
    %1673 = vmatmul.mubr.bf16.gmra.mrb[0].mxu0 %v1591
    %v1674 = vpop.f32.mrb[0].mxu0
    %v1675 = vadd.f32 0.0, %v1674
    %v1676 = vpop.f32.mrb[0].mxu0
    %v1677 = vpop.f32.mrb[0].mxu0
    %v1678 = vadd.f32 0.0, %v1677
    %v1679 = vpop.f32.mrb[0].mxu0
    %1680 = vdwg.mxu0
    %v1681 = vsel %vm854, %v1675, inf
    %v1682 = vsel %vm855, %v1678, inf
    %v1683 = vsel %vm856, %v1675, inf
    %v1684 = vsel %vm857, %v1678, inf
    %v1685 = vsel %vm858, %v1675, inf
    %v1686 = vsel %vm859, %v1678, inf
    %v1687 = vsel %vm860, %v1675, inf
    %v1688 = vsel %vm861, %v1678, inf
    %v1689 = vsel %vm862, %v1675, inf
    %v1690 = vsel %vm863, %v1678, inf
    %v1691 = vsel %vm864, %v1675, inf
    %v1692 = vsel %vm865, %v1678, inf
    %v1693 = vsel %vm866, %v1675, inf
    %v1694 = vsel %vm867, %v1678, inf
    %v1695 = vsel %vm868, %v1675, inf
    %v1696 = vsel %vm869, %v1678, inf
    %v1697 = vsel %vm870, %v1675, inf
    %v1698 = vsel %vm871, %v1678, inf
    %v1699 = vsel %vm872, %v1675, inf
    %v1700 = vsel %vm873, %v1678, inf
    %v1701 = vsel %vm874, %v1675, inf
    %v1702 = vsel %vm875, %v1678, inf
    %v1703 = vsel %vm876, %v1675, inf
    %v1704 = vsel %vm877, %v1678, inf
    %v1705 = vsel %vm878, %v1675, inf
    %v1706 = vsel %vm879, %v1678, inf
    %v1707 = vsel %vm880, %v1675, inf
    %v1708 = vsel %vm881, %v1678, inf
    %v1709 = vsel %vm882, %v1675, inf
    %v1710 = vsel %vm883, %v1678, inf
    %v1711 = vsel %vm884, %v1675, inf
    %v1712 = vsel %vm885, %v1678, inf
    %v1713 = vmin.f32 %v1681, %v1682
    %v1714 = vrot.slane %v1713, 4
    %v1715 = vmin.f32 %v1713, %v1714
    %v1716 = vrot.slane %v1715, 2
    %v1717 = vmin.f32 %v1715, %v1716
    %v1718 = vrot.slane %v1717, 1
    %v1719 = vmin.f32 %v1717, %v1718
    %v1720 = vmin.f32 %v1683, %v1684
    %v1721 = vrot.slane %v1720, 4
    %v1722 = vmin.f32 %v1720, %v1721
    %v1723 = vrot.slane %v1722, 2
    %v1724 = vmin.f32 %v1722, %v1723
    %v1725 = vrot.slane %v1724, 1
    %v1726 = vmin.f32 %v1724, %v1725
    %v1727 = vmin.f32 %v1685, %v1686
    %v1728 = vrot.slane %v1727, 4
    %v1729 = vmin.f32 %v1727, %v1728
    %v1730 = vrot.slane %v1729, 2
    %v1731 = vmin.f32 %v1729, %v1730
    %v1732 = vrot.slane %v1731, 1
    %v1733 = vmin.f32 %v1731, %v1732
    %v1734 = vmin.f32 %v1687, %v1688
    %v1735 = vrot.slane %v1734, 4
    %v1736 = vmin.f32 %v1734, %v1735
    %v1737 = vrot.slane %v1736, 2
    %v1738 = vmin.f32 %v1736, %v1737
    %v1739 = vrot.slane %v1738, 1
    %v1740 = vmin.f32 %v1738, %v1739
    %v1741 = vmin.f32 %v1689, %v1690
    %v1742 = vrot.slane %v1741, 4
    %v1743 = vmin.f32 %v1741, %v1742
    %v1744 = vrot.slane %v1743, 2
    %v1745 = vmin.f32 %v1743, %v1744
    %v1746 = vrot.slane %v1745, 1
    %v1747 = vmin.f32 %v1745, %v1746
    %v1748 = vmin.f32 %v1691, %v1692
    %v1749 = vrot.slane %v1748, 4
    %v1750 = vmin.f32 %v1748, %v1749
    %v1751 = vrot.slane %v1750, 2
    %v1752 = vmin.f32 %v1750, %v1751
    %v1753 = vrot.slane %v1752, 1
    %v1754 = vmin.f32 %v1752, %v1753
    %v1755 = vmin.f32 %v1693, %v1694
    %v1756 = vrot.slane %v1755, 4
    %v1757 = vmin.f32 %v1755, %v1756
    %v1758 = vrot.slane %v1757, 2
    %v1759 = vmin.f32 %v1757, %v1758
    %v1760 = vrot.slane %v1759, 1
    %v1761 = vmin.f32 %v1759, %v1760
    %v1762 = vmin.f32 %v1695, %v1696
    %v1763 = vrot.slane %v1762, 4
    %v1764 = vmin.f32 %v1762, %v1763
    %v1765 = vrot.slane %v1764, 2
    %v1766 = vmin.f32 %v1764, %v1765
    %v1767 = vrot.slane %v1766, 1
    %v1768 = vmin.f32 %v1766, %v1767
    %v1769 = vmin.f32 %v1697, %v1698
    %v1770 = vrot.slane %v1769, 4
    %v1771 = vmin.f32 %v1769, %v1770
    %v1772 = vrot.slane %v1771, 2
    %v1773 = vmin.f32 %v1771, %v1772
    %v1774 = vrot.slane %v1773, 1
    %v1775 = vmin.f32 %v1773, %v1774
    %v1776 = vmin.f32 %v1699, %v1700
    %v1777 = vrot.slane %v1776, 4
    %v1778 = vmin.f32 %v1776, %v1777
    %v1779 = vrot.slane %v1778, 2
    %v1780 = vmin.f32 %v1778, %v1779
    %v1781 = vrot.slane %v1780, 1
    %v1782 = vmin.f32 %v1780, %v1781
    %v1783 = vmin.f32 %v1701, %v1702
    %v1784 = vrot.slane %v1783, 4
    %v1785 = vmin.f32 %v1783, %v1784
    %v1786 = vrot.slane %v1785, 2
    %v1787 = vmin.f32 %v1785, %v1786
    %v1788 = vrot.slane %v1787, 1
    %v1789 = vmin.f32 %v1787, %v1788
    %v1790 = vmin.f32 %v1703, %v1704
    %v1791 = vrot.slane %v1790, 4
    %v1792 = vmin.f32 %v1790, %v1791
    %v1793 = vrot.slane %v1792, 2
    %v1794 = vmin.f32 %v1792, %v1793
    %v1795 = vrot.slane %v1794, 1
    %v1796 = vmin.f32 %v1794, %v1795
    %v1797 = vmin.f32 %v1705, %v1706
    %v1798 = vrot.slane %v1797, 4
    %v1799 = vmin.f32 %v1797, %v1798
    %v1800 = vrot.slane %v1799, 2
    %v1801 = vmin.f32 %v1799, %v1800
    %v1802 = vrot.slane %v1801, 1
    %v1803 = vmin.f32 %v1801, %v1802
    %v1804 = vmin.f32 %v1707, %v1708
    %v1805 = vrot.slane %v1804, 4
    %v1806 = vmin.f32 %v1804, %v1805
    %v1807 = vrot.slane %v1806, 2
    %v1808 = vmin.f32 %v1806, %v1807
    %v1809 = vrot.slane %v1808, 1
    %v1810 = vmin.f32 %v1808, %v1809
    %v1811 = vmin.f32 %v1709, %v1710
    %v1812 = vrot.slane %v1811, 4
    %v1813 = vmin.f32 %v1811, %v1812
    %v1814 = vrot.slane %v1813, 2
    %v1815 = vmin.f32 %v1813, %v1814
    %v1816 = vrot.slane %v1815, 1
    %v1817 = vmin.f32 %v1815, %v1816
    %v1818 = vmin.f32 %v1711, %v1712
    %v1819 = vrot.slane %v1818, 4
    %v1820 = vmin.f32 %v1818, %v1819
    %v1821 = vrot.slane %v1820, 2
    %v1822 = vmin.f32 %v1820, %v1821
    %v1823 = vrot.slane %v1822, 1
    %v1824 = vmin.f32 %v1822, %v1823
    %v1841 = vsel %vm1050, %v1726, %v1719
    %v1842 = vsel %vm1052, %v1733, %v1841
    %v1843 = vsel %vm1054, %v1740, %v1842
    %v1844 = vsel %vm1056, %v1747, %v1843
    %v1845 = vsel %vm1058, %v1754, %v1844
    %v1846 = vsel %vm1060, %v1761, %v1845
    %v1847 = vsel %vm1062, %v1768, %v1846
    %v1848 = vsel %vm1050, %v1782, %v1775
    %v1849 = vsel %vm1052, %v1789, %v1848
    %v1850 = vsel %vm1054, %v1796, %v1849
    %v1851 = vsel %vm1056, %v1803, %v1850
    %v1852 = vsel %vm1058, %v1810, %v1851
    %v1853 = vsel %vm1060, %v1817, %v1852
    %v1854 = vsel %vm1062, %v1824, %v1853
    %v1857 = vsel %vm1032, %v1847, 0.0
    %v1858 = vsel %vm1033, %v1854, 0.0
    %v1859 = vpack.c.bf16 %v1858, %v1857
    %1860 = vmatprep.subr.bf16.mxu0 %v1173
    %1861 = vmatpush1.bf16.msra.mxu0 %v1172
    %1862 = vmatprep.subr.bf16.mxu0 %v1176
    %1863 = vmatpush1.bf16.msra.mxu0 %v1175
    %1864 = vmatprep.subr.bf16.mxu0 %v1179
    %1865 = vmatpush1.bf16.msra.mxu0 %v1178
    %1866 = vmatprep.subr.bf16.mxu0 %v1182
    %1867 = vmatpush1.bf16.msra.mxu0 %v1181
    %1868 = vmatprep.subr.bf16.mxu0 %v1185
    %1869 = vmatpush1.bf16.msra.mxu0 %v1184
    %1870 = vmatprep.subr.bf16.mxu0 %v1188
    %1871 = vmatpush1.bf16.msra.mxu0 %v1187
    %1872 = vmatprep.subr.bf16.mxu0 %v1191
    %1873 = vmatpush1.bf16.msra.mxu0 %v1190
    %1874 = vmatprep.subr.bf16.mxu0 %v1194
    %1875 = vmatpush1.bf16.msra.mxu0 %v1193
    %1876 = vmatprep.subr.bf16.mxu0 0
    %1877 = vmatpush1.bf16.msra.mxu0 0
    %1878 = vmatprep.subr.bf16.mxu0 0
    %1879 = vmatpush1.bf16.msra.mxu0 0
    %1880 = vmatprep.subr.bf16.mxu0 0
    %1881 = vmatpush1.bf16.msra.mxu0 0
    %1882 = vmatprep.subr.bf16.mxu0 0
    %1883 = vmatpush1.bf16.msra.mxu0 0
    %1884 = vmatprep.subr.bf16.mxu0 0
    %1885 = vmatpush1.bf16.msra.mxu0 0
    %1886 = vmatprep.subr.bf16.mxu0 0
    %1887 = vmatpush1.bf16.msra.mxu0 0
    %1888 = vmatprep.subr.bf16.mxu0 0
    %1889 = vmatpush1.bf16.msra.mxu0 0
    %1890 = vmatprep.subr.bf16.mxu0 0
    %1891 = vmatpush1.bf16.msra.mxu0 0
    %1892 = vmatprep.mubr.bf16.mxu0 0
    %1893 = vmatmul.mubr.bf16.gmra.mrb[0].mxu0 %v1859
    %v1894 = vpop.f32.mrb[0].mxu0
    %v1895 = vadd.f32 %v1080, %v1894
    %v1896 = vpop.f32.mrb[0].mxu0
    %v1897 = vadd.f32 %v1084, %v1896
    %v1898 = vpop.f32.mrb[0].mxu0
    %v1899 = vadd.f32 %v1080, %v1898
    %v1900 = vpop.f32.mrb[0].mxu0
    %v1901 = vadd.f32 %v1084, %v1900
    %1902 = vdwg.mxu0
    %1903 = vmatprep.subr.bf16.mxu0 0
    %1904 = vmatpush1.bf16.msra.mxu0 %v1174
    %1905 = vmatprep.subr.bf16.mxu0 0
    %1906 = vmatpush1.bf16.msra.mxu0 %v1177
    %1907 = vmatprep.subr.bf16.mxu0 0
    %1908 = vmatpush1.bf16.msra.mxu0 %v1180
    %1909 = vmatprep.subr.bf16.mxu0 0
    %1910 = vmatpush1.bf16.msra.mxu0 %v1183
    %1911 = vmatprep.subr.bf16.mxu0 0
    %1912 = vmatpush1.bf16.msra.mxu0 %v1186
    %1913 = vmatprep.subr.bf16.mxu0 0
    %1914 = vmatpush1.bf16.msra.mxu0 %v1189
    %1915 = vmatprep.subr.bf16.mxu0 0
    %1916 = vmatpush1.bf16.msra.mxu0 %v1192
    %1917 = vmatprep.subr.bf16.mxu0 0
    %1918 = vmatpush1.bf16.msra.mxu0 %v1195
    %1919 = vmatprep.subr.bf16.mxu0 0
    %1920 = vmatpush1.bf16.msra.mxu0 0
    %1921 = vmatprep.subr.bf16.mxu0 0
    %1922 = vmatpush1.bf16.msra.mxu0 0
    %1923 = vmatprep.subr.bf16.mxu0 0
    %1924 = vmatpush1.bf16.msra.mxu0 0
    %1925 = vmatprep.subr.bf16.mxu0 0
    %1926 = vmatpush1.bf16.msra.mxu0 0
    %1927 = vmatprep.subr.bf16.mxu0 0
    %1928 = vmatpush1.bf16.msra.mxu0 0
    %1929 = vmatprep.subr.bf16.mxu0 0
    %1930 = vmatpush1.bf16.msra.mxu0 0
    %1931 = vmatprep.subr.bf16.mxu0 0
    %1932 = vmatpush1.bf16.msra.mxu0 0
    %1933 = vmatprep.subr.bf16.mxu0 0
    %1934 = vmatpush1.bf16.msra.mxu0 0
    %1935 = vmatprep.mubr.bf16.mxu0 0
    %1936 = vmatmul.mubr.bf16.gmra.mrb[0].mxu0 %v1859
    %v1937 = vpop.f32.mrb[0].mxu0
    %v1938 = vadd.f32 %v1088, %v1937
    %v1939 = vpop.f32.mrb[0].mxu0
    %v1940 = vpop.f32.mrb[0].mxu0
    %v1941 = vadd.f32 %v1088, %v1940
    %v1942 = vpop.f32.mrb[0].mxu0
    %1943 = vdwg.mxu0
    %1944 = vmatprep.subr.bf16.mxu0 %v1401
    %1945 = vmatpush1.bf16.msra.mxu0 %v1400
    %1946 = vmatprep.subr.bf16.mxu0 %v1404
    %1947 = vmatpush1.bf16.msra.mxu0 %v1403
    %1948 = vmatprep.subr.bf16.mxu0 %v1407
    %1949 = vmatpush1.bf16.msra.mxu0 %v1406
    %1950 = vmatprep.subr.bf16.mxu0 %v1410
    %1951 = vmatpush1.bf16.msra.mxu0 %v1409
    %1952 = vmatprep.subr.bf16.mxu0 %v1413
    %1953 = vmatpush1.bf16.msra.mxu0 %v1412
    %1954 = vmatprep.subr.bf16.mxu0 %v1416
    %1955 = vmatpush1.bf16.msra.mxu0 %v1415
    %1956 = vmatprep.subr.bf16.mxu0 %v1419
    %1957 = vmatpush1.bf16.msra.mxu0 %v1418
    %1958 = vmatprep.subr.bf16.mxu0 %v1422
    %1959 = vmatpush1.bf16.msra.mxu0 %v1421
    %1960 = vmatprep.subr.bf16.mxu0 0
    %1961 = vmatpush1.bf16.msra.mxu0 0
    %1962 = vmatprep.subr.bf16.mxu0 0
    %1963 = vmatpush1.bf16.msra.mxu0 0
    %1964 = vmatprep.subr.bf16.mxu0 0
    %1965 = vmatpush1.bf16.msra.mxu0 0
    %1966 = vmatprep.subr.bf16.mxu0 0
    %1967 = vmatpush1.bf16.msra.mxu0 0
    %1968 = vmatprep.subr.bf16.mxu0 0
    %1969 = vmatpush1.bf16.msra.mxu0 0
    %1970 = vmatprep.subr.bf16.mxu0 0
    %1971 = vmatpush1.bf16.msra.mxu0 0
    %1972 = vmatprep.subr.bf16.mxu0 0
    %1973 = vmatpush1.bf16.msra.mxu0 0
    %1974 = vmatprep.subr.bf16.mxu0 0
    %1975 = vmatpush1.bf16.msra.mxu0 0
    %1976 = vmatprep.mubr.bf16.mxu0 0
    %1977 = vmatmul.mubr.bf16.gmra.mrb[0].mxu0 %v1591
    %v1978 = vpop.f32.mrb[0].mxu0
    %v1979 = vadd.f32 %v1308, %v1978
    %v1980 = vpop.f32.mrb[0].mxu0
    %v1981 = vadd.f32 %v1312, %v1980
    %v1982 = vpop.f32.mrb[0].mxu0
    %v1983 = vadd.f32 %v1308, %v1982
    %v1984 = vpop.f32.mrb[0].mxu0
    %v1985 = vadd.f32 %v1312, %v1984
    %1986 = vdwg.mxu0
    %1987 = vmatprep.subr.bf16.mxu0 0
    %1988 = vmatpush1.bf16.msra.mxu0 %v1402
    %1989 = vmatprep.subr.bf16.mxu0 0
    %1990 = vmatpush1.bf16.msra.mxu0 %v1405
    %1991 = vmatprep.subr.bf16.mxu0 0
    %1992 = vmatpush1.bf16.msra.mxu0 %v1408
    %1993 = vmatprep.subr.bf16.mxu0 0
    %1994 = vmatpush1.bf16.msra.mxu0 %v1411
    %1995 = vmatprep.subr.bf16.mxu0 0
    %1996 = vmatpush1.bf16.msra.mxu0 %v1414
    %1997 = vmatprep.subr.bf16.mxu0 0
    %1998 = vmatpush1.bf16.msra.mxu0 %v1417
    %1999 = vmatprep.subr.bf16.mxu0 0
    %2000 = vmatpush1.bf16.msra.mxu0 %v1420
    %2001 = vmatprep.subr.bf16.mxu0 0
    %2002 = vmatpush1.bf16.msra.mxu0 %v1423
    %2003 = vmatprep.subr.bf16.mxu0 0
    %2004 = vmatpush1.bf16.msra.mxu0 0
    %2005 = vmatprep.subr.bf16.mxu0 0
    %2006 = vmatpush1.bf16.msra.mxu0 0
    %2007 = vmatprep.subr.bf16.mxu0 0
    %2008 = vmatpush1.bf16.msra.mxu0 0
    %2009 = vmatprep.subr.bf16.mxu0 0
    %2010 = vmatpush1.bf16.msra.mxu0 0
    %2011 = vmatprep.subr.bf16.mxu0 0
    %2012 = vmatpush1.bf16.msra.mxu0 0
    %2013 = vmatprep.subr.bf16.mxu0 0
    %2014 = vmatpush1.bf16.msra.mxu0 0
    %2015 = vmatprep.subr.bf16.mxu0 0
    %2016 = vmatpush1.bf16.msra.mxu0 0
    %2017 = vmatprep.subr.bf16.mxu0 0
    %2018 = vmatpush1.bf16.msra.mxu0 0
    %2019 = vmatprep.mubr.bf16.mxu0 0
    %2020 = vmatmul.mubr.bf16.gmra.mrb[0].mxu0 %v1591
    %v2021 = vpop.f32.mrb[0].mxu0
    %v2022 = vadd.f32 %v1316, %v2021
    %v2023 = vpop.f32.mrb[0].mxu0
    %v2024 = vpop.f32.mrb[0].mxu0
    %v2025 = vadd.f32 %v1316, %v2024
    %v2026 = vpop.f32.mrb[0].mxu0
    %2027 = vdwg.mxu0
    %v2028 = vadd.f32 %v1895, %v1979
    %v2029 = vadd.f32 %v1899, %v1983
    %v2030 = vsub.f32 0.0, %v2028
    %v2031 = vsub.f32 0.0, %v2029
    %v2032 = vmul.f32 %v2030, 1.442695
    %v2033 = vpow.pop %v2032
    %v2034 = vmul.f32 %v2031, 1.442695
    %v2035 = vpow.pop %v2034
    %v2036 = vadd.f32 %v2033, 1.0
    %v2037 = vadd.f32 %v2035, 1.0
    %v2038 = vrcp.pop %v2036
    %v2039 = vmul.f32 1.0, %v2038
    %v2040 = vrcp.pop %v2037
    %v2041 = vmul.f32 1.0, %v2040
    %v2042 = vadd.f32 %v1897, %v1981
    %v2043 = vadd.f32 %v1901, %v1985
    %v2044 = vsub.f32 0.0, %v2042
    %v2045 = vsub.f32 0.0, %v2043
    %v2046 = vmul.f32 %v2044, 1.442695
    %v2047 = vpow.pop %v2046
    %v2048 = vmul.f32 %v2045, 1.442695
    %v2049 = vpow.pop %v2048
    %v2050 = vadd.f32 %v2047, 1.0
    %v2051 = vadd.f32 %v2049, 1.0
    %v2052 = vrcp.pop %v2050
    %v2053 = vmul.f32 1.0, %v2052
    %v2054 = vrcp.pop %v2051
    %v2055 = vmul.f32 1.0, %v2054
    %v2056 = vmul.f32 %v2039, %v2022
    %v2057 = vmul.f32 %v2041, %v2025
    %v2058 = vadd.f32 %v1938, %v2056
    %v2059 = vadd.f32 %v1941, %v2057
    %v2060 = vtanh.pop %v2058
    %v2061 = vtanh.pop %v2059
    %v2062 = vsub.f32 1.0, %v2053
    %v2063 = vsub.f32 1.0, %v2055
    %v2064 = vmul.f32 %v2062, %v2060
    %v2065 = vmul.f32 %v2063, %v2061
    %v2066 = vmul.f32 %v2053, %v1572
    %v2067 = vmul.f32 %v2055, %v1573
    %v2068 = vadd.f32 %v2064, %v2066
    %v2069 = vadd.f32 %v2065, %v2067
    %s2070 = scalar_lea.vmem [#allocation10], 128
    %v2071 = vld [vmem:[%s2070] sm:$0xf]
    %v2072 = vld [vmem:[%s2070 + $0x4] sm:$0xf]
    %v2073 = vld [vmem:[%s2070 + $0x8] sm:$0xf]
    %v2074 = vld [vmem:[%s2070 + $0xc] sm:$0xf]
    %v2075 = vld [vmem:[%s2070 + $0x10] sm:$0xf]
    %v2076 = vld [vmem:[%s2070 + $0x14] sm:$0xf]
    %v2077 = vld [vmem:[%s2070 + $0x18] sm:$0xf]
    %v2078 = vld [vmem:[%s2070 + $0x1c] sm:$0xf]
    %v2079 = vld [vmem:[%s2070 + $0x20] sm:$0xf]
    %v2080 = vld [vmem:[%s2070 + $0x24] sm:$0xf]
    %v2081 = vld [vmem:[%s2070 + $0x28] sm:$0xf]
    %v2082 = vld [vmem:[%s2070 + $0x2c] sm:$0xf]
    %v2083 = vld [vmem:[%s2070 + $0x30] sm:$0xf]
    %v2084 = vld [vmem:[%s2070 + $0x34] sm:$0xf]
    %v2085 = vld [vmem:[%s2070 + $0x38] sm:$0xf]
    %v2086 = vld [vmem:[%s2070 + $0x3c] sm:$0xf]
    %v2087 = vpack.c.bf16 %v2069, %v2068
    %v2104 = vunpack.c.l.b16 %v2071
    %v2105 = vunpack.c.l.b16 %v2072
    %v2106 = vunpack.c.l.b16 %v2073
    %v2107 = vunpack.c.l.b16 %v2074
    %v2108 = vunpack.c.l.b16 %v2075
    %v2109 = vunpack.c.l.b16 %v2076
    %v2110 = vunpack.c.l.b16 %v2077
    %v2111 = vunpack.c.l.b16 %v2078
    %v2112 = vunpack.c.l.b16 %v2079
    %v2113 = vunpack.c.l.b16 %v2080
    %v2114 = vunpack.c.l.b16 %v2081
    %v2115 = vunpack.c.l.b16 %v2082
    %v2116 = vunpack.c.l.b16 %v2083
    %v2117 = vunpack.c.l.b16 %v2084
    %v2118 = vunpack.c.l.b16 %v2085
    %v2119 = vunpack.c.l.b16 %v2086
    %v2120 = vpack.c.b16 %v2105, %v2104
    %v2121 = vpack.c.b16 %v2107, %v2106
    %v2122 = vpack.c.b16 %v2109, %v2108
    %v2123 = vpack.c.b16 %v2111, %v2110
    %v2124 = vpack.c.b16 %v2113, %v2112
    %v2125 = vpack.c.b16 %v2115, %v2114
    %v2126 = vpack.c.b16 %v2117, %v2116
    %v2127 = vpack.c.b16 %v2119, %v2118
    %2136 = vmatprep.subr.bf16.mxu0 0
    %2137 = vmatpush1.bf16.msra.mxu0 %v2120
    %2138 = vmatprep.subr.bf16.mxu0 0
    %2139 = vmatpush1.bf16.msra.mxu0 %v2121
    %2140 = vmatprep.subr.bf16.mxu0 0
    %2141 = vmatpush1.bf16.msra.mxu0 %v2122
    %2142 = vmatprep.subr.bf16.mxu0 0
    %2143 = vmatpush1.bf16.msra.mxu0 %v2123
    %2144 = vmatprep.subr.bf16.mxu0 0
    %2145 = vmatpush1.bf16.msra.mxu0 %v2124
    %2146 = vmatprep.subr.bf16.mxu0 0
    %2147 = vmatpush1.bf16.msra.mxu0 %v2125
    %2148 = vmatprep.subr.bf16.mxu0 0
    %2149 = vmatpush1.bf16.msra.mxu0 %v2126
    %2150 = vmatprep.subr.bf16.mxu0 0
    %2151 = vmatpush1.bf16.msra.mxu0 %v2127
    %2152 = vmatprep.subr.bf16.mxu0 0
    %2153 = vmatpush1.bf16.msra.mxu0 0
    %2154 = vmatprep.subr.bf16.mxu0 0
    %2155 = vmatpush1.bf16.msra.mxu0 0
    %2156 = vmatprep.subr.bf16.mxu0 0
    %2157 = vmatpush1.bf16.msra.mxu0 0
    %2158 = vmatprep.subr.bf16.mxu0 0
    %2159 = vmatpush1.bf16.msra.mxu0 0
    %2160 = vmatprep.subr.bf16.mxu0 0
    %2161 = vmatpush1.bf16.msra.mxu0 0
    %2162 = vmatprep.subr.bf16.mxu0 0
    %2163 = vmatpush1.bf16.msra.mxu0 0
    %2164 = vmatprep.subr.bf16.mxu0 0
    %2165 = vmatpush1.bf16.msra.mxu0 0
    %2166 = vmatprep.subr.bf16.mxu0 0
    %2167 = vmatpush1.bf16.msra.mxu0 0
    %2168 = vmatprep.mubr.bf16.mxu0 0
    %2169 = vmatmul.mubr.bf16.gmra.mrb[0].mxu0 %v2087
    %v2170 = vpop.f32.mrb[0].mxu0
    %v2171 = vadd.f32 0.0, %v2170
    %v2172 = vpop.f32.mrb[0].mxu0
    %v2173 = vpop.f32.mrb[0].mxu0
    %v2174 = vadd.f32 0.0, %v2173
    %v2175 = vpop.f32.mrb[0].mxu0
    %2176 = vdwg.mxu0
    %v2177 = vsel %vm854, %v2171, inf
    %v2178 = vsel %vm855, %v2174, inf
    %v2179 = vsel %vm856, %v2171, inf
    %v2180 = vsel %vm857, %v2174, inf
    %v2181 = vsel %vm858, %v2171, inf
    %v2182 = vsel %vm859, %v2174, inf
    %v2183 = vsel %vm860, %v2171, inf
    %v2184 = vsel %vm861, %v2174, inf
    %v2185 = vsel %vm862, %v2171, inf
    %v2186 = vsel %vm863, %v2174, inf
    %v2187 = vsel %vm864, %v2171, inf
    %v2188 = vsel %vm865, %v2174, inf
    %v2189 = vsel %vm866, %v2171, inf
    %v2190 = vsel %vm867, %v2174, inf
    %v2191 = vsel %vm868, %v2171, inf
    %v2192 = vsel %vm869, %v2174, inf
    %v2193 = vsel %vm870, %v2171, inf
    %v2194 = vsel %vm871, %v2174, inf
    %v2195 = vsel %vm872, %v2171, inf
    %v2196 = vsel %vm873, %v2174, inf
    %v2197 = vsel %vm874, %v2171, inf
    %v2198 = vsel %vm875, %v2174, inf
    %v2199 = vsel %vm876, %v2171, inf
    %v2200 = vsel %vm877, %v2174, inf
    %v2201 = vsel %vm878, %v2171, inf
    %v2202 = vsel %vm879, %v2174, inf
    %v2203 = vsel %vm880, %v2171, inf
    %v2204 = vsel %vm881, %v2174, inf
    %v2205 = vsel %vm882, %v2171, inf
    %v2206 = vsel %vm883, %v2174, inf
    %v2207 = vsel %vm884, %v2171, inf
    %v2208 = vsel %vm885, %v2174, inf
    %v2209 = vmin.f32 %v2177, %v2178
    %v2210 = vrot.slane %v2209, 4
    %v2211 = vmin.f32 %v2209, %v2210
    %v2212 = vrot.slane %v2211, 2
    %v2213 = vmin.f32 %v2211, %v2212
    %v2214 = vrot.slane %v2213, 1
    %v2215 = vmin.f32 %v2213, %v2214
    %v2216 = vmin.f32 %v2179, %v2180
    %v2217 = vrot.slane %v2216, 4
    %v2218 = vmin.f32 %v2216, %v2217
    %v2219 = vrot.slane %v2218, 2
    %v2220 = vmin.f32 %v2218, %v2219
    %v2221 = vrot.slane %v2220, 1
    %v2222 = vmin.f32 %v2220, %v2221
    %v2223 = vmin.f32 %v2181, %v2182
    %v2224 = vrot.slane %v2223, 4
    %v2225 = vmin.f32 %v2223, %v2224
    %v2226 = vrot.slane %v2225, 2
    %v2227 = vmin.f32 %v2225, %v2226
    %v2228 = vrot.slane %v2227, 1
    %v2229 = vmin.f32 %v2227, %v2228
    %v2230 = vmin.f32 %v2183, %v2184
    %v2231 = vrot.slane %v2230, 4
    %v2232 = vmin.f32 %v2230, %v2231
    %v2233 = vrot.slane %v2232, 2
    %v2234 = vmin.f32 %v2232, %v2233
    %v2235 = vrot.slane %v2234, 1
    %v2236 = vmin.f32 %v2234, %v2235
    %v2237 = vmin.f32 %v2185, %v2186
    %v2238 = vrot.slane %v2237, 4
    %v2239 = vmin.f32 %v2237, %v2238
    %v2240 = vrot.slane %v2239, 2
    %v2241 = vmin.f32 %v2239, %v2240
    %v2242 = vrot.slane %v2241, 1
    %v2243 = vmin.f32 %v2241, %v2242
    %v2244 = vmin.f32 %v2187, %v2188
    %v2245 = vrot.slane %v2244, 4
    %v2246 = vmin.f32 %v2244, %v2245
    %v2247 = vrot.slane %v2246, 2
    %v2248 = vmin.f32 %v2246, %v2247
    %v2249 = vrot.slane %v2248, 1
    %v2250 = vmin.f32 %v2248, %v2249
    %v2251 = vmin.f32 %v2189, %v2190
    %v2252 = vrot.slane %v2251, 4
    %v2253 = vmin.f32 %v2251, %v2252
    %v2254 = vrot.slane %v2253, 2
    %v2255 = vmin.f32 %v2253, %v2254
    %v2256 = vrot.slane %v2255, 1
    %v2257 = vmin.f32 %v2255, %v2256
    %v2258 = vmin.f32 %v2191, %v2192
    %v2259 = vrot.slane %v2258, 4
    %v2260 = vmin.f32 %v2258, %v2259
    %v2261 = vrot.slane %v2260, 2
    %v2262 = vmin.f32 %v2260, %v2261
    %v2263 = vrot.slane %v2262, 1
    %v2264 = vmin.f32 %v2262, %v2263
    %v2265 = vmin.f32 %v2193, %v2194
    %v2266 = vrot.slane %v2265, 4
    %v2267 = vmin.f32 %v2265, %v2266
    %v2268 = vrot.slane %v2267, 2
    %v2269 = vmin.f32 %v2267, %v2268
    %v2270 = vrot.slane %v2269, 1
    %v2271 = vmin.f32 %v2269, %v2270
    %v2272 = vmin.f32 %v2195, %v2196
    %v2273 = vrot.slane %v2272, 4
    %v2274 = vmin.f32 %v2272, %v2273
    %v2275 = vrot.slane %v2274, 2
    %v2276 = vmin.f32 %v2274, %v2275
    %v2277 = vrot.slane %v2276, 1
    %v2278 = vmin.f32 %v2276, %v2277
    %v2279 = vmin.f32 %v2197, %v2198
    %v2280 = vrot.slane %v2279, 4
    %v2281 = vmin.f32 %v2279, %v2280
    %v2282 = vrot.slane %v2281, 2
    %v2283 = vmin.f32 %v2281, %v2282
    %v2284 = vrot.slane %v2283, 1
    %v2285 = vmin.f32 %v2283, %v2284
    %v2286 = vmin.f32 %v2199, %v2200
    %v2287 = vrot.slane %v2286, 4
    %v2288 = vmin.f32 %v2286, %v2287
    %v2289 = vrot.slane %v2288, 2
    %v2290 = vmin.f32 %v2288, %v2289
    %v2291 = vrot.slane %v2290, 1
    %v2292 = vmin.f32 %v2290, %v2291
    %v2293 = vmin.f32 %v2201, %v2202
    %v2294 = vrot.slane %v2293, 4
    %v2295 = vmin.f32 %v2293, %v2294
    %v2296 = vrot.slane %v2295, 2
    %v2297 = vmin.f32 %v2295, %v2296
    %v2298 = vrot.slane %v2297, 1
    %v2299 = vmin.f32 %v2297, %v2298
    %v2300 = vmin.f32 %v2203, %v2204
    %v2301 = vrot.slane %v2300, 4
    %v2302 = vmin.f32 %v2300, %v2301
    %v2303 = vrot.slane %v2302, 2
    %v2304 = vmin.f32 %v2302, %v2303
    %v2305 = vrot.slane %v2304, 1
    %v2306 = vmin.f32 %v2304, %v2305
    %v2307 = vmin.f32 %v2205, %v2206
    %v2308 = vrot.slane %v2307, 4
    %v2309 = vmin.f32 %v2307, %v2308
    %v2310 = vrot.slane %v2309, 2
    %v2311 = vmin.f32 %v2309, %v2310
    %v2312 = vrot.slane %v2311, 1
    %v2313 = vmin.f32 %v2311, %v2312
    %v2314 = vmin.f32 %v2207, %v2208
    %v2315 = vrot.slane %v2314, 4
    %v2316 = vmin.f32 %v2314, %v2315
    %v2317 = vrot.slane %v2316, 2
    %v2318 = vmin.f32 %v2316, %v2317
    %v2319 = vrot.slane %v2318, 1
    %v2320 = vmin.f32 %v2318, %v2319
    %v2337 = vsel %vm1050, %v2222, %v2215
    %v2338 = vsel %vm1052, %v2229, %v2337
    %v2339 = vsel %vm1054, %v2236, %v2338
    %v2340 = vsel %vm1056, %v2243, %v2339
    %v2341 = vsel %vm1058, %v2250, %v2340
    %v2342 = vsel %vm1060, %v2257, %v2341
    %v2343 = vsel %vm1062, %v2264, %v2342
    %v2344 = vsel %vm1050, %v2278, %v2271
    %v2345 = vsel %vm1052, %v2285, %v2344
    %v2346 = vsel %vm1054, %v2292, %v2345
    %v2347 = vsel %vm1056, %v2299, %v2346
    %v2348 = vsel %vm1058, %v2306, %v2347
    %v2349 = vsel %vm1060, %v2313, %v2348
    %v2350 = vsel %vm1062, %v2320, %v2349
    %v2353 = vsel %vm1032, %v2343, 0.0
    %v2354 = vsel %vm1033, %v2350, 0.0
    %v2355 = vpack.c.bf16 %v2354, %v2353
    %2356 = vmatprep.subr.bf16.mxu0 %v1173
    %2357 = vmatpush1.bf16.msra.mxu0 %v1172
    %2358 = vmatprep.subr.bf16.mxu0 %v1176
    %2359 = vmatpush1.bf16.msra.mxu0 %v1175
    %2360 = vmatprep.subr.bf16.mxu0 %v1179
    %2361 = vmatpush1.bf16.msra.mxu0 %v1178
    %2362 = vmatprep.subr.bf16.mxu0 %v1182
    %2363 = vmatpush1.bf16.msra.mxu0 %v1181
    %2364 = vmatprep.subr.bf16.mxu0 %v1185
    %2365 = vmatpush1.bf16.msra.mxu0 %v1184
    %2366 = vmatprep.subr.bf16.mxu0 %v1188
    %2367 = vmatpush1.bf16.msra.mxu0 %v1187
    %2368 = vmatprep.subr.bf16.mxu0 %v1191
    %2369 = vmatpush1.bf16.msra.mxu0 %v1190
    %2370 = vmatprep.subr.bf16.mxu0 %v1194
    %2371 = vmatpush1.bf16.msra.mxu0 %v1193
    %2372 = vmatprep.subr.bf16.mxu0 0
    %2373 = vmatpush1.bf16.msra.mxu0 0
    %2374 = vmatprep.subr.bf16.mxu0 0
    %2375 = vmatpush1.bf16.msra.mxu0 0
    %2376 = vmatprep.subr.bf16.mxu0 0
    %2377 = vmatpush1.bf16.msra.mxu0 0
    %2378 = vmatprep.subr.bf16.mxu0 0
    %2379 = vmatpush1.bf16.msra.mxu0 0
    %2380 = vmatprep.subr.bf16.mxu0 0
    %2381 = vmatpush1.bf16.msra.mxu0 0
    %2382 = vmatprep.subr.bf16.mxu0 0
    %2383 = vmatpush1.bf16.msra.mxu0 0
    %2384 = vmatprep.subr.bf16.mxu0 0
    %2385 = vmatpush1.bf16.msra.mxu0 0
    %2386 = vmatprep.subr.bf16.mxu0 0
    %2387 = vmatpush1.bf16.msra.mxu0 0
    %2388 = vmatprep.mubr.bf16.mxu0 0
    %2389 = vmatmul.mubr.bf16.gmra.mrb[0].mxu0 %v2355
    %v2390 = vpop.f32.mrb[0].mxu0
    %v2391 = vadd.f32 %v1080, %v2390
    %v2392 = vpop.f32.mrb[0].mxu0
    %v2393 = vadd.f32 %v1084, %v2392
    %v2394 = vpop.f32.mrb[0].mxu0
    %v2395 = vadd.f32 %v1080, %v2394
    %v2396 = vpop.f32.mrb[0].mxu0
    %v2397 = vadd.f32 %v1084, %v2396
    %2398 = vdwg.mxu0
    %2399 = vmatprep.subr.bf16.mxu0 0
    %2400 = vmatpush1.bf16.msra.mxu0 %v1174
    %2401 = vmatprep.subr.bf16.mxu0 0
    %2402 = vmatpush1.bf16.msra.mxu0 %v1177
    %2403 = vmatprep.subr.bf16.mxu0 0
    %2404 = vmatpush1.bf16.msra.mxu0 %v1180
    %2405 = vmatprep.subr.bf16.mxu0 0
    %2406 = vmatpush1.bf16.msra.mxu0 %v1183
    %2407 = vmatprep.subr.bf16.mxu0 0
    %2408 = vmatpush1.bf16.msra.mxu0 %v1186
    %2409 = vmatprep.subr.bf16.mxu0 0
    %2410 = vmatpush1.bf16.msra.mxu0 %v1189
    %2411 = vmatprep.subr.bf16.mxu0 0
    %2412 = vmatpush1.bf16.msra.mxu0 %v1192
    %2413 = vmatprep.subr.bf16.mxu0 0
    %2414 = vmatpush1.bf16.msra.mxu0 %v1195
    %2415 = vmatprep.subr.bf16.mxu0 0
    %2416 = vmatpush1.bf16.msra.mxu0 0
    %2417 = vmatprep.subr.bf16.mxu0 0
    %2418 = vmatpush1.bf16.msra.mxu0 0
    %2419 = vmatprep.subr.bf16.mxu0 0
    %2420 = vmatpush1.bf16.msra.mxu0 0
    %2421 = vmatprep.subr.bf16.mxu0 0
    %2422 = vmatpush1.bf16.msra.mxu0 0
    %2423 = vmatprep.subr.bf16.mxu0 0
    %2424 = vmatpush1.bf16.msra.mxu0 0
    %2425 = vmatprep.subr.bf16.mxu0 0
    %2426 = vmatpush1.bf16.msra.mxu0 0
    %2427 = vmatprep.subr.bf16.mxu0 0
    %2428 = vmatpush1.bf16.msra.mxu0 0
    %2429 = vmatprep.subr.bf16.mxu0 0
    %2430 = vmatpush1.bf16.msra.mxu0 0
    %2431 = vmatprep.mubr.bf16.mxu0 0
    %2432 = vmatmul.mubr.bf16.gmra.mrb[0].mxu0 %v2355
    %v2433 = vpop.f32.mrb[0].mxu0
    %v2434 = vadd.f32 %v1088, %v2433
    %v2435 = vpop.f32.mrb[0].mxu0
    %v2436 = vpop.f32.mrb[0].mxu0
    %v2437 = vadd.f32 %v1088, %v2436
    %v2438 = vpop.f32.mrb[0].mxu0
    %2439 = vdwg.mxu0
    %2440 = vmatprep.subr.bf16.mxu0 %v1401
    %2441 = vmatpush1.bf16.msra.mxu0 %v1400
    %2442 = vmatprep.subr.bf16.mxu0 %v1404
    %2443 = vmatpush1.bf16.msra.mxu0 %v1403
    %2444 = vmatprep.subr.bf16.mxu0 %v1407
    %2445 = vmatpush1.bf16.msra.mxu0 %v1406
    %2446 = vmatprep.subr.bf16.mxu0 %v1410
    %2447 = vmatpush1.bf16.msra.mxu0 %v1409
    %2448 = vmatprep.subr.bf16.mxu0 %v1413
    %2449 = vmatpush1.bf16.msra.mxu0 %v1412
    %2450 = vmatprep.subr.bf16.mxu0 %v1416
    %2451 = vmatpush1.bf16.msra.mxu0 %v1415
    %2452 = vmatprep.subr.bf16.mxu0 %v1419
    %2453 = vmatpush1.bf16.msra.mxu0 %v1418
    %2454 = vmatprep.subr.bf16.mxu0 %v1422
    %2455 = vmatpush1.bf16.msra.mxu0 %v1421
    %2456 = vmatprep.subr.bf16.mxu0 0
    %2457 = vmatpush1.bf16.msra.mxu0 0
    %2458 = vmatprep.subr.bf16.mxu0 0
    %2459 = vmatpush1.bf16.msra.mxu0 0
    %2460 = vmatprep.subr.bf16.mxu0 0
    %2461 = vmatpush1.bf16.msra.mxu0 0
    %2462 = vmatprep.subr.bf16.mxu0 0
    %2463 = vmatpush1.bf16.msra.mxu0 0
    %2464 = vmatprep.subr.bf16.mxu0 0
    %2465 = vmatpush1.bf16.msra.mxu0 0
    %2466 = vmatprep.subr.bf16.mxu0 0
    %2467 = vmatpush1.bf16.msra.mxu0 0
    %2468 = vmatprep.subr.bf16.mxu0 0
    %2469 = vmatpush1.bf16.msra.mxu0 0
    %2470 = vmatprep.subr.bf16.mxu0 0
    %2471 = vmatpush1.bf16.msra.mxu0 0
    %2472 = vmatprep.mubr.bf16.mxu0 0
    %2473 = vmatmul.mubr.bf16.gmra.mrb[0].mxu0 %v2087
    %v2474 = vpop.f32.mrb[0].mxu0
    %v2475 = vadd.f32 %v1308, %v2474
    %v2476 = vpop.f32.mrb[0].mxu0
    %v2477 = vadd.f32 %v1312, %v2476
    %v2478 = vpop.f32.mrb[0].mxu0
    %v2479 = vadd.f32 %v1308, %v2478
    %v2480 = vpop.f32.mrb[0].mxu0
    %v2481 = vadd.f32 %v1312, %v2480
    %2482 = vdwg.mxu0
    %2483 = vmatprep.subr.bf16.mxu0 0
    %2484 = vmatpush1.bf16.msra.mxu0 %v1402
    %2485 = vmatprep.subr.bf16.mxu0 0
    %2486 = vmatpush1.bf16.msra.mxu0 %v1405
    %2487 = vmatprep.subr.bf16.mxu0 0
    %2488 = vmatpush1.bf16.msra.mxu0 %v1408
    %2489 = vmatprep.subr.bf16.mxu0 0
    %2490 = vmatpush1.bf16.msra.mxu0 %v1411
    %2491 = vmatprep.subr.bf16.mxu0 0
    %2492 = vmatpush1.bf16.msra.mxu0 %v1414
    %2493 = vmatprep.subr.bf16.mxu0 0
    %2494 = vmatpush1.bf16.msra.mxu0 %v1417
    %2495 = vmatprep.subr.bf16.mxu0 0
    %2496 = vmatpush1.bf16.msra.mxu0 %v1420
    %2497 = vmatprep.subr.bf16.mxu0 0
    %2498 = vmatpush1.bf16.msra.mxu0 %v1423
    %2499 = vmatprep.subr.bf16.mxu0 0
    %2500 = vmatpush1.bf16.msra.mxu0 0
    %2501 = vmatprep.subr.bf16.mxu0 0
    %2502 = vmatpush1.bf16.msra.mxu0 0
    %2503 = vmatprep.subr.bf16.mxu0 0
    %2504 = vmatpush1.bf16.msra.mxu0 0
    %2505 = vmatprep.subr.bf16.mxu0 0
    %2506 = vmatpush1.bf16.msra.mxu0 0
    %2507 = vmatprep.subr.bf16.mxu0 0
    %2508 = vmatpush1.bf16.msra.mxu0 0
    %2509 = vmatprep.subr.bf16.mxu0 0
    %2510 = vmatpush1.bf16.msra.mxu0 0
    %2511 = vmatprep.subr.bf16.mxu0 0
    %2512 = vmatpush1.bf16.msra.mxu0 0
    %2513 = vmatprep.subr.bf16.mxu0 0
    %2514 = vmatpush1.bf16.msra.mxu0 0
    %2515 = vmatprep.mubr.bf16.mxu0 0
    %2516 = vmatmul.mubr.bf16.gmra.mrb[0].mxu0 %v2087
    %v2517 = vpop.f32.mrb[0].mxu0
    %v2518 = vadd.f32 %v1316, %v2517
    %v2519 = vpop.f32.mrb[0].mxu0
    %v2520 = vpop.f32.mrb[0].mxu0
    %v2521 = vadd.f32 %v1316, %v2520
    %v2522 = vpop.f32.mrb[0].mxu0
    %2523 = vdwg.mxu0
    %v2524 = vadd.f32 %v2391, %v2475
    %v2525 = vadd.f32 %v2395, %v2479
    %v2526 = vsub.f32 0.0, %v2524
    %v2527 = vsub.f32 0.0, %v2525
    %v2528 = vmul.f32 %v2526, 1.442695
    %v2529 = vpow.pop %v2528
    %v2530 = vmul.f32 %v2527, 1.442695
    %v2531 = vpow.pop %v2530
    %v2532 = vadd.f32 %v2529, 1.0
    %v2533 = vadd.f32 %v2531, 1.0
    %v2534 = vrcp.pop %v2532
    %v2535 = vmul.f32 1.0, %v2534
    %v2536 = vrcp.pop %v2533
    %v2537 = vmul.f32 1.0, %v2536
    %v2538 = vadd.f32 %v2393, %v2477
    %v2539 = vadd.f32 %v2397, %v2481
    %v2540 = vsub.f32 0.0, %v2538
    %v2541 = vsub.f32 0.0, %v2539
    %v2542 = vmul.f32 %v2540, 1.442695
    %v2543 = vpow.pop %v2542
    %v2544 = vmul.f32 %v2541, 1.442695
    %v2545 = vpow.pop %v2544
    %v2546 = vadd.f32 %v2543, 1.0
    %v2547 = vadd.f32 %v2545, 1.0
    %v2548 = vrcp.pop %v2546
    %v2549 = vmul.f32 1.0, %v2548
    %v2550 = vrcp.pop %v2547
    %v2551 = vmul.f32 1.0, %v2550
    %v2552 = vmul.f32 %v2535, %v2518
    %v2553 = vmul.f32 %v2537, %v2521
    %v2554 = vadd.f32 %v2434, %v2552
    %v2555 = vadd.f32 %v2437, %v2553
    %v2556 = vtanh.pop %v2554
    %v2557 = vtanh.pop %v2555
    %v2558 = vsub.f32 1.0, %v2549
    %v2559 = vsub.f32 1.0, %v2551
    %v2560 = vmul.f32 %v2558, %v2556
    %v2561 = vmul.f32 %v2559, %v2557
    %v2562 = vmul.f32 %v2549, %v2068
    %v2563 = vmul.f32 %v2551, %v2069
    %v2564 = vadd.f32 %v2560, %v2562
    %v2565 = vadd.f32 %v2561, %v2563
    %s2566 = scalar_lea.vmem [#allocation10], 192
    %v2567 = vld [vmem:[%s2566] sm:$0xf]
    %v2568 = vld [vmem:[%s2566 + $0x4] sm:$0xf]
    %v2569 = vld [vmem:[%s2566 + $0x8] sm:$0xf]
    %v2570 = vld [vmem:[%s2566 + $0xc] sm:$0xf]
    %v2571 = vld [vmem:[%s2566 + $0x10] sm:$0xf]
    %v2572 = vld [vmem:[%s2566 + $0x14] sm:$0xf]
    %v2573 = vld [vmem:[%s2566 + $0x18] sm:$0xf]
    %v2574 = vld [vmem:[%s2566 + $0x1c] sm:$0xf]
    %v2575 = vld [vmem:[%s2566 + $0x20] sm:$0xf]
    %v2576 = vld [vmem:[%s2566 + $0x24] sm:$0xf]
    %v2577 = vld [vmem:[%s2566 + $0x28] sm:$0xf]
    %v2578 = vld [vmem:[%s2566 + $0x2c] sm:$0xf]
    %v2579 = vld [vmem:[%s2566 + $0x30] sm:$0xf]
    %v2580 = vld [vmem:[%s2566 + $0x34] sm:$0xf]
    %v2581 = vld [vmem:[%s2566 + $0x38] sm:$0xf]
    %v2582 = vld [vmem:[%s2566 + $0x3c] sm:$0xf]
    %v2583 = vpack.c.bf16 %v2565, %v2564
    %v2600 = vunpack.c.l.b16 %v2567
    %v2601 = vunpack.c.l.b16 %v2568
    %v2602 = vunpack.c.l.b16 %v2569
    %v2603 = vunpack.c.l.b16 %v2570
    %v2604 = vunpack.c.l.b16 %v2571
    %v2605 = vunpack.c.l.b16 %v2572
    %v2606 = vunpack.c.l.b16 %v2573
    %v2607 = vunpack.c.l.b16 %v2574
    %v2608 = vunpack.c.l.b16 %v2575
    %v2609 = vunpack.c.l.b16 %v2576
    %v2610 = vunpack.c.l.b16 %v2577
    %v2611 = vunpack.c.l.b16 %v2578
    %v2612 = vunpack.c.l.b16 %v2579
    %v2613 = vunpack.c.l.b16 %v2580
    %v2614 = vunpack.c.l.b16 %v2581
    %v2615 = vunpack.c.l.b16 %v2582
    %v2616 = vpack.c.b16 %v2601, %v2600
    %v2617 = vpack.c.b16 %v2603, %v2602
    %v2618 = vpack.c.b16 %v2605, %v2604
    %v2619 = vpack.c.b16 %v2607, %v2606
    %v2620 = vpack.c.b16 %v2609, %v2608
    %v2621 = vpack.c.b16 %v2611, %v2610
    %v2622 = vpack.c.b16 %v2613, %v2612
    %v2623 = vpack.c.b16 %v2615, %v2614
    %2632 = vmatprep.subr.bf16.mxu0 0
    %2633 = vmatpush1.bf16.msra.mxu0 %v2616
    %2634 = vmatprep.subr.bf16.mxu0 0
    %2635 = vmatpush1.bf16.msra.mxu0 %v2617
    %2636 = vmatprep.subr.bf16.mxu0 0
    %2637 = vmatpush1.bf16.msra.mxu0 %v2618
    %2638 = vmatprep.subr.bf16.mxu0 0
    %2639 = vmatpush1.bf16.msra.mxu0 %v2619
    %2640 = vmatprep.subr.bf16.mxu0 0
    %2641 = vmatpush1.bf16.msra.mxu0 %v2620
    %2642 = vmatprep.subr.bf16.mxu0 0
    %2643 = vmatpush1.bf16.msra.mxu0 %v2621
    %2644 = vmatprep.subr.bf16.mxu0 0
    %2645 = vmatpush1.bf16.msra.mxu0 %v2622
    %2646 = vmatprep.subr.bf16.mxu0 0
    %2647 = vmatpush1.bf16.msra.mxu0 %v2623
    %2648 = vmatprep.subr.bf16.mxu0 0
    %2649 = vmatpush1.bf16.msra.mxu0 0
    %2650 = vmatprep.subr.bf16.mxu0 0
    %2651 = vmatpush1.bf16.msra.mxu0 0
    %2652 = vmatprep.subr.bf16.mxu0 0
    %2653 = vmatpush1.bf16.msra.mxu0 0
    %2654 = vmatprep.subr.bf16.mxu0 0
    %2655 = vmatpush1.bf16.msra.mxu0 0
    %2656 = vmatprep.subr.bf16.mxu0 0
    %2657 = vmatpush1.bf16.msra.mxu0 0
    %2658 = vmatprep.subr.bf16.mxu0 0
    %2659 = vmatpush1.bf16.msra.mxu0 0
    %2660 = vmatprep.subr.bf16.mxu0 0
    %2661 = vmatpush1.bf16.msra.mxu0 0
    %2662 = vmatprep.subr.bf16.mxu0 0
    %2663 = vmatpush1.bf16.msra.mxu0 0
    %2664 = vmatprep.mubr.bf16.mxu0 0
    %2665 = vmatmul.mubr.bf16.gmra.mrb[0].mxu0 %v2583
    %v2666 = vpop.f32.mrb[0].mxu0
    %v2667 = vadd.f32 0.0, %v2666
    %v2668 = vpop.f32.mrb[0].mxu0
    %v2669 = vpop.f32.mrb[0].mxu0
    %v2670 = vadd.f32 0.0, %v2669
    %v2671 = vpop.f32.mrb[0].mxu0
    %2672 = vdwg.mxu0
    %v2673 = vsel %vm854, %v2667, inf
    %v2674 = vsel %vm855, %v2670, inf
    %v2675 = vsel %vm856, %v2667, inf
    %v2676 = vsel %vm857, %v2670, inf
    %v2677 = vsel %vm858, %v2667, inf
    %v2678 = vsel %vm859, %v2670, inf
    %v2679 = vsel %vm860, %v2667, inf
    %v2680 = vsel %vm861, %v2670, inf
    %v2681 = vsel %vm862, %v2667, inf
    %v2682 = vsel %vm863, %v2670, inf
    %v2683 = vsel %vm864, %v2667, inf
    %v2684 = vsel %vm865, %v2670, inf
    %v2685 = vsel %vm866, %v2667, inf
    %v2686 = vsel %vm867, %v2670, inf
    %v2687 = vsel %vm868, %v2667, inf
    %v2688 = vsel %vm869, %v2670, inf
    %v2689 = vsel %vm870, %v2667, inf
    %v2690 = vsel %vm871, %v2670, inf
    %v2691 = vsel %vm872, %v2667, inf
    %v2692 = vsel %vm873, %v2670, inf
    %v2693 = vsel %vm874, %v2667, inf
    %v2694 = vsel %vm875, %v2670, inf
    %v2695 = vsel %vm876, %v2667, inf
    %v2696 = vsel %vm877, %v2670, inf
    %v2697 = vsel %vm878, %v2667, inf
    %v2698 = vsel %vm879, %v2670, inf
    %v2699 = vsel %vm880, %v2667, inf
    %v2700 = vsel %vm881, %v2670, inf
    %v2701 = vsel %vm882, %v2667, inf
    %v2702 = vsel %vm883, %v2670, inf
    %v2703 = vsel %vm884, %v2667, inf
    %v2704 = vsel %vm885, %v2670, inf
    %v2705 = vmin.f32 %v2673, %v2674
    %v2706 = vrot.slane %v2705, 4
    %v2707 = vmin.f32 %v2705, %v2706
    %v2708 = vrot.slane %v2707, 2
    %v2709 = vmin.f32 %v2707, %v2708
    %v2710 = vrot.slane %v2709, 1
    %v2711 = vmin.f32 %v2709, %v2710
    %v2712 = vmin.f32 %v2675, %v2676
    %v2713 = vrot.slane %v2712, 4
    %v2714 = vmin.f32 %v2712, %v2713
    %v2715 = vrot.slane %v2714, 2
    %v2716 = vmin.f32 %v2714, %v2715
    %v2717 = vrot.slane %v2716, 1
    %v2718 = vmin.f32 %v2716, %v2717
    %v2719 = vmin.f32 %v2677, %v2678
    %v2720 = vrot.slane %v2719, 4
    %v2721 = vmin.f32 %v2719, %v2720
    %v2722 = vrot.slane %v2721, 2
    %v2723 = vmin.f32 %v2721, %v2722
    %v2724 = vrot.slane %v2723, 1
    %v2725 = vmin.f32 %v2723, %v2724
    %v2726 = vmin.f32 %v2679, %v2680
    %v2727 = vrot.slane %v2726, 4
    %v2728 = vmin.f32 %v2726, %v2727
    %v2729 = vrot.slane %v2728, 2
    %v2730 = vmin.f32 %v2728, %v2729
    %v2731 = vrot.slane %v2730, 1
    %v2732 = vmin.f32 %v2730, %v2731
    %v2733 = vmin.f32 %v2681, %v2682
    %v2734 = vrot.slane %v2733, 4
    %v2735 = vmin.f32 %v2733, %v2734
    %v2736 = vrot.slane %v2735, 2
    %v2737 = vmin.f32 %v2735, %v2736
    %v2738 = vrot.slane %v2737, 1
    %v2739 = vmin.f32 %v2737, %v2738
    %v2740 = vmin.f32 %v2683, %v2684
    %v2741 = vrot.slane %v2740, 4
    %v2742 = vmin.f32 %v2740, %v2741
    %v2743 = vrot.slane %v2742, 2
    %v2744 = vmin.f32 %v2742, %v2743
    %v2745 = vrot.slane %v2744, 1
    %v2746 = vmin.f32 %v2744, %v2745
    %v2747 = vmin.f32 %v2685, %v2686
    %v2748 = vrot.slane %v2747, 4
    %v2749 = vmin.f32 %v2747, %v2748
    %v2750 = vrot.slane %v2749, 2
    %v2751 = vmin.f32 %v2749, %v2750
    %v2752 = vrot.slane %v2751, 1
    %v2753 = vmin.f32 %v2751, %v2752
    %v2754 = vmin.f32 %v2687, %v2688
    %v2755 = vrot.slane %v2754, 4
    %v2756 = vmin.f32 %v2754, %v2755
    %v2757 = vrot.slane %v2756, 2
    %v2758 = vmin.f32 %v2756, %v2757
    %v2759 = vrot.slane %v2758, 1
    %v2760 = vmin.f32 %v2758, %v2759
    %v2761 = vmin.f32 %v2689, %v2690
    %v2762 = vrot.slane %v2761, 4
    %v2763 = vmin.f32 %v2761, %v2762
    %v2764 = vrot.slane %v2763, 2
    %v2765 = vmin.f32 %v2763, %v2764
    %v2766 = vrot.slane %v2765, 1
    %v2767 = vmin.f32 %v2765, %v2766
    %v2768 = vmin.f32 %v2691, %v2692
    %v2769 = vrot.slane %v2768, 4
    %v2770 = vmin.f32 %v2768, %v2769
    %v2771 = vrot.slane %v2770, 2
    %v2772 = vmin.f32 %v2770, %v2771
    %v2773 = vrot.slane %v2772, 1
    %v2774 = vmin.f32 %v2772, %v2773
    %v2775 = vmin.f32 %v2693, %v2694
    %v2776 = vrot.slane %v2775, 4
    %v2777 = vmin.f32 %v2775, %v2776
    %v2778 = vrot.slane %v2777, 2
    %v2779 = vmin.f32 %v2777, %v2778
    %v2780 = vrot.slane %v2779, 1
    %v2781 = vmin.f32 %v2779, %v2780
    %v2782 = vmin.f32 %v2695, %v2696
    %v2783 = vrot.slane %v2782, 4
    %v2784 = vmin.f32 %v2782, %v2783
    %v2785 = vrot.slane %v2784, 2
    %v2786 = vmin.f32 %v2784, %v2785
    %v2787 = vrot.slane %v2786, 1
    %v2788 = vmin.f32 %v2786, %v2787
    %v2789 = vmin.f32 %v2697, %v2698
    %v2790 = vrot.slane %v2789, 4
    %v2791 = vmin.f32 %v2789, %v2790
    %v2792 = vrot.slane %v2791, 2
    %v2793 = vmin.f32 %v2791, %v2792
    %v2794 = vrot.slane %v2793, 1
    %v2795 = vmin.f32 %v2793, %v2794
    %v2796 = vmin.f32 %v2699, %v2700
    %v2797 = vrot.slane %v2796, 4
    %v2798 = vmin.f32 %v2796, %v2797
    %v2799 = vrot.slane %v2798, 2
    %v2800 = vmin.f32 %v2798, %v2799
    %v2801 = vrot.slane %v2800, 1
    %v2802 = vmin.f32 %v2800, %v2801
    %v2803 = vmin.f32 %v2701, %v2702
    %v2804 = vrot.slane %v2803, 4
    %v2805 = vmin.f32 %v2803, %v2804
    %v2806 = vrot.slane %v2805, 2
    %v2807 = vmin.f32 %v2805, %v2806
    %v2808 = vrot.slane %v2807, 1
    %v2809 = vmin.f32 %v2807, %v2808
    %v2810 = vmin.f32 %v2703, %v2704
    %v2811 = vrot.slane %v2810, 4
    %v2812 = vmin.f32 %v2810, %v2811
    %v2813 = vrot.slane %v2812, 2
    %v2814 = vmin.f32 %v2812, %v2813
    %v2815 = vrot.slane %v2814, 1
    %v2816 = vmin.f32 %v2814, %v2815
    %v2833 = vsel %vm1050, %v2718, %v2711
    %v2834 = vsel %vm1052, %v2725, %v2833
    %v2835 = vsel %vm1054, %v2732, %v2834
    %v2836 = vsel %vm1056, %v2739, %v2835
    %v2837 = vsel %vm1058, %v2746, %v2836
    %v2838 = vsel %vm1060, %v2753, %v2837
    %v2839 = vsel %vm1062, %v2760, %v2838
    %v2840 = vsel %vm1050, %v2774, %v2767
    %v2841 = vsel %vm1052, %v2781, %v2840
    %v2842 = vsel %vm1054, %v2788, %v2841
    %v2843 = vsel %vm1056, %v2795, %v2842
    %v2844 = vsel %vm1058, %v2802, %v2843
    %v2845 = vsel %vm1060, %v2809, %v2844
    %v2846 = vsel %vm1062, %v2816, %v2845
    %v2849 = vsel %vm1032, %v2839, 0.0
    %v2850 = vsel %vm1033, %v2846, 0.0
    %v2851 = vpack.c.bf16 %v2850, %v2849
    %2852 = vmatprep.subr.bf16.mxu0 %v1173
    %2853 = vmatpush1.bf16.msra.mxu0 %v1172
    %2854 = vmatprep.subr.bf16.mxu0 %v1176
    %2855 = vmatpush1.bf16.msra.mxu0 %v1175
    %2856 = vmatprep.subr.bf16.mxu0 %v1179
    %2857 = vmatpush1.bf16.msra.mxu0 %v1178
    %2858 = vmatprep.subr.bf16.mxu0 %v1182
    %2859 = vmatpush1.bf16.msra.mxu0 %v1181
    %2860 = vmatprep.subr.bf16.mxu0 %v1185
    %2861 = vmatpush1.bf16.msra.mxu0 %v1184
    %2862 = vmatprep.subr.bf16.mxu0 %v1188
    %2863 = vmatpush1.bf16.msra.mxu0 %v1187
    %2864 = vmatprep.subr.bf16.mxu0 %v1191
    %2865 = vmatpush1.bf16.msra.mxu0 %v1190
    %2866 = vmatprep.subr.bf16.mxu0 %v1194
    %2867 = vmatpush1.bf16.msra.mxu0 %v1193
    %2868 = vmatprep.subr.bf16.mxu0 0
    %2869 = vmatpush1.bf16.msra.mxu0 0
    %2870 = vmatprep.subr.bf16.mxu0 0
    %2871 = vmatpush1.bf16.msra.mxu0 0
    %2872 = vmatprep.subr.bf16.mxu0 0
    %2873 = vmatpush1.bf16.msra.mxu0 0
    %2874 = vmatprep.subr.bf16.mxu0 0
    %2875 = vmatpush1.bf16.msra.mxu0 0
    %2876 = vmatprep.subr.bf16.mxu0 0
    %2877 = vmatpush1.bf16.msra.mxu0 0
    %2878 = vmatprep.subr.bf16.mxu0 0
    %2879 = vmatpush1.bf16.msra.mxu0 0
    %2880 = vmatprep.subr.bf16.mxu0 0
    %2881 = vmatpush1.bf16.msra.mxu0 0
    %2882 = vmatprep.subr.bf16.mxu0 0
    %2883 = vmatpush1.bf16.msra.mxu0 0
    %2884 = vmatprep.mubr.bf16.mxu0 0
    %2885 = vmatmul.mubr.bf16.gmra.mrb[0].mxu0 %v2851
    %v2886 = vpop.f32.mrb[0].mxu0
    %v2887 = vadd.f32 %v1080, %v2886
    %v2888 = vpop.f32.mrb[0].mxu0
    %v2889 = vadd.f32 %v1084, %v2888
    %v2890 = vpop.f32.mrb[0].mxu0
    %v2891 = vadd.f32 %v1080, %v2890
    %v2892 = vpop.f32.mrb[0].mxu0
    %v2893 = vadd.f32 %v1084, %v2892
    %2894 = vdwg.mxu0
    %2895 = vmatprep.subr.bf16.mxu0 0
    %2896 = vmatpush1.bf16.msra.mxu0 %v1174
    %2897 = vmatprep.subr.bf16.mxu0 0
    %2898 = vmatpush1.bf16.msra.mxu0 %v1177
    %2899 = vmatprep.subr.bf16.mxu0 0
    %2900 = vmatpush1.bf16.msra.mxu0 %v1180
    %2901 = vmatprep.subr.bf16.mxu0 0
    %2902 = vmatpush1.bf16.msra.mxu0 %v1183
    %2903 = vmatprep.subr.bf16.mxu0 0
    %2904 = vmatpush1.bf16.msra.mxu0 %v1186
    %2905 = vmatprep.subr.bf16.mxu0 0
    %2906 = vmatpush1.bf16.msra.mxu0 %v1189
    %2907 = vmatprep.subr.bf16.mxu0 0
    %2908 = vmatpush1.bf16.msra.mxu0 %v1192
    %2909 = vmatprep.subr.bf16.mxu0 0
    %2910 = vmatpush1.bf16.msra.mxu0 %v1195
    %2911 = vmatprep.subr.bf16.mxu0 0
    %2912 = vmatpush1.bf16.msra.mxu0 0
    %2913 = vmatprep.subr.bf16.mxu0 0
    %2914 = vmatpush1.bf16.msra.mxu0 0
    %2915 = vmatprep.subr.bf16.mxu0 0
    %2916 = vmatpush1.bf16.msra.mxu0 0
    %2917 = vmatprep.subr.bf16.mxu0 0
    %2918 = vmatpush1.bf16.msra.mxu0 0
    %2919 = vmatprep.subr.bf16.mxu0 0
    %2920 = vmatpush1.bf16.msra.mxu0 0
    %2921 = vmatprep.subr.bf16.mxu0 0
    %2922 = vmatpush1.bf16.msra.mxu0 0
    %2923 = vmatprep.subr.bf16.mxu0 0
    %2924 = vmatpush1.bf16.msra.mxu0 0
    %2925 = vmatprep.subr.bf16.mxu0 0
    %2926 = vmatpush1.bf16.msra.mxu0 0
    %2927 = vmatprep.mubr.bf16.mxu0 0
    %2928 = vmatmul.mubr.bf16.gmra.mrb[0].mxu0 %v2851
    %v2929 = vpop.f32.mrb[0].mxu0
    %v2930 = vadd.f32 %v1088, %v2929
    %v2931 = vpop.f32.mrb[0].mxu0
    %v2932 = vpop.f32.mrb[0].mxu0
    %v2933 = vadd.f32 %v1088, %v2932
    %v2934 = vpop.f32.mrb[0].mxu0
    %2935 = vdwg.mxu0
    %2936 = vmatprep.subr.bf16.mxu0 %v1401
    %2937 = vmatpush1.bf16.msra.mxu0 %v1400
    %2938 = vmatprep.subr.bf16.mxu0 %v1404
    %2939 = vmatpush1.bf16.msra.mxu0 %v1403
    %2940 = vmatprep.subr.bf16.mxu0 %v1407
    %2941 = vmatpush1.bf16.msra.mxu0 %v1406
    %2942 = vmatprep.subr.bf16.mxu0 %v1410
    %2943 = vmatpush1.bf16.msra.mxu0 %v1409
    %2944 = vmatprep.subr.bf16.mxu0 %v1413
    %2945 = vmatpush1.bf16.msra.mxu0 %v1412
    %2946 = vmatprep.subr.bf16.mxu0 %v1416
    %2947 = vmatpush1.bf16.msra.mxu0 %v1415
    %2948 = vmatprep.subr.bf16.mxu0 %v1419
    %2949 = vmatpush1.bf16.msra.mxu0 %v1418
    %2950 = vmatprep.subr.bf16.mxu0 %v1422
    %2951 = vmatpush1.bf16.msra.mxu0 %v1421
    %2952 = vmatprep.subr.bf16.mxu0 0
    %2953 = vmatpush1.bf16.msra.mxu0 0
    %2954 = vmatprep.subr.bf16.mxu0 0
    %2955 = vmatpush1.bf16.msra.mxu0 0
    %2956 = vmatprep.subr.bf16.mxu0 0
    %2957 = vmatpush1.bf16.msra.mxu0 0
    %2958 = vmatprep.subr.bf16.mxu0 0
    %2959 = vmatpush1.bf16.msra.mxu0 0
    %2960 = vmatprep.subr.bf16.mxu0 0
    %2961 = vmatpush1.bf16.msra.mxu0 0
    %2962 = vmatprep.subr.bf16.mxu0 0
    %2963 = vmatpush1.bf16.msra.mxu0 0
    %2964 = vmatprep.subr.bf16.mxu0 0
    %2965 = vmatpush1.bf16.msra.mxu0 0
    %2966 = vmatprep.subr.bf16.mxu0 0
    %2967 = vmatpush1.bf16.msra.mxu0 0
    %2968 = vmatprep.mubr.bf16.mxu0 0
    %2969 = vmatmul.mubr.bf16.gmra.mrb[0].mxu0 %v2583
    %v2970 = vpop.f32.mrb[0].mxu0
    %v2971 = vadd.f32 %v1308, %v2970
    %v2972 = vpop.f32.mrb[0].mxu0
    %v2973 = vadd.f32 %v1312, %v2972
    %v2974 = vpop.f32.mrb[0].mxu0
    %v2975 = vadd.f32 %v1308, %v2974
    %v2976 = vpop.f32.mrb[0].mxu0
    %v2977 = vadd.f32 %v1312, %v2976
    %2978 = vdwg.mxu0
    %2979 = vmatprep.subr.bf16.mxu0 0
    %2980 = vmatpush1.bf16.msra.mxu0 %v1402
    %2981 = vmatprep.subr.bf16.mxu0 0
    %2982 = vmatpush1.bf16.msra.mxu0 %v1405
    %2983 = vmatprep.subr.bf16.mxu0 0
    %2984 = vmatpush1.bf16.msra.mxu0 %v1408
    %2985 = vmatprep.subr.bf16.mxu0 0
    %2986 = vmatpush1.bf16.msra.mxu0 %v1411
    %2987 = vmatprep.subr.bf16.mxu0 0
    %2988 = vmatpush1.bf16.msra.mxu0 %v1414
    %2989 = vmatprep.subr.bf16.mxu0 0
    %2990 = vmatpush1.bf16.msra.mxu0 %v1417
    %2991 = vmatprep.subr.bf16.mxu0 0
    %2992 = vmatpush1.bf16.msra.mxu0 %v1420
    %2993 = vmatprep.subr.bf16.mxu0 0
    %2994 = vmatpush1.bf16.msra.mxu0 %v1423
    %2995 = vmatprep.subr.bf16.mxu0 0
    %2996 = vmatpush1.bf16.msra.mxu0 0
    %2997 = vmatprep.subr.bf16.mxu0 0
    %2998 = vmatpush1.bf16.msra.mxu0 0
    %2999 = vmatprep.subr.bf16.mxu0 0
    %3000 = vmatpush1.bf16.msra.mxu0 0
    %3001 = vmatprep.subr.bf16.mxu0 0
    %3002 = vmatpush1.bf16.msra.mxu0 0
    %3003 = vmatprep.subr.bf16.mxu0 0
    %3004 = vmatpush1.bf16.msra.mxu0 0
    %3005 = vmatprep.subr.bf16.mxu0 0
    %3006 = vmatpush1.bf16.msra.mxu0 0
    %3007 = vmatprep.subr.bf16.mxu0 0
    %3008 = vmatpush1.bf16.msra.mxu0 0
    %3009 = vmatprep.subr.bf16.mxu0 0
    %3010 = vmatpush1.bf16.msra.mxu0 0
    %3011 = vmatprep.mubr.bf16.mxu0 0
    %3012 = vmatmul.mubr.bf16.gmra.mrb[0].mxu0 %v2583
    %v3013 = vpop.f32.mrb[0].mxu0
    %v3014 = vadd.f32 %v1316, %v3013
    %v3015 = vpop.f32.mrb[0].mxu0
    %v3016 = vpop.f32.mrb[0].mxu0
    %v3017 = vadd.f32 %v1316, %v3016
    %v3018 = vpop.f32.mrb[0].mxu0
    %3019 = vdwg.mxu0
    %v3020 = vadd.f32 %v2887, %v2971
    %v3021 = vadd.f32 %v2891, %v2975
    %v3022 = vsub.f32 0.0, %v3020
    %v3023 = vsub.f32 0.0, %v3021
    %v3024 = vmul.f32 %v3022, 1.442695
    %v3025 = vpow.pop %v3024
    %v3026 = vmul.f32 %v3023, 1.442695
    %v3027 = vpow.pop %v3026
    %v3028 = vadd.f32 %v3025, 1.0
    %v3029 = vadd.f32 %v3027, 1.0
    %v3030 = vrcp.pop %v3028
    %v3031 = vmul.f32 1.0, %v3030
    %v3032 = vrcp.pop %v3029
    %v3033 = vmul.f32 1.0, %v3032
    %v3034 = vadd.f32 %v2889, %v2973
    %v3035 = vadd.f32 %v2893, %v2977
    %v3036 = vsub.f32 0.0, %v3034
    %v3037 = vsub.f32 0.0, %v3035
    %v3038 = vmul.f32 %v3036, 1.442695
    %v3039 = vpow.pop %v3038
    %v3040 = vmul.f32 %v3037, 1.442695
    %v3041 = vpow.pop %v3040
    %v3042 = vadd.f32 %v3039, 1.0
    %v3043 = vadd.f32 %v3041, 1.0
    %v3044 = vrcp.pop %v3042
    %v3045 = vmul.f32 1.0, %v3044
    %v3046 = vrcp.pop %v3043
    %v3047 = vmul.f32 1.0, %v3046
    %v3048 = vmul.f32 %v3031, %v3014
    %v3049 = vmul.f32 %v3033, %v3017
    %v3050 = vadd.f32 %v2930, %v3048
    %v3051 = vadd.f32 %v2933, %v3049
    %v3052 = vtanh.pop %v3050
    %v3053 = vtanh.pop %v3051
    %v3054 = vsub.f32 1.0, %v3045
    %v3055 = vsub.f32 1.0, %v3047
    %v3056 = vmul.f32 %v3054, %v3052
    %v3057 = vmul.f32 %v3055, %v3053
    %v3058 = vmul.f32 %v3045, %v2564
    %v3059 = vmul.f32 %v3047, %v2565
    %v3060 = vadd.f32 %v3056, %v3058
    %v3061 = vadd.f32 %v3057, %v3059
    %v3062 = vmax.f32 %v3060, 0.0
    %v3063 = vmax.f32 %v3061, 0.0
    %v3064 = vpack.c.bf16 %v3063, %v3062
    %v3067 = vunpack.c.l.b16 %v424
    %v3068 = vunpack.c.l.b16 %v425
    %v3069 = vpack.c.b16 %v3068, %v3067
    %v3071 = vsel %vm433, %v3069, 0
    %3073 = vmatprep.subr.bf16.mxu0 0
    %3074 = vmatpush1.bf16.msra.mxu0 %v3064
    %3075 = vmatprep.subr.bf16.mxu0 0
    %3076 = vmatpush1.bf16.msra.mxu0 0
    %3077 = vmatprep.subr.bf16.mxu0 0
    %3078 = vmatpush1.bf16.msra.mxu0 0
    %3079 = vmatprep.subr.bf16.mxu0 0
    %3080 = vmatpush1.bf16.msra.mxu0 0
    %3081 = vmatprep.subr.bf16.mxu0 0
    %3082 = vmatpush1.bf16.msra.mxu0 0
    %3083 = vmatprep.subr.bf16.mxu0 0
    %3084 = vmatpush1.bf16.msra.mxu0 0
    %3085 = vmatprep.subr.bf16.mxu0 0
    %3086 = vmatpush1.bf16.msra.mxu0 0
    %3087 = vmatprep.subr.bf16.mxu0 0
    %3088 = vmatpush1.bf16.msra.mxu0 0
    %3089 = vmatprep.subr.bf16.mxu0 0
    %3090 = vmatpush1.bf16.msra.mxu0 0
    %3091 = vmatprep.subr.bf16.mxu0 0
    %3092 = vmatpush1.bf16.msra.mxu0 0
    %3093 = vmatprep.subr.bf16.mxu0 0
    %3094 = vmatpush1.bf16.msra.mxu0 0
    %3095 = vmatprep.subr.bf16.mxu0 0
    %3096 = vmatpush1.bf16.msra.mxu0 0
    %3097 = vmatprep.subr.bf16.mxu0 0
    %3098 = vmatpush1.bf16.msra.mxu0 0
    %3099 = vmatprep.subr.bf16.mxu0 0
    %3100 = vmatpush1.bf16.msra.mxu0 0
    %3101 = vmatprep.subr.bf16.mxu0 0
    %3102 = vmatpush1.bf16.msra.mxu0 0
    %3103 = vmatprep.subr.bf16.mxu0 0
    %3104 = vmatpush1.bf16.msra.mxu0 0
    %3105 = vmatprep.mubr.bf16.mxu0 0
    %3106 = vmatmul.mubr.bf16.gmra.mrb[0].mxu0 %v3071
    %v3107 = vpop.f32.mrb[0].mxu0
    %v3108 = vadd.f32 0.0, %v3107
    %v3109 = vpop.f32.mrb[0].mxu0
    %v3110 = vpop.f32.mrb[0].mxu0
    %v3111 = vadd.f32 0.0, %v3110
    %v3112 = vpop.f32.mrb[0].mxu0
    %3113 = vdwg.mxu0
    %v3114 = vld [vmem:[#allocation14] sm:$0xf]
    %v3115 = vld [vmem:[#allocation14 + $0x4] sm:$0xf]
    %v3116 = vld [vmem:[#allocation14 + $0x8] sm:$0xf]
    %v3117 = vld [vmem:[#allocation14 + $0xc] sm:$0xf]
    %v3118 = vld [vmem:[#allocation14 + $0x10] sm:$0xf]
    %v3119 = vld [vmem:[#allocation14 + $0x14] sm:$0xf]
    %v3120 = vld [vmem:[#allocation14 + $0x18] sm:$0xf]
    %v3121 = vld [vmem:[#allocation14 + $0x1c] sm:$0xf]
    %v3122 = vld [vmem:[#allocation14 + $0x20] sm:$0xf]
    %v3123 = vld [vmem:[#allocation14 + $0x24] sm:$0xf]
    %v3124 = vld [vmem:[#allocation14 + $0x28] sm:$0xf]
    %v3125 = vld [vmem:[#allocation14 + $0x2c] sm:$0xf]
    %v3126 = vld [vmem:[#allocation14 + $0x30] sm:$0xf]
    %v3127 = vld [vmem:[#allocation14 + $0x34] sm:$0xf]
    %v3128 = vld [vmem:[#allocation14 + $0x38] sm:$0xf]
    %v3129 = vld [vmem:[#allocation14 + $0x3c] sm:$0xf]
    %v3130 = vpack.c.bf16 %v3111, %v3108
    %v3131 = vld [vmem:[%s21] sm:$0x1]
    %v3133 = vlaneseq
    %v3134 = vshrl.u32 %v3133, 7
    %v3135 = vsub.s32 0, %v3134
    %v3136 = vrot.slane %v3131, %v3135
    %v3154 = vunpack.c.l.b16 %v3114
    %v3155 = vunpack.c.l.b16 %v3115
    %v3156 = vunpack.c.l.b16 %v3116
    %v3157 = vunpack.c.l.b16 %v3117
    %v3158 = vunpack.c.l.b16 %v3118
    %v3159 = vunpack.c.l.b16 %v3119
    %v3160 = vunpack.c.l.b16 %v3120
    %v3161 = vunpack.c.l.b16 %v3121
    %v3162 = vunpack.c.l.b16 %v3122
    %v3163 = vunpack.c.l.b16 %v3123
    %v3164 = vunpack.c.l.b16 %v3124
    %v3165 = vunpack.c.l.b16 %v3125
    %v3166 = vunpack.c.l.b16 %v3126
    %v3167 = vunpack.c.l.b16 %v3127
    %v3168 = vunpack.c.l.b16 %v3128
    %v3169 = vunpack.c.l.b16 %v3129
    %v3170 = vpack.c.b16 %v3155, %v3154
    %v3171 = vpack.c.b16 %v3157, %v3156
    %v3172 = vpack.c.b16 %v3159, %v3158
    %v3173 = vpack.c.b16 %v3161, %v3160
    %v3174 = vpack.c.b16 %v3163, %v3162
    %v3175 = vpack.c.b16 %v3165, %v3164
    %v3176 = vpack.c.b16 %v3167, %v3166
    %v3177 = vpack.c.b16 %v3169, %v3168
    %3186 = vmatprep.subr.bf16.mxu0 0
    %3187 = vmatpush1.bf16.msra.mxu0 %v3170
    %3188 = vmatprep.subr.bf16.mxu0 0
    %3189 = vmatpush1.bf16.msra.mxu0 %v3171
    %3190 = vmatprep.subr.bf16.mxu0 0
    %3191 = vmatpush1.bf16.msra.mxu0 %v3172
    %3192 = vmatprep.subr.bf16.mxu0 0
    %3193 = vmatpush1.bf16.msra.mxu0 %v3173
    %3194 = vmatprep.subr.bf16.mxu0 0
    %3195 = vmatpush1.bf16.msra.mxu0 %v3174
    %3196 = vmatprep.subr.bf16.mxu0 0
    %3197 = vmatpush1.bf16.msra.mxu0 %v3175
    %3198 = vmatprep.subr.bf16.mxu0 0
    %3199 = vmatpush1.bf16.msra.mxu0 %v3176
    %3200 = vmatprep.subr.bf16.mxu0 0
    %3201 = vmatpush1.bf16.msra.mxu0 %v3177
    %3202 = vmatprep.subr.bf16.mxu0 0
    %3203 = vmatpush1.bf16.msra.mxu0 0
    %3204 = vmatprep.subr.bf16.mxu0 0
    %3205 = vmatpush1.bf16.msra.mxu0 0
    %3206 = vmatprep.subr.bf16.mxu0 0
    %3207 = vmatpush1.bf16.msra.mxu0 0
    %3208 = vmatprep.subr.bf16.mxu0 0
    %3209 = vmatpush1.bf16.msra.mxu0 0
    %3210 = vmatprep.subr.bf16.mxu0 0
    %3211 = vmatpush1.bf16.msra.mxu0 0
    %3212 = vmatprep.subr.bf16.mxu0 0
    %3213 = vmatpush1.bf16.msra.mxu0 0
    %3214 = vmatprep.subr.bf16.mxu0 0
    %3215 = vmatpush1.bf16.msra.mxu0 0
    %3216 = vmatprep.subr.bf16.mxu0 0
    %3217 = vmatpush1.bf16.msra.mxu0 0
    %3218 = vmatprep.mubr.bf16.mxu0 0
    %3219 = vmatmul.mubr.bf16.gmra.mrb[0].mxu0 %v3130
    %v3220 = vpop.f32.mrb[0].mxu0
    %v3221 = vadd.f32 %v3136, %v3220
    %v3222 = vpop.f32.mrb[0].mxu0
    %v3223 = vpop.f32.mrb[0].mxu0
    %v3224 = vadd.f32 %v3136, %v3223
    %v3225 = vpop.f32.mrb[0].mxu0
    %3226 = vdwg.mxu0
    %v3227 = vld [vmem:[#allocation16] sm:$0xf]
    %v3228 = vld [vmem:[#allocation16 + $0x4] sm:$0xf]
    %v3229 = vld [vmem:[#allocation16 + $0x8] sm:$0xf]
    %v3230 = vld [vmem:[#allocation16 + $0xc] sm:$0xf]
    %v3231 = vld [vmem:[#allocation16 + $0x10] sm:$0xf]
    %v3232 = vld [vmem:[#allocation16 + $0x14] sm:$0xf]
    %v3233 = vld [vmem:[#allocation16 + $0x18] sm:$0xf]
    %v3234 = vld [vmem:[#allocation16 + $0x1c] sm:$0xf]
    %v3235 = vld [vmem:[#allocation16 + $0x20] sm:$0xf]
    %v3236 = vld [vmem:[#allocation16 + $0x24] sm:$0xf]
    %v3237 = vld [vmem:[#allocation16 + $0x28] sm:$0xf]
    %v3238 = vld [vmem:[#allocation16 + $0x2c] sm:$0xf]
    %v3239 = vld [vmem:[#allocation16 + $0x30] sm:$0xf]
    %v3240 = vld [vmem:[#allocation16 + $0x34] sm:$0xf]
    %v3241 = vld [vmem:[#allocation16 + $0x38] sm:$0xf]
    %v3242 = vld [vmem:[#allocation16 + $0x3c] sm:$0xf]
    %v3259 = vunpack.c.l.b16 %v3227
    %v3260 = vunpack.c.l.b16 %v3228
    %v3261 = vunpack.c.l.b16 %v3229
    %v3262 = vunpack.c.l.b16 %v3230
    %v3263 = vunpack.c.l.b16 %v3231
    %v3264 = vunpack.c.l.b16 %v3232
    %v3265 = vunpack.c.l.b16 %v3233
    %v3266 = vunpack.c.l.b16 %v3234
    %v3267 = vunpack.c.l.b16 %v3235
    %v3268 = vunpack.c.l.b16 %v3236
    %v3269 = vunpack.c.l.b16 %v3237
    %v3270 = vunpack.c.l.b16 %v3238
    %v3271 = vunpack.c.l.b16 %v3239
    %v3272 = vunpack.c.l.b16 %v3240
    %v3273 = vunpack.c.l.b16 %v3241
    %v3274 = vunpack.c.l.b16 %v3242
    %v3275 = vpack.c.b16 %v3260, %v3259
    %v3276 = vpack.c.b16 %v3262, %v3261
    %v3277 = vpack.c.b16 %v3264, %v3263
    %v3278 = vpack.c.b16 %v3266, %v3265
    %v3279 = vpack.c.b16 %v3268, %v3267
    %v3280 = vpack.c.b16 %v3270, %v3269
    %v3281 = vpack.c.b16 %v3272, %v3271
    %v3282 = vpack.c.b16 %v3274, %v3273
    %3291 = vmatprep.subr.bf16.mxu0 0
    %3292 = vmatpush1.bf16.msra.mxu0 %v3275
    %3293 = vmatprep.subr.bf16.mxu0 0
    %3294 = vmatpush1.bf16.msra.mxu0 %v3276
    %3295 = vmatprep.subr.bf16.mxu0 0
    %3296 = vmatpush1.bf16.msra.mxu0 %v3277
    %3297 = vmatprep.subr.bf16.mxu0 0
    %3298 = vmatpush1.bf16.msra.mxu0 %v3278
    %3299 = vmatprep.subr.bf16.mxu0 0
    %3300 = vmatpush1.bf16.msra.mxu0 %v3279
    %3301 = vmatprep.subr.bf16.mxu0 0
    %3302 = vmatpush1.bf16.msra.mxu0 %v3280
    %3303 = vmatprep.subr.bf16.mxu0 0
    %3304 = vmatpush1.bf16.msra.mxu0 %v3281
    %3305 = vmatprep.subr.bf16.mxu0 0
    %3306 = vmatpush1.bf16.msra.mxu0 %v3282
    %3307 = vmatprep.subr.bf16.mxu0 0
    %3308 = vmatpush1.bf16.msra.mxu0 0
    %3309 = vmatprep.subr.bf16.mxu0 0
    %3310 = vmatpush1.bf16.msra.mxu0 0
    %3311 = vmatprep.subr.bf16.mxu0 0
    %3312 = vmatpush1.bf16.msra.mxu0 0
    %3313 = vmatprep.subr.bf16.mxu0 0
    %3314 = vmatpush1.bf16.msra.mxu0 0
    %3315 = vmatprep.subr.bf16.mxu0 0
    %3316 = vmatpush1.bf16.msra.mxu0 0
    %3317 = vmatprep.subr.bf16.mxu0 0
    %3318 = vmatpush1.bf16.msra.mxu0 0
    %3319 = vmatprep.subr.bf16.mxu0 0
    %3320 = vmatpush1.bf16.msra.mxu0 0
    %3321 = vmatprep.subr.bf16.mxu0 0
    %3322 = vmatpush1.bf16.msra.mxu0 0
    %3323 = vmatprep.mubr.bf16.mxu0 0
    %3324 = vmatmul.mubr.bf16.gmra.mrb[0].mxu0 %v3064
    %v3325 = vpop.f32.mrb[0].mxu0
    %v3326 = vadd.f32 0.0, %v3325
    %v3327 = vpop.f32.mrb[0].mxu0
    %v3328 = vpop.f32.mrb[0].mxu0
    %v3329 = vadd.f32 0.0, %v3328
    %v3330 = vpop.f32.mrb[0].mxu0
    %3331 = vdwg.mxu0
    %v3332 = vadd.f32 %v3221, %v3326
    %v3333 = vadd.f32 %v3224, %v3329
    %vm3334 = vcmp.gt.f32.partialorder %v3332, 0.0
    %vm3335 = vcmp.gt.f32.partialorder %v3333, 0.0
    %v3336 = vmin.f32 %v3332, 0.0
    %v3337 = vmin.f32 %v3333, 0.0
    %v3338 = vmul.f32 %v3336, 1.442695
    %v3339 = vpow.pop %v3338
    %v3340 = vmul.f32 %v3337, 1.442695
    %v3341 = vpow.pop %v3340
    %v3342 = vsub.f32 %v3339, 1.0
    %v3343 = vsub.f32 %v3341, 1.0
    %v3344 = vsel %vm3334, %v3332, %v3342
    %v3345 = vsel %vm3335, %v3333, %v3343
    %v3346 = vld [vmem:[#allocation17] sm:$0x1]
    %v3348 = vlaneseq
    %v3349 = vshrl.u32 %v3348, 7
    %v3350 = vsub.s32 0, %v3349
    %v3351 = vrot.slane %v3346, %v3350
    %v3353 = vmul.f32 %v3344, %v3351
    %v3354 = vmul.f32 %v3345, %v3351
    %v3355 = vld [vmem:[#allocation19] sm:$0x1]
    %v3357 = vlaneseq
    %v3358 = vshrl.u32 %v3357, 7
    %v3359 = vsub.s32 0, %v3358
    %v3360 = vrot.slane %v3355, %v3359
    %v3362 = vadd.f32 %v3353, %v3360
    %v3363 = vadd.f32 %v3354, %v3360
    %v3364 = vld [vmem:[#allocation22] sm:$0xff]
    %v3365 = vld [vmem:[#allocation22 + $0x8] sm:$0xf]
    %v3366 = vld [vmem:[#allocation22 + $0xc] sm:$0xff]
    %v3367 = vld [vmem:[#allocation22 + $0x14] sm:$0xf]
    %v3368 = vld [vmem:[#allocation22 + $0x18] sm:$0xff]
    %v3369 = vld [vmem:[#allocation22 + $0x20] sm:$0xf]
    %v3370 = vld [vmem:[#allocation22 + $0x24] sm:$0xff]
    %v3371 = vld [vmem:[#allocation22 + $0x2c] sm:$0xf]
    %v3372 = vld [vmem:[#allocation22 + $0x30] sm:$0xff]
    %v3373 = vld [vmem:[#allocation22 + $0x38] sm:$0xf]
    %v3374 = vld [vmem:[#allocation22 + $0x3c] sm:$0xff]
    %v3375 = vld [vmem:[#allocation22 + $0x44] sm:$0xf]
    %v3376 = vld [vmem:[#allocation22 + $0x48] sm:$0xff]
    %v3377 = vld [vmem:[#allocation22 + $0x50] sm:$0xf]
    %v3378 = vld [vmem:[#allocation22 + $0x54] sm:$0xff]
    %v3379 = vld [vmem:[#allocation22 + $0x5c] sm:$0xf]
    %v3380 = vld [vmem:[#allocation22 + $0x60] sm:$0xff]
    %v3381 = vld [vmem:[#allocation22 + $0x68] sm:$0xf]
    %v3382 = vld [vmem:[#allocation22 + $0x6c] sm:$0xff]
    %v3383 = vld [vmem:[#allocation22 + $0x74] sm:$0xf]
    %v3384 = vld [vmem:[#allocation22 + $0x78] sm:$0xff]
    %v3385 = vld [vmem:[#allocation22 + $0x80] sm:$0xf]
    %v3386 = vld [vmem:[#allocation22 + $0x84] sm:$0xff]
    %v3387 = vld [vmem:[#allocation22 + $0x8c] sm:$0xf]
    %v3388 = vld [vmem:[#allocation22 + $0x90] sm:$0xff]
    %v3389 = vld [vmem:[#allocation22 + $0x98] sm:$0xf]
    %v3390 = vld [vmem:[#allocation22 + $0x9c] sm:$0xff]
    %v3391 = vld [vmem:[#allocation22 + $0xa4] sm:$0xf]
    %v3392 = vld [vmem:[#allocation22 + $0xa8] sm:$0xff]
    %v3393 = vld [vmem:[#allocation22 + $0xb0] sm:$0xf]
    %v3394 = vld [vmem:[#allocation22 + $0xb4] sm:$0xff]
    %v3395 = vld [vmem:[#allocation22 + $0xbc] sm:$0xf]
    %v3396 = vld [vmem:[#allocation23] sm:$0xff]
    %v3397 = vld [vmem:[#allocation23 + $0x8] sm:$0xf]
    %v3398 = vld [vmem:[#allocation23 + $0xc] sm:$0xff]
    %v3399 = vld [vmem:[#allocation23 + $0x14] sm:$0xf]
    %v3400 = vld [vmem:[#allocation23 + $0x18] sm:$0xff]
    %v3401 = vld [vmem:[#allocation23 + $0x20] sm:$0xf]
    %v3402 = vld [vmem:[#allocation23 + $0x24] sm:$0xff]
    %v3403 = vld [vmem:[#allocation23 + $0x2c] sm:$0xf]
    %v3404 = vld [vmem:[#allocation23 + $0x30] sm:$0xff]
    %v3405 = vld [vmem:[#allocation23 + $0x38] sm:$0xf]
    %v3406 = vld [vmem:[#allocation23 + $0x3c] sm:$0xff]
    %v3407 = vld [vmem:[#allocation23 + $0x44] sm:$0xf]
    %v3408 = vld [vmem:[#allocation23 + $0x48] sm:$0xff]
    %v3409 = vld [vmem:[#allocation23 + $0x50] sm:$0xf]
    %v3410 = vld [vmem:[#allocation23 + $0x54] sm:$0xff]
    %v3411 = vld [vmem:[#allocation23 + $0x5c] sm:$0xf]
    %v3412 = vld [vmem:[#allocation23 + $0x60] sm:$0xff]
    %v3413 = vld [vmem:[#allocation23 + $0x68] sm:$0xf]
    %v3414 = vld [vmem:[#allocation23 + $0x6c] sm:$0xff]
    %v3415 = vld [vmem:[#allocation23 + $0x74] sm:$0xf]
    %v3416 = vld [vmem:[#allocation23 + $0x78] sm:$0xff]
    %v3417 = vld [vmem:[#allocation23 + $0x80] sm:$0xf]
    %v3418 = vld [vmem:[#allocation23 + $0x84] sm:$0xff]
    %v3419 = vld [vmem:[#allocation23 + $0x8c] sm:$0xf]
    %v3420 = vld [vmem:[#allocation23 + $0x90] sm:$0xff]
    %v3421 = vld [vmem:[#allocation23 + $0x98] sm:$0xf]
    %v3422 = vld [vmem:[#allocation23 + $0x9c] sm:$0xff]
    %v3423 = vld [vmem:[#allocation23 + $0xa4] sm:$0xf]
    %v3424 = vld [vmem:[#allocation23 + $0xa8] sm:$0xff]
    %v3425 = vld [vmem:[#allocation23 + $0xb0] sm:$0xf]
    %v3426 = vld [vmem:[#allocation23 + $0xb4] sm:$0xff]
    %v3427 = vld [vmem:[#allocation23 + $0xbc] sm:$0xf]
    %v3428 = vld [vmem:[#allocation25] sm:$0x7]
    %v3429 = vld [vmem:[#allocation26] sm:$0x7]
    %v3430 = vld [vmem:[#allocation20] sm:$0xf]
    %v3431 = vld [vmem:[#allocation20 + $0x4] sm:$0xf]
    %v3432 = vld [vmem:[#allocation20 + $0x8] sm:$0xf]
    %v3433 = vld [vmem:[#allocation20 + $0xc] sm:$0xf]
    %v3434 = vld [vmem:[#allocation20 + $0x10] sm:$0xf]
    %v3435 = vld [vmem:[#allocation20 + $0x14] sm:$0xf]
    %v3436 = vld [vmem:[#allocation20 + $0x18] sm:$0xf]
    %v3437 = vld [vmem:[#allocation20 + $0x1c] sm:$0xf]
    %v3438 = vld [vmem:[#allocation20 + $0x20] sm:$0xf]
    %v3439 = vld [vmem:[#allocation20 + $0x24] sm:$0xf]
    %v3440 = vld [vmem:[#allocation20 + $0x28] sm:$0xf]
    %v3441 = vld [vmem:[#allocation20 + $0x2c] sm:$0xf]
    %v3442 = vld [vmem:[#allocation20 + $0x30] sm:$0xf]
    %v3443 = vld [vmem:[#allocation20 + $0x34] sm:$0xf]
    %v3444 = vld [vmem:[#allocation20 + $0x38] sm:$0xf]
    %v3445 = vld [vmem:[#allocation20 + $0x3c] sm:$0xf]
    %v3446 = vpack.c.bf16 %v3363, %v3362
    %v3463 = vunpack.c.l.b16 %v3430
    %v3464 = vunpack.c.l.b16 %v3431
    %v3465 = vunpack.c.l.b16 %v3432
    %v3466 = vunpack.c.l.b16 %v3433
    %v3467 = vunpack.c.l.b16 %v3434
    %v3468 = vunpack.c.l.b16 %v3435
    %v3469 = vunpack.c.l.b16 %v3436
    %v3470 = vunpack.c.l.b16 %v3437
    %v3471 = vunpack.c.l.b16 %v3438
    %v3472 = vunpack.c.l.b16 %v3439
    %v3473 = vunpack.c.l.b16 %v3440
    %v3474 = vunpack.c.l.b16 %v3441
    %v3475 = vunpack.c.l.b16 %v3442
    %v3476 = vunpack.c.l.b16 %v3443
    %v3477 = vunpack.c.l.b16 %v3444
    %v3478 = vunpack.c.l.b16 %v3445
    %v3479 = vpack.c.b16 %v3464, %v3463
    %v3480 = vpack.c.b16 %v3466, %v3465
    %v3481 = vpack.c.b16 %v3468, %v3467
    %v3482 = vpack.c.b16 %v3470, %v3469
    %v3483 = vpack.c.b16 %v3472, %v3471
    %v3484 = vpack.c.b16 %v3474, %v3473
    %v3485 = vpack.c.b16 %v3476, %v3475
    %v3486 = vpack.c.b16 %v3478, %v3477
    %3495 = vmatprep.subr.bf16.mxu0 0
    %3496 = vmatpush1.bf16.msra.mxu0 %v3479
    %3497 = vmatprep.subr.bf16.mxu0 0
    %3498 = vmatpush1.bf16.msra.mxu0 %v3480
    %3499 = vmatprep.subr.bf16.mxu0 0
    %3500 = vmatpush1.bf16.msra.mxu0 %v3481
    %3501 = vmatprep.subr.bf16.mxu0 0
    %3502 = vmatpush1.bf16.msra.mxu0 %v3482
    %3503 = vmatprep.subr.bf16.mxu0 0
    %3504 = vmatpush1.bf16.msra.mxu0 %v3483
    %3505 = vmatprep.subr.bf16.mxu0 0
    %3506 = vmatpush1.bf16.msra.mxu0 %v3484
    %3507 = vmatprep.subr.bf16.mxu0 0
    %3508 = vmatpush1.bf16.msra.mxu0 %v3485
    %3509 = vmatprep.subr.bf16.mxu0 0
    %3510 = vmatpush1.bf16.msra.mxu0 %v3486
    %3511 = vmatprep.subr.bf16.mxu0 0
    %3512 = vmatpush1.bf16.msra.mxu0 0
    %3513 = vmatprep.subr.bf16.mxu0 0
    %3514 = vmatpush1.bf16.msra.mxu0 0
    %3515 = vmatprep.subr.bf16.mxu0 0
    %3516 = vmatpush1.bf16.msra.mxu0 0
    %3517 = vmatprep.subr.bf16.mxu0 0
    %3518 = vmatpush1.bf16.msra.mxu0 0
    %3519 = vmatprep.subr.bf16.mxu0 0
    %3520 = vmatpush1.bf16.msra.mxu0 0
    %3521 = vmatprep.subr.bf16.mxu0 0
    %3522 = vmatpush1.bf16.msra.mxu0 0
    %3523 = vmatprep.subr.bf16.mxu0 0
    %3524 = vmatpush1.bf16.msra.mxu0 0
    %3525 = vmatprep.subr.bf16.mxu0 0
    %3526 = vmatpush1.bf16.msra.mxu0 0
    %3527 = vmatprep.mubr.bf16.mxu0 0
    %3528 = vmatmul.mubr.bf16.gmra.mrb[0].mxu0 %v3446
    %v3529 = vpop.f32.mrb[0].mxu0
    %v3530 = vadd.f32 0.0, %v3529
    %v3531 = vpop.f32.mrb[0].mxu0
    %v3532 = vpop.f32.mrb[0].mxu0
    %v3533 = vadd.f32 0.0, %v3532
    %v3534 = vpop.f32.mrb[0].mxu0
    %3535 = vdwg.mxu0
    %vm3536 = vcmp.lt.f32.partialorder %v3530, 0.0
    %vm3537 = vcmp.lt.f32.partialorder %v3533, 0.0
    %vm3538 = vcmp.eq.f32.partialorder %v3530, 0.0
    %vm3539 = vcmp.eq.f32.partialorder %v3533, 0.0
    %v3540 = vand.u32 2147483647, %v3530
    %v3541 = vand.u32 2147483647, %v3533
    %v3542 = vsel %vm3538, 1.0, %v3540
    %v3543 = vsel %vm3539, 1.0, %v3541
    %v3544 = vlog2.pop %v3542
    %v3545 = vmul.f32 %v3544, 0.6931472
    %v3546 = vlog2.pop %v3543
    %v3547 = vmul.f32 %v3546, 0.6931472
    %v3548 = vsel %vm3536, 1, 0
    %v3549 = vsel %vm3537, 1, 0
    %v3550 = vcvt.s32.f32 %v3548
    %v3551 = vcvt.s32.f32 %v3549
    %v3552 = vpack.c.bf16 %v3551, %v3550
    %3553 = vmatprep.subr.bf16.mxu0 0
    %3554 = vmatpush1.bf16.msra.mxu0 %v3552
    %3555 = vmatprep.subr.bf16.mxu0 0
    %3556 = vmatpush1.bf16.msra.mxu0 0
    %3557 = vmatprep.subr.bf16.mxu0 0
    %3558 = vmatpush1.bf16.msra.mxu0 0
    %3559 = vmatprep.subr.bf16.mxu0 0
    %3560 = vmatpush1.bf16.msra.mxu0 0
    %3561 = vmatprep.subr.bf16.mxu0 0
    %3562 = vmatpush1.bf16.msra.mxu0 0
    %3563 = vmatprep.subr.bf16.mxu0 0
    %3564 = vmatpush1.bf16.msra.mxu0 0
    %3565 = vmatprep.subr.bf16.mxu0 0
    %3566 = vmatpush1.bf16.msra.mxu0 0
    %3567 = vmatprep.subr.bf16.mxu0 0
    %3568 = vmatpush1.bf16.msra.mxu0 0
    %3569 = vmatprep.subr.bf16.mxu0 0
    %3570 = vmatpush1.bf16.msra.mxu0 0
    %3571 = vmatprep.subr.bf16.mxu0 0
    %3572 = vmatpush1.bf16.msra.mxu0 0
    %3573 = vmatprep.subr.bf16.mxu0 0
    %3574 = vmatpush1.bf16.msra.mxu0 0
    %3575 = vmatprep.subr.bf16.mxu0 0
    %3576 = vmatpush1.bf16.msra.mxu0 0
    %3577 = vmatprep.subr.bf16.mxu0 0
    %3578 = vmatpush1.bf16.msra.mxu0 0
    %3579 = vmatprep.subr.bf16.mxu0 0
    %3580 = vmatpush1.bf16.msra.mxu0 0
    %3581 = vmatprep.subr.bf16.mxu0 0
    %3582 = vmatpush1.bf16.msra.mxu0 0
    %3583 = vmatprep.subr.bf16.mxu0 0
    %3584 = vmatpush1.bf16.msra.mxu0 0
    %3585 = vmatprep.mubr.bf16.mxu0 0
    %3586 = vmatmul.mubr.bf16.gmra.mrb[0].mxu0 %v3071
    %v3587 = vpop.f32.mrb[0].mxu0
    %v3588 = vadd.f32 0.0, %v3587
    %v3589 = vpop.f32.mrb[0].mxu0
    %v3590 = vpop.f32.mrb[0].mxu0
    %v3591 = vadd.f32 0.0, %v3590
    %v3592 = vpop.f32.mrb[0].mxu0
    %3593 = vdwg.mxu0
    %v3594 = vsel %vm3538, 1, 0
    %v3595 = vsel %vm3539, 1, 0
    %v3596 = vcvt.s32.f32 %v3594
    %v3597 = vcvt.s32.f32 %v3595
    %v3598 = vpack.c.bf16 %v3597, %v3596
    %3599 = vmatprep.subr.bf16.mxu0 0
    %3600 = vmatpush1.bf16.msra.mxu0 %v3598
    %3601 = vmatprep.subr.bf16.mxu0 0
    %3602 = vmatpush1.bf16.msra.mxu0 0
    %3603 = vmatprep.subr.bf16.mxu0 0
    %3604 = vmatpush1.bf16.msra.mxu0 0
    %3605 = vmatprep.subr.bf16.mxu0 0
    %3606 = vmatpush1.bf16.msra.mxu0 0
    %3607 = vmatprep.subr.bf16.mxu0 0
    %3608 = vmatpush1.bf16.msra.mxu0 0
    %3609 = vmatprep.subr.bf16.mxu0 0
    %3610 = vmatpush1.bf16.msra.mxu0 0
    %3611 = vmatprep.subr.bf16.mxu0 0
    %3612 = vmatpush1.bf16.msra.mxu0 0
    %3613 = vmatprep.subr.bf16.mxu0 0
    %3614 = vmatpush1.bf16.msra.mxu0 0
    %3615 = vmatprep.subr.bf16.mxu0 0
    %3616 = vmatpush1.bf16.msra.mxu0 0
    %3617 = vmatprep.subr.bf16.mxu0 0
    %3618 = vmatpush1.bf16.msra.mxu0 0
    %3619 = vmatprep.subr.bf16.mxu0 0
    %3620 = vmatpush1.bf16.msra.mxu0 0
    %3621 = vmatprep.subr.bf16.mxu0 0
    %3622 = vmatpush1.bf16.msra.mxu0 0
    %3623 = vmatprep.subr.bf16.mxu0 0
    %3624 = vmatpush1.bf16.msra.mxu0 0
    %3625 = vmatprep.subr.bf16.mxu0 0
    %3626 = vmatpush1.bf16.msra.mxu0 0
    %3627 = vmatprep.subr.bf16.mxu0 0
    %3628 = vmatpush1.bf16.msra.mxu0 0
    %3629 = vmatprep.subr.bf16.mxu0 0
    %3630 = vmatpush1.bf16.msra.mxu0 0
    %3631 = vmatprep.mubr.bf16.mxu0 0
    %3632 = vmatmul.mubr.bf16.gmra.mrb[0].mxu0 %v3071
    %v3633 = vpop.f32.mrb[0].mxu0
    %v3634 = vadd.f32 0.0, %v3633
    %v3635 = vpop.f32.mrb[0].mxu0
    %v3636 = vpop.f32.mrb[0].mxu0
    %v3637 = vadd.f32 0.0, %v3636
    %v3638 = vpop.f32.mrb[0].mxu0
    %3639 = vdwg.mxu0
    %v3640 = vpack.c.bf16 %v3547, %v3545
    %3641 = vmatprep.subr.bf16.mxu0 0
    %3642 = vmatpush1.bf16.msra.mxu0 %v3640
    %3643 = vmatprep.subr.bf16.mxu0 0
    %3644 = vmatpush1.bf16.msra.mxu0 0
    %3645 = vmatprep.subr.bf16.mxu0 0
    %3646 = vmatpush1.bf16.msra.mxu0 0
    %3647 = vmatprep.subr.bf16.mxu0 0
    %3648 = vmatpush1.bf16.msra.mxu0 0
    %3649 = vmatprep.subr.bf16.mxu0 0
    %3650 = vmatpush1.bf16.msra.mxu0 0
    %3651 = vmatprep.subr.bf16.mxu0 0
    %3652 = vmatpush1.bf16.msra.mxu0 0
    %3653 = vmatprep.subr.bf16.mxu0 0
    %3654 = vmatpush1.bf16.msra.mxu0 0
    %3655 = vmatprep.subr.bf16.mxu0 0
    %3656 = vmatpush1.bf16.msra.mxu0 0
    %3657 = vmatprep.subr.bf16.mxu0 0
    %3658 = vmatpush1.bf16.msra.mxu0 0
    %3659 = vmatprep.subr.bf16.mxu0 0
    %3660 = vmatpush1.bf16.msra.mxu0 0
    %3661 = vmatprep.subr.bf16.mxu0 0
    %3662 = vmatpush1.bf16.msra.mxu0 0
    %3663 = vmatprep.subr.bf16.mxu0 0
    %3664 = vmatpush1.bf16.msra.mxu0 0
    %3665 = vmatprep.subr.bf16.mxu0 0
    %3666 = vmatpush1.bf16.msra.mxu0 0
    %3667 = vmatprep.subr.bf16.mxu0 0
    %3668 = vmatpush1.bf16.msra.mxu0 0
    %3669 = vmatprep.subr.bf16.mxu0 0
    %3670 = vmatpush1.bf16.msra.mxu0 0
    %3671 = vmatprep.subr.bf16.mxu0 0
    %3672 = vmatpush1.bf16.msra.mxu0 0
    %3673 = vmatprep.mubr.bf16.mxu0 0
    %3674 = vmatmul.mubr.bf16.gmra.mrb[0].mxu0 %v3071
    %v3675 = vpop.f32.mrb[0].mxu0
    %v3676 = vadd.f32 0.0, %v3675
    %v3677 = vpop.f32.mrb[0].mxu0
    %v3678 = vpop.f32.mrb[0].mxu0
    %v3679 = vadd.f32 0.0, %v3678
    %v3680 = vpop.f32.mrb[0].mxu0
    %3681 = vdwg.mxu0
    %v3682 = vmul.f32 %v3588, 0.5
    %v3683 = vmul.f32 %v3591, 0.5
    %v3684 = vfloor.f32 %v3682
    %v3685 = vfloor.f32 %v3683
    %v3686 = vmul.f32 %v3684, 2.0
    %v3687 = vmul.f32 %v3685, 2.0
    %v3688 = vsub.f32 %v3588, %v3686
    %v3689 = vsub.f32 %v3591, %v3687
    %v3690 = vmul.f32 %v3688, 2.0
    %v3691 = vmul.f32 %v3689, 2.0
    %v3692 = vsub.f32 1.0, %v3690
    %v3693 = vsub.f32 1.0, %v3691
    %vm3694 = vcmp.gt.f32.partialorder %v3634, 0.5
    %vm3695 = vcmp.gt.f32.partialorder %v3637, 0.5
    %v3696 = vmul.f32 %v3676, 1.442695
    %v3697 = vpow.pop %v3696
    %v3698 = vmul.f32 %v3679, 1.442695
    %v3699 = vpow.pop %v3698
    %v3700 = vmul.f32 %v3692, %v3697
    %v3701 = vmul.f32 %v3693, %v3699
    %v3702 = vsel %vm3694, 0.0, %v3700
    %v3703 = vsel %vm3695, 0.0, %v3701
    %v3704 = vpack.c.bf16 %v3703, %v3702
    %v3706 = vlaneseq
    %v3707 = vshrl.u32 %v3706, 7
    %v3708 = vsub.s32 0, %v3707
    %v3709 = vrot.slane %v3428, %v3708
    %v3710 = vlaneseq
    %v3711 = vshrl.u32 %v3710, 7
    %v3712 = vsub.s32 1, %v3711
    %v3713 = vrot.slane %v3428, %v3712
    %v3714 = vlaneseq
    %v3715 = vshrl.u32 %v3714, 7
    %v3716 = vsub.s32 2, %v3715
    %v3717 = vrot.slane %v3428, %v3716
    %v3753 = vunpack.c.l.b16 %v3364
    %v3754 = vunpack.c.h.b16 %v3364
    %v3755 = vunpack.c.l.b16 %v3365
    %v3756 = vunpack.c.l.b16 %v3366
    %v3757 = vunpack.c.h.b16 %v3366
    %v3758 = vunpack.c.l.b16 %v3367
    %v3759 = vunpack.c.l.b16 %v3368
    %v3760 = vunpack.c.h.b16 %v3368
    %v3761 = vunpack.c.l.b16 %v3369
    %v3762 = vunpack.c.l.b16 %v3370
    %v3763 = vunpack.c.h.b16 %v3370
    %v3764 = vunpack.c.l.b16 %v3371
    %v3765 = vunpack.c.l.b16 %v3372
    %v3766 = vunpack.c.h.b16 %v3372
    %v3767 = vunpack.c.l.b16 %v3373
    %v3768 = vunpack.c.l.b16 %v3374
    %v3769 = vunpack.c.h.b16 %v3374
    %v3770 = vunpack.c.l.b16 %v3375
    %v3771 = vunpack.c.l.b16 %v3376
    %v3772 = vunpack.c.h.b16 %v3376
    %v3773 = vunpack.c.l.b16 %v3377
    %v3774 = vunpack.c.l.b16 %v3378
    %v3775 = vunpack.c.h.b16 %v3378
    %v3776 = vunpack.c.l.b16 %v3379
    %v3777 = vunpack.c.l.b16 %v3380
    %v3778 = vunpack.c.h.b16 %v3380
    %v3779 = vunpack.c.l.b16 %v3381
    %v3780 = vunpack.c.l.b16 %v3382
    %v3781 = vunpack.c.h.b16 %v3382
    %v3782 = vunpack.c.l.b16 %v3383
    %v3783 = vunpack.c.l.b16 %v3384
    %v3784 = vunpack.c.h.b16 %v3384
    %v3785 = vunpack.c.l.b16 %v3385
    %v3786 = vunpack.c.l.b16 %v3386
    %v3787 = vunpack.c.h.b16 %v3386
    %v3788 = vunpack.c.l.b16 %v3387
    %v3789 = vunpack.c.l.b16 %v3388
    %v3790 = vunpack.c.h.b16 %v3388
    %v3791 = vunpack.c.l.b16 %v3389
    %v3792 = vunpack.c.l.b16 %v3390
    %v3793 = vunpack.c.h.b16 %v3390
    %v3794 = vunpack.c.l.b16 %v3391
    %v3795 = vunpack.c.l.b16 %v3392
    %v3796 = vunpack.c.h.b16 %v3392
    %v3797 = vunpack.c.l.b16 %v3393
    %v3798 = vunpack.c.l.b16 %v3394
    %v3799 = vunpack.c.h.b16 %v3394
    %v3800 = vunpack.c.l.b16 %v3395
    %v3801 = vpack.c.b16 %v3756, %v3753
    %v3802 = vpack.c.b16 %v3757, %v3754
    %v3803 = vpack.c.b16 %v3758, %v3755
    %v3804 = vpack.c.b16 %v3762, %v3759
    %v3805 = vpack.c.b16 %v3763, %v3760
    %v3806 = vpack.c.b16 %v3764, %v3761
    %v3807 = vpack.c.b16 %v3768, %v3765
    %v3808 = vpack.c.b16 %v3769, %v3766
    %v3809 = vpack.c.b16 %v3770, %v3767
    %v3810 = vpack.c.b16 %v3774, %v3771
    %v3811 = vpack.c.b16 %v3775, %v3772
    %v3812 = vpack.c.b16 %v3776, %v3773
    %v3813 = vpack.c.b16 %v3780, %v3777
    %v3814 = vpack.c.b16 %v3781, %v3778
    %v3815 = vpack.c.b16 %v3782, %v3779
    %v3816 = vpack.c.b16 %v3786, %v3783
    %v3817 = vpack.c.b16 %v3787, %v3784
    %v3818 = vpack.c.b16 %v3788, %v3785
    %v3819 = vpack.c.b16 %v3792, %v3789
    %v3820 = vpack.c.b16 %v3793, %v3790
    %v3821 = vpack.c.b16 %v3794, %v3791
    %v3822 = vpack.c.b16 %v3798, %v3795
    %v3823 = vpack.c.b16 %v3799, %v3796
    %v3824 = vpack.c.b16 %v3800, %v3797
    %3849 = vmatprep.subr.bf16.mxu0 %v3802
    %3850 = vmatpush1.bf16.msra.mxu0 %v3801
    %3851 = vmatprep.subr.bf16.mxu0 %v3805
    %3852 = vmatpush1.bf16.msra.mxu0 %v3804
    %3853 = vmatprep.subr.bf16.mxu0 %v3808
    %3854 = vmatpush1.bf16.msra.mxu0 %v3807
    %3855 = vmatprep.subr.bf16.mxu0 %v3811
    %3856 = vmatpush1.bf16.msra.mxu0 %v3810
    %3857 = vmatprep.subr.bf16.mxu0 %v3814
    %3858 = vmatpush1.bf16.msra.mxu0 %v3813
    %3859 = vmatprep.subr.bf16.mxu0 %v3817
    %3860 = vmatpush1.bf16.msra.mxu0 %v3816
    %3861 = vmatprep.subr.bf16.mxu0 %v3820
    %3862 = vmatpush1.bf16.msra.mxu0 %v3819
    %3863 = vmatprep.subr.bf16.mxu0 %v3823
    %3864 = vmatpush1.bf16.msra.mxu0 %v3822
    %3865 = vmatprep.subr.bf16.mxu0 0
    %3866 = vmatpush1.bf16.msra.mxu0 0
    %3867 = vmatprep.subr.bf16.mxu0 0
    %3868 = vmatpush1.bf16.msra.mxu0 0
    %3869 = vmatprep.subr.bf16.mxu0 0
    %3870 = vmatpush1.bf16.msra.mxu0 0
    %3871 = vmatprep.subr.bf16.mxu0 0
    %3872 = vmatpush1.bf16.msra.mxu0 0
    %3873 = vmatprep.subr.bf16.mxu0 0
    %3874 = vmatpush1.bf16.msra.mxu0 0
    %3875 = vmatprep.subr.bf16.mxu0 0
    %3876 = vmatpush1.bf16.msra.mxu0 0
    %3877 = vmatprep.subr.bf16.mxu0 0
    %3878 = vmatpush1.bf16.msra.mxu0 0
    %3879 = vmatprep.subr.bf16.mxu0 0
    %3880 = vmatpush1.bf16.msra.mxu0 0
    %3881 = vmatprep.mubr.bf16.mxu0 0
    %3882 = vmatmul.mubr.bf16.gmra.mrb[0].mxu0 %v3704
    %v3883 = vpop.f32.mrb[0].mxu0
    %v3884 = vadd.f32 %v3709, %v3883
    %v3885 = vpop.f32.mrb[0].mxu0
    %v3886 = vadd.f32 %v3713, %v3885
    %v3887 = vpop.f32.mrb[0].mxu0
    %v3888 = vadd.f32 %v3709, %v3887
    %v3889 = vpop.f32.mrb[0].mxu0
    %v3890 = vadd.f32 %v3713, %v3889
    %3891 = vdwg.mxu0
    %3892 = vmatprep.subr.bf16.mxu0 0
    %3893 = vmatpush1.bf16.msra.mxu0 %v3803
    %3894 = vmatprep.subr.bf16.mxu0 0
    %3895 = vmatpush1.bf16.msra.mxu0 %v3806
    %3896 = vmatprep.subr.bf16.mxu0 0
    %3897 = vmatpush1.bf16.msra.mxu0 %v3809
    %3898 = vmatprep.subr.bf16.mxu0 0
    %3899 = vmatpush1.bf16.msra.mxu0 %v3812
    %3900 = vmatprep.subr.bf16.mxu0 0
    %3901 = vmatpush1.bf16.msra.mxu0 %v3815
    %3902 = vmatprep.subr.bf16.mxu0 0
    %3903 = vmatpush1.bf16.msra.mxu0 %v3818
    %3904 = vmatprep.subr.bf16.mxu0 0
    %3905 = vmatpush1.bf16.msra.mxu0 %v3821
    %3906 = vmatprep.subr.bf16.mxu0 0
    %3907 = vmatpush1.bf16.msra.mxu0 %v3824
    %3908 = vmatprep.subr.bf16.mxu0 0
    %3909 = vmatpush1.bf16.msra.mxu0 0
    %3910 = vmatprep.subr.bf16.mxu0 0
    %3911 = vmatpush1.bf16.msra.mxu0 0
    %3912 = vmatprep.subr.bf16.mxu0 0
    %3913 = vmatpush1.bf16.msra.mxu0 0
    %3914 = vmatprep.subr.bf16.mxu0 0
    %3915 = vmatpush1.bf16.msra.mxu0 0
    %3916 = vmatprep.subr.bf16.mxu0 0
    %3917 = vmatpush1.bf16.msra.mxu0 0
    %3918 = vmatprep.subr.bf16.mxu0 0
    %3919 = vmatpush1.bf16.msra.mxu0 0
    %3920 = vmatprep.subr.bf16.mxu0 0
    %3921 = vmatpush1.bf16.msra.mxu0 0
    %3922 = vmatprep.subr.bf16.mxu0 0
    %3923 = vmatpush1.bf16.msra.mxu0 0
    %3924 = vmatprep.mubr.bf16.mxu0 0
    %3925 = vmatmul.mubr.bf16.gmra.mrb[0].mxu0 %v3704
    %v3926 = vpop.f32.mrb[0].mxu0
    %v3927 = vadd.f32 %v3717, %v3926
    %v3928 = vpop.f32.mrb[0].mxu0
    %v3929 = vpop.f32.mrb[0].mxu0
    %v3930 = vadd.f32 %v3717, %v3929
    %v3931 = vpop.f32.mrb[0].mxu0
    %3932 = vdwg.mxu0
    %v3934 = vlaneseq
    %v3935 = vshrl.u32 %v3934, 7
    %v3936 = vsub.s32 0, %v3935
    %v3937 = vrot.slane %v3429, %v3936
    %v3938 = vlaneseq
    %v3939 = vshrl.u32 %v3938, 7
    %v3940 = vsub.s32 1, %v3939
    %v3941 = vrot.slane %v3429, %v3940
    %v3942 = vlaneseq
    %v3943 = vshrl.u32 %v3942, 7
    %v3944 = vsub.s32 2, %v3943
    %v3945 = vrot.slane %v3429, %v3944
    %v3981 = vunpack.c.l.b16 %v3396
    %v3982 = vunpack.c.h.b16 %v3396
    %v3983 = vunpack.c.l.b16 %v3397
    %v3984 = vunpack.c.l.b16 %v3398
    %v3985 = vunpack.c.h.b16 %v3398
    %v3986 = vunpack.c.l.b16 %v3399
    %v3987 = vunpack.c.l.b16 %v3400
    %v3988 = vunpack.c.h.b16 %v3400
    %v3989 = vunpack.c.l.b16 %v3401
    %v3990 = vunpack.c.l.b16 %v3402
    %v3991 = vunpack.c.h.b16 %v3402
    %v3992 = vunpack.c.l.b16 %v3403
    %v3993 = vunpack.c.l.b16 %v3404
    %v3994 = vunpack.c.h.b16 %v3404
    %v3995 = vunpack.c.l.b16 %v3405
    %v3996 = vunpack.c.l.b16 %v3406
    %v3997 = vunpack.c.h.b16 %v3406
    %v3998 = vunpack.c.l.b16 %v3407
    %v3999 = vunpack.c.l.b16 %v3408
    %v4000 = vunpack.c.h.b16 %v3408
    %v4001 = vunpack.c.l.b16 %v3409
    %v4002 = vunpack.c.l.b16 %v3410
    %v4003 = vunpack.c.h.b16 %v3410
    %v4004 = vunpack.c.l.b16 %v3411
    %v4005 = vunpack.c.l.b16 %v3412
    %v4006 = vunpack.c.h.b16 %v3412
    %v4007 = vunpack.c.l.b16 %v3413
    %v4008 = vunpack.c.l.b16 %v3414
    %v4009 = vunpack.c.h.b16 %v3414
    %v4010 = vunpack.c.l.b16 %v3415
    %v4011 = vunpack.c.l.b16 %v3416
    %v4012 = vunpack.c.h.b16 %v3416
    %v4013 = vunpack.c.l.b16 %v3417
    %v4014 = vunpack.c.l.b16 %v3418
    %v4015 = vunpack.c.h.b16 %v3418
    %v4016 = vunpack.c.l.b16 %v3419
    %v4017 = vunpack.c.l.b16 %v3420
    %v4018 = vunpack.c.h.b16 %v3420
    %v4019 = vunpack.c.l.b16 %v3421
    %v4020 = vunpack.c.l.b16 %v3422
    %v4021 = vunpack.c.h.b16 %v3422
    %v4022 = vunpack.c.l.b16 %v3423
    %v4023 = vunpack.c.l.b16 %v3424
    %v4024 = vunpack.c.h.b16 %v3424
    %v4025 = vunpack.c.l.b16 %v3425
    %v4026 = vunpack.c.l.b16 %v3426
    %v4027 = vunpack.c.h.b16 %v3426
    %v4028 = vunpack.c.l.b16 %v3427
    %v4029 = vpack.c.b16 %v3984, %v3981
    %v4030 = vpack.c.b16 %v3985, %v3982
    %v4031 = vpack.c.b16 %v3986, %v3983
    %v4032 = vpack.c.b16 %v3990, %v3987
    %v4033 = vpack.c.b16 %v3991, %v3988
    %v4034 = vpack.c.b16 %v3992, %v3989
    %v4035 = vpack.c.b16 %v3996, %v3993
    %v4036 = vpack.c.b16 %v3997, %v3994
    %v4037 = vpack.c.b16 %v3998, %v3995
    %v4038 = vpack.c.b16 %v4002, %v3999
    %v4039 = vpack.c.b16 %v4003, %v4000
    %v4040 = vpack.c.b16 %v4004, %v4001
    %v4041 = vpack.c.b16 %v4008, %v4005
    %v4042 = vpack.c.b16 %v4009, %v4006
    %v4043 = vpack.c.b16 %v4010, %v4007
    %v4044 = vpack.c.b16 %v4014, %v4011
    %v4045 = vpack.c.b16 %v4015, %v4012
    %v4046 = vpack.c.b16 %v4016, %v4013
    %v4047 = vpack.c.b16 %v4020, %v4017
    %v4048 = vpack.c.b16 %v4021, %v4018
    %v4049 = vpack.c.b16 %v4022, %v4019
    %v4050 = vpack.c.b16 %v4026, %v4023
    %v4051 = vpack.c.b16 %v4027, %v4024
    %v4052 = vpack.c.b16 %v4028, %v4025
    %4077 = vmatprep.subr.bf16.mxu0 %v4030
    %4078 = vmatpush1.bf16.msra.mxu0 %v4029
    %4079 = vmatprep.subr.bf16.mxu0 %v4033
    %4080 = vmatpush1.bf16.msra.mxu0 %v4032
    %4081 = vmatprep.subr.bf16.mxu0 %v4036
    %4082 = vmatpush1.bf16.msra.mxu0 %v4035
    %4083 = vmatprep.subr.bf16.mxu0 %v4039
    %4084 = vmatpush1.bf16.msra.mxu0 %v4038
    %4085 = vmatprep.subr.bf16.mxu0 %v4042
    %4086 = vmatpush1.bf16.msra.mxu0 %v4041
    %4087 = vmatprep.subr.bf16.mxu0 %v4045
    %4088 = vmatpush1.bf16.msra.mxu0 %v4044
    %4089 = vmatprep.subr.bf16.mxu0 %v4048
    %4090 = vmatpush1.bf16.msra.mxu0 %v4047
    %4091 = vmatprep.subr.bf16.mxu0 %v4051
    %4092 = vmatpush1.bf16.msra.mxu0 %v4050
    %4093 = vmatprep.subr.bf16.mxu0 0
    %4094 = vmatpush1.bf16.msra.mxu0 0
    %4095 = vmatprep.subr.bf16.mxu0 0
    %4096 = vmatpush1.bf16.msra.mxu0 0
    %4097 = vmatprep.subr.bf16.mxu0 0
    %4098 = vmatpush1.bf16.msra.mxu0 0
    %4099 = vmatprep.subr.bf16.mxu0 0
    %4100 = vmatpush1.bf16.msra.mxu0 0
    %4101 = vmatprep.subr.bf16.mxu0 0
    %4102 = vmatpush1.bf16.msra.mxu0 0
    %4103 = vmatprep.subr.bf16.mxu0 0
    %4104 = vmatpush1.bf16.msra.mxu0 0
    %4105 = vmatprep.subr.bf16.mxu0 0
    %4106 = vmatpush1.bf16.msra.mxu0 0
    %4107 = vmatprep.subr.bf16.mxu0 0
    %4108 = vmatpush1.bf16.msra.mxu0 0
    %4109 = vmatprep.mubr.bf16.mxu0 0
    %4110 = vmatmul.mubr.bf16.gmra.mrb[0].mxu0 %v3446
    %v4111 = vpop.f32.mrb[0].mxu0
    %v4112 = vadd.f32 %v3937, %v4111
    %v4113 = vpop.f32.mrb[0].mxu0
    %v4114 = vadd.f32 %v3941, %v4113
    %v4115 = vpop.f32.mrb[0].mxu0
    %v4116 = vadd.f32 %v3937, %v4115
    %v4117 = vpop.f32.mrb[0].mxu0
    %v4118 = vadd.f32 %v3941, %v4117
    %4119 = vdwg.mxu0
    %4120 = vmatprep.subr.bf16.mxu0 0
    %4121 = vmatpush1.bf16.msra.mxu0 %v4031
    %4122 = vmatprep.subr.bf16.mxu0 0
    %4123 = vmatpush1.bf16.msra.mxu0 %v4034
    %4124 = vmatprep.subr.bf16.mxu0 0
    %4125 = vmatpush1.bf16.msra.mxu0 %v4037
    %4126 = vmatprep.subr.bf16.mxu0 0
    %4127 = vmatpush1.bf16.msra.mxu0 %v4040
    %4128 = vmatprep.subr.bf16.mxu0 0
    %4129 = vmatpush1.bf16.msra.mxu0 %v4043
    %4130 = vmatprep.subr.bf16.mxu0 0
    %4131 = vmatpush1.bf16.msra.mxu0 %v4046
    %4132 = vmatprep.subr.bf16.mxu0 0
    %4133 = vmatpush1.bf16.msra.mxu0 %v4049
    %4134 = vmatprep.subr.bf16.mxu0 0
    %4135 = vmatpush1.bf16.msra.mxu0 %v4052
    %4136 = vmatprep.subr.bf16.mxu0 0
    %4137 = vmatpush1.bf16.msra.mxu0 0
    %4138 = vmatprep.subr.bf16.mxu0 0
    %4139 = vmatpush1.bf16.msra.mxu0 0
    %4140 = vmatprep.subr.bf16.mxu0 0
    %4141 = vmatpush1.bf16.msra.mxu0 0
    %4142 = vmatprep.subr.bf16.mxu0 0
    %4143 = vmatpush1.bf16.msra.mxu0 0
    %4144 = vmatprep.subr.bf16.mxu0 0
    %4145 = vmatpush1.bf16.msra.mxu0 0
    %4146 = vmatprep.subr.bf16.mxu0 0
    %4147 = vmatpush1.bf16.msra.mxu0 0
    %4148 = vmatprep.subr.bf16.mxu0 0
    %4149 = vmatpush1.bf16.msra.mxu0 0
    %4150 = vmatprep.subr.bf16.mxu0 0
    %4151 = vmatpush1.bf16.msra.mxu0 0
    %4152 = vmatprep.mubr.bf16.mxu0 0
    %4153 = vmatmul.mubr.bf16.gmra.mrb[0].mxu0 %v3446
    %v4154 = vpop.f32.mrb[0].mxu0
    %v4155 = vadd.f32 %v3945, %v4154
    %v4156 = vpop.f32.mrb[0].mxu0
    %v4157 = vpop.f32.mrb[0].mxu0
    %v4158 = vadd.f32 %v3945, %v4157
    %v4159 = vpop.f32.mrb[0].mxu0
    %4160 = vdwg.mxu0
    %v4161 = vadd.f32 %v3884, %v4112
    %v4162 = vadd.f32 %v3888, %v4116
    %v4163 = vsub.f32 0.0, %v4161
    %v4164 = vsub.f32 0.0, %v4162
    %v4165 = vmul.f32 %v4163, 1.442695
    %v4166 = vpow.pop %v4165
    %v4167 = vmul.f32 %v4164, 1.442695
    %v4168 = vpow.pop %v4167
    %v4169 = vadd.f32 %v4166, 1.0
    %v4170 = vadd.f32 %v4168, 1.0
    %v4171 = vrcp.pop %v4169
    %v4172 = vmul.f32 1.0, %v4171
    %v4173 = vrcp.pop %v4170
    %v4174 = vmul.f32 1.0, %v4173
    %v4175 = vadd.f32 %v3886, %v4114
    %v4176 = vadd.f32 %v3890, %v4118
    %v4177 = vsub.f32 0.0, %v4175
    %v4178 = vsub.f32 0.0, %v4176
    %v4179 = vmul.f32 %v4177, 1.442695
    %v4180 = vpow.pop %v4179
    %v4181 = vmul.f32 %v4178, 1.442695
    %v4182 = vpow.pop %v4181
    %v4183 = vadd.f32 %v4180, 1.0
    %v4184 = vadd.f32 %v4182, 1.0
    %v4185 = vrcp.pop %v4183
    %v4186 = vmul.f32 1.0, %v4185
    %v4187 = vrcp.pop %v4184
    %v4188 = vmul.f32 1.0, %v4187
    %v4189 = vmul.f32 %v4172, %v4155
    %v4190 = vmul.f32 %v4174, %v4158
    %v4191 = vadd.f32 %v3927, %v4189
    %v4192 = vadd.f32 %v3930, %v4190
    %v4193 = vtanh.pop %v4191
    %v4194 = vtanh.pop %v4192
    %v4195 = vsub.f32 1.0, %v4186
    %v4196 = vsub.f32 1.0, %v4188
    %v4197 = vmul.f32 %v4195, %v4193
    %v4198 = vmul.f32 %v4196, %v4194
    %v4199 = vmul.f32 %v4186, %v3362
    %v4200 = vmul.f32 %v4188, %v3363
    %v4201 = vadd.f32 %v4197, %v4199
    %v4202 = vadd.f32 %v4198, %v4200
    %s4203 = scalar_lea.vmem [#allocation20], 64
    %v4204 = vld [vmem:[%s4203] sm:$0xf]
    %v4205 = vld [vmem:[%s4203 + $0x4] sm:$0xf]
    %v4206 = vld [vmem:[%s4203 + $0x8] sm:$0xf]
    %v4207 = vld [vmem:[%s4203 + $0xc] sm:$0xf]
    %v4208 = vld [vmem:[%s4203 + $0x10] sm:$0xf]
    %v4209 = vld [vmem:[%s4203 + $0x14] sm:$0xf]
    %v4210 = vld [vmem:[%s4203 + $0x18] sm:$0xf]
    %v4211 = vld [vmem:[%s4203 + $0x1c] sm:$0xf]
    %v4212 = vld [vmem:[%s4203 + $0x20] sm:$0xf]
    %v4213 = vld [vmem:[%s4203 + $0x24] sm:$0xf]
    %v4214 = vld [vmem:[%s4203 + $0x28] sm:$0xf]
    %v4215 = vld [vmem:[%s4203 + $0x2c] sm:$0xf]
    %v4216 = vld [vmem:[%s4203 + $0x30] sm:$0xf]
    %v4217 = vld [vmem:[%s4203 + $0x34] sm:$0xf]
    %v4218 = vld [vmem:[%s4203 + $0x38] sm:$0xf]
    %v4219 = vld [vmem:[%s4203 + $0x3c] sm:$0xf]
    %v4220 = vpack.c.bf16 %v4202, %v4201
    %v4237 = vunpack.c.l.b16 %v4204
    %v4238 = vunpack.c.l.b16 %v4205
    %v4239 = vunpack.c.l.b16 %v4206
    %v4240 = vunpack.c.l.b16 %v4207
    %v4241 = vunpack.c.l.b16 %v4208
    %v4242 = vunpack.c.l.b16 %v4209
    %v4243 = vunpack.c.l.b16 %v4210
    %v4244 = vunpack.c.l.b16 %v4211
    %v4245 = vunpack.c.l.b16 %v4212
    %v4246 = vunpack.c.l.b16 %v4213
    %v4247 = vunpack.c.l.b16 %v4214
    %v4248 = vunpack.c.l.b16 %v4215
    %v4249 = vunpack.c.l.b16 %v4216
    %v4250 = vunpack.c.l.b16 %v4217
    %v4251 = vunpack.c.l.b16 %v4218
    %v4252 = vunpack.c.l.b16 %v4219
    %v4253 = vpack.c.b16 %v4238, %v4237
    %v4254 = vpack.c.b16 %v4240, %v4239
    %v4255 = vpack.c.b16 %v4242, %v4241
    %v4256 = vpack.c.b16 %v4244, %v4243
    %v4257 = vpack.c.b16 %v4246, %v4245
    %v4258 = vpack.c.b16 %v4248, %v4247
    %v4259 = vpack.c.b16 %v4250, %v4249
    %v4260 = vpack.c.b16 %v4252, %v4251
    %4269 = vmatprep.subr.bf16.mxu0 0
    %4270 = vmatpush1.bf16.msra.mxu0 %v4253
    %4271 = vmatprep.subr.bf16.mxu0 0
    %4272 = vmatpush1.bf16.msra.mxu0 %v4254
    %4273 = vmatprep.subr.bf16.mxu0 0
    %4274 = vmatpush1.bf16.msra.mxu0 %v4255
    %4275 = vmatprep.subr.bf16.mxu0 0
    %4276 = vmatpush1.bf16.msra.mxu0 %v4256
    %4277 = vmatprep.subr.bf16.mxu0 0
    %4278 = vmatpush1.bf16.msra.mxu0 %v4257
    %4279 = vmatprep.subr.bf16.mxu0 0
    %4280 = vmatpush1.bf16.msra.mxu0 %v4258
    %4281 = vmatprep.subr.bf16.mxu0 0
    %4282 = vmatpush1.bf16.msra.mxu0 %v4259
    %4283 = vmatprep.subr.bf16.mxu0 0
    %4284 = vmatpush1.bf16.msra.mxu0 %v4260
    %4285 = vmatprep.subr.bf16.mxu0 0
    %4286 = vmatpush1.bf16.msra.mxu0 0
    %4287 = vmatprep.subr.bf16.mxu0 0
    %4288 = vmatpush1.bf16.msra.mxu0 0
    %4289 = vmatprep.subr.bf16.mxu0 0
    %4290 = vmatpush1.bf16.msra.mxu0 0
    %4291 = vmatprep.subr.bf16.mxu0 0
    %4292 = vmatpush1.bf16.msra.mxu0 0
    %4293 = vmatprep.subr.bf16.mxu0 0
    %4294 = vmatpush1.bf16.msra.mxu0 0
    %4295 = vmatprep.subr.bf16.mxu0 0
    %4296 = vmatpush1.bf16.msra.mxu0 0
    %4297 = vmatprep.subr.bf16.mxu0 0
    %4298 = vmatpush1.bf16.msra.mxu0 0
    %4299 = vmatprep.subr.bf16.mxu0 0
    %4300 = vmatpush1.bf16.msra.mxu0 0
    %4301 = vmatprep.mubr.bf16.mxu0 0
    %4302 = vmatmul.mubr.bf16.gmra.mrb[0].mxu0 %v4220
    %v4303 = vpop.f32.mrb[0].mxu0
    %v4304 = vadd.f32 0.0, %v4303
    %v4305 = vpop.f32.mrb[0].mxu0
    %v4306 = vpop.f32.mrb[0].mxu0
    %v4307 = vadd.f32 0.0, %v4306
    %v4308 = vpop.f32.mrb[0].mxu0
    %4309 = vdwg.mxu0
    %vm4310 = vcmp.lt.f32.partialorder %v4304, 0.0
    %vm4311 = vcmp.lt.f32.partialorder %v4307, 0.0
    %vm4312 = vcmp.eq.f32.partialorder %v4304, 0.0
    %vm4313 = vcmp.eq.f32.partialorder %v4307, 0.0
    %v4314 = vand.u32 2147483647, %v4304
    %v4315 = vand.u32 2147483647, %v4307
    %v4316 = vsel %vm4312, 1.0, %v4314
    %v4317 = vsel %vm4313, 1.0, %v4315
    %v4318 = vlog2.pop %v4316
    %v4319 = vmul.f32 %v4318, 0.6931472
    %v4320 = vlog2.pop %v4317
    %v4321 = vmul.f32 %v4320, 0.6931472
    %v4322 = vsel %vm4310, 1, 0
    %v4323 = vsel %vm4311, 1, 0
    %v4324 = vcvt.s32.f32 %v4322
    %v4325 = vcvt.s32.f32 %v4323
    %v4326 = vpack.c.bf16 %v4325, %v4324
    %4327 = vmatprep.subr.bf16.mxu0 0
    %4328 = vmatpush1.bf16.msra.mxu0 %v4326
    %4329 = vmatprep.subr.bf16.mxu0 0
    %4330 = vmatpush1.bf16.msra.mxu0 0
    %4331 = vmatprep.subr.bf16.mxu0 0
    %4332 = vmatpush1.bf16.msra.mxu0 0
    %4333 = vmatprep.subr.bf16.mxu0 0
    %4334 = vmatpush1.bf16.msra.mxu0 0
    %4335 = vmatprep.subr.bf16.mxu0 0
    %4336 = vmatpush1.bf16.msra.mxu0 0
    %4337 = vmatprep.subr.bf16.mxu0 0
    %4338 = vmatpush1.bf16.msra.mxu0 0
    %4339 = vmatprep.subr.bf16.mxu0 0
    %4340 = vmatpush1.bf16.msra.mxu0 0
    %4341 = vmatprep.subr.bf16.mxu0 0
    %4342 = vmatpush1.bf16.msra.mxu0 0
    %4343 = vmatprep.subr.bf16.mxu0 0
    %4344 = vmatpush1.bf16.msra.mxu0 0
    %4345 = vmatprep.subr.bf16.mxu0 0
    %4346 = vmatpush1.bf16.msra.mxu0 0
    %4347 = vmatprep.subr.bf16.mxu0 0
    %4348 = vmatpush1.bf16.msra.mxu0 0
    %4349 = vmatprep.subr.bf16.mxu0 0
    %4350 = vmatpush1.bf16.msra.mxu0 0
    %4351 = vmatprep.subr.bf16.mxu0 0
    %4352 = vmatpush1.bf16.msra.mxu0 0
    %4353 = vmatprep.subr.bf16.mxu0 0
    %4354 = vmatpush1.bf16.msra.mxu0 0
    %4355 = vmatprep.subr.bf16.mxu0 0
    %4356 = vmatpush1.bf16.msra.mxu0 0
    %4357 = vmatprep.subr.bf16.mxu0 0
    %4358 = vmatpush1.bf16.msra.mxu0 0
    %4359 = vmatprep.mubr.bf16.mxu0 0
    %4360 = vmatmul.mubr.bf16.gmra.mrb[0].mxu0 %v3071
    %v4361 = vpop.f32.mrb[0].mxu0
    %v4362 = vadd.f32 0.0, %v4361
    %v4363 = vpop.f32.mrb[0].mxu0
    %v4364 = vpop.f32.mrb[0].mxu0
    %v4365 = vadd.f32 0.0, %v4364
    %v4366 = vpop.f32.mrb[0].mxu0
    %4367 = vdwg.mxu0
    %v4368 = vsel %vm4312, 1, 0
    %v4369 = vsel %vm4313, 1, 0
    %v4370 = vcvt.s32.f32 %v4368
    %v4371 = vcvt.s32.f32 %v4369
    %v4372 = vpack.c.bf16 %v4371, %v4370
    %4373 = vmatprep.subr.bf16.mxu0 0
    %4374 = vmatpush1.bf16.msra.mxu0 %v4372
    %4375 = vmatprep.subr.bf16.mxu0 0
    %4376 = vmatpush1.bf16.msra.mxu0 0
    %4377 = vmatprep.subr.bf16.mxu0 0
    %4378 = vmatpush1.bf16.msra.mxu0 0
    %4379 = vmatprep.subr.bf16.mxu0 0
    %4380 = vmatpush1.bf16.msra.mxu0 0
    %4381 = vmatprep.subr.bf16.mxu0 0
    %4382 = vmatpush1.bf16.msra.mxu0 0
    %4383 = vmatprep.subr.bf16.mxu0 0
    %4384 = vmatpush1.bf16.msra.mxu0 0
    %4385 = vmatprep.subr.bf16.mxu0 0
    %4386 = vmatpush1.bf16.msra.mxu0 0
    %4387 = vmatprep.subr.bf16.mxu0 0
    %4388 = vmatpush1.bf16.msra.mxu0 0
    %4389 = vmatprep.subr.bf16.mxu0 0
    %4390 = vmatpush1.bf16.msra.mxu0 0
    %4391 = vmatprep.subr.bf16.mxu0 0
    %4392 = vmatpush1.bf16.msra.mxu0 0
    %4393 = vmatprep.subr.bf16.mxu0 0
    %4394 = vmatpush1.bf16.msra.mxu0 0
    %4395 = vmatprep.subr.bf16.mxu0 0
    %4396 = vmatpush1.bf16.msra.mxu0 0
    %4397 = vmatprep.subr.bf16.mxu0 0
    %4398 = vmatpush1.bf16.msra.mxu0 0
    %4399 = vmatprep.subr.bf16.mxu0 0
    %4400 = vmatpush1.bf16.msra.mxu0 0
    %4401 = vmatprep.subr.bf16.mxu0 0
    %4402 = vmatpush1.bf16.msra.mxu0 0
    %4403 = vmatprep.subr.bf16.mxu0 0
    %4404 = vmatpush1.bf16.msra.mxu0 0
    %4405 = vmatprep.mubr.bf16.mxu0 0
    %4406 = vmatmul.mubr.bf16.gmra.mrb[0].mxu0 %v3071
    %v4407 = vpop.f32.mrb[0].mxu0
    %v4408 = vadd.f32 0.0, %v4407
    %v4409 = vpop.f32.mrb[0].mxu0
    %v4410 = vpop.f32.mrb[0].mxu0
    %v4411 = vadd.f32 0.0, %v4410
    %v4412 = vpop.f32.mrb[0].mxu0
    %4413 = vdwg.mxu0
    %v4414 = vpack.c.bf16 %v4321, %v4319
    %4415 = vmatprep.subr.bf16.mxu0 0
    %4416 = vmatpush1.bf16.msra.mxu0 %v4414
    %4417 = vmatprep.subr.bf16.mxu0 0
    %4418 = vmatpush1.bf16.msra.mxu0 0
    %4419 = vmatprep.subr.bf16.mxu0 0
    %4420 = vmatpush1.bf16.msra.mxu0 0
    %4421 = vmatprep.subr.bf16.mxu0 0
    %4422 = vmatpush1.bf16.msra.mxu0 0
    %4423 = vmatprep.subr.bf16.mxu0 0
    %4424 = vmatpush1.bf16.msra.mxu0 0
    %4425 = vmatprep.subr.bf16.mxu0 0
    %4426 = vmatpush1.bf16.msra.mxu0 0
    %4427 = vmatprep.subr.bf16.mxu0 0
    %4428 = vmatpush1.bf16.msra.mxu0 0
    %4429 = vmatprep.subr.bf16.mxu0 0
    %4430 = vmatpush1.bf16.msra.mxu0 0
    %4431 = vmatprep.subr.bf16.mxu0 0
    %4432 = vmatpush1.bf16.msra.mxu0 0
    %4433 = vmatprep.subr.bf16.mxu0 0
    %4434 = vmatpush1.bf16.msra.mxu0 0
    %4435 = vmatprep.subr.bf16.mxu0 0
    %4436 = vmatpush1.bf16.msra.mxu0 0
    %4437 = vmatprep.subr.bf16.mxu0 0
    %4438 = vmatpush1.bf16.msra.mxu0 0
    %4439 = vmatprep.subr.bf16.mxu0 0
    %4440 = vmatpush1.bf16.msra.mxu0 0
    %4441 = vmatprep.subr.bf16.mxu0 0
    %4442 = vmatpush1.bf16.msra.mxu0 0
    %4443 = vmatprep.subr.bf16.mxu0 0
    %4444 = vmatpush1.bf16.msra.mxu0 0
    %4445 = vmatprep.subr.bf16.mxu0 0
    %4446 = vmatpush1.bf16.msra.mxu0 0
    %4447 = vmatprep.mubr.bf16.mxu0 0
    %4448 = vmatmul.mubr.bf16.gmra.mrb[0].mxu0 %v3071
    %v4449 = vpop.f32.mrb[0].mxu0
    %v4450 = vadd.f32 0.0, %v4449
    %v4451 = vpop.f32.mrb[0].mxu0
    %v4452 = vpop.f32.mrb[0].mxu0
    %v4453 = vadd.f32 0.0, %v4452
    %v4454 = vpop.f32.mrb[0].mxu0
    %4455 = vdwg.mxu0
    %v4456 = vmul.f32 %v4362, 0.5
    %v4457 = vmul.f32 %v4365, 0.5
    %v4458 = vfloor.f32 %v4456
    %v4459 = vfloor.f32 %v4457
    %v4460 = vmul.f32 %v4458, 2.0
    %v4461 = vmul.f32 %v4459, 2.0
    %v4462 = vsub.f32 %v4362, %v4460
    %v4463 = vsub.f32 %v4365, %v4461
    %v4464 = vmul.f32 %v4462, 2.0
    %v4465 = vmul.f32 %v4463, 2.0
    %v4466 = vsub.f32 1.0, %v4464
    %v4467 = vsub.f32 1.0, %v4465
    %vm4468 = vcmp.gt.f32.partialorder %v4408, 0.5
    %vm4469 = vcmp.gt.f32.partialorder %v4411, 0.5
    %v4470 = vmul.f32 %v4450, 1.442695
    %v4471 = vpow.pop %v4470
    %v4472 = vmul.f32 %v4453, 1.442695
    %v4473 = vpow.pop %v4472
    %v4474 = vmul.f32 %v4466, %v4471
    %v4475 = vmul.f32 %v4467, %v4473
    %v4476 = vsel %vm4468, 0.0, %v4474
    %v4477 = vsel %vm4469, 0.0, %v4475
    %v4478 = vpack.c.bf16 %v4477, %v4476
    %4479 = vmatprep.subr.bf16.mxu0 %v3802
    %4480 = vmatpush1.bf16.msra.mxu0 %v3801
    %4481 = vmatprep.subr.bf16.mxu0 %v3805
    %4482 = vmatpush1.bf16.msra.mxu0 %v3804
    %4483 = vmatprep.subr.bf16.mxu0 %v3808
    %4484 = vmatpush1.bf16.msra.mxu0 %v3807
    %4485 = vmatprep.subr.bf16.mxu0 %v3811
    %4486 = vmatpush1.bf16.msra.mxu0 %v3810
    %4487 = vmatprep.subr.bf16.mxu0 %v3814
    %4488 = vmatpush1.bf16.msra.mxu0 %v3813
    %4489 = vmatprep.subr.bf16.mxu0 %v3817
    %4490 = vmatpush1.bf16.msra.mxu0 %v3816
    %4491 = vmatprep.subr.bf16.mxu0 %v3820
    %4492 = vmatpush1.bf16.msra.mxu0 %v3819
    %4493 = vmatprep.subr.bf16.mxu0 %v3823
    %4494 = vmatpush1.bf16.msra.mxu0 %v3822
    %4495 = vmatprep.subr.bf16.mxu0 0
    %4496 = vmatpush1.bf16.msra.mxu0 0
    %4497 = vmatprep.subr.bf16.mxu0 0
    %4498 = vmatpush1.bf16.msra.mxu0 0
    %4499 = vmatprep.subr.bf16.mxu0 0
    %4500 = vmatpush1.bf16.msra.mxu0 0
    %4501 = vmatprep.subr.bf16.mxu0 0
    %4502 = vmatpush1.bf16.msra.mxu0 0
    %4503 = vmatprep.subr.bf16.mxu0 0
    %4504 = vmatpush1.bf16.msra.mxu0 0
    %4505 = vmatprep.subr.bf16.mxu0 0
    %4506 = vmatpush1.bf16.msra.mxu0 0
    %4507 = vmatprep.subr.bf16.mxu0 0
    %4508 = vmatpush1.bf16.msra.mxu0 0
    %4509 = vmatprep.subr.bf16.mxu0 0
    %4510 = vmatpush1.bf16.msra.mxu0 0
    %4511 = vmatprep.mubr.bf16.mxu0 0
    %4512 = vmatmul.mubr.bf16.gmra.mrb[0].mxu0 %v4478
    %v4513 = vpop.f32.mrb[0].mxu0
    %v4514 = vadd.f32 %v3709, %v4513
    %v4515 = vpop.f32.mrb[0].mxu0
    %v4516 = vadd.f32 %v3713, %v4515
    %v4517 = vpop.f32.mrb[0].mxu0
    %v4518 = vadd.f32 %v3709, %v4517
    %v4519 = vpop.f32.mrb[0].mxu0
    %v4520 = vadd.f32 %v3713, %v4519
    %4521 = vdwg.mxu0
    %4522 = vmatprep.subr.bf16.mxu0 0
    %4523 = vmatpush1.bf16.msra.mxu0 %v3803
    %4524 = vmatprep.subr.bf16.mxu0 0
    %4525 = vmatpush1.bf16.msra.mxu0 %v3806
    %4526 = vmatprep.subr.bf16.mxu0 0
    %4527 = vmatpush1.bf16.msra.mxu0 %v3809
    %4528 = vmatprep.subr.bf16.mxu0 0
    %4529 = vmatpush1.bf16.msra.mxu0 %v3812
    %4530 = vmatprep.subr.bf16.mxu0 0
    %4531 = vmatpush1.bf16.msra.mxu0 %v3815
    %4532 = vmatprep.subr.bf16.mxu0 0
    %4533 = vmatpush1.bf16.msra.mxu0 %v3818
    %4534 = vmatprep.subr.bf16.mxu0 0
    %4535 = vmatpush1.bf16.msra.mxu0 %v3821
    %4536 = vmatprep.subr.bf16.mxu0 0
    %4537 = vmatpush1.bf16.msra.mxu0 %v3824
    %4538 = vmatprep.subr.bf16.mxu0 0
    %4539 = vmatpush1.bf16.msra.mxu0 0
    %4540 = vmatprep.subr.bf16.mxu0 0
    %4541 = vmatpush1.bf16.msra.mxu0 0
    %4542 = vmatprep.subr.bf16.mxu0 0
    %4543 = vmatpush1.bf16.msra.mxu0 0
    %4544 = vmatprep.subr.bf16.mxu0 0
    %4545 = vmatpush1.bf16.msra.mxu0 0
    %4546 = vmatprep.subr.bf16.mxu0 0
    %4547 = vmatpush1.bf16.msra.mxu0 0
    %4548 = vmatprep.subr.bf16.mxu0 0
    %4549 = vmatpush1.bf16.msra.mxu0 0
    %4550 = vmatprep.subr.bf16.mxu0 0
    %4551 = vmatpush1.bf16.msra.mxu0 0
    %4552 = vmatprep.subr.bf16.mxu0 0
    %4553 = vmatpush1.bf16.msra.mxu0 0
    %4554 = vmatprep.mubr.bf16.mxu0 0
    %4555 = vmatmul.mubr.bf16.gmra.mrb[0].mxu0 %v4478
    %v4556 = vpop.f32.mrb[0].mxu0
    %v4557 = vadd.f32 %v3717, %v4556
    %v4558 = vpop.f32.mrb[0].mxu0
    %v4559 = vpop.f32.mrb[0].mxu0
    %v4560 = vadd.f32 %v3717, %v4559
    %v4561 = vpop.f32.mrb[0].mxu0
    %4562 = vdwg.mxu0
    %4563 = vmatprep.subr.bf16.mxu0 %v4030
    %4564 = vmatpush1.bf16.msra.mxu0 %v4029
    %4565 = vmatprep.subr.bf16.mxu0 %v4033
    %4566 = vmatpush1.bf16.msra.mxu0 %v4032
    %4567 = vmatprep.subr.bf16.mxu0 %v4036
    %4568 = vmatpush1.bf16.msra.mxu0 %v4035
    %4569 = vmatprep.subr.bf16.mxu0 %v4039
    %4570 = vmatpush1.bf16.msra.mxu0 %v4038
    %4571 = vmatprep.subr.bf16.mxu0 %v4042
    %4572 = vmatpush1.bf16.msra.mxu0 %v4041
    %4573 = vmatprep.subr.bf16.mxu0 %v4045
    %4574 = vmatpush1.bf16.msra.mxu0 %v4044
    %4575 = vmatprep.subr.bf16.mxu0 %v4048
    %4576 = vmatpush1.bf16.msra.mxu0 %v4047
    %4577 = vmatprep.subr.bf16.mxu0 %v4051
    %4578 = vmatpush1.bf16.msra.mxu0 %v4050
    %4579 = vmatprep.subr.bf16.mxu0 0
    %4580 = vmatpush1.bf16.msra.mxu0 0
    %4581 = vmatprep.subr.bf16.mxu0 0
    %4582 = vmatpush1.bf16.msra.mxu0 0
    %4583 = vmatprep.subr.bf16.mxu0 0
    %4584 = vmatpush1.bf16.msra.mxu0 0
    %4585 = vmatprep.subr.bf16.mxu0 0
    %4586 = vmatpush1.bf16.msra.mxu0 0
    %4587 = vmatprep.subr.bf16.mxu0 0
    %4588 = vmatpush1.bf16.msra.mxu0 0
    %4589 = vmatprep.subr.bf16.mxu0 0
    %4590 = vmatpush1.bf16.msra.mxu0 0
    %4591 = vmatprep.subr.bf16.mxu0 0
    %4592 = vmatpush1.bf16.msra.mxu0 0
    %4593 = vmatprep.subr.bf16.mxu0 0
    %4594 = vmatpush1.bf16.msra.mxu0 0
    %4595 = vmatprep.mubr.bf16.mxu0 0
    %4596 = vmatmul.mubr.bf16.gmra.mrb[0].mxu0 %v4220
    %v4597 = vpop.f32.mrb[0].mxu0
    %v4598 = vadd.f32 %v3937, %v4597
    %v4599 = vpop.f32.mrb[0].mxu0
    %v4600 = vadd.f32 %v3941, %v4599
    %v4601 = vpop.f32.mrb[0].mxu0
    %v4602 = vadd.f32 %v3937, %v4601
    %v4603 = vpop.f32.mrb[0].mxu0
    %v4604 = vadd.f32 %v3941, %v4603
    %4605 = vdwg.mxu0
    %4606 = vmatprep.subr.bf16.mxu0 0
    %4607 = vmatpush1.bf16.msra.mxu0 %v4031
    %4608 = vmatprep.subr.bf16.mxu0 0
    %4609 = vmatpush1.bf16.msra.mxu0 %v4034
    %4610 = vmatprep.subr.bf16.mxu0 0
    %4611 = vmatpush1.bf16.msra.mxu0 %v4037
    %4612 = vmatprep.subr.bf16.mxu0 0
    %4613 = vmatpush1.bf16.msra.mxu0 %v4040
    %4614 = vmatprep.subr.bf16.mxu0 0
    %4615 = vmatpush1.bf16.msra.mxu0 %v4043
    %4616 = vmatprep.subr.bf16.mxu0 0
    %4617 = vmatpush1.bf16.msra.mxu0 %v4046
    %4618 = vmatprep.subr.bf16.mxu0 0
    %4619 = vmatpush1.bf16.msra.mxu0 %v4049
    %4620 = vmatprep.subr.bf16.mxu0 0
    %4621 = vmatpush1.bf16.msra.mxu0 %v4052
    %4622 = vmatprep.subr.bf16.mxu0 0
    %4623 = vmatpush1.bf16.msra.mxu0 0
    %4624 = vmatprep.subr.bf16.mxu0 0
    %4625 = vmatpush1.bf16.msra.mxu0 0
    %4626 = vmatprep.subr.bf16.mxu0 0
    %4627 = vmatpush1.bf16.msra.mxu0 0
    %4628 = vmatprep.subr.bf16.mxu0 0
    %4629 = vmatpush1.bf16.msra.mxu0 0
    %4630 = vmatprep.subr.bf16.mxu0 0
    %4631 = vmatpush1.bf16.msra.mxu0 0
    %4632 = vmatprep.subr.bf16.mxu0 0
    %4633 = vmatpush1.bf16.msra.mxu0 0
    %4634 = vmatprep.subr.bf16.mxu0 0
    %4635 = vmatpush1.bf16.msra.mxu0 0
    %4636 = vmatprep.subr.bf16.mxu0 0
    %4637 = vmatpush1.bf16.msra.mxu0 0
    %4638 = vmatprep.mubr.bf16.mxu0 0
    %4639 = vmatmul.mubr.bf16.gmra.mrb[0].mxu0 %v4220
    %v4640 = vpop.f32.mrb[0].mxu0
    %v4641 = vadd.f32 %v3945, %v4640
    %v4642 = vpop.f32.mrb[0].mxu0
    %v4643 = vpop.f32.mrb[0].mxu0
    %v4644 = vadd.f32 %v3945, %v4643
    %v4645 = vpop.f32.mrb[0].mxu0
    %4646 = vdwg.mxu0
    %v4647 = vadd.f32 %v4514, %v4598
    %v4648 = vadd.f32 %v4518, %v4602
    %v4649 = vsub.f32 0.0, %v4647
    %v4650 = vsub.f32 0.0, %v4648
    %v4651 = vmul.f32 %v4649, 1.442695
    %v4652 = vpow.pop %v4651
    %v4653 = vmul.f32 %v4650, 1.442695
    %v4654 = vpow.pop %v4653
    %v4655 = vadd.f32 %v4652, 1.0
    %v4656 = vadd.f32 %v4654, 1.0
    %v4657 = vrcp.pop %v4655
    %v4658 = vmul.f32 1.0, %v4657
    %v4659 = vrcp.pop %v4656
    %v4660 = vmul.f32 1.0, %v4659
    %v4661 = vadd.f32 %v4516, %v4600
    %v4662 = vadd.f32 %v4520, %v4604
    %v4663 = vsub.f32 0.0, %v4661
    %v4664 = vsub.f32 0.0, %v4662
    %v4665 = vmul.f32 %v4663, 1.442695
    %v4666 = vpow.pop %v4665
    %v4667 = vmul.f32 %v4664, 1.442695
    %v4668 = vpow.pop %v4667
    %v4669 = vadd.f32 %v4666, 1.0
    %v4670 = vadd.f32 %v4668, 1.0
    %v4671 = vrcp.pop %v4669
    %v4672 = vmul.f32 1.0, %v4671
    %v4673 = vrcp.pop %v4670
    %v4674 = vmul.f32 1.0, %v4673
    %v4675 = vmul.f32 %v4658, %v4641
    %v4676 = vmul.f32 %v4660, %v4644
    %v4677 = vadd.f32 %v4557, %v4675
    %v4678 = vadd.f32 %v4560, %v4676
    %v4679 = vtanh.pop %v4677
    %v4680 = vtanh.pop %v4678
    %v4681 = vsub.f32 1.0, %v4672
    %v4682 = vsub.f32 1.0, %v4674
    %v4683 = vmul.f32 %v4681, %v4679
    %v4684 = vmul.f32 %v4682, %v4680
    %v4685 = vmul.f32 %v4672, %v4201
    %v4686 = vmul.f32 %v4674, %v4202
    %v4687 = vadd.f32 %v4683, %v4685
    %v4688 = vadd.f32 %v4684, %v4686
    %s4689 = scalar_lea.vmem [#allocation20], 128
    %v4690 = vld [vmem:[%s4689] sm:$0xf]
    %v4691 = vld [vmem:[%s4689 + $0x4] sm:$0xf]
    %v4692 = vld [vmem:[%s4689 + $0x8] sm:$0xf]
    %v4693 = vld [vmem:[%s4689 + $0xc] sm:$0xf]
    %v4694 = vld [vmem:[%s4689 + $0x10] sm:$0xf]
    %v4695 = vld [vmem:[%s4689 + $0x14] sm:$0xf]
    %v4696 = vld [vmem:[%s4689 + $0x18] sm:$0xf]
    %v4697 = vld [vmem:[%s4689 + $0x1c] sm:$0xf]
    %v4698 = vld [vmem:[%s4689 + $0x20] sm:$0xf]
    %v4699 = vld [vmem:[%s4689 + $0x24] sm:$0xf]
    %v4700 = vld [vmem:[%s4689 + $0x28] sm:$0xf]
    %v4701 = vld [vmem:[%s4689 + $0x2c] sm:$0xf]
    %v4702 = vld [vmem:[%s4689 + $0x30] sm:$0xf]
    %v4703 = vld [vmem:[%s4689 + $0x34] sm:$0xf]
    %v4704 = vld [vmem:[%s4689 + $0x38] sm:$0xf]
    %v4705 = vld [vmem:[%s4689 + $0x3c] sm:$0xf]
    %v4706 = vpack.c.bf16 %v4688, %v4687
    %v4723 = vunpack.c.l.b16 %v4690
    %v4724 = vunpack.c.l.b16 %v4691
    %v4725 = vunpack.c.l.b16 %v4692
    %v4726 = vunpack.c.l.b16 %v4693
    %v4727 = vunpack.c.l.b16 %v4694
    %v4728 = vunpack.c.l.b16 %v4695
    %v4729 = vunpack.c.l.b16 %v4696
    %v4730 = vunpack.c.l.b16 %v4697
    %v4731 = vunpack.c.l.b16 %v4698
    %v4732 = vunpack.c.l.b16 %v4699
    %v4733 = vunpack.c.l.b16 %v4700
    %v4734 = vunpack.c.l.b16 %v4701
    %v4735 = vunpack.c.l.b16 %v4702
    %v4736 = vunpack.c.l.b16 %v4703
    %v4737 = vunpack.c.l.b16 %v4704
    %v4738 = vunpack.c.l.b16 %v4705
    %v4739 = vpack.c.b16 %v4724, %v4723
    %v4740 = vpack.c.b16 %v4726, %v4725
    %v4741 = vpack.c.b16 %v4728, %v4727
    %v4742 = vpack.c.b16 %v4730, %v4729
    %v4743 = vpack.c.b16 %v4732, %v4731
    %v4744 = vpack.c.b16 %v4734, %v4733
    %v4745 = vpack.c.b16 %v4736, %v4735
    %v4746 = vpack.c.b16 %v4738, %v4737
    %4755 = vmatprep.subr.bf16.mxu0 0
    %4756 = vmatpush1.bf16.msra.mxu0 %v4739
    %4757 = vmatprep.subr.bf16.mxu0 0
    %4758 = vmatpush1.bf16.msra.mxu0 %v4740
    %4759 = vmatprep.subr.bf16.mxu0 0
    %4760 = vmatpush1.bf16.msra.mxu0 %v4741
    %4761 = vmatprep.subr.bf16.mxu0 0
    %4762 = vmatpush1.bf16.msra.mxu0 %v4742
    %4763 = vmatprep.subr.bf16.mxu0 0
    %4764 = vmatpush1.bf16.msra.mxu0 %v4743
    %4765 = vmatprep.subr.bf16.mxu0 0
    %4766 = vmatpush1.bf16.msra.mxu0 %v4744
    %4767 = vmatprep.subr.bf16.mxu0 0
    %4768 = vmatpush1.bf16.msra.mxu0 %v4745
    %4769 = vmatprep.subr.bf16.mxu0 0
    %4770 = vmatpush1.bf16.msra.mxu0 %v4746
    %4771 = vmatprep.subr.bf16.mxu0 0
    %4772 = vmatpush1.bf16.msra.mxu0 0
    %4773 = vmatprep.subr.bf16.mxu0 0
    %4774 = vmatpush1.bf16.msra.mxu0 0
    %4775 = vmatprep.subr.bf16.mxu0 0
    %4776 = vmatpush1.bf16.msra.mxu0 0
    %4777 = vmatprep.subr.bf16.mxu0 0
    %4778 = vmatpush1.bf16.msra.mxu0 0
    %4779 = vmatprep.subr.bf16.mxu0 0
    %4780 = vmatpush1.bf16.msra.mxu0 0
    %4781 = vmatprep.subr.bf16.mxu0 0
    %4782 = vmatpush1.bf16.msra.mxu0 0
    %4783 = vmatprep.subr.bf16.mxu0 0
    %4784 = vmatpush1.bf16.msra.mxu0 0
    %4785 = vmatprep.subr.bf16.mxu0 0
    %4786 = vmatpush1.bf16.msra.mxu0 0
    %4787 = vmatprep.mubr.bf16.mxu0 0
    %4788 = vmatmul.mubr.bf16.gmra.mrb[0].mxu0 %v4706
    %v4789 = vpop.f32.mrb[0].mxu0
    %v4790 = vadd.f32 0.0, %v4789
    %v4791 = vpop.f32.mrb[0].mxu0
    %v4792 = vpop.f32.mrb[0].mxu0
    %v4793 = vadd.f32 0.0, %v4792
    %v4794 = vpop.f32.mrb[0].mxu0
    %4795 = vdwg.mxu0
    %vm4796 = vcmp.lt.f32.partialorder %v4790, 0.0
    %vm4797 = vcmp.lt.f32.partialorder %v4793, 0.0
    %vm4798 = vcmp.eq.f32.partialorder %v4790, 0.0
    %vm4799 = vcmp.eq.f32.partialorder %v4793, 0.0
    %v4800 = vand.u32 2147483647, %v4790
    %v4801 = vand.u32 2147483647, %v4793
    %v4802 = vsel %vm4798, 1.0, %v4800
    %v4803 = vsel %vm4799, 1.0, %v4801
    %v4804 = vlog2.pop %v4802
    %v4805 = vmul.f32 %v4804, 0.6931472
    %v4806 = vlog2.pop %v4803
    %v4807 = vmul.f32 %v4806, 0.6931472
    %v4808 = vsel %vm4796, 1, 0
    %v4809 = vsel %vm4797, 1, 0
    %v4810 = vcvt.s32.f32 %v4808
    %v4811 = vcvt.s32.f32 %v4809
    %v4812 = vpack.c.bf16 %v4811, %v4810
    %4813 = vmatprep.subr.bf16.mxu0 0
    %4814 = vmatpush1.bf16.msra.mxu0 %v4812
    %4815 = vmatprep.subr.bf16.mxu0 0
    %4816 = vmatpush1.bf16.msra.mxu0 0
    %4817 = vmatprep.subr.bf16.mxu0 0
    %4818 = vmatpush1.bf16.msra.mxu0 0
    %4819 = vmatprep.subr.bf16.mxu0 0
    %4820 = vmatpush1.bf16.msra.mxu0 0
    %4821 = vmatprep.subr.bf16.mxu0 0
    %4822 = vmatpush1.bf16.msra.mxu0 0
    %4823 = vmatprep.subr.bf16.mxu0 0
    %4824 = vmatpush1.bf16.msra.mxu0 0
    %4825 = vmatprep.subr.bf16.mxu0 0
    %4826 = vmatpush1.bf16.msra.mxu0 0
    %4827 = vmatprep.subr.bf16.mxu0 0
    %4828 = vmatpush1.bf16.msra.mxu0 0
    %4829 = vmatprep.subr.bf16.mxu0 0
    %4830 = vmatpush1.bf16.msra.mxu0 0
    %4831 = vmatprep.subr.bf16.mxu0 0
    %4832 = vmatpush1.bf16.msra.mxu0 0
    %4833 = vmatprep.subr.bf16.mxu0 0
    %4834 = vmatpush1.bf16.msra.mxu0 0
    %4835 = vmatprep.subr.bf16.mxu0 0
    %4836 = vmatpush1.bf16.msra.mxu0 0
    %4837 = vmatprep.subr.bf16.mxu0 0
    %4838 = vmatpush1.bf16.msra.mxu0 0
    %4839 = vmatprep.subr.bf16.mxu0 0
    %4840 = vmatpush1.bf16.msra.mxu0 0
    %4841 = vmatprep.subr.bf16.mxu0 0
    %4842 = vmatpush1.bf16.msra.mxu0 0
    %4843 = vmatprep.subr.bf16.mxu0 0
    %4844 = vmatpush1.bf16.msra.mxu0 0
    %4845 = vmatprep.mubr.bf16.mxu0 0
    %4846 = vmatmul.mubr.bf16.gmra.mrb[0].mxu0 %v3071
    %v4847 = vpop.f32.mrb[0].mxu0
    %v4848 = vadd.f32 0.0, %v4847
    %v4849 = vpop.f32.mrb[0].mxu0
    %v4850 = vpop.f32.mrb[0].mxu0
    %v4851 = vadd.f32 0.0, %v4850
    %v4852 = vpop.f32.mrb[0].mxu0
    %4853 = vdwg.mxu0
    %v4854 = vsel %vm4798, 1, 0
    %v4855 = vsel %vm4799, 1, 0
    %v4856 = vcvt.s32.f32 %v4854
    %v4857 = vcvt.s32.f32 %v4855
    %v4858 = vpack.c.bf16 %v4857, %v4856
    %4859 = vmatprep.subr.bf16.mxu0 0
    %4860 = vmatpush1.bf16.msra.mxu0 %v4858
    %4861 = vmatprep.subr.bf16.mxu0 0
    %4862 = vmatpush1.bf16.msra.mxu0 0
    %4863 = vmatprep.subr.bf16.mxu0 0
    %4864 = vmatpush1.bf16.msra.mxu0 0
    %4865 = vmatprep.subr.bf16.mxu0 0
    %4866 = vmatpush1.bf16.msra.mxu0 0
    %4867 = vmatprep.subr.bf16.mxu0 0
    %4868 = vmatpush1.bf16.msra.mxu0 0
    %4869 = vmatprep.subr.bf16.mxu0 0
    %4870 = vmatpush1.bf16.msra.mxu0 0
    %4871 = vmatprep.subr.bf16.mxu0 0
    %4872 = vmatpush1.bf16.msra.mxu0 0
    %4873 = vmatprep.subr.bf16.mxu0 0
    %4874 = vmatpush1.bf16.msra.mxu0 0
    %4875 = vmatprep.subr.bf16.mxu0 0
    %4876 = vmatpush1.bf16.msra.mxu0 0
    %4877 = vmatprep.subr.bf16.mxu0 0
    %4878 = vmatpush1.bf16.msra.mxu0 0
    %4879 = vmatprep.subr.bf16.mxu0 0
    %4880 = vmatpush1.bf16.msra.mxu0 0
    %4881 = vmatprep.subr.bf16.mxu0 0
    %4882 = vmatpush1.bf16.msra.mxu0 0
    %4883 = vmatprep.subr.bf16.mxu0 0
    %4884 = vmatpush1.bf16.msra.mxu0 0
    %4885 = vmatprep.subr.bf16.mxu0 0
    %4886 = vmatpush1.bf16.msra.mxu0 0
    %4887 = vmatprep.subr.bf16.mxu0 0
    %4888 = vmatpush1.bf16.msra.mxu0 0
    %4889 = vmatprep.subr.bf16.mxu0 0
    %4890 = vmatpush1.bf16.msra.mxu0 0
    %4891 = vmatprep.mubr.bf16.mxu0 0
    %4892 = vmatmul.mubr.bf16.gmra.mrb[0].mxu0 %v3071
    %v4893 = vpop.f32.mrb[0].mxu0
    %v4894 = vadd.f32 0.0, %v4893
    %v4895 = vpop.f32.mrb[0].mxu0
    %v4896 = vpop.f32.mrb[0].mxu0
    %v4897 = vadd.f32 0.0, %v4896
    %v4898 = vpop.f32.mrb[0].mxu0
    %4899 = vdwg.mxu0
    %v4900 = vpack.c.bf16 %v4807, %v4805
    %4901 = vmatprep.subr.bf16.mxu0 0
    %4902 = vmatpush1.bf16.msra.mxu0 %v4900
    %4903 = vmatprep.subr.bf16.mxu0 0
    %4904 = vmatpush1.bf16.msra.mxu0 0
    %4905 = vmatprep.subr.bf16.mxu0 0
    %4906 = vmatpush1.bf16.msra.mxu0 0
    %4907 = vmatprep.subr.bf16.mxu0 0
    %4908 = vmatpush1.bf16.msra.mxu0 0
    %4909 = vmatprep.subr.bf16.mxu0 0
    %4910 = vmatpush1.bf16.msra.mxu0 0
    %4911 = vmatprep.subr.bf16.mxu0 0
    %4912 = vmatpush1.bf16.msra.mxu0 0
    %4913 = vmatprep.subr.bf16.mxu0 0
    %4914 = vmatpush1.bf16.msra.mxu0 0
    %4915 = vmatprep.subr.bf16.mxu0 0
    %4916 = vmatpush1.bf16.msra.mxu0 0
    %4917 = vmatprep.subr.bf16.mxu0 0
    %4918 = vmatpush1.bf16.msra.mxu0 0
    %4919 = vmatprep.subr.bf16.mxu0 0
    %4920 = vmatpush1.bf16.msra.mxu0 0
    %4921 = vmatprep.subr.bf16.mxu0 0
    %4922 = vmatpush1.bf16.msra.mxu0 0
    %4923 = vmatprep.subr.bf16.mxu0 0
    %4924 = vmatpush1.bf16.msra.mxu0 0
    %4925 = vmatprep.subr.bf16.mxu0 0
    %4926 = vmatpush1.bf16.msra.mxu0 0
    %4927 = vmatprep.subr.bf16.mxu0 0
    %4928 = vmatpush1.bf16.msra.mxu0 0
    %4929 = vmatprep.subr.bf16.mxu0 0
    %4930 = vmatpush1.bf16.msra.mxu0 0
    %4931 = vmatprep.subr.bf16.mxu0 0
    %4932 = vmatpush1.bf16.msra.mxu0 0
    %4933 = vmatprep.mubr.bf16.mxu0 0
    %4934 = vmatmul.mubr.bf16.gmra.mrb[0].mxu0 %v3071
    %v4935 = vpop.f32.mrb[0].mxu0
    %v4936 = vadd.f32 0.0, %v4935
    %v4937 = vpop.f32.mrb[0].mxu0
    %v4938 = vpop.f32.mrb[0].mxu0
    %v4939 = vadd.f32 0.0, %v4938
    %v4940 = vpop.f32.mrb[0].mxu0
    %4941 = vdwg.mxu0
    %v4942 = vmul.f32 %v4848, 0.5
    %v4943 = vmul.f32 %v4851, 0.5
    %v4944 = vfloor.f32 %v4942
    %v4945 = vfloor.f32 %v4943
    %v4946 = vmul.f32 %v4944, 2.0
    %v4947 = vmul.f32 %v4945, 2.0
    %v4948 = vsub.f32 %v4848, %v4946
    %v4949 = vsub.f32 %v4851, %v4947
    %v4950 = vmul.f32 %v4948, 2.0
    %v4951 = vmul.f32 %v4949, 2.0
    %v4952 = vsub.f32 1.0, %v4950
    %v4953 = vsub.f32 1.0, %v4951
    %vm4954 = vcmp.gt.f32.partialorder %v4894, 0.5
    %vm4955 = vcmp.gt.f32.partialorder %v4897, 0.5
    %v4956 = vmul.f32 %v4936, 1.442695
    %v4957 = vpow.pop %v4956
    %v4958 = vmul.f32 %v4939, 1.442695
    %v4959 = vpow.pop %v4958
    %v4960 = vmul.f32 %v4952, %v4957
    %v4961 = vmul.f32 %v4953, %v4959
    %v4962 = vsel %vm4954, 0.0, %v4960
    %v4963 = vsel %vm4955, 0.0, %v4961
    %v4964 = vpack.c.bf16 %v4963, %v4962
    %4965 = vmatprep.subr.bf16.mxu0 %v3802
    %4966 = vmatpush1.bf16.msra.mxu0 %v3801
    %4967 = vmatprep.subr.bf16.mxu0 %v3805
    %4968 = vmatpush1.bf16.msra.mxu0 %v3804
    %4969 = vmatprep.subr.bf16.mxu0 %v3808
    %4970 = vmatpush1.bf16.msra.mxu0 %v3807
    %4971 = vmatprep.subr.bf16.mxu0 %v3811
    %4972 = vmatpush1.bf16.msra.mxu0 %v3810
    %4973 = vmatprep.subr.bf16.mxu0 %v3814
    %4974 = vmatpush1.bf16.msra.mxu0 %v3813
    %4975 = vmatprep.subr.bf16.mxu0 %v3817
    %4976 = vmatpush1.bf16.msra.mxu0 %v3816
    %4977 = vmatprep.subr.bf16.mxu0 %v3820
    %4978 = vmatpush1.bf16.msra.mxu0 %v3819
    %4979 = vmatprep.subr.bf16.mxu0 %v3823
    %4980 = vmatpush1.bf16.msra.mxu0 %v3822
    %4981 = vmatprep.subr.bf16.mxu0 0
    %4982 = vmatpush1.bf16.msra.mxu0 0
    %4983 = vmatprep.subr.bf16.mxu0 0
    %4984 = vmatpush1.bf16.msra.mxu0 0
    %4985 = vmatprep.subr.bf16.mxu0 0
    %4986 = vmatpush1.bf16.msra.mxu0 0
    %4987 = vmatprep.subr.bf16.mxu0 0
    %4988 = vmatpush1.bf16.msra.mxu0 0
    %4989 = vmatprep.subr.bf16.mxu0 0
    %4990 = vmatpush1.bf16.msra.mxu0 0
    %4991 = vmatprep.subr.bf16.mxu0 0
    %4992 = vmatpush1.bf16.msra.mxu0 0
    %4993 = vmatprep.subr.bf16.mxu0 0
    %4994 = vmatpush1.bf16.msra.mxu0 0
    %4995 = vmatprep.subr.bf16.mxu0 0
    %4996 = vmatpush1.bf16.msra.mxu0 0
    %4997 = vmatprep.mubr.bf16.mxu0 0
    %4998 = vmatmul.mubr.bf16.gmra.mrb[0].mxu0 %v4964
    %v4999 = vpop.f32.mrb[0].mxu0
    %v5000 = vadd.f32 %v3709, %v4999
    %v5001 = vpop.f32.mrb[0].mxu0
    %v5002 = vadd.f32 %v3713, %v5001
    %v5003 = vpop.f32.mrb[0].mxu0
    %v5004 = vadd.f32 %v3709, %v5003
    %v5005 = vpop.f32.mrb[0].mxu0
    %v5006 = vadd.f32 %v3713, %v5005
    %5007 = vdwg.mxu0
    %5008 = vmatprep.subr.bf16.mxu0 0
    %5009 = vmatpush1.bf16.msra.mxu0 %v3803
    %5010 = vmatprep.subr.bf16.mxu0 0
    %5011 = vmatpush1.bf16.msra.mxu0 %v3806
    %5012 = vmatprep.subr.bf16.mxu0 0
    %5013 = vmatpush1.bf16.msra.mxu0 %v3809
    %5014 = vmatprep.subr.bf16.mxu0 0
    %5015 = vmatpush1.bf16.msra.mxu0 %v3812
    %5016 = vmatprep.subr.bf16.mxu0 0
    %5017 = vmatpush1.bf16.msra.mxu0 %v3815
    %5018 = vmatprep.subr.bf16.mxu0 0
    %5019 = vmatpush1.bf16.msra.mxu0 %v3818
    %5020 = vmatprep.subr.bf16.mxu0 0
    %5021 = vmatpush1.bf16.msra.mxu0 %v3821
    %5022 = vmatprep.subr.bf16.mxu0 0
    %5023 = vmatpush1.bf16.msra.mxu0 %v3824
    %5024 = vmatprep.subr.bf16.mxu0 0
    %5025 = vmatpush1.bf16.msra.mxu0 0
    %5026 = vmatprep.subr.bf16.mxu0 0
    %5027 = vmatpush1.bf16.msra.mxu0 0
    %5028 = vmatprep.subr.bf16.mxu0 0
    %5029 = vmatpush1.bf16.msra.mxu0 0
    %5030 = vmatprep.subr.bf16.mxu0 0
    %5031 = vmatpush1.bf16.msra.mxu0 0
    %5032 = vmatprep.subr.bf16.mxu0 0
    %5033 = vmatpush1.bf16.msra.mxu0 0
    %5034 = vmatprep.subr.bf16.mxu0 0
    %5035 = vmatpush1.bf16.msra.mxu0 0
    %5036 = vmatprep.subr.bf16.mxu0 0
    %5037 = vmatpush1.bf16.msra.mxu0 0
    %5038 = vmatprep.subr.bf16.mxu0 0
    %5039 = vmatpush1.bf16.msra.mxu0 0
    %5040 = vmatprep.mubr.bf16.mxu0 0
    %5041 = vmatmul.mubr.bf16.gmra.mrb[0].mxu0 %v4964
    %v5042 = vpop.f32.mrb[0].mxu0
    %v5043 = vadd.f32 %v3717, %v5042
    %v5044 = vpop.f32.mrb[0].mxu0
    %v5045 = vpop.f32.mrb[0].mxu0
    %v5046 = vadd.f32 %v3717, %v5045
    %v5047 = vpop.f32.mrb[0].mxu0
    %5048 = vdwg.mxu0
    %5049 = vmatprep.subr.bf16.mxu0 %v4030
    %5050 = vmatpush1.bf16.msra.mxu0 %v4029
    %5051 = vmatprep.subr.bf16.mxu0 %v4033
    %5052 = vmatpush1.bf16.msra.mxu0 %v4032
    %5053 = vmatprep.subr.bf16.mxu0 %v4036
    %5054 = vmatpush1.bf16.msra.mxu0 %v4035
    %5055 = vmatprep.subr.bf16.mxu0 %v4039
    %5056 = vmatpush1.bf16.msra.mxu0 %v4038
    %5057 = vmatprep.subr.bf16.mxu0 %v4042
    %5058 = vmatpush1.bf16.msra.mxu0 %v4041
    %5059 = vmatprep.subr.bf16.mxu0 %v4045
    %5060 = vmatpush1.bf16.msra.mxu0 %v4044
    %5061 = vmatprep.subr.bf16.mxu0 %v4048
    %5062 = vmatpush1.bf16.msra.mxu0 %v4047
    %5063 = vmatprep.subr.bf16.mxu0 %v4051
    %5064 = vmatpush1.bf16.msra.mxu0 %v4050
    %5065 = vmatprep.subr.bf16.mxu0 0
    %5066 = vmatpush1.bf16.msra.mxu0 0
    %5067 = vmatprep.subr.bf16.mxu0 0
    %5068 = vmatpush1.bf16.msra.mxu0 0
    %5069 = vmatprep.subr.bf16.mxu0 0
    %5070 = vmatpush1.bf16.msra.mxu0 0
    %5071 = vmatprep.subr.bf16.mxu0 0
    %5072 = vmatpush1.bf16.msra.mxu0 0
    %5073 = vmatprep.subr.bf16.mxu0 0
    %5074 = vmatpush1.bf16.msra.mxu0 0
    %5075 = vmatprep.subr.bf16.mxu0 0
    %5076 = vmatpush1.bf16.msra.mxu0 0
    %5077 = vmatprep.subr.bf16.mxu0 0
    %5078 = vmatpush1.bf16.msra.mxu0 0
    %5079 = vmatprep.subr.bf16.mxu0 0
    %5080 = vmatpush1.bf16.msra.mxu0 0
    %5081 = vmatprep.mubr.bf16.mxu0 0
    %5082 = vmatmul.mubr.bf16.gmra.mrb[0].mxu0 %v4706
    %v5083 = vpop.f32.mrb[0].mxu0
    %v5084 = vadd.f32 %v3937, %v5083
    %v5085 = vpop.f32.mrb[0].mxu0
    %v5086 = vadd.f32 %v3941, %v5085
    %v5087 = vpop.f32.mrb[0].mxu0
    %v5088 = vadd.f32 %v3937, %v5087
    %v5089 = vpop.f32.mrb[0].mxu0
    %v5090 = vadd.f32 %v3941, %v5089
    %5091 = vdwg.mxu0
    %5092 = vmatprep.subr.bf16.mxu0 0
    %5093 = vmatpush1.bf16.msra.mxu0 %v4031
    %5094 = vmatprep.subr.bf16.mxu0 0
    %5095 = vmatpush1.bf16.msra.mxu0 %v4034
    %5096 = vmatprep.subr.bf16.mxu0 0
    %5097 = vmatpush1.bf16.msra.mxu0 %v4037
    %5098 = vmatprep.subr.bf16.mxu0 0
    %5099 = vmatpush1.bf16.msra.mxu0 %v4040
    %5100 = vmatprep.subr.bf16.mxu0 0
    %5101 = vmatpush1.bf16.msra.mxu0 %v4043
    %5102 = vmatprep.subr.bf16.mxu0 0
    %5103 = vmatpush1.bf16.msra.mxu0 %v4046
    %5104 = vmatprep.subr.bf16.mxu0 0
    %5105 = vmatpush1.bf16.msra.mxu0 %v4049
    %5106 = vmatprep.subr.bf16.mxu0 0
    %5107 = vmatpush1.bf16.msra.mxu0 %v4052
    %5108 = vmatprep.subr.bf16.mxu0 0
    %5109 = vmatpush1.bf16.msra.mxu0 0
    %5110 = vmatprep.subr.bf16.mxu0 0
    %5111 = vmatpush1.bf16.msra.mxu0 0
    %5112 = vmatprep.subr.bf16.mxu0 0
    %5113 = vmatpush1.bf16.msra.mxu0 0
    %5114 = vmatprep.subr.bf16.mxu0 0
    %5115 = vmatpush1.bf16.msra.mxu0 0
    %5116 = vmatprep.subr.bf16.mxu0 0
    %5117 = vmatpush1.bf16.msra.mxu0 0
    %5118 = vmatprep.subr.bf16.mxu0 0
    %5119 = vmatpush1.bf16.msra.mxu0 0
    %5120 = vmatprep.subr.bf16.mxu0 0
    %5121 = vmatpush1.bf16.msra.mxu0 0
    %5122 = vmatprep.subr.bf16.mxu0 0
    %5123 = vmatpush1.bf16.msra.mxu0 0
    %5124 = vmatprep.mubr.bf16.mxu0 0
    %5125 = vmatmul.mubr.bf16.gmra.mrb[0].mxu0 %v4706
    %v5126 = vpop.f32.mrb[0].mxu0
    %v5127 = vadd.f32 %v3945, %v5126
    %v5128 = vpop.f32.mrb[0].mxu0
    %v5129 = vpop.f32.mrb[0].mxu0
    %v5130 = vadd.f32 %v3945, %v5129
    %v5131 = vpop.f32.mrb[0].mxu0
    %5132 = vdwg.mxu0
    %v5133 = vadd.f32 %v5000, %v5084
    %v5134 = vadd.f32 %v5004, %v5088
    %v5135 = vsub.f32 0.0, %v5133
    %v5136 = vsub.f32 0.0, %v5134
    %v5137 = vmul.f32 %v5135, 1.442695
    %v5138 = vpow.pop %v5137
    %v5139 = vmul.f32 %v5136, 1.442695
    %v5140 = vpow.pop %v5139
    %v5141 = vadd.f32 %v5138, 1.0
    %v5142 = vadd.f32 %v5140, 1.0
    %v5143 = vrcp.pop %v5141
    %v5144 = vmul.f32 1.0, %v5143
    %v5145 = vrcp.pop %v5142
    %v5146 = vmul.f32 1.0, %v5145
    %v5147 = vadd.f32 %v5002, %v5086
    %v5148 = vadd.f32 %v5006, %v5090
    %v5149 = vsub.f32 0.0, %v5147
    %v5150 = vsub.f32 0.0, %v5148
    %v5151 = vmul.f32 %v5149, 1.442695
    %v5152 = vpow.pop %v5151
    %v5153 = vmul.f32 %v5150, 1.442695
    %v5154 = vpow.pop %v5153
    %v5155 = vadd.f32 %v5152, 1.0
    %v5156 = vadd.f32 %v5154, 1.0
    %v5157 = vrcp.pop %v5155
    %v5158 = vmul.f32 1.0, %v5157
    %v5159 = vrcp.pop %v5156
    %v5160 = vmul.f32 1.0, %v5159
    %v5161 = vmul.f32 %v5144, %v5127
    %v5162 = vmul.f32 %v5146, %v5130
    %v5163 = vadd.f32 %v5043, %v5161
    %v5164 = vadd.f32 %v5046, %v5162
    %v5165 = vtanh.pop %v5163
    %v5166 = vtanh.pop %v5164
    %v5167 = vsub.f32 1.0, %v5158
    %v5168 = vsub.f32 1.0, %v5160
    %v5169 = vmul.f32 %v5167, %v5165
    %v5170 = vmul.f32 %v5168, %v5166
    %v5171 = vmul.f32 %v5158, %v4687
    %v5172 = vmul.f32 %v5160, %v4688
    %v5173 = vadd.f32 %v5169, %v5171
    %v5174 = vadd.f32 %v5170, %v5172
    %s5175 = scalar_lea.vmem [#allocation20], 192
    %v5176 = vld [vmem:[%s5175] sm:$0xf]
    %v5177 = vld [vmem:[%s5175 + $0x4] sm:$0xf]
    %v5178 = vld [vmem:[%s5175 + $0x8] sm:$0xf]
    %v5179 = vld [vmem:[%s5175 + $0xc] sm:$0xf]
    %v5180 = vld [vmem:[%s5175 + $0x10] sm:$0xf]
    %v5181 = vld [vmem:[%s5175 + $0x14] sm:$0xf]
    %v5182 = vld [vmem:[%s5175 + $0x18] sm:$0xf]
    %v5183 = vld [vmem:[%s5175 + $0x1c] sm:$0xf]
    %v5184 = vld [vmem:[%s5175 + $0x20] sm:$0xf]
    %v5185 = vld [vmem:[%s5175 + $0x24] sm:$0xf]
    %v5186 = vld [vmem:[%s5175 + $0x28] sm:$0xf]
    %v5187 = vld [vmem:[%s5175 + $0x2c] sm:$0xf]
    %v5188 = vld [vmem:[%s5175 + $0x30] sm:$0xf]
    %v5189 = vld [vmem:[%s5175 + $0x34] sm:$0xf]
    %v5190 = vld [vmem:[%s5175 + $0x38] sm:$0xf]
    %v5191 = vld [vmem:[%s5175 + $0x3c] sm:$0xf]
    %v5192 = vpack.c.bf16 %v5174, %v5173
    %v5209 = vunpack.c.l.b16 %v5176
    %v5210 = vunpack.c.l.b16 %v5177
    %v5211 = vunpack.c.l.b16 %v5178
    %v5212 = vunpack.c.l.b16 %v5179
    %v5213 = vunpack.c.l.b16 %v5180
    %v5214 = vunpack.c.l.b16 %v5181
    %v5215 = vunpack.c.l.b16 %v5182
    %v5216 = vunpack.c.l.b16 %v5183
    %v5217 = vunpack.c.l.b16 %v5184
    %v5218 = vunpack.c.l.b16 %v5185
    %v5219 = vunpack.c.l.b16 %v5186
    %v5220 = vunpack.c.l.b16 %v5187
    %v5221 = vunpack.c.l.b16 %v5188
    %v5222 = vunpack.c.l.b16 %v5189
    %v5223 = vunpack.c.l.b16 %v5190
    %v5224 = vunpack.c.l.b16 %v5191
    %v5225 = vpack.c.b16 %v5210, %v5209
    %v5226 = vpack.c.b16 %v5212, %v5211
    %v5227 = vpack.c.b16 %v5214, %v5213
    %v5228 = vpack.c.b16 %v5216, %v5215
    %v5229 = vpack.c.b16 %v5218, %v5217
    %v5230 = vpack.c.b16 %v5220, %v5219
    %v5231 = vpack.c.b16 %v5222, %v5221
    %v5232 = vpack.c.b16 %v5224, %v5223
    %5241 = vmatprep.subr.bf16.mxu0 0
    %5242 = vmatpush1.bf16.msra.mxu0 %v5225
    %5243 = vmatprep.subr.bf16.mxu0 0
    %5244 = vmatpush1.bf16.msra.mxu0 %v5226
    %5245 = vmatprep.subr.bf16.mxu0 0
    %5246 = vmatpush1.bf16.msra.mxu0 %v5227
    %5247 = vmatprep.subr.bf16.mxu0 0
    %5248 = vmatpush1.bf16.msra.mxu0 %v5228
    %5249 = vmatprep.subr.bf16.mxu0 0
    %5250 = vmatpush1.bf16.msra.mxu0 %v5229
    %5251 = vmatprep.subr.bf16.mxu0 0
    %5252 = vmatpush1.bf16.msra.mxu0 %v5230
    %5253 = vmatprep.subr.bf16.mxu0 0
    %5254 = vmatpush1.bf16.msra.mxu0 %v5231
    %5255 = vmatprep.subr.bf16.mxu0 0
    %5256 = vmatpush1.bf16.msra.mxu0 %v5232
    %5257 = vmatprep.subr.bf16.mxu0 0
    %5258 = vmatpush1.bf16.msra.mxu0 0
    %5259 = vmatprep.subr.bf16.mxu0 0
    %5260 = vmatpush1.bf16.msra.mxu0 0
    %5261 = vmatprep.subr.bf16.mxu0 0
    %5262 = vmatpush1.bf16.msra.mxu0 0
    %5263 = vmatprep.subr.bf16.mxu0 0
    %5264 = vmatpush1.bf16.msra.mxu0 0
    %5265 = vmatprep.subr.bf16.mxu0 0
    %5266 = vmatpush1.bf16.msra.mxu0 0
    %5267 = vmatprep.subr.bf16.mxu0 0
    %5268 = vmatpush1.bf16.msra.mxu0 0
    %5269 = vmatprep.subr.bf16.mxu0 0
    %5270 = vmatpush1.bf16.msra.mxu0 0
    %5271 = vmatprep.subr.bf16.mxu0 0
    %5272 = vmatpush1.bf16.msra.mxu0 0
    %5273 = vmatprep.mubr.bf16.mxu0 0
    %5274 = vmatmul.mubr.bf16.gmra.mrb[0].mxu0 %v5192
    %v5275 = vpop.f32.mrb[0].mxu0
    %v5276 = vadd.f32 0.0, %v5275
    %v5277 = vpop.f32.mrb[0].mxu0
    %v5278 = vpop.f32.mrb[0].mxu0
    %v5279 = vadd.f32 0.0, %v5278
    %v5280 = vpop.f32.mrb[0].mxu0
    %5281 = vdwg.mxu0
    %vm5282 = vcmp.lt.f32.partialorder %v5276, 0.0
    %vm5283 = vcmp.lt.f32.partialorder %v5279, 0.0
    %vm5284 = vcmp.eq.f32.partialorder %v5276, 0.0
    %vm5285 = vcmp.eq.f32.partialorder %v5279, 0.0
    %v5286 = vand.u32 2147483647, %v5276
    %v5287 = vand.u32 2147483647, %v5279
    %v5288 = vsel %vm5284, 1.0, %v5286
    %v5289 = vsel %vm5285, 1.0, %v5287
    %v5290 = vlog2.pop %v5288
    %v5291 = vmul.f32 %v5290, 0.6931472
    %v5292 = vlog2.pop %v5289
    %v5293 = vmul.f32 %v5292, 0.6931472
    %v5294 = vsel %vm5282, 1, 0
    %v5295 = vsel %vm5283, 1, 0
    %v5296 = vcvt.s32.f32 %v5294
    %v5297 = vcvt.s32.f32 %v5295
    %v5298 = vpack.c.bf16 %v5297, %v5296
    %5299 = vmatprep.subr.bf16.mxu0 0
    %5300 = vmatpush1.bf16.msra.mxu0 %v5298
    %5301 = vmatprep.subr.bf16.mxu0 0
    %5302 = vmatpush1.bf16.msra.mxu0 0
    %5303 = vmatprep.subr.bf16.mxu0 0
    %5304 = vmatpush1.bf16.msra.mxu0 0
    %5305 = vmatprep.subr.bf16.mxu0 0
    %5306 = vmatpush1.bf16.msra.mxu0 0
    %5307 = vmatprep.subr.bf16.mxu0 0
    %5308 = vmatpush1.bf16.msra.mxu0 0
    %5309 = vmatprep.subr.bf16.mxu0 0
    %5310 = vmatpush1.bf16.msra.mxu0 0
    %5311 = vmatprep.subr.bf16.mxu0 0
    %5312 = vmatpush1.bf16.msra.mxu0 0
    %5313 = vmatprep.subr.bf16.mxu0 0
    %5314 = vmatpush1.bf16.msra.mxu0 0
    %5315 = vmatprep.subr.bf16.mxu0 0
    %5316 = vmatpush1.bf16.msra.mxu0 0
    %5317 = vmatprep.subr.bf16.mxu0 0
    %5318 = vmatpush1.bf16.msra.mxu0 0
    %5319 = vmatprep.subr.bf16.mxu0 0
    %5320 = vmatpush1.bf16.msra.mxu0 0
    %5321 = vmatprep.subr.bf16.mxu0 0
    %5322 = vmatpush1.bf16.msra.mxu0 0
    %5323 = vmatprep.subr.bf16.mxu0 0
    %5324 = vmatpush1.bf16.msra.mxu0 0
    %5325 = vmatprep.subr.bf16.mxu0 0
    %5326 = vmatpush1.bf16.msra.mxu0 0
    %5327 = vmatprep.subr.bf16.mxu0 0
    %5328 = vmatpush1.bf16.msra.mxu0 0
    %5329 = vmatprep.subr.bf16.mxu0 0
    %5330 = vmatpush1.bf16.msra.mxu0 0
    %5331 = vmatprep.mubr.bf16.mxu0 0
    %5332 = vmatmul.mubr.bf16.gmra.mrb[0].mxu0 %v3071
    %v5333 = vpop.f32.mrb[0].mxu0
    %v5334 = vadd.f32 0.0, %v5333
    %v5335 = vpop.f32.mrb[0].mxu0
    %v5336 = vpop.f32.mrb[0].mxu0
    %v5337 = vadd.f32 0.0, %v5336
    %v5338 = vpop.f32.mrb[0].mxu0
    %5339 = vdwg.mxu0
    %v5340 = vsel %vm5284, 1, 0
    %v5341 = vsel %vm5285, 1, 0
    %v5342 = vcvt.s32.f32 %v5340
    %v5343 = vcvt.s32.f32 %v5341
    %v5344 = vpack.c.bf16 %v5343, %v5342
    %5345 = vmatprep.subr.bf16.mxu0 0
    %5346 = vmatpush1.bf16.msra.mxu0 %v5344
    %5347 = vmatprep.subr.bf16.mxu0 0
    %5348 = vmatpush1.bf16.msra.mxu0 0
    %5349 = vmatprep.subr.bf16.mxu0 0
    %5350 = vmatpush1.bf16.msra.mxu0 0
    %5351 = vmatprep.subr.bf16.mxu0 0
    %5352 = vmatpush1.bf16.msra.mxu0 0
    %5353 = vmatprep.subr.bf16.mxu0 0
    %5354 = vmatpush1.bf16.msra.mxu0 0
    %5355 = vmatprep.subr.bf16.mxu0 0
    %5356 = vmatpush1.bf16.msra.mxu0 0
    %5357 = vmatprep.subr.bf16.mxu0 0
    %5358 = vmatpush1.bf16.msra.mxu0 0
    %5359 = vmatprep.subr.bf16.mxu0 0
    %5360 = vmatpush1.bf16.msra.mxu0 0
    %5361 = vmatprep.subr.bf16.mxu0 0
    %5362 = vmatpush1.bf16.msra.mxu0 0
    %5363 = vmatprep.subr.bf16.mxu0 0
    %5364 = vmatpush1.bf16.msra.mxu0 0
    %5365 = vmatprep.subr.bf16.mxu0 0
    %5366 = vmatpush1.bf16.msra.mxu0 0
    %5367 = vmatprep.subr.bf16.mxu0 0
    %5368 = vmatpush1.bf16.msra.mxu0 0
    %5369 = vmatprep.subr.bf16.mxu0 0
    %5370 = vmatpush1.bf16.msra.mxu0 0
    %5371 = vmatprep.subr.bf16.mxu0 0
    %5372 = vmatpush1.bf16.msra.mxu0 0
    %5373 = vmatprep.subr.bf16.mxu0 0
    %5374 = vmatpush1.bf16.msra.mxu0 0
    %5375 = vmatprep.subr.bf16.mxu0 0
    %5376 = vmatpush1.bf16.msra.mxu0 0
    %5377 = vmatprep.mubr.bf16.mxu0 0
    %5378 = vmatmul.mubr.bf16.gmra.mrb[0].mxu0 %v3071
    %v5379 = vpop.f32.mrb[0].mxu0
    %v5380 = vadd.f32 0.0, %v5379
    %v5381 = vpop.f32.mrb[0].mxu0
    %v5382 = vpop.f32.mrb[0].mxu0
    %v5383 = vadd.f32 0.0, %v5382
    %v5384 = vpop.f32.mrb[0].mxu0
    %5385 = vdwg.mxu0
    %v5386 = vpack.c.bf16 %v5293, %v5291
    %5387 = vmatprep.subr.bf16.mxu0 0
    %5388 = vmatpush1.bf16.msra.mxu0 %v5386
    %5389 = vmatprep.subr.bf16.mxu0 0
    %5390 = vmatpush1.bf16.msra.mxu0 0
    %5391 = vmatprep.subr.bf16.mxu0 0
    %5392 = vmatpush1.bf16.msra.mxu0 0
    %5393 = vmatprep.subr.bf16.mxu0 0
    %5394 = vmatpush1.bf16.msra.mxu0 0
    %5395 = vmatprep.subr.bf16.mxu0 0
    %5396 = vmatpush1.bf16.msra.mxu0 0
    %5397 = vmatprep.subr.bf16.mxu0 0
    %5398 = vmatpush1.bf16.msra.mxu0 0
    %5399 = vmatprep.subr.bf16.mxu0 0
    %5400 = vmatpush1.bf16.msra.mxu0 0
    %5401 = vmatprep.subr.bf16.mxu0 0
    %5402 = vmatpush1.bf16.msra.mxu0 0
    %5403 = vmatprep.subr.bf16.mxu0 0
    %5404 = vmatpush1.bf16.msra.mxu0 0
    %5405 = vmatprep.subr.bf16.mxu0 0
    %5406 = vmatpush1.bf16.msra.mxu0 0
    %5407 = vmatprep.subr.bf16.mxu0 0
    %5408 = vmatpush1.bf16.msra.mxu0 0
    %5409 = vmatprep.subr.bf16.mxu0 0
    %5410 = vmatpush1.bf16.msra.mxu0 0
    %5411 = vmatprep.subr.bf16.mxu0 0
    %5412 = vmatpush1.bf16.msra.mxu0 0
    %5413 = vmatprep.subr.bf16.mxu0 0
    %5414 = vmatpush1.bf16.msra.mxu0 0
    %5415 = vmatprep.subr.bf16.mxu0 0
    %5416 = vmatpush1.bf16.msra.mxu0 0
    %5417 = vmatprep.subr.bf16.mxu0 0
    %5418 = vmatpush1.bf16.msra.mxu0 0
    %5419 = vmatprep.mubr.bf16.mxu0 0
    %5420 = vmatmul.mubr.bf16.gmra.mrb[0].mxu0 %v3071
    %v5421 = vpop.f32.mrb[0].mxu0
    %v5422 = vadd.f32 0.0, %v5421
    %v5423 = vpop.f32.mrb[0].mxu0
    %v5424 = vpop.f32.mrb[0].mxu0
    %v5425 = vadd.f32 0.0, %v5424
    %v5426 = vpop.f32.mrb[0].mxu0
    %5427 = vdwg.mxu0
    %v5428 = vmul.f32 %v5334, 0.5
    %v5429 = vmul.f32 %v5337, 0.5
    %v5430 = vfloor.f32 %v5428
    %v5431 = vfloor.f32 %v5429
    %v5432 = vmul.f32 %v5430, 2.0
    %v5433 = vmul.f32 %v5431, 2.0
    %v5434 = vsub.f32 %v5334, %v5432
    %v5435 = vsub.f32 %v5337, %v5433
    %v5436 = vmul.f32 %v5434, 2.0
    %v5437 = vmul.f32 %v5435, 2.0
    %v5438 = vsub.f32 1.0, %v5436
    %v5439 = vsub.f32 1.0, %v5437
    %vm5440 = vcmp.gt.f32.partialorder %v5380, 0.5
    %vm5441 = vcmp.gt.f32.partialorder %v5383, 0.5
    %v5442 = vmul.f32 %v5422, 1.442695
    %v5443 = vpow.pop %v5442
    %v5444 = vmul.f32 %v5425, 1.442695
    %v5445 = vpow.pop %v5444
    %v5446 = vmul.f32 %v5438, %v5443
    %v5447 = vmul.f32 %v5439, %v5445
    %v5448 = vsel %vm5440, 0.0, %v5446
    %v5449 = vsel %vm5441, 0.0, %v5447
    %v5450 = vpack.c.bf16 %v5449, %v5448
    %5451 = vmatprep.subr.bf16.mxu0 %v3802
    %5452 = vmatpush1.bf16.msra.mxu0 %v3801
    %5453 = vmatprep.subr.bf16.mxu0 %v3805
    %5454 = vmatpush1.bf16.msra.mxu0 %v3804
    %5455 = vmatprep.subr.bf16.mxu0 %v3808
    %5456 = vmatpush1.bf16.msra.mxu0 %v3807
    %5457 = vmatprep.subr.bf16.mxu0 %v3811
    %5458 = vmatpush1.bf16.msra.mxu0 %v3810
    %5459 = vmatprep.subr.bf16.mxu0 %v3814
    %5460 = vmatpush1.bf16.msra.mxu0 %v3813
    %5461 = vmatprep.subr.bf16.mxu0 %v3817
    %5462 = vmatpush1.bf16.msra.mxu0 %v3816
    %5463 = vmatprep.subr.bf16.mxu0 %v3820
    %5464 = vmatpush1.bf16.msra.mxu0 %v3819
    %5465 = vmatprep.subr.bf16.mxu0 %v3823
    %5466 = vmatpush1.bf16.msra.mxu0 %v3822
    %5467 = vmatprep.subr.bf16.mxu0 0
    %5468 = vmatpush1.bf16.msra.mxu0 0
    %5469 = vmatprep.subr.bf16.mxu0 0
    %5470 = vmatpush1.bf16.msra.mxu0 0
    %5471 = vmatprep.subr.bf16.mxu0 0
    %5472 = vmatpush1.bf16.msra.mxu0 0
    %5473 = vmatprep.subr.bf16.mxu0 0
    %5474 = vmatpush1.bf16.msra.mxu0 0
    %5475 = vmatprep.subr.bf16.mxu0 0
    %5476 = vmatpush1.bf16.msra.mxu0 0
    %5477 = vmatprep.subr.bf16.mxu0 0
    %5478 = vmatpush1.bf16.msra.mxu0 0
    %5479 = vmatprep.subr.bf16.mxu0 0
    %5480 = vmatpush1.bf16.msra.mxu0 0
    %5481 = vmatprep.subr.bf16.mxu0 0
    %5482 = vmatpush1.bf16.msra.mxu0 0
    %5483 = vmatprep.mubr.bf16.mxu0 0
    %5484 = vmatmul.mubr.bf16.gmra.mrb[0].mxu0 %v5450
    %v5485 = vpop.f32.mrb[0].mxu0
    %v5486 = vadd.f32 %v3709, %v5485
    %v5487 = vpop.f32.mrb[0].mxu0
    %v5488 = vadd.f32 %v3713, %v5487
    %v5489 = vpop.f32.mrb[0].mxu0
    %v5490 = vadd.f32 %v3709, %v5489
    %v5491 = vpop.f32.mrb[0].mxu0
    %v5492 = vadd.f32 %v3713, %v5491
    %5493 = vdwg.mxu0
    %5494 = vmatprep.subr.bf16.mxu0 0
    %5495 = vmatpush1.bf16.msra.mxu0 %v3803
    %5496 = vmatprep.subr.bf16.mxu0 0
    %5497 = vmatpush1.bf16.msra.mxu0 %v3806
    %5498 = vmatprep.subr.bf16.mxu0 0
    %5499 = vmatpush1.bf16.msra.mxu0 %v3809
    %5500 = vmatprep.subr.bf16.mxu0 0
    %5501 = vmatpush1.bf16.msra.mxu0 %v3812
    %5502 = vmatprep.subr.bf16.mxu0 0
    %5503 = vmatpush1.bf16.msra.mxu0 %v3815
    %5504 = vmatprep.subr.bf16.mxu0 0
    %5505 = vmatpush1.bf16.msra.mxu0 %v3818
    %5506 = vmatprep.subr.bf16.mxu0 0
    %5507 = vmatpush1.bf16.msra.mxu0 %v3821
    %5508 = vmatprep.subr.bf16.mxu0 0
    %5509 = vmatpush1.bf16.msra.mxu0 %v3824
    %5510 = vmatprep.subr.bf16.mxu0 0
    %5511 = vmatpush1.bf16.msra.mxu0 0
    %5512 = vmatprep.subr.bf16.mxu0 0
    %5513 = vmatpush1.bf16.msra.mxu0 0
    %5514 = vmatprep.subr.bf16.mxu0 0
    %5515 = vmatpush1.bf16.msra.mxu0 0
    %5516 = vmatprep.subr.bf16.mxu0 0
    %5517 = vmatpush1.bf16.msra.mxu0 0
    %5518 = vmatprep.subr.bf16.mxu0 0
    %5519 = vmatpush1.bf16.msra.mxu0 0
    %5520 = vmatprep.subr.bf16.mxu0 0
    %5521 = vmatpush1.bf16.msra.mxu0 0
    %5522 = vmatprep.subr.bf16.mxu0 0
    %5523 = vmatpush1.bf16.msra.mxu0 0
    %5524 = vmatprep.subr.bf16.mxu0 0
    %5525 = vmatpush1.bf16.msra.mxu0 0
    %5526 = vmatprep.mubr.bf16.mxu0 0
    %5527 = vmatmul.mubr.bf16.gmra.mrb[0].mxu0 %v5450
    %v5528 = vpop.f32.mrb[0].mxu0
    %v5529 = vadd.f32 %v3717, %v5528
    %v5530 = vpop.f32.mrb[0].mxu0
    %v5531 = vpop.f32.mrb[0].mxu0
    %v5532 = vadd.f32 %v3717, %v5531
    %v5533 = vpop.f32.mrb[0].mxu0
    %5534 = vdwg.mxu0
    %5535 = vmatprep.subr.bf16.mxu0 %v4030
    %5536 = vmatpush1.bf16.msra.mxu0 %v4029
    %5537 = vmatprep.subr.bf16.mxu0 %v4033
    %5538 = vmatpush1.bf16.msra.mxu0 %v4032
    %5539 = vmatprep.subr.bf16.mxu0 %v4036
    %5540 = vmatpush1.bf16.msra.mxu0 %v4035
    %5541 = vmatprep.subr.bf16.mxu0 %v4039
    %5542 = vmatpush1.bf16.msra.mxu0 %v4038
    %5543 = vmatprep.subr.bf16.mxu0 %v4042
    %5544 = vmatpush1.bf16.msra.mxu0 %v4041
    %5545 = vmatprep.subr.bf16.mxu0 %v4045
    %5546 = vmatpush1.bf16.msra.mxu0 %v4044
    %5547 = vmatprep.subr.bf16.mxu0 %v4048
    %5548 = vmatpush1.bf16.msra.mxu0 %v4047
    %5549 = vmatprep.subr.bf16.mxu0 %v4051
    %5550 = vmatpush1.bf16.msra.mxu0 %v4050
    %5551 = vmatprep.subr.bf16.mxu0 0
    %5552 = vmatpush1.bf16.msra.mxu0 0
    %5553 = vmatprep.subr.bf16.mxu0 0
    %5554 = vmatpush1.bf16.msra.mxu0 0
    %5555 = vmatprep.subr.bf16.mxu0 0
    %5556 = vmatpush1.bf16.msra.mxu0 0
    %5557 = vmatprep.subr.bf16.mxu0 0
    %5558 = vmatpush1.bf16.msra.mxu0 0
    %5559 = vmatprep.subr.bf16.mxu0 0
    %5560 = vmatpush1.bf16.msra.mxu0 0
    %5561 = vmatprep.subr.bf16.mxu0 0
    %5562 = vmatpush1.bf16.msra.mxu0 0
    %5563 = vmatprep.subr.bf16.mxu0 0
    %5564 = vmatpush1.bf16.msra.mxu0 0
    %5565 = vmatprep.subr.bf16.mxu0 0
    %5566 = vmatpush1.bf16.msra.mxu0 0
    %5567 = vmatprep.mubr.bf16.mxu0 0
    %5568 = vmatmul.mubr.bf16.gmra.mrb[0].mxu0 %v5192
    %v5569 = vpop.f32.mrb[0].mxu0
    %v5570 = vadd.f32 %v3937, %v5569
    %v5571 = vpop.f32.mrb[0].mxu0
    %v5572 = vadd.f32 %v3941, %v5571
    %v5573 = vpop.f32.mrb[0].mxu0
    %v5574 = vadd.f32 %v3937, %v5573
    %v5575 = vpop.f32.mrb[0].mxu0
    %v5576 = vadd.f32 %v3941, %v5575
    %5577 = vdwg.mxu0
    %5578 = vmatprep.subr.bf16.mxu0 0
    %5579 = vmatpush1.bf16.msra.mxu0 %v4031
    %5580 = vmatprep.subr.bf16.mxu0 0
    %5581 = vmatpush1.bf16.msra.mxu0 %v4034
    %5582 = vmatprep.subr.bf16.mxu0 0
    %5583 = vmatpush1.bf16.msra.mxu0 %v4037
    %5584 = vmatprep.subr.bf16.mxu0 0
    %5585 = vmatpush1.bf16.msra.mxu0 %v4040
    %5586 = vmatprep.subr.bf16.mxu0 0
    %5587 = vmatpush1.bf16.msra.mxu0 %v4043
    %5588 = vmatprep.subr.bf16.mxu0 0
    %5589 = vmatpush1.bf16.msra.mxu0 %v4046
    %5590 = vmatprep.subr.bf16.mxu0 0
    %5591 = vmatpush1.bf16.msra.mxu0 %v4049
    %5592 = vmatprep.subr.bf16.mxu0 0
    %5593 = vmatpush1.bf16.msra.mxu0 %v4052
    %5594 = vmatprep.subr.bf16.mxu0 0
    %5595 = vmatpush1.bf16.msra.mxu0 0
    %5596 = vmatprep.subr.bf16.mxu0 0
    %5597 = vmatpush1.bf16.msra.mxu0 0
    %5598 = vmatprep.subr.bf16.mxu0 0
    %5599 = vmatpush1.bf16.msra.mxu0 0
    %5600 = vmatprep.subr.bf16.mxu0 0
    %5601 = vmatpush1.bf16.msra.mxu0 0
    %5602 = vmatprep.subr.bf16.mxu0 0
    %5603 = vmatpush1.bf16.msra.mxu0 0
    %5604 = vmatprep.subr.bf16.mxu0 0
    %5605 = vmatpush1.bf16.msra.mxu0 0
    %5606 = vmatprep.subr.bf16.mxu0 0
    %5607 = vmatpush1.bf16.msra.mxu0 0
    %5608 = vmatprep.subr.bf16.mxu0 0
    %5609 = vmatpush1.bf16.msra.mxu0 0
    %5610 = vmatprep.mubr.bf16.mxu0 0
    %5611 = vmatmul.mubr.bf16.gmra.mrb[0].mxu0 %v5192
    %v5612 = vpop.f32.mrb[0].mxu0
    %v5613 = vadd.f32 %v3945, %v5612
    %v5614 = vpop.f32.mrb[0].mxu0
    %v5615 = vpop.f32.mrb[0].mxu0
    %v5616 = vadd.f32 %v3945, %v5615
    %v5617 = vpop.f32.mrb[0].mxu0
    %5618 = vdwg.mxu0
    %v5619 = vadd.f32 %v5486, %v5570
    %v5620 = vadd.f32 %v5490, %v5574
    %v5621 = vsub.f32 0.0, %v5619
    %v5622 = vsub.f32 0.0, %v5620
    %v5623 = vmul.f32 %v5621, 1.442695
    %v5624 = vpow.pop %v5623
    %v5625 = vmul.f32 %v5622, 1.442695
    %v5626 = vpow.pop %v5625
    %v5627 = vadd.f32 %v5624, 1.0
    %v5628 = vadd.f32 %v5626, 1.0
    %v5629 = vrcp.pop %v5627
    %v5630 = vmul.f32 1.0, %v5629
    %v5631 = vrcp.pop %v5628
    %v5632 = vmul.f32 1.0, %v5631
    %v5633 = vadd.f32 %v5488, %v5572
    %v5634 = vadd.f32 %v5492, %v5576
    %v5635 = vsub.f32 0.0, %v5633
    %v5636 = vsub.f32 0.0, %v5634
    %v5637 = vmul.f32 %v5635, 1.442695
    %v5638 = vpow.pop %v5637
    %v5639 = vmul.f32 %v5636, 1.442695
    %v5640 = vpow.pop %v5639
    %v5641 = vadd.f32 %v5638, 1.0
    %v5642 = vadd.f32 %v5640, 1.0
    %v5643 = vrcp.pop %v5641
    %v5644 = vmul.f32 1.0, %v5643
    %v5645 = vrcp.pop %v5642
    %v5646 = vmul.f32 1.0, %v5645
    %v5647 = vmul.f32 %v5630, %v5613
    %v5648 = vmul.f32 %v5632, %v5616
    %v5649 = vadd.f32 %v5529, %v5647
    %v5650 = vadd.f32 %v5532, %v5648
    %v5651 = vtanh.pop %v5649
    %v5652 = vtanh.pop %v5650
    %v5653 = vsub.f32 1.0, %v5644
    %v5654 = vsub.f32 1.0, %v5646
    %v5655 = vmul.f32 %v5653, %v5651
    %v5656 = vmul.f32 %v5654, %v5652
    %v5657 = vmul.f32 %v5644, %v5173
    %v5658 = vmul.f32 %v5646, %v5174
    %v5659 = vadd.f32 %v5655, %v5657
    %v5660 = vadd.f32 %v5656, %v5658
    %s5661 = scalar_lea.vmem [#allocation20], 256
    %v5662 = vld [vmem:[%s5661] sm:$0xf]
    %v5663 = vld [vmem:[%s5661 + $0x4] sm:$0xf]
    %v5664 = vld [vmem:[%s5661 + $0x8] sm:$0xf]
    %v5665 = vld [vmem:[%s5661 + $0xc] sm:$0xf]
    %v5666 = vld [vmem:[%s5661 + $0x10] sm:$0xf]
    %v5667 = vld [vmem:[%s5661 + $0x14] sm:$0xf]
    %v5668 = vld [vmem:[%s5661 + $0x18] sm:$0xf]
    %v5669 = vld [vmem:[%s5661 + $0x1c] sm:$0xf]
    %v5670 = vld [vmem:[%s5661 + $0x20] sm:$0xf]
    %v5671 = vld [vmem:[%s5661 + $0x24] sm:$0xf]
    %v5672 = vld [vmem:[%s5661 + $0x28] sm:$0xf]
    %v5673 = vld [vmem:[%s5661 + $0x2c] sm:$0xf]
    %v5674 = vld [vmem:[%s5661 + $0x30] sm:$0xf]
    %v5675 = vld [vmem:[%s5661 + $0x34] sm:$0xf]
    %v5676 = vld [vmem:[%s5661 + $0x38] sm:$0xf]
    %v5677 = vld [vmem:[%s5661 + $0x3c] sm:$0xf]
    %v5678 = vpack.c.bf16 %v5660, %v5659
    %v5695 = vunpack.c.l.b16 %v5662
    %v5696 = vunpack.c.l.b16 %v5663
    %v5697 = vunpack.c.l.b16 %v5664
    %v5698 = vunpack.c.l.b16 %v5665
    %v5699 = vunpack.c.l.b16 %v5666
    %v5700 = vunpack.c.l.b16 %v5667
    %v5701 = vunpack.c.l.b16 %v5668
    %v5702 = vunpack.c.l.b16 %v5669
    %v5703 = vunpack.c.l.b16 %v5670
    %v5704 = vunpack.c.l.b16 %v5671
    %v5705 = vunpack.c.l.b16 %v5672
    %v5706 = vunpack.c.l.b16 %v5673
    %v5707 = vunpack.c.l.b16 %v5674
    %v5708 = vunpack.c.l.b16 %v5675
    %v5709 = vunpack.c.l.b16 %v5676
    %v5710 = vunpack.c.l.b16 %v5677
    %v5711 = vpack.c.b16 %v5696, %v5695
    %v5712 = vpack.c.b16 %v5698, %v5697
    %v5713 = vpack.c.b16 %v5700, %v5699
    %v5714 = vpack.c.b16 %v5702, %v5701
    %v5715 = vpack.c.b16 %v5704, %v5703
    %v5716 = vpack.c.b16 %v5706, %v5705
    %v5717 = vpack.c.b16 %v5708, %v5707
    %v5718 = vpack.c.b16 %v5710, %v5709
    %5727 = vmatprep.subr.bf16.mxu0 0
    %5728 = vmatpush1.bf16.msra.mxu0 %v5711
    %5729 = vmatprep.subr.bf16.mxu0 0
    %5730 = vmatpush1.bf16.msra.mxu0 %v5712
    %5731 = vmatprep.subr.bf16.mxu0 0
    %5732 = vmatpush1.bf16.msra.mxu0 %v5713
    %5733 = vmatprep.subr.bf16.mxu0 0
    %5734 = vmatpush1.bf16.msra.mxu0 %v5714
    %5735 = vmatprep.subr.bf16.mxu0 0
    %5736 = vmatpush1.bf16.msra.mxu0 %v5715
    %5737 = vmatprep.subr.bf16.mxu0 0
    %5738 = vmatpush1.bf16.msra.mxu0 %v5716
    %5739 = vmatprep.subr.bf16.mxu0 0
    %5740 = vmatpush1.bf16.msra.mxu0 %v5717
    %5741 = vmatprep.subr.bf16.mxu0 0
    %5742 = vmatpush1.bf16.msra.mxu0 %v5718
    %5743 = vmatprep.subr.bf16.mxu0 0
    %5744 = vmatpush1.bf16.msra.mxu0 0
    %5745 = vmatprep.subr.bf16.mxu0 0
    %5746 = vmatpush1.bf16.msra.mxu0 0
    %5747 = vmatprep.subr.bf16.mxu0 0
    %5748 = vmatpush1.bf16.msra.mxu0 0
    %5749 = vmatprep.subr.bf16.mxu0 0
    %5750 = vmatpush1.bf16.msra.mxu0 0
    %5751 = vmatprep.subr.bf16.mxu0 0
    %5752 = vmatpush1.bf16.msra.mxu0 0
    %5753 = vmatprep.subr.bf16.mxu0 0
    %5754 = vmatpush1.bf16.msra.mxu0 0
    %5755 = vmatprep.subr.bf16.mxu0 0
    %5756 = vmatpush1.bf16.msra.mxu0 0
    %5757 = vmatprep.subr.bf16.mxu0 0
    %5758 = vmatpush1.bf16.msra.mxu0 0
    %5759 = vmatprep.mubr.bf16.mxu0 0
    %5760 = vmatmul.mubr.bf16.gmra.mrb[0].mxu0 %v5678
    %v5761 = vpop.f32.mrb[0].mxu0
    %v5762 = vadd.f32 0.0, %v5761
    %v5763 = vpop.f32.mrb[0].mxu0
    %v5764 = vpop.f32.mrb[0].mxu0
    %v5765 = vadd.f32 0.0, %v5764
    %v5766 = vpop.f32.mrb[0].mxu0
    %5767 = vdwg.mxu0
    %vm5768 = vcmp.lt.f32.partialorder %v5762, 0.0
    %vm5769 = vcmp.lt.f32.partialorder %v5765, 0.0
    %vm5770 = vcmp.eq.f32.partialorder %v5762, 0.0
    %vm5771 = vcmp.eq.f32.partialorder %v5765, 0.0
    %v5772 = vand.u32 2147483647, %v5762
    %v5773 = vand.u32 2147483647, %v5765
    %v5774 = vsel %vm5770, 1.0, %v5772
    %v5775 = vsel %vm5771, 1.0, %v5773
    %v5776 = vlog2.pop %v5774
    %v5777 = vmul.f32 %v5776, 0.6931472
    %v5778 = vlog2.pop %v5775
    %v5779 = vmul.f32 %v5778, 0.6931472
    %v5780 = vsel %vm5768, 1, 0
    %v5781 = vsel %vm5769, 1, 0
    %v5782 = vcvt.s32.f32 %v5780
    %v5783 = vcvt.s32.f32 %v5781
    %v5784 = vpack.c.bf16 %v5783, %v5782
    %5785 = vmatprep.subr.bf16.mxu0 0
    %5786 = vmatpush1.bf16.msra.mxu0 %v5784
    %5787 = vmatprep.subr.bf16.mxu0 0
    %5788 = vmatpush1.bf16.msra.mxu0 0
    %5789 = vmatprep.subr.bf16.mxu0 0
    %5790 = vmatpush1.bf16.msra.mxu0 0
    %5791 = vmatprep.subr.bf16.mxu0 0
    %5792 = vmatpush1.bf16.msra.mxu0 0
    %5793 = vmatprep.subr.bf16.mxu0 0
    %5794 = vmatpush1.bf16.msra.mxu0 0
    %5795 = vmatprep.subr.bf16.mxu0 0
    %5796 = vmatpush1.bf16.msra.mxu0 0
    %5797 = vmatprep.subr.bf16.mxu0 0
    %5798 = vmatpush1.bf16.msra.mxu0 0
    %5799 = vmatprep.subr.bf16.mxu0 0
    %5800 = vmatpush1.bf16.msra.mxu0 0
    %5801 = vmatprep.subr.bf16.mxu0 0
    %5802 = vmatpush1.bf16.msra.mxu0 0
    %5803 = vmatprep.subr.bf16.mxu0 0
    %5804 = vmatpush1.bf16.msra.mxu0 0
    %5805 = vmatprep.subr.bf16.mxu0 0
    %5806 = vmatpush1.bf16.msra.mxu0 0
    %5807 = vmatprep.subr.bf16.mxu0 0
    %5808 = vmatpush1.bf16.msra.mxu0 0
    %5809 = vmatprep.subr.bf16.mxu0 0
    %5810 = vmatpush1.bf16.msra.mxu0 0
    %5811 = vmatprep.subr.bf16.mxu0 0
    %5812 = vmatpush1.bf16.msra.mxu0 0
    %5813 = vmatprep.subr.bf16.mxu0 0
    %5814 = vmatpush1.bf16.msra.mxu0 0
    %5815 = vmatprep.subr.bf16.mxu0 0
    %5816 = vmatpush1.bf16.msra.mxu0 0
    %5817 = vmatprep.mubr.bf16.mxu0 0
    %5818 = vmatmul.mubr.bf16.gmra.mrb[0].mxu0 %v3071
    %v5819 = vpop.f32.mrb[0].mxu0
    %v5820 = vadd.f32 0.0, %v5819
    %v5821 = vpop.f32.mrb[0].mxu0
    %v5822 = vpop.f32.mrb[0].mxu0
    %v5823 = vadd.f32 0.0, %v5822
    %v5824 = vpop.f32.mrb[0].mxu0
    %5825 = vdwg.mxu0
    %v5826 = vsel %vm5770, 1, 0
    %v5827 = vsel %vm5771, 1, 0
    %v5828 = vcvt.s32.f32 %v5826
    %v5829 = vcvt.s32.f32 %v5827
    %v5830 = vpack.c.bf16 %v5829, %v5828
    %5831 = vmatprep.subr.bf16.mxu0 0
    %5832 = vmatpush1.bf16.msra.mxu0 %v5830
    %5833 = vmatprep.subr.bf16.mxu0 0
    %5834 = vmatpush1.bf16.msra.mxu0 0
    %5835 = vmatprep.subr.bf16.mxu0 0
    %5836 = vmatpush1.bf16.msra.mxu0 0
    %5837 = vmatprep.subr.bf16.mxu0 0
    %5838 = vmatpush1.bf16.msra.mxu0 0
    %5839 = vmatprep.subr.bf16.mxu0 0
    %5840 = vmatpush1.bf16.msra.mxu0 0
    %5841 = vmatprep.subr.bf16.mxu0 0
    %5842 = vmatpush1.bf16.msra.mxu0 0
    %5843 = vmatprep.subr.bf16.mxu0 0
    %5844 = vmatpush1.bf16.msra.mxu0 0
    %5845 = vmatprep.subr.bf16.mxu0 0
    %5846 = vmatpush1.bf16.msra.mxu0 0
    %5847 = vmatprep.subr.bf16.mxu0 0
    %5848 = vmatpush1.bf16.msra.mxu0 0
    %5849 = vmatprep.subr.bf16.mxu0 0
    %5850 = vmatpush1.bf16.msra.mxu0 0
    %5851 = vmatprep.subr.bf16.mxu0 0
    %5852 = vmatpush1.bf16.msra.mxu0 0
    %5853 = vmatprep.subr.bf16.mxu0 0
    %5854 = vmatpush1.bf16.msra.mxu0 0
    %5855 = vmatprep.subr.bf16.mxu0 0
    %5856 = vmatpush1.bf16.msra.mxu0 0
    %5857 = vmatprep.subr.bf16.mxu0 0
    %5858 = vmatpush1.bf16.msra.mxu0 0
    %5859 = vmatprep.subr.bf16.mxu0 0
    %5860 = vmatpush1.bf16.msra.mxu0 0
    %5861 = vmatprep.subr.bf16.mxu0 0
    %5862 = vmatpush1.bf16.msra.mxu0 0
    %5863 = vmatprep.mubr.bf16.mxu0 0
    %5864 = vmatmul.mubr.bf16.gmra.mrb[0].mxu0 %v3071
    %v5865 = vpop.f32.mrb[0].mxu0
    %v5866 = vadd.f32 0.0, %v5865
    %v5867 = vpop.f32.mrb[0].mxu0
    %v5868 = vpop.f32.mrb[0].mxu0
    %v5869 = vadd.f32 0.0, %v5868
    %v5870 = vpop.f32.mrb[0].mxu0
    %5871 = vdwg.mxu0
    %v5872 = vpack.c.bf16 %v5779, %v5777
    %5873 = vmatprep.subr.bf16.mxu0 0
    %5874 = vmatpush1.bf16.msra.mxu0 %v5872
    %5875 = vmatprep.subr.bf16.mxu0 0
    %5876 = vmatpush1.bf16.msra.mxu0 0
    %5877 = vmatprep.subr.bf16.mxu0 0
    %5878 = vmatpush1.bf16.msra.mxu0 0
    %5879 = vmatprep.subr.bf16.mxu0 0
    %5880 = vmatpush1.bf16.msra.mxu0 0
    %5881 = vmatprep.subr.bf16.mxu0 0
    %5882 = vmatpush1.bf16.msra.mxu0 0
    %5883 = vmatprep.subr.bf16.mxu0 0
    %5884 = vmatpush1.bf16.msra.mxu0 0
    %5885 = vmatprep.subr.bf16.mxu0 0
    %5886 = vmatpush1.bf16.msra.mxu0 0
    %5887 = vmatprep.subr.bf16.mxu0 0
    %5888 = vmatpush1.bf16.msra.mxu0 0
    %5889 = vmatprep.subr.bf16.mxu0 0
    %5890 = vmatpush1.bf16.msra.mxu0 0
    %5891 = vmatprep.subr.bf16.mxu0 0
    %5892 = vmatpush1.bf16.msra.mxu0 0
    %5893 = vmatprep.subr.bf16.mxu0 0
    %5894 = vmatpush1.bf16.msra.mxu0 0
    %5895 = vmatprep.subr.bf16.mxu0 0
    %5896 = vmatpush1.bf16.msra.mxu0 0
    %5897 = vmatprep.subr.bf16.mxu0 0
    %5898 = vmatpush1.bf16.msra.mxu0 0
    %5899 = vmatprep.subr.bf16.mxu0 0
    %5900 = vmatpush1.bf16.msra.mxu0 0
    %5901 = vmatprep.subr.bf16.mxu0 0
    %5902 = vmatpush1.bf16.msra.mxu0 0
    %5903 = vmatprep.subr.bf16.mxu0 0
    %5904 = vmatpush1.bf16.msra.mxu0 0
    %5905 = vmatprep.mubr.bf16.mxu0 0
    %5906 = vmatmul.mubr.bf16.gmra.mrb[0].mxu0 %v3071
    %v5907 = vpop.f32.mrb[0].mxu0
    %v5908 = vadd.f32 0.0, %v5907
    %v5909 = vpop.f32.mrb[0].mxu0
    %v5910 = vpop.f32.mrb[0].mxu0
    %v5911 = vadd.f32 0.0, %v5910
    %v5912 = vpop.f32.mrb[0].mxu0
    %5913 = vdwg.mxu0
    %v5914 = vmul.f32 %v5820, 0.5
    %v5915 = vmul.f32 %v5823, 0.5
    %v5916 = vfloor.f32 %v5914
    %v5917 = vfloor.f32 %v5915
    %v5918 = vmul.f32 %v5916, 2.0
    %v5919 = vmul.f32 %v5917, 2.0
    %v5920 = vsub.f32 %v5820, %v5918
    %v5921 = vsub.f32 %v5823, %v5919
    %v5922 = vmul.f32 %v5920, 2.0
    %v5923 = vmul.f32 %v5921, 2.0
    %v5924 = vsub.f32 1.0, %v5922
    %v5925 = vsub.f32 1.0, %v5923
    %vm5926 = vcmp.gt.f32.partialorder %v5866, 0.5
    %vm5927 = vcmp.gt.f32.partialorder %v5869, 0.5
    %v5928 = vmul.f32 %v5908, 1.442695
    %v5929 = vpow.pop %v5928
    %v5930 = vmul.f32 %v5911, 1.442695
    %v5931 = vpow.pop %v5930
    %v5932 = vmul.f32 %v5924, %v5929
    %v5933 = vmul.f32 %v5925, %v5931
    %v5934 = vsel %vm5926, 0.0, %v5932
    %v5935 = vsel %vm5927, 0.0, %v5933
    %v5936 = vpack.c.bf16 %v5935, %v5934
    %5937 = vmatprep.subr.bf16.mxu0 %v3802
    %5938 = vmatpush1.bf16.msra.mxu0 %v3801
    %5939 = vmatprep.subr.bf16.mxu0 %v3805
    %5940 = vmatpush1.bf16.msra.mxu0 %v3804
    %5941 = vmatprep.subr.bf16.mxu0 %v3808
    %5942 = vmatpush1.bf16.msra.mxu0 %v3807
    %5943 = vmatprep.subr.bf16.mxu0 %v3811
    %5944 = vmatpush1.bf16.msra.mxu0 %v3810
    %5945 = vmatprep.subr.bf16.mxu0 %v3814
    %5946 = vmatpush1.bf16.msra.mxu0 %v3813
    %5947 = vmatprep.subr.bf16.mxu0 %v3817
    %5948 = vmatpush1.bf16.msra.mxu0 %v3816
    %5949 = vmatprep.subr.bf16.mxu0 %v3820
    %5950 = vmatpush1.bf16.msra.mxu0 %v3819
    %5951 = vmatprep.subr.bf16.mxu0 %v3823
    %5952 = vmatpush1.bf16.msra.mxu0 %v3822
    %5953 = vmatprep.subr.bf16.mxu0 0
    %5954 = vmatpush1.bf16.msra.mxu0 0
    %5955 = vmatprep.subr.bf16.mxu0 0
    %5956 = vmatpush1.bf16.msra.mxu0 0
    %5957 = vmatprep.subr.bf16.mxu0 0
    %5958 = vmatpush1.bf16.msra.mxu0 0
    %5959 = vmatprep.subr.bf16.mxu0 0
    %5960 = vmatpush1.bf16.msra.mxu0 0
    %5961 = vmatprep.subr.bf16.mxu0 0
    %5962 = vmatpush1.bf16.msra.mxu0 0
    %5963 = vmatprep.subr.bf16.mxu0 0
    %5964 = vmatpush1.bf16.msra.mxu0 0
    %5965 = vmatprep.subr.bf16.mxu0 0
    %5966 = vmatpush1.bf16.msra.mxu0 0
    %5967 = vmatprep.subr.bf16.mxu0 0
    %5968 = vmatpush1.bf16.msra.mxu0 0
    %5969 = vmatprep.mubr.bf16.mxu0 0
    %5970 = vmatmul.mubr.bf16.gmra.mrb[0].mxu0 %v5936
    %v5971 = vpop.f32.mrb[0].mxu0
    %v5972 = vadd.f32 %v3709, %v5971
    %v5973 = vpop.f32.mrb[0].mxu0
    %v5974 = vadd.f32 %v3713, %v5973
    %v5975 = vpop.f32.mrb[0].mxu0
    %v5976 = vadd.f32 %v3709, %v5975
    %v5977 = vpop.f32.mrb[0].mxu0
    %v5978 = vadd.f32 %v3713, %v5977
    %5979 = vdwg.mxu0
    %5980 = vmatprep.subr.bf16.mxu0 0
    %5981 = vmatpush1.bf16.msra.mxu0 %v3803
    %5982 = vmatprep.subr.bf16.mxu0 0
    %5983 = vmatpush1.bf16.msra.mxu0 %v3806
    %5984 = vmatprep.subr.bf16.mxu0 0
    %5985 = vmatpush1.bf16.msra.mxu0 %v3809
    %5986 = vmatprep.subr.bf16.mxu0 0
    %5987 = vmatpush1.bf16.msra.mxu0 %v3812
    %5988 = vmatprep.subr.bf16.mxu0 0
    %5989 = vmatpush1.bf16.msra.mxu0 %v3815
    %5990 = vmatprep.subr.bf16.mxu0 0
    %5991 = vmatpush1.bf16.msra.mxu0 %v3818
    %5992 = vmatprep.subr.bf16.mxu0 0
    %5993 = vmatpush1.bf16.msra.mxu0 %v3821
    %5994 = vmatprep.subr.bf16.mxu0 0
    %5995 = vmatpush1.bf16.msra.mxu0 %v3824
    %5996 = vmatprep.subr.bf16.mxu0 0
    %5997 = vmatpush1.bf16.msra.mxu0 0
    %5998 = vmatprep.subr.bf16.mxu0 0
    %5999 = vmatpush1.bf16.msra.mxu0 0
    %6000 = vmatprep.subr.bf16.mxu0 0
    %6001 = vmatpush1.bf16.msra.mxu0 0
    %6002 = vmatprep.subr.bf16.mxu0 0
    %6003 = vmatpush1.bf16.msra.mxu0 0
    %6004 = vmatprep.subr.bf16.mxu0 0
    %6005 = vmatpush1.bf16.msra.mxu0 0
    %6006 = vmatprep.subr.bf16.mxu0 0
    %6007 = vmatpush1.bf16.msra.mxu0 0
    %6008 = vmatprep.subr.bf16.mxu0 0
    %6009 = vmatpush1.bf16.msra.mxu0 0
    %6010 = vmatprep.subr.bf16.mxu0 0
    %6011 = vmatpush1.bf16.msra.mxu0 0
    %6012 = vmatprep.mubr.bf16.mxu0 0
    %6013 = vmatmul.mubr.bf16.gmra.mrb[0].mxu0 %v5936
    %v6014 = vpop.f32.mrb[0].mxu0
    %v6015 = vadd.f32 %v3717, %v6014
    %v6016 = vpop.f32.mrb[0].mxu0
    %v6017 = vpop.f32.mrb[0].mxu0
    %v6018 = vadd.f32 %v3717, %v6017
    %v6019 = vpop.f32.mrb[0].mxu0
    %6020 = vdwg.mxu0
    %6021 = vmatprep.subr.bf16.mxu0 %v4030
    %6022 = vmatpush1.bf16.msra.mxu0 %v4029
    %6023 = vmatprep.subr.bf16.mxu0 %v4033
    %6024 = vmatpush1.bf16.msra.mxu0 %v4032
    %6025 = vmatprep.subr.bf16.mxu0 %v4036
    %6026 = vmatpush1.bf16.msra.mxu0 %v4035
    %6027 = vmatprep.subr.bf16.mxu0 %v4039
    %6028 = vmatpush1.bf16.msra.mxu0 %v4038
    %6029 = vmatprep.subr.bf16.mxu0 %v4042
    %6030 = vmatpush1.bf16.msra.mxu0 %v4041
    %6031 = vmatprep.subr.bf16.mxu0 %v4045
    %6032 = vmatpush1.bf16.msra.mxu0 %v4044
    %6033 = vmatprep.subr.bf16.mxu0 %v4048
    %6034 = vmatpush1.bf16.msra.mxu0 %v4047
    %6035 = vmatprep.subr.bf16.mxu0 %v4051
    %6036 = vmatpush1.bf16.msra.mxu0 %v4050
    %6037 = vmatprep.subr.bf16.mxu0 0
    %6038 = vmatpush1.bf16.msra.mxu0 0
    %6039 = vmatprep.subr.bf16.mxu0 0
    %6040 = vmatpush1.bf16.msra.mxu0 0
    %6041 = vmatprep.subr.bf16.mxu0 0
    %6042 = vmatpush1.bf16.msra.mxu0 0
    %6043 = vmatprep.subr.bf16.mxu0 0
    %6044 = vmatpush1.bf16.msra.mxu0 0
    %6045 = vmatprep.subr.bf16.mxu0 0
    %6046 = vmatpush1.bf16.msra.mxu0 0
    %6047 = vmatprep.subr.bf16.mxu0 0
    %6048 = vmatpush1.bf16.msra.mxu0 0
    %6049 = vmatprep.subr.bf16.mxu0 0
    %6050 = vmatpush1.bf16.msra.mxu0 0
    %6051 = vmatprep.subr.bf16.mxu0 0
    %6052 = vmatpush1.bf16.msra.mxu0 0
    %6053 = vmatprep.mubr.bf16.mxu0 0
    %6054 = vmatmul.mubr.bf16.gmra.mrb[0].mxu0 %v5678
    %v6055 = vpop.f32.mrb[0].mxu0
    %v6056 = vadd.f32 %v3937, %v6055
    %v6057 = vpop.f32.mrb[0].mxu0
    %v6058 = vadd.f32 %v3941, %v6057
    %v6059 = vpop.f32.mrb[0].mxu0
    %v6060 = vadd.f32 %v3937, %v6059
    %v6061 = vpop.f32.mrb[0].mxu0
    %v6062 = vadd.f32 %v3941, %v6061
    %6063 = vdwg.mxu0
    %6064 = vmatprep.subr.bf16.mxu0 0
    %6065 = vmatpush1.bf16.msra.mxu0 %v4031
    %6066 = vmatprep.subr.bf16.mxu0 0
    %6067 = vmatpush1.bf16.msra.mxu0 %v4034
    %6068 = vmatprep.subr.bf16.mxu0 0
    %6069 = vmatpush1.bf16.msra.mxu0 %v4037
    %6070 = vmatprep.subr.bf16.mxu0 0
    %6071 = vmatpush1.bf16.msra.mxu0 %v4040
    %6072 = vmatprep.subr.bf16.mxu0 0
    %6073 = vmatpush1.bf16.msra.mxu0 %v4043
    %6074 = vmatprep.subr.bf16.mxu0 0
    %6075 = vmatpush1.bf16.msra.mxu0 %v4046
    %6076 = vmatprep.subr.bf16.mxu0 0
    %6077 = vmatpush1.bf16.msra.mxu0 %v4049
    %6078 = vmatprep.subr.bf16.mxu0 0
    %6079 = vmatpush1.bf16.msra.mxu0 %v4052
    %6080 = vmatprep.subr.bf16.mxu0 0
    %6081 = vmatpush1.bf16.msra.mxu0 0
    %6082 = vmatprep.subr.bf16.mxu0 0
    %6083 = vmatpush1.bf16.msra.mxu0 0
    %6084 = vmatprep.subr.bf16.mxu0 0
    %6085 = vmatpush1.bf16.msra.mxu0 0
    %6086 = vmatprep.subr.bf16.mxu0 0
    %6087 = vmatpush1.bf16.msra.mxu0 0
    %6088 = vmatprep.subr.bf16.mxu0 0
    %6089 = vmatpush1.bf16.msra.mxu0 0
    %6090 = vmatprep.subr.bf16.mxu0 0
    %6091 = vmatpush1.bf16.msra.mxu0 0
    %6092 = vmatprep.subr.bf16.mxu0 0
    %6093 = vmatpush1.bf16.msra.mxu0 0
    %6094 = vmatprep.subr.bf16.mxu0 0
    %6095 = vmatpush1.bf16.msra.mxu0 0
    %6096 = vmatprep.mubr.bf16.mxu0 0
    %6097 = vmatmul.mubr.bf16.gmra.mrb[0].mxu0 %v5678
    %v6098 = vpop.f32.mrb[0].mxu0
    %v6099 = vadd.f32 %v3945, %v6098
    %v6100 = vpop.f32.mrb[0].mxu0
    %v6101 = vpop.f32.mrb[0].mxu0
    %v6102 = vadd.f32 %v3945, %v6101
    %v6103 = vpop.f32.mrb[0].mxu0
    %6104 = vdwg.mxu0
    %v6105 = vadd.f32 %v5972, %v6056
    %v6106 = vadd.f32 %v5976, %v6060
    %v6107 = vsub.f32 0.0, %v6105
    %v6108 = vsub.f32 0.0, %v6106
    %v6109 = vmul.f32 %v6107, 1.442695
    %v6110 = vpow.pop %v6109
    %v6111 = vmul.f32 %v6108, 1.442695
    %v6112 = vpow.pop %v6111
    %v6113 = vadd.f32 %v6110, 1.0
    %v6114 = vadd.f32 %v6112, 1.0
    %v6115 = vrcp.pop %v6113
    %v6116 = vmul.f32 1.0, %v6115
    %v6117 = vrcp.pop %v6114
    %v6118 = vmul.f32 1.0, %v6117
    %v6119 = vadd.f32 %v5974, %v6058
    %v6120 = vadd.f32 %v5978, %v6062
    %v6121 = vsub.f32 0.0, %v6119
    %v6122 = vsub.f32 0.0, %v6120
    %v6123 = vmul.f32 %v6121, 1.442695
    %v6124 = vpow.pop %v6123
    %v6125 = vmul.f32 %v6122, 1.442695
    %v6126 = vpow.pop %v6125
    %v6127 = vadd.f32 %v6124, 1.0
    %v6128 = vadd.f32 %v6126, 1.0
    %v6129 = vrcp.pop %v6127
    %v6130 = vmul.f32 1.0, %v6129
    %v6131 = vrcp.pop %v6128
    %v6132 = vmul.f32 1.0, %v6131
    %v6133 = vmul.f32 %v6116, %v6099
    %v6134 = vmul.f32 %v6118, %v6102
    %v6135 = vadd.f32 %v6015, %v6133
    %v6136 = vadd.f32 %v6018, %v6134
    %v6137 = vtanh.pop %v6135
    %v6138 = vtanh.pop %v6136
    %v6139 = vsub.f32 1.0, %v6130
    %v6140 = vsub.f32 1.0, %v6132
    %v6141 = vmul.f32 %v6139, %v6137
    %v6142 = vmul.f32 %v6140, %v6138
    %v6143 = vmul.f32 %v6130, %v5659
    %v6144 = vmul.f32 %v6132, %v5660
    %v6145 = vadd.f32 %v6141, %v6143
    %v6146 = vadd.f32 %v6142, %v6144
    %v6147 = vld [vmem:[%s39] sm:$0xf]
    %v6148 = vld [vmem:[%s39 + $0x4] sm:$0xf]
    %v6149 = vld [vmem:[%s39 + $0x8] sm:$0xf]
    %v6150 = vld [vmem:[%s39 + $0xc] sm:$0xf]
    %v6151 = vld [vmem:[%s39 + $0x10] sm:$0xf]
    %v6152 = vld [vmem:[%s39 + $0x14] sm:$0xf]
    %v6153 = vld [vmem:[%s39 + $0x18] sm:$0xf]
    %v6154 = vld [vmem:[%s39 + $0x1c] sm:$0xf]
    %v6155 = vld [vmem:[%s39 + $0x20] sm:$0xf]
    %v6156 = vld [vmem:[%s39 + $0x24] sm:$0xf]
    %v6157 = vld [vmem:[%s39 + $0x28] sm:$0xf]
    %v6158 = vld [vmem:[%s39 + $0x2c] sm:$0xf]
    %v6159 = vld [vmem:[%s39 + $0x30] sm:$0xf]
    %v6160 = vld [vmem:[%s39 + $0x34] sm:$0xf]
    %v6161 = vld [vmem:[%s39 + $0x38] sm:$0xf]
    %v6162 = vld [vmem:[%s39 + $0x3c] sm:$0xf]
    %v6163 = vpack.c.bf16 %v6146, %v6145
    %v6164 = vld [vmem:[%s41] sm:$0x1]
    %v6166 = vlaneseq
    %v6167 = vshrl.u32 %v6166, 7
    %v6168 = vsub.s32 0, %v6167
    %v6169 = vrot.slane %v6164, %v6168
    %v6187 = vunpack.c.l.b16 %v6147
    %v6188 = vunpack.c.l.b16 %v6148
    %v6189 = vunpack.c.l.b16 %v6149
    %v6190 = vunpack.c.l.b16 %v6150
    %v6191 = vunpack.c.l.b16 %v6151
    %v6192 = vunpack.c.l.b16 %v6152
    %v6193 = vunpack.c.l.b16 %v6153
    %v6194 = vunpack.c.l.b16 %v6154
    %v6195 = vunpack.c.l.b16 %v6155
    %v6196 = vunpack.c.l.b16 %v6156
    %v6197 = vunpack.c.l.b16 %v6157
    %v6198 = vunpack.c.l.b16 %v6158
    %v6199 = vunpack.c.l.b16 %v6159
    %v6200 = vunpack.c.l.b16 %v6160
    %v6201 = vunpack.c.l.b16 %v6161
    %v6202 = vunpack.c.l.b16 %v6162
    %v6203 = vpack.c.b16 %v6188, %v6187
    %v6204 = vpack.c.b16 %v6190, %v6189
    %v6205 = vpack.c.b16 %v6192, %v6191
    %v6206 = vpack.c.b16 %v6194, %v6193
    %v6207 = vpack.c.b16 %v6196, %v6195
    %v6208 = vpack.c.b16 %v6198, %v6197
    %v6209 = vpack.c.b16 %v6200, %v6199
    %v6210 = vpack.c.b16 %v6202, %v6201
    %6219 = vmatprep.subr.bf16.mxu0 0
    %6220 = vmatpush1.bf16.msra.mxu0 %v6203
    %6221 = vmatprep.subr.bf16.mxu0 0
    %6222 = vmatpush1.bf16.msra.mxu0 %v6204
    %6223 = vmatprep.subr.bf16.mxu0 0
    %6224 = vmatpush1.bf16.msra.mxu0 %v6205
    %6225 = vmatprep.subr.bf16.mxu0 0
    %6226 = vmatpush1.bf16.msra.mxu0 %v6206
    %6227 = vmatprep.subr.bf16.mxu0 0
    %6228 = vmatpush1.bf16.msra.mxu0 %v6207
    %6229 = vmatprep.subr.bf16.mxu0 0
    %6230 = vmatpush1.bf16.msra.mxu0 %v6208
    %6231 = vmatprep.subr.bf16.mxu0 0
    %6232 = vmatpush1.bf16.msra.mxu0 %v6209
    %6233 = vmatprep.subr.bf16.mxu0 0
    %6234 = vmatpush1.bf16.msra.mxu0 %v6210
    %6235 = vmatprep.subr.bf16.mxu0 0
    %6236 = vmatpush1.bf16.msra.mxu0 0
    %6237 = vmatprep.subr.bf16.mxu0 0
    %6238 = vmatpush1.bf16.msra.mxu0 0
    %6239 = vmatprep.subr.bf16.mxu0 0
    %6240 = vmatpush1.bf16.msra.mxu0 0
    %6241 = vmatprep.subr.bf16.mxu0 0
    %6242 = vmatpush1.bf16.msra.mxu0 0
    %6243 = vmatprep.subr.bf16.mxu0 0
    %6244 = vmatpush1.bf16.msra.mxu0 0
    %6245 = vmatprep.subr.bf16.mxu0 0
    %6246 = vmatpush1.bf16.msra.mxu0 0
    %6247 = vmatprep.subr.bf16.mxu0 0
    %6248 = vmatpush1.bf16.msra.mxu0 0
    %6249 = vmatprep.subr.bf16.mxu0 0
    %6250 = vmatpush1.bf16.msra.mxu0 0
    %6251 = vmatprep.mubr.bf16.mxu0 0
    %6252 = vmatmul.mubr.bf16.gmra.mrb[0].mxu0 %v6163
    %v6253 = vpop.f32.mrb[0].mxu0
    %v6254 = vadd.f32 %v6169, %v6253
    %v6255 = vpop.f32.mrb[0].mxu0
    %v6256 = vpop.f32.mrb[0].mxu0
    %v6257 = vadd.f32 %v6169, %v6256
    %v6258 = vpop.f32.mrb[0].mxu0
    %6259 = vdwg.mxu0
    %v6260 = vmax.f32 %v6254, 0.0
    %v6261 = vmax.f32 %v6257, 0.0
    %v6262 = vld [vmem:[#allocation28] sm:$0xf]
    %v6263 = vld [vmem:[#allocation28 + $0x4] sm:$0xf]
    %v6264 = vld [vmem:[#allocation28 + $0x8] sm:$0xf]
    %v6265 = vld [vmem:[#allocation28 + $0xc] sm:$0xf]
    %v6266 = vld [vmem:[#allocation28 + $0x10] sm:$0xf]
    %v6267 = vld [vmem:[#allocation28 + $0x14] sm:$0xf]
    %v6268 = vld [vmem:[#allocation28 + $0x18] sm:$0xf]
    %v6269 = vld [vmem:[#allocation28 + $0x1c] sm:$0xf]
    %v6270 = vld [vmem:[#allocation28 + $0x20] sm:$0xf]
    %v6271 = vld [vmem:[#allocation28 + $0x24] sm:$0xf]
    %v6272 = vld [vmem:[#allocation28 + $0x28] sm:$0xf]
    %v6273 = vld [vmem:[#allocation28 + $0x2c] sm:$0xf]
    %v6274 = vld [vmem:[#allocation28 + $0x30] sm:$0xf]
    %v6275 = vld [vmem:[#allocation28 + $0x34] sm:$0xf]
    %v6276 = vld [vmem:[#allocation28 + $0x38] sm:$0xf]
    %v6277 = vld [vmem:[#allocation28 + $0x3c] sm:$0xf]
    %v6278 = vpack.c.bf16 %v6261, %v6260
    %v6281 = vunpack.c.l.b16 %v428
    %v6282 = vunpack.c.l.b16 %v429
    %v6283 = vpack.c.b16 %v6282, %v6281
    %v6285 = vsel %vm433, %v6283, 0
    %6287 = vmatprep.subr.bf16.mxu0 0
    %6288 = vmatpush1.bf16.msra.mxu0 %v6278
    %6289 = vmatprep.subr.bf16.mxu0 0
    %6290 = vmatpush1.bf16.msra.mxu0 0
    %6291 = vmatprep.subr.bf16.mxu0 0
    %6292 = vmatpush1.bf16.msra.mxu0 0
    %6293 = vmatprep.subr.bf16.mxu0 0
    %6294 = vmatpush1.bf16.msra.mxu0 0
    %6295 = vmatprep.subr.bf16.mxu0 0
    %6296 = vmatpush1.bf16.msra.mxu0 0
    %6297 = vmatprep.subr.bf16.mxu0 0
    %6298 = vmatpush1.bf16.msra.mxu0 0
    %6299 = vmatprep.subr.bf16.mxu0 0
    %6300 = vmatpush1.bf16.msra.mxu0 0
    %6301 = vmatprep.subr.bf16.mxu0 0
    %6302 = vmatpush1.bf16.msra.mxu0 0
    %6303 = vmatprep.subr.bf16.mxu0 0
    %6304 = vmatpush1.bf16.msra.mxu0 0
    %6305 = vmatprep.subr.bf16.mxu0 0
    %6306 = vmatpush1.bf16.msra.mxu0 0
    %6307 = vmatprep.subr.bf16.mxu0 0
    %6308 = vmatpush1.bf16.msra.mxu0 0
    %6309 = vmatprep.subr.bf16.mxu0 0
    %6310 = vmatpush1.bf16.msra.mxu0 0
    %6311 = vmatprep.subr.bf16.mxu0 0
    %6312 = vmatpush1.bf16.msra.mxu0 0
    %6313 = vmatprep.subr.bf16.mxu0 0
    %6314 = vmatpush1.bf16.msra.mxu0 0
    %6315 = vmatprep.subr.bf16.mxu0 0
    %6316 = vmatpush1.bf16.msra.mxu0 0
    %6317 = vmatprep.subr.bf16.mxu0 0
    %6318 = vmatpush1.bf16.msra.mxu0 0
    %6319 = vmatprep.mubr.bf16.mxu0 0
    %6320 = vmatmul.mubr.bf16.gmra.mrb[0].mxu0 %v6285
    %v6321 = vpop.f32.mrb[0].mxu0
    %v6322 = vadd.f32 0.0, %v6321
    %v6323 = vpop.f32.mrb[0].mxu0
    %v6324 = vpop.f32.mrb[0].mxu0
    %v6325 = vadd.f32 0.0, %v6324
    %v6326 = vpop.f32.mrb[0].mxu0
    %6327 = vdwg.mxu0
    %s6328 = scalar_lea.vmem [#allocation28], 64
    %v6329 = vld [vmem:[%s6328] sm:$0xf]
    %v6330 = vld [vmem:[%s6328 + $0x4] sm:$0xf]
    %v6331 = vld [vmem:[%s6328 + $0x8] sm:$0xf]
    %v6332 = vld [vmem:[%s6328 + $0xc] sm:$0xf]
    %v6333 = vld [vmem:[%s6328 + $0x10] sm:$0xf]
    %v6334 = vld [vmem:[%s6328 + $0x14] sm:$0xf]
    %v6335 = vld [vmem:[%s6328 + $0x18] sm:$0xf]
    %v6336 = vld [vmem:[%s6328 + $0x1c] sm:$0xf]
    %v6337 = vld [vmem:[%s6328 + $0x20] sm:$0xf]
    %v6338 = vld [vmem:[%s6328 + $0x24] sm:$0xf]
    %v6339 = vld [vmem:[%s6328 + $0x28] sm:$0xf]
    %v6340 = vld [vmem:[%s6328 + $0x2c] sm:$0xf]
    %v6341 = vld [vmem:[%s6328 + $0x30] sm:$0xf]
    %v6342 = vld [vmem:[%s6328 + $0x34] sm:$0xf]
    %v6343 = vld [vmem:[%s6328 + $0x38] sm:$0xf]
    %v6344 = vld [vmem:[%s6328 + $0x3c] sm:$0xf]
    %v6345 = vpack.c.bf16 %v6325, %v6322
    %v6362 = vunpack.c.l.b16 %v6329
    %v6363 = vunpack.c.l.b16 %v6330
    %v6364 = vunpack.c.l.b16 %v6331
    %v6365 = vunpack.c.l.b16 %v6332
    %v6366 = vunpack.c.l.b16 %v6333
    %v6367 = vunpack.c.l.b16 %v6334
    %v6368 = vunpack.c.l.b16 %v6335
    %v6369 = vunpack.c.l.b16 %v6336
    %v6370 = vunpack.c.l.b16 %v6337
    %v6371 = vunpack.c.l.b16 %v6338
    %v6372 = vunpack.c.l.b16 %v6339
    %v6373 = vunpack.c.l.b16 %v6340
    %v6374 = vunpack.c.l.b16 %v6341
    %v6375 = vunpack.c.l.b16 %v6342
    %v6376 = vunpack.c.l.b16 %v6343
    %v6377 = vunpack.c.l.b16 %v6344
    %v6378 = vpack.c.b16 %v6363, %v6362
    %v6379 = vpack.c.b16 %v6365, %v6364
    %v6380 = vpack.c.b16 %v6367, %v6366
    %v6381 = vpack.c.b16 %v6369, %v6368
    %v6382 = vpack.c.b16 %v6371, %v6370
    %v6383 = vpack.c.b16 %v6373, %v6372
    %v6384 = vpack.c.b16 %v6375, %v6374
    %v6385 = vpack.c.b16 %v6377, %v6376
    %6394 = vmatprep.subr.bf16.mxu0 0
    %6395 = vmatpush1.bf16.msra.mxu0 %v6378
    %6396 = vmatprep.subr.bf16.mxu0 0
    %6397 = vmatpush1.bf16.msra.mxu0 %v6379
    %6398 = vmatprep.subr.bf16.mxu0 0
    %6399 = vmatpush1.bf16.msra.mxu0 %v6380
    %6400 = vmatprep.subr.bf16.mxu0 0
    %6401 = vmatpush1.bf16.msra.mxu0 %v6381
    %6402 = vmatprep.subr.bf16.mxu0 0
    %6403 = vmatpush1.bf16.msra.mxu0 %v6382
    %6404 = vmatprep.subr.bf16.mxu0 0
    %6405 = vmatpush1.bf16.msra.mxu0 %v6383
    %6406 = vmatprep.subr.bf16.mxu0 0
    %6407 = vmatpush1.bf16.msra.mxu0 %v6384
    %6408 = vmatprep.subr.bf16.mxu0 0
    %6409 = vmatpush1.bf16.msra.mxu0 %v6385
    %6410 = vmatprep.subr.bf16.mxu0 0
    %6411 = vmatpush1.bf16.msra.mxu0 0
    %6412 = vmatprep.subr.bf16.mxu0 0
    %6413 = vmatpush1.bf16.msra.mxu0 0
    %6414 = vmatprep.subr.bf16.mxu0 0
    %6415 = vmatpush1.bf16.msra.mxu0 0
    %6416 = vmatprep.subr.bf16.mxu0 0
    %6417 = vmatpush1.bf16.msra.mxu0 0
    %6418 = vmatprep.subr.bf16.mxu0 0
    %6419 = vmatpush1.bf16.msra.mxu0 0
    %6420 = vmatprep.subr.bf16.mxu0 0
    %6421 = vmatpush1.bf16.msra.mxu0 0
    %6422 = vmatprep.subr.bf16.mxu0 0
    %6423 = vmatpush1.bf16.msra.mxu0 0
    %6424 = vmatprep.subr.bf16.mxu0 0
    %6425 = vmatpush1.bf16.msra.mxu0 0
    %6426 = vmatprep.mubr.bf16.mxu0 0
    %6427 = vmatmul.mubr.bf16.gmra.mrb[0].mxu0 %v6345
    %v6428 = vpop.f32.mrb[0].mxu0
    %v6429 = vadd.f32 0.0, %v6428
    %v6430 = vpop.f32.mrb[0].mxu0
    %v6431 = vpop.f32.mrb[0].mxu0
    %v6432 = vadd.f32 0.0, %v6431
    %v6433 = vpop.f32.mrb[0].mxu0
    %6434 = vdwg.mxu0
    %v6451 = vunpack.c.l.b16 %v6262
    %v6452 = vunpack.c.l.b16 %v6263
    %v6453 = vunpack.c.l.b16 %v6264
    %v6454 = vunpack.c.l.b16 %v6265
    %v6455 = vunpack.c.l.b16 %v6266
    %v6456 = vunpack.c.l.b16 %v6267
    %v6457 = vunpack.c.l.b16 %v6268
    %v6458 = vunpack.c.l.b16 %v6269
    %v6459 = vunpack.c.l.b16 %v6270
    %v6460 = vunpack.c.l.b16 %v6271
    %v6461 = vunpack.c.l.b16 %v6272
    %v6462 = vunpack.c.l.b16 %v6273
    %v6463 = vunpack.c.l.b16 %v6274
    %v6464 = vunpack.c.l.b16 %v6275
    %v6465 = vunpack.c.l.b16 %v6276
    %v6466 = vunpack.c.l.b16 %v6277
    %v6467 = vpack.c.b16 %v6452, %v6451
    %v6468 = vpack.c.b16 %v6454, %v6453
    %v6469 = vpack.c.b16 %v6456, %v6455
    %v6470 = vpack.c.b16 %v6458, %v6457
    %v6471 = vpack.c.b16 %v6460, %v6459
    %v6472 = vpack.c.b16 %v6462, %v6461
    %v6473 = vpack.c.b16 %v6464, %v6463
    %v6474 = vpack.c.b16 %v6466, %v6465
    %6483 = vmatprep.subr.bf16.mxu0 0
    %6484 = vmatpush1.bf16.msra.mxu0 %v6467
    %6485 = vmatprep.subr.bf16.mxu0 0
    %6486 = vmatpush1.bf16.msra.mxu0 %v6468
    %6487 = vmatprep.subr.bf16.mxu0 0
    %6488 = vmatpush1.bf16.msra.mxu0 %v6469
    %6489 = vmatprep.subr.bf16.mxu0 0
    %6490 = vmatpush1.bf16.msra.mxu0 %v6470
    %6491 = vmatprep.subr.bf16.mxu0 0
    %6492 = vmatpush1.bf16.msra.mxu0 %v6471
    %6493 = vmatprep.subr.bf16.mxu0 0
    %6494 = vmatpush1.bf16.msra.mxu0 %v6472
    %6495 = vmatprep.subr.bf16.mxu0 0
    %6496 = vmatpush1.bf16.msra.mxu0 %v6473
    %6497 = vmatprep.subr.bf16.mxu0 0
    %6498 = vmatpush1.bf16.msra.mxu0 %v6474
    %6499 = vmatprep.subr.bf16.mxu0 0
    %6500 = vmatpush1.bf16.msra.mxu0 0
    %6501 = vmatprep.subr.bf16.mxu0 0
    %6502 = vmatpush1.bf16.msra.mxu0 0
    %6503 = vmatprep.subr.bf16.mxu0 0
    %6504 = vmatpush1.bf16.msra.mxu0 0
    %6505 = vmatprep.subr.bf16.mxu0 0
    %6506 = vmatpush1.bf16.msra.mxu0 0
    %6507 = vmatprep.subr.bf16.mxu0 0
    %6508 = vmatpush1.bf16.msra.mxu0 0
    %6509 = vmatprep.subr.bf16.mxu0 0
    %6510 = vmatpush1.bf16.msra.mxu0 0
    %6511 = vmatprep.subr.bf16.mxu0 0
    %6512 = vmatpush1.bf16.msra.mxu0 0
    %6513 = vmatprep.subr.bf16.mxu0 0
    %6514 = vmatpush1.bf16.msra.mxu0 0
    %6515 = vmatprep.mubr.bf16.mxu0 0
    %6516 = vmatmul.mubr.bf16.gmra.mrb[0].mxu0 %v6278
    %v6517 = vpop.f32.mrb[0].mxu0
    %v6518 = vadd.f32 %v6429, %v6517
    %v6519 = vpop.f32.mrb[0].mxu0
    %v6520 = vpop.f32.mrb[0].mxu0
    %v6521 = vadd.f32 %v6432, %v6520
    %v6522 = vpop.f32.mrb[0].mxu0
    %6523 = vdwg.mxu0
    %6524 = vmatprep.subr.bf16.mxu0 0
    %6525 = vmatpush1.bf16.msra.mxu0 %v6345
    %6526 = vmatprep.subr.bf16.mxu0 0
    %6527 = vmatpush1.bf16.msra.mxu0 0
    %6528 = vmatprep.subr.bf16.mxu0 0
    %6529 = vmatpush1.bf16.msra.mxu0 0
    %6530 = vmatprep.subr.bf16.mxu0 0
    %6531 = vmatpush1.bf16.msra.mxu0 0
    %6532 = vmatprep.subr.bf16.mxu0 0
    %6533 = vmatpush1.bf16.msra.mxu0 0
    %6534 = vmatprep.subr.bf16.mxu0 0
    %6535 = vmatpush1.bf16.msra.mxu0 0
    %6536 = vmatprep.subr.bf16.mxu0 0
    %6537 = vmatpush1.bf16.msra.mxu0 0
    %6538 = vmatprep.subr.bf16.mxu0 0
    %6539 = vmatpush1.bf16.msra.mxu0 0
    %6540 = vmatprep.subr.bf16.mxu0 0
    %6541 = vmatpush1.bf16.msra.mxu0 0
    %6542 = vmatprep.subr.bf16.mxu0 0
    %6543 = vmatpush1.bf16.msra.mxu0 0
    %6544 = vmatprep.subr.bf16.mxu0 0
    %6545 = vmatpush1.bf16.msra.mxu0 0
    %6546 = vmatprep.subr.bf16.mxu0 0
    %6547 = vmatpush1.bf16.msra.mxu0 0
    %6548 = vmatprep.subr.bf16.mxu0 0
    %6549 = vmatpush1.bf16.msra.mxu0 0
    %6550 = vmatprep.subr.bf16.mxu0 0
    %6551 = vmatpush1.bf16.msra.mxu0 0
    %6552 = vmatprep.subr.bf16.mxu0 0
    %6553 = vmatpush1.bf16.msra.mxu0 0
    %6554 = vmatprep.subr.bf16.mxu0 0
    %6555 = vmatpush1.bf16.msra.mxu0 0
    %6556 = vmatprep.mubr.bf16.mxu0 0
    %6557 = vmatmul.mubr.bf16.gmra.mrb[0].mxu0 %v6285
    %v6558 = vpop.f32.mrb[0].mxu0
    %v6559 = vadd.f32 0.0, %v6558
    %v6560 = vpop.f32.mrb[0].mxu0
    %v6561 = vpop.f32.mrb[0].mxu0
    %v6562 = vadd.f32 0.0, %v6561
    %v6563 = vpop.f32.mrb[0].mxu0
    %6564 = vdwg.mxu0
    %s6565 = scalar_lea.vmem [#allocation28], 128
    %v6566 = vld [vmem:[%s6565] sm:$0xf]
    %v6567 = vld [vmem:[%s6565 + $0x4] sm:$0xf]
    %v6568 = vld [vmem:[%s6565 + $0x8] sm:$0xf]
    %v6569 = vld [vmem:[%s6565 + $0xc] sm:$0xf]
    %v6570 = vld [vmem:[%s6565 + $0x10] sm:$0xf]
    %v6571 = vld [vmem:[%s6565 + $0x14] sm:$0xf]
    %v6572 = vld [vmem:[%s6565 + $0x18] sm:$0xf]
    %v6573 = vld [vmem:[%s6565 + $0x1c] sm:$0xf]
    %v6574 = vld [vmem:[%s6565 + $0x20] sm:$0xf]
    %v6575 = vld [vmem:[%s6565 + $0x24] sm:$0xf]
    %v6576 = vld [vmem:[%s6565 + $0x28] sm:$0xf]
    %v6577 = vld [vmem:[%s6565 + $0x2c] sm:$0xf]
    %v6578 = vld [vmem:[%s6565 + $0x30] sm:$0xf]
    %v6579 = vld [vmem:[%s6565 + $0x34] sm:$0xf]
    %v6580 = vld [vmem:[%s6565 + $0x38] sm:$0xf]
    %v6581 = vld [vmem:[%s6565 + $0x3c] sm:$0xf]
    %v6582 = vpack.c.bf16 %v6562, %v6559
    %v6599 = vunpack.c.l.b16 %v6566
    %v6600 = vunpack.c.l.b16 %v6567
    %v6601 = vunpack.c.l.b16 %v6568
    %v6602 = vunpack.c.l.b16 %v6569
    %v6603 = vunpack.c.l.b16 %v6570
    %v6604 = vunpack.c.l.b16 %v6571
    %v6605 = vunpack.c.l.b16 %v6572
    %v6606 = vunpack.c.l.b16 %v6573
    %v6607 = vunpack.c.l.b16 %v6574
    %v6608 = vunpack.c.l.b16 %v6575
    %v6609 = vunpack.c.l.b16 %v6576
    %v6610 = vunpack.c.l.b16 %v6577
    %v6611 = vunpack.c.l.b16 %v6578
    %v6612 = vunpack.c.l.b16 %v6579
    %v6613 = vunpack.c.l.b16 %v6580
    %v6614 = vunpack.c.l.b16 %v6581
    %v6615 = vpack.c.b16 %v6600, %v6599
    %v6616 = vpack.c.b16 %v6602, %v6601
    %v6617 = vpack.c.b16 %v6604, %v6603
    %v6618 = vpack.c.b16 %v6606, %v6605
    %v6619 = vpack.c.b16 %v6608, %v6607
    %v6620 = vpack.c.b16 %v6610, %v6609
    %v6621 = vpack.c.b16 %v6612, %v6611
    %v6622 = vpack.c.b16 %v6614, %v6613
    %6631 = vmatprep.subr.bf16.mxu0 0
    %6632 = vmatpush1.bf16.msra.mxu0 %v6615
    %6633 = vmatprep.subr.bf16.mxu0 0
    %6634 = vmatpush1.bf16.msra.mxu0 %v6616
    %6635 = vmatprep.subr.bf16.mxu0 0
    %6636 = vmatpush1.bf16.msra.mxu0 %v6617
    %6637 = vmatprep.subr.bf16.mxu0 0
    %6638 = vmatpush1.bf16.msra.mxu0 %v6618
    %6639 = vmatprep.subr.bf16.mxu0 0
    %6640 = vmatpush1.bf16.msra.mxu0 %v6619
    %6641 = vmatprep.subr.bf16.mxu0 0
    %6642 = vmatpush1.bf16.msra.mxu0 %v6620
    %6643 = vmatprep.subr.bf16.mxu0 0
    %6644 = vmatpush1.bf16.msra.mxu0 %v6621
    %6645 = vmatprep.subr.bf16.mxu0 0
    %6646 = vmatpush1.bf16.msra.mxu0 %v6622
    %6647 = vmatprep.subr.bf16.mxu0 0
    %6648 = vmatpush1.bf16.msra.mxu0 0
    %6649 = vmatprep.subr.bf16.mxu0 0
    %6650 = vmatpush1.bf16.msra.mxu0 0
    %6651 = vmatprep.subr.bf16.mxu0 0
    %6652 = vmatpush1.bf16.msra.mxu0 0
    %6653 = vmatprep.subr.bf16.mxu0 0
    %6654 = vmatpush1.bf16.msra.mxu0 0
    %6655 = vmatprep.subr.bf16.mxu0 0
    %6656 = vmatpush1.bf16.msra.mxu0 0
    %6657 = vmatprep.subr.bf16.mxu0 0
    %6658 = vmatpush1.bf16.msra.mxu0 0
    %6659 = vmatprep.subr.bf16.mxu0 0
    %6660 = vmatpush1.bf16.msra.mxu0 0
    %6661 = vmatprep.subr.bf16.mxu0 0
    %6662 = vmatpush1.bf16.msra.mxu0 0
    %6663 = vmatprep.mubr.bf16.mxu0 0
    %6664 = vmatmul.mubr.bf16.gmra.mrb[0].mxu0 %v6582
    %v6665 = vpop.f32.mrb[0].mxu0
    %v6666 = vadd.f32 0.0, %v6665
    %v6667 = vpop.f32.mrb[0].mxu0
    %v6668 = vpop.f32.mrb[0].mxu0
    %v6669 = vadd.f32 0.0, %v6668
    %v6670 = vpop.f32.mrb[0].mxu0
    %6671 = vdwg.mxu0
    %v6672 = vadd.f32 %v6518, %v6666
    %v6673 = vadd.f32 %v6521, %v6669
    %6674 = vmatprep.subr.bf16.mxu0 0
    %6675 = vmatpush1.bf16.msra.mxu0 %v6582
    %6676 = vmatprep.subr.bf16.mxu0 0
    %6677 = vmatpush1.bf16.msra.mxu0 0
    %6678 = vmatprep.subr.bf16.mxu0 0
    %6679 = vmatpush1.bf16.msra.mxu0 0
    %6680 = vmatprep.subr.bf16.mxu0 0
    %6681 = vmatpush1.bf16.msra.mxu0 0
    %6682 = vmatprep.subr.bf16.mxu0 0
    %6683 = vmatpush1.bf16.msra.mxu0 0
    %6684 = vmatprep.subr.bf16.mxu0 0
    %6685 = vmatpush1.bf16.msra.mxu0 0
    %6686 = vmatprep.subr.bf16.mxu0 0
    %6687 = vmatpush1.bf16.msra.mxu0 0
    %6688 = vmatprep.subr.bf16.mxu0 0
    %6689 = vmatpush1.bf16.msra.mxu0 0
    %6690 = vmatprep.subr.bf16.mxu0 0
    %6691 = vmatpush1.bf16.msra.mxu0 0
    %6692 = vmatprep.subr.bf16.mxu0 0
    %6693 = vmatpush1.bf16.msra.mxu0 0
    %6694 = vmatprep.subr.bf16.mxu0 0
    %6695 = vmatpush1.bf16.msra.mxu0 0
    %6696 = vmatprep.subr.bf16.mxu0 0
    %6697 = vmatpush1.bf16.msra.mxu0 0
    %6698 = vmatprep.subr.bf16.mxu0 0
    %6699 = vmatpush1.bf16.msra.mxu0 0
    %6700 = vmatprep.subr.bf16.mxu0 0
    %6701 = vmatpush1.bf16.msra.mxu0 0
    %6702 = vmatprep.subr.bf16.mxu0 0
    %6703 = vmatpush1.bf16.msra.mxu0 0
    %6704 = vmatprep.subr.bf16.mxu0 0
    %6705 = vmatpush1.bf16.msra.mxu0 0
    %6706 = vmatprep.mubr.bf16.mxu0 0
    %6707 = vmatmul.mubr.bf16.gmra.mrb[0].mxu0 %v6285
    %v6708 = vpop.f32.mrb[0].mxu0
    %v6709 = vadd.f32 0.0, %v6708
    %v6710 = vpop.f32.mrb[0].mxu0
    %v6711 = vpop.f32.mrb[0].mxu0
    %v6712 = vadd.f32 0.0, %v6711
    %v6713 = vpop.f32.mrb[0].mxu0
    %6714 = vdwg.mxu0
    %s6715 = scalar_lea.vmem [#allocation28], 192
    %v6716 = vld [vmem:[%s6715] sm:$0xf]
    %v6717 = vld [vmem:[%s6715 + $0x4] sm:$0xf]
    %v6718 = vld [vmem:[%s6715 + $0x8] sm:$0xf]
    %v6719 = vld [vmem:[%s6715 + $0xc] sm:$0xf]
    %v6720 = vld [vmem:[%s6715 + $0x10] sm:$0xf]
    %v6721 = vld [vmem:[%s6715 + $0x14] sm:$0xf]
    %v6722 = vld [vmem:[%s6715 + $0x18] sm:$0xf]
    %v6723 = vld [vmem:[%s6715 + $0x1c] sm:$0xf]
    %v6724 = vld [vmem:[%s6715 + $0x20] sm:$0xf]
    %v6725 = vld [vmem:[%s6715 + $0x24] sm:$0xf]
    %v6726 = vld [vmem:[%s6715 + $0x28] sm:$0xf]
    %v6727 = vld [vmem:[%s6715 + $0x2c] sm:$0xf]
    %v6728 = vld [vmem:[%s6715 + $0x30] sm:$0xf]
    %v6729 = vld [vmem:[%s6715 + $0x34] sm:$0xf]
    %v6730 = vld [vmem:[%s6715 + $0x38] sm:$0xf]
    %v6731 = vld [vmem:[%s6715 + $0x3c] sm:$0xf]
    %v6732 = vpack.c.bf16 %v6712, %v6709
    %v6749 = vunpack.c.l.b16 %v6716
    %v6750 = vunpack.c.l.b16 %v6717
    %v6751 = vunpack.c.l.b16 %v6718
    %v6752 = vunpack.c.l.b16 %v6719
    %v6753 = vunpack.c.l.b16 %v6720
    %v6754 = vunpack.c.l.b16 %v6721
    %v6755 = vunpack.c.l.b16 %v6722
    %v6756 = vunpack.c.l.b16 %v6723
    %v6757 = vunpack.c.l.b16 %v6724
    %v6758 = vunpack.c.l.b16 %v6725
    %v6759 = vunpack.c.l.b16 %v6726
    %v6760 = vunpack.c.l.b16 %v6727
    %v6761 = vunpack.c.l.b16 %v6728
    %v6762 = vunpack.c.l.b16 %v6729
    %v6763 = vunpack.c.l.b16 %v6730
    %v6764 = vunpack.c.l.b16 %v6731
    %v6765 = vpack.c.b16 %v6750, %v6749
    %v6766 = vpack.c.b16 %v6752, %v6751
    %v6767 = vpack.c.b16 %v6754, %v6753
    %v6768 = vpack.c.b16 %v6756, %v6755
    %v6769 = vpack.c.b16 %v6758, %v6757
    %v6770 = vpack.c.b16 %v6760, %v6759
    %v6771 = vpack.c.b16 %v6762, %v6761
    %v6772 = vpack.c.b16 %v6764, %v6763
    %6781 = vmatprep.subr.bf16.mxu0 0
    %6782 = vmatpush1.bf16.msra.mxu0 %v6765
    %6783 = vmatprep.subr.bf16.mxu0 0
    %6784 = vmatpush1.bf16.msra.mxu0 %v6766
    %6785 = vmatprep.subr.bf16.mxu0 0
    %6786 = vmatpush1.bf16.msra.mxu0 %v6767
    %6787 = vmatprep.subr.bf16.mxu0 0
    %6788 = vmatpush1.bf16.msra.mxu0 %v6768
    %6789 = vmatprep.subr.bf16.mxu0 0
    %6790 = vmatpush1.bf16.msra.mxu0 %v6769
    %6791 = vmatprep.subr.bf16.mxu0 0
    %6792 = vmatpush1.bf16.msra.mxu0 %v6770
    %6793 = vmatprep.subr.bf16.mxu0 0
    %6794 = vmatpush1.bf16.msra.mxu0 %v6771
    %6795 = vmatprep.subr.bf16.mxu0 0
    %6796 = vmatpush1.bf16.msra.mxu0 %v6772
    %6797 = vmatprep.subr.bf16.mxu0 0
    %6798 = vmatpush1.bf16.msra.mxu0 0
    %6799 = vmatprep.subr.bf16.mxu0 0
    %6800 = vmatpush1.bf16.msra.mxu0 0
    %6801 = vmatprep.subr.bf16.mxu0 0
    %6802 = vmatpush1.bf16.msra.mxu0 0
    %6803 = vmatprep.subr.bf16.mxu0 0
    %6804 = vmatpush1.bf16.msra.mxu0 0
    %6805 = vmatprep.subr.bf16.mxu0 0
    %6806 = vmatpush1.bf16.msra.mxu0 0
    %6807 = vmatprep.subr.bf16.mxu0 0
    %6808 = vmatpush1.bf16.msra.mxu0 0
    %6809 = vmatprep.subr.bf16.mxu0 0
    %6810 = vmatpush1.bf16.msra.mxu0 0
    %6811 = vmatprep.subr.bf16.mxu0 0
    %6812 = vmatpush1.bf16.msra.mxu0 0
    %6813 = vmatprep.mubr.bf16.mxu0 0
    %6814 = vmatmul.mubr.bf16.gmra.mrb[0].mxu0 %v6732
    %v6815 = vpop.f32.mrb[0].mxu0
    %v6816 = vadd.f32 0.0, %v6815
    %v6817 = vpop.f32.mrb[0].mxu0
    %v6818 = vpop.f32.mrb[0].mxu0
    %v6819 = vadd.f32 0.0, %v6818
    %v6820 = vpop.f32.mrb[0].mxu0
    %6821 = vdwg.mxu0
    %v6822 = vadd.f32 %v6672, %v6816
    %v6823 = vadd.f32 %v6673, %v6819
    %6824 = vmatprep.subr.bf16.mxu0 0
    %6825 = vmatpush1.bf16.msra.mxu0 %v6732
    %6826 = vmatprep.subr.bf16.mxu0 0
    %6827 = vmatpush1.bf16.msra.mxu0 0
    %6828 = vmatprep.subr.bf16.mxu0 0
    %6829 = vmatpush1.bf16.msra.mxu0 0
    %6830 = vmatprep.subr.bf16.mxu0 0
    %6831 = vmatpush1.bf16.msra.mxu0 0
    %6832 = vmatprep.subr.bf16.mxu0 0
    %6833 = vmatpush1.bf16.msra.mxu0 0
    %6834 = vmatprep.subr.bf16.mxu0 0
    %6835 = vmatpush1.bf16.msra.mxu0 0
    %6836 = vmatprep.subr.bf16.mxu0 0
    %6837 = vmatpush1.bf16.msra.mxu0 0
    %6838 = vmatprep.subr.bf16.mxu0 0
    %6839 = vmatpush1.bf16.msra.mxu0 0
    %6840 = vmatprep.subr.bf16.mxu0 0
    %6841 = vmatpush1.bf16.msra.mxu0 0
    %6842 = vmatprep.subr.bf16.mxu0 0
    %6843 = vmatpush1.bf16.msra.mxu0 0
    %6844 = vmatprep.subr.bf16.mxu0 0
    %6845 = vmatpush1.bf16.msra.mxu0 0
    %6846 = vmatprep.subr.bf16.mxu0 0
    %6847 = vmatpush1.bf16.msra.mxu0 0
    %6848 = vmatprep.subr.bf16.mxu0 0
    %6849 = vmatpush1.bf16.msra.mxu0 0
    %6850 = vmatprep.subr.bf16.mxu0 0
    %6851 = vmatpush1.bf16.msra.mxu0 0
    %6852 = vmatprep.subr.bf16.mxu0 0
    %6853 = vmatpush1.bf16.msra.mxu0 0
    %6854 = vmatprep.subr.bf16.mxu0 0
    %6855 = vmatpush1.bf16.msra.mxu0 0
    %6856 = vmatprep.mubr.bf16.mxu0 0
    %6857 = vmatmul.mubr.bf16.gmra.mrb[0].mxu0 %v6285
    %v6858 = vpop.f32.mrb[0].mxu0
    %v6859 = vadd.f32 0.0, %v6858
    %v6860 = vpop.f32.mrb[0].mxu0
    %v6861 = vpop.f32.mrb[0].mxu0
    %v6862 = vadd.f32 0.0, %v6861
    %v6863 = vpop.f32.mrb[0].mxu0
    %6864 = vdwg.mxu0
    %s6865 = scalar_lea.vmem [#allocation28], 256
    %v6866 = vld [vmem:[%s6865] sm:$0xf]
    %v6867 = vld [vmem:[%s6865 + $0x4] sm:$0xf]
    %v6868 = vld [vmem:[%s6865 + $0x8] sm:$0xf]
    %v6869 = vld [vmem:[%s6865 + $0xc] sm:$0xf]
    %v6870 = vld [vmem:[%s6865 + $0x10] sm:$0xf]
    %v6871 = vld [vmem:[%s6865 + $0x14] sm:$0xf]
    %v6872 = vld [vmem:[%s6865 + $0x18] sm:$0xf]
    %v6873 = vld [vmem:[%s6865 + $0x1c] sm:$0xf]
    %v6874 = vld [vmem:[%s6865 + $0x20] sm:$0xf]
    %v6875 = vld [vmem:[%s6865 + $0x24] sm:$0xf]
    %v6876 = vld [vmem:[%s6865 + $0x28] sm:$0xf]
    %v6877 = vld [vmem:[%s6865 + $0x2c] sm:$0xf]
    %v6878 = vld [vmem:[%s6865 + $0x30] sm:$0xf]
    %v6879 = vld [vmem:[%s6865 + $0x34] sm:$0xf]
    %v6880 = vld [vmem:[%s6865 + $0x38] sm:$0xf]
    %v6881 = vld [vmem:[%s6865 + $0x3c] sm:$0xf]
    %v6882 = vpack.c.bf16 %v6862, %v6859
    %v6899 = vunpack.c.l.b16 %v6866
    %v6900 = vunpack.c.l.b16 %v6867
    %v6901 = vunpack.c.l.b16 %v6868
    %v6902 = vunpack.c.l.b16 %v6869
    %v6903 = vunpack.c.l.b16 %v6870
    %v6904 = vunpack.c.l.b16 %v6871
    %v6905 = vunpack.c.l.b16 %v6872
    %v6906 = vunpack.c.l.b16 %v6873
    %v6907 = vunpack.c.l.b16 %v6874
    %v6908 = vunpack.c.l.b16 %v6875
    %v6909 = vunpack.c.l.b16 %v6876
    %v6910 = vunpack.c.l.b16 %v6877
    %v6911 = vunpack.c.l.b16 %v6878
    %v6912 = vunpack.c.l.b16 %v6879
    %v6913 = vunpack.c.l.b16 %v6880
    %v6914 = vunpack.c.l.b16 %v6881
    %v6915 = vpack.c.b16 %v6900, %v6899
    %v6916 = vpack.c.b16 %v6902, %v6901
    %v6917 = vpack.c.b16 %v6904, %v6903
    %v6918 = vpack.c.b16 %v6906, %v6905
    %v6919 = vpack.c.b16 %v6908, %v6907
    %v6920 = vpack.c.b16 %v6910, %v6909
    %v6921 = vpack.c.b16 %v6912, %v6911
    %v6922 = vpack.c.b16 %v6914, %v6913
    %6931 = vmatprep.subr.bf16.mxu0 0
    %6932 = vmatpush1.bf16.msra.mxu0 %v6915
    %6933 = vmatprep.subr.bf16.mxu0 0
    %6934 = vmatpush1.bf16.msra.mxu0 %v6916
    %6935 = vmatprep.subr.bf16.mxu0 0
    %6936 = vmatpush1.bf16.msra.mxu0 %v6917
    %6937 = vmatprep.subr.bf16.mxu0 0
    %6938 = vmatpush1.bf16.msra.mxu0 %v6918
    %6939 = vmatprep.subr.bf16.mxu0 0
    %6940 = vmatpush1.bf16.msra.mxu0 %v6919
    %6941 = vmatprep.subr.bf16.mxu0 0
    %6942 = vmatpush1.bf16.msra.mxu0 %v6920
    %6943 = vmatprep.subr.bf16.mxu0 0
    %6944 = vmatpush1.bf16.msra.mxu0 %v6921
    %6945 = vmatprep.subr.bf16.mxu0 0
    %6946 = vmatpush1.bf16.msra.mxu0 %v6922
    %6947 = vmatprep.subr.bf16.mxu0 0
    %6948 = vmatpush1.bf16.msra.mxu0 0
    %6949 = vmatprep.subr.bf16.mxu0 0
    %6950 = vmatpush1.bf16.msra.mxu0 0
    %6951 = vmatprep.subr.bf16.mxu0 0
    %6952 = vmatpush1.bf16.msra.mxu0 0
    %6953 = vmatprep.subr.bf16.mxu0 0
    %6954 = vmatpush1.bf16.msra.mxu0 0
    %6955 = vmatprep.subr.bf16.mxu0 0
    %6956 = vmatpush1.bf16.msra.mxu0 0
    %6957 = vmatprep.subr.bf16.mxu0 0
    %6958 = vmatpush1.bf16.msra.mxu0 0
    %6959 = vmatprep.subr.bf16.mxu0 0
    %6960 = vmatpush1.bf16.msra.mxu0 0
    %6961 = vmatprep.subr.bf16.mxu0 0
    %6962 = vmatpush1.bf16.msra.mxu0 0
    %6963 = vmatprep.mubr.bf16.mxu0 0
    %6964 = vmatmul.mubr.bf16.gmra.mrb[0].mxu0 %v6882
    %v6965 = vpop.f32.mrb[0].mxu0
    %v6966 = vadd.f32 0.0, %v6965
    %v6967 = vpop.f32.mrb[0].mxu0
    %v6968 = vpop.f32.mrb[0].mxu0
    %v6969 = vadd.f32 0.0, %v6968
    %v6970 = vpop.f32.mrb[0].mxu0
    %6971 = vdwg.mxu0
    %v6972 = vadd.f32 %v6822, %v6966
    %v6973 = vadd.f32 %v6823, %v6969
    %6974 = vmatprep.subr.bf16.mxu0 0
    %6975 = vmatpush1.bf16.msra.mxu0 %v6882
    %6976 = vmatprep.subr.bf16.mxu0 0
    %6977 = vmatpush1.bf16.msra.mxu0 0
    %6978 = vmatprep.subr.bf16.mxu0 0
    %6979 = vmatpush1.bf16.msra.mxu0 0
    %6980 = vmatprep.subr.bf16.mxu0 0
    %6981 = vmatpush1.bf16.msra.mxu0 0
    %6982 = vmatprep.subr.bf16.mxu0 0
    %6983 = vmatpush1.bf16.msra.mxu0 0
    %6984 = vmatprep.subr.bf16.mxu0 0
    %6985 = vmatpush1.bf16.msra.mxu0 0
    %6986 = vmatprep.subr.bf16.mxu0 0
    %6987 = vmatpush1.bf16.msra.mxu0 0
    %6988 = vmatprep.subr.bf16.mxu0 0
    %6989 = vmatpush1.bf16.msra.mxu0 0
    %6990 = vmatprep.subr.bf16.mxu0 0
    %6991 = vmatpush1.bf16.msra.mxu0 0
    %6992 = vmatprep.subr.bf16.mxu0 0
    %6993 = vmatpush1.bf16.msra.mxu0 0
    %6994 = vmatprep.subr.bf16.mxu0 0
    %6995 = vmatpush1.bf16.msra.mxu0 0
    %6996 = vmatprep.subr.bf16.mxu0 0
    %6997 = vmatpush1.bf16.msra.mxu0 0
    %6998 = vmatprep.subr.bf16.mxu0 0
    %6999 = vmatpush1.bf16.msra.mxu0 0
    %7000 = vmatprep.subr.bf16.mxu0 0
    %7001 = vmatpush1.bf16.msra.mxu0 0
    %7002 = vmatprep.subr.bf16.mxu0 0
    %7003 = vmatpush1.bf16.msra.mxu0 0
    %7004 = vmatprep.subr.bf16.mxu0 0
    %7005 = vmatpush1.bf16.msra.mxu0 0
    %7006 = vmatprep.mubr.bf16.mxu0 0
    %7007 = vmatmul.mubr.bf16.gmra.mrb[0].mxu0 %v6285
    %v7008 = vpop.f32.mrb[0].mxu0
    %v7009 = vadd.f32 0.0, %v7008
    %v7010 = vpop.f32.mrb[0].mxu0
    %v7011 = vpop.f32.mrb[0].mxu0
    %v7012 = vadd.f32 0.0, %v7011
    %v7013 = vpop.f32.mrb[0].mxu0
    %7014 = vdwg.mxu0
    %s7015 = scalar_lea.vmem [#allocation28], 320
    %v7016 = vld [vmem:[%s7015] sm:$0xf]
    %v7017 = vld [vmem:[%s7015 + $0x4] sm:$0xf]
    %v7018 = vld [vmem:[%s7015 + $0x8] sm:$0xf]
    %v7019 = vld [vmem:[%s7015 + $0xc] sm:$0xf]
    %v7020 = vld [vmem:[%s7015 + $0x10] sm:$0xf]
    %v7021 = vld [vmem:[%s7015 + $0x14] sm:$0xf]
    %v7022 = vld [vmem:[%s7015 + $0x18] sm:$0xf]
    %v7023 = vld [vmem:[%s7015 + $0x1c] sm:$0xf]
    %v7024 = vld [vmem:[%s7015 + $0x20] sm:$0xf]
    %v7025 = vld [vmem:[%s7015 + $0x24] sm:$0xf]
    %v7026 = vld [vmem:[%s7015 + $0x28] sm:$0xf]
    %v7027 = vld [vmem:[%s7015 + $0x2c] sm:$0xf]
    %v7028 = vld [vmem:[%s7015 + $0x30] sm:$0xf]
    %v7029 = vld [vmem:[%s7015 + $0x34] sm:$0xf]
    %v7030 = vld [vmem:[%s7015 + $0x38] sm:$0xf]
    %v7031 = vld [vmem:[%s7015 + $0x3c] sm:$0xf]
    %v7032 = vpack.c.bf16 %v7012, %v7009
    %v7049 = vunpack.c.l.b16 %v7016
    %v7050 = vunpack.c.l.b16 %v7017
    %v7051 = vunpack.c.l.b16 %v7018
    %v7052 = vunpack.c.l.b16 %v7019
    %v7053 = vunpack.c.l.b16 %v7020
    %v7054 = vunpack.c.l.b16 %v7021
    %v7055 = vunpack.c.l.b16 %v7022
    %v7056 = vunpack.c.l.b16 %v7023
    %v7057 = vunpack.c.l.b16 %v7024
    %v7058 = vunpack.c.l.b16 %v7025
    %v7059 = vunpack.c.l.b16 %v7026
    %v7060 = vunpack.c.l.b16 %v7027
    %v7061 = vunpack.c.l.b16 %v7028
    %v7062 = vunpack.c.l.b16 %v7029
    %v7063 = vunpack.c.l.b16 %v7030
    %v7064 = vunpack.c.l.b16 %v7031
    %v7065 = vpack.c.b16 %v7050, %v7049
    %v7066 = vpack.c.b16 %v7052, %v7051
    %v7067 = vpack.c.b16 %v7054, %v7053
    %v7068 = vpack.c.b16 %v7056, %v7055
    %v7069 = vpack.c.b16 %v7058, %v7057
    %v7070 = vpack.c.b16 %v7060, %v7059
    %v7071 = vpack.c.b16 %v7062, %v7061
    %v7072 = vpack.c.b16 %v7064, %v7063
    %7081 = vmatprep.subr.bf16.mxu0 0
    %7082 = vmatpush1.bf16.msra.mxu0 %v7065
    %7083 = vmatprep.subr.bf16.mxu0 0
    %7084 = vmatpush1.bf16.msra.mxu0 %v7066
    %7085 = vmatprep.subr.bf16.mxu0 0
    %7086 = vmatpush1.bf16.msra.mxu0 %v7067
    %7087 = vmatprep.subr.bf16.mxu0 0
    %7088 = vmatpush1.bf16.msra.mxu0 %v7068
    %7089 = vmatprep.subr.bf16.mxu0 0
    %7090 = vmatpush1.bf16.msra.mxu0 %v7069
    %7091 = vmatprep.subr.bf16.mxu0 0
    %7092 = vmatpush1.bf16.msra.mxu0 %v7070
    %7093 = vmatprep.subr.bf16.mxu0 0
    %7094 = vmatpush1.bf16.msra.mxu0 %v7071
    %7095 = vmatprep.subr.bf16.mxu0 0
    %7096 = vmatpush1.bf16.msra.mxu0 %v7072
    %7097 = vmatprep.subr.bf16.mxu0 0
    %7098 = vmatpush1.bf16.msra.mxu0 0
    %7099 = vmatprep.subr.bf16.mxu0 0
    %7100 = vmatpush1.bf16.msra.mxu0 0
    %7101 = vmatprep.subr.bf16.mxu0 0
    %7102 = vmatpush1.bf16.msra.mxu0 0
    %7103 = vmatprep.subr.bf16.mxu0 0
    %7104 = vmatpush1.bf16.msra.mxu0 0
    %7105 = vmatprep.subr.bf16.mxu0 0
    %7106 = vmatpush1.bf16.msra.mxu0 0
    %7107 = vmatprep.subr.bf16.mxu0 0
    %7108 = vmatpush1.bf16.msra.mxu0 0
    %7109 = vmatprep.subr.bf16.mxu0 0
    %7110 = vmatpush1.bf16.msra.mxu0 0
    %7111 = vmatprep.subr.bf16.mxu0 0
    %7112 = vmatpush1.bf16.msra.mxu0 0
    %7113 = vmatprep.mubr.bf16.mxu0 0
    %7114 = vmatmul.mubr.bf16.gmra.mrb[0].mxu0 %v7032
    %v7115 = vpop.f32.mrb[0].mxu0
    %v7116 = vadd.f32 0.0, %v7115
    %v7117 = vpop.f32.mrb[0].mxu0
    %v7118 = vpop.f32.mrb[0].mxu0
    %v7119 = vadd.f32 0.0, %v7118
    %v7120 = vpop.f32.mrb[0].mxu0
    %7121 = vdwg.mxu0
    %v7122 = vadd.f32 %v6972, %v7116
    %v7123 = vadd.f32 %v6973, %v7119
    %7124 = vmatprep.subr.bf16.mxu0 0
    %7125 = vmatpush1.bf16.msra.mxu0 %v7032
    %7126 = vmatprep.subr.bf16.mxu0 0
    %7127 = vmatpush1.bf16.msra.mxu0 0
    %7128 = vmatprep.subr.bf16.mxu0 0
    %7129 = vmatpush1.bf16.msra.mxu0 0
    %7130 = vmatprep.subr.bf16.mxu0 0
    %7131 = vmatpush1.bf16.msra.mxu0 0
    %7132 = vmatprep.subr.bf16.mxu0 0
    %7133 = vmatpush1.bf16.msra.mxu0 0
    %7134 = vmatprep.subr.bf16.mxu0 0
    %7135 = vmatpush1.bf16.msra.mxu0 0
    %7136 = vmatprep.subr.bf16.mxu0 0
    %7137 = vmatpush1.bf16.msra.mxu0 0
    %7138 = vmatprep.subr.bf16.mxu0 0
    %7139 = vmatpush1.bf16.msra.mxu0 0
    %7140 = vmatprep.subr.bf16.mxu0 0
    %7141 = vmatpush1.bf16.msra.mxu0 0
    %7142 = vmatprep.subr.bf16.mxu0 0
    %7143 = vmatpush1.bf16.msra.mxu0 0
    %7144 = vmatprep.subr.bf16.mxu0 0
    %7145 = vmatpush1.bf16.msra.mxu0 0
    %7146 = vmatprep.subr.bf16.mxu0 0
    %7147 = vmatpush1.bf16.msra.mxu0 0
    %7148 = vmatprep.subr.bf16.mxu0 0
    %7149 = vmatpush1.bf16.msra.mxu0 0
    %7150 = vmatprep.subr.bf16.mxu0 0
    %7151 = vmatpush1.bf16.msra.mxu0 0
    %7152 = vmatprep.subr.bf16.mxu0 0
    %7153 = vmatpush1.bf16.msra.mxu0 0
    %7154 = vmatprep.subr.bf16.mxu0 0
    %7155 = vmatpush1.bf16.msra.mxu0 0
    %7156 = vmatprep.mubr.bf16.mxu0 0
    %7157 = vmatmul.mubr.bf16.gmra.mrb[0].mxu0 %v6285
    %v7158 = vpop.f32.mrb[0].mxu0
    %v7159 = vadd.f32 0.0, %v7158
    %v7160 = vpop.f32.mrb[0].mxu0
    %v7161 = vpop.f32.mrb[0].mxu0
    %v7162 = vadd.f32 0.0, %v7161
    %v7163 = vpop.f32.mrb[0].mxu0
    %7164 = vdwg.mxu0
    %s7165 = scalar_lea.vmem [#allocation28], 384
    %v7166 = vld [vmem:[%s7165] sm:$0xf]
    %v7167 = vld [vmem:[%s7165 + $0x4] sm:$0xf]
    %v7168 = vld [vmem:[%s7165 + $0x8] sm:$0xf]
    %v7169 = vld [vmem:[%s7165 + $0xc] sm:$0xf]
    %v7170 = vld [vmem:[%s7165 + $0x10] sm:$0xf]
    %v7171 = vld [vmem:[%s7165 + $0x14] sm:$0xf]
    %v7172 = vld [vmem:[%s7165 + $0x18] sm:$0xf]
    %v7173 = vld [vmem:[%s7165 + $0x1c] sm:$0xf]
    %v7174 = vld [vmem:[%s7165 + $0x20] sm:$0xf]
    %v7175 = vld [vmem:[%s7165 + $0x24] sm:$0xf]
    %v7176 = vld [vmem:[%s7165 + $0x28] sm:$0xf]
    %v7177 = vld [vmem:[%s7165 + $0x2c] sm:$0xf]
    %v7178 = vld [vmem:[%s7165 + $0x30] sm:$0xf]
    %v7179 = vld [vmem:[%s7165 + $0x34] sm:$0xf]
    %v7180 = vld [vmem:[%s7165 + $0x38] sm:$0xf]
    %v7181 = vld [vmem:[%s7165 + $0x3c] sm:$0xf]
    %v7182 = vpack.c.bf16 %v7162, %v7159
    %v7199 = vunpack.c.l.b16 %v7166
    %v7200 = vunpack.c.l.b16 %v7167
    %v7201 = vunpack.c.l.b16 %v7168
    %v7202 = vunpack.c.l.b16 %v7169
    %v7203 = vunpack.c.l.b16 %v7170
    %v7204 = vunpack.c.l.b16 %v7171
    %v7205 = vunpack.c.l.b16 %v7172
    %v7206 = vunpack.c.l.b16 %v7173
    %v7207 = vunpack.c.l.b16 %v7174
    %v7208 = vunpack.c.l.b16 %v7175
    %v7209 = vunpack.c.l.b16 %v7176
    %v7210 = vunpack.c.l.b16 %v7177
    %v7211 = vunpack.c.l.b16 %v7178
    %v7212 = vunpack.c.l.b16 %v7179
    %v7213 = vunpack.c.l.b16 %v7180
    %v7214 = vunpack.c.l.b16 %v7181
    %v7215 = vpack.c.b16 %v7200, %v7199
    %v7216 = vpack.c.b16 %v7202, %v7201
    %v7217 = vpack.c.b16 %v7204, %v7203
    %v7218 = vpack.c.b16 %v7206, %v7205
    %v7219 = vpack.c.b16 %v7208, %v7207
    %v7220 = vpack.c.b16 %v7210, %v7209
    %v7221 = vpack.c.b16 %v7212, %v7211
    %v7222 = vpack.c.b16 %v7214, %v7213
    %7231 = vmatprep.subr.bf16.mxu0 0
    %7232 = vmatpush1.bf16.msra.mxu0 %v7215
    %7233 = vmatprep.subr.bf16.mxu0 0
    %7234 = vmatpush1.bf16.msra.mxu0 %v7216
    %7235 = vmatprep.subr.bf16.mxu0 0
    %7236 = vmatpush1.bf16.msra.mxu0 %v7217
    %7237 = vmatprep.subr.bf16.mxu0 0
    %7238 = vmatpush1.bf16.msra.mxu0 %v7218
    %7239 = vmatprep.subr.bf16.mxu0 0
    %7240 = vmatpush1.bf16.msra.mxu0 %v7219
    %7241 = vmatprep.subr.bf16.mxu0 0
    %7242 = vmatpush1.bf16.msra.mxu0 %v7220
    %7243 = vmatprep.subr.bf16.mxu0 0
    %7244 = vmatpush1.bf16.msra.mxu0 %v7221
    %7245 = vmatprep.subr.bf16.mxu0 0
    %7246 = vmatpush1.bf16.msra.mxu0 %v7222
    %7247 = vmatprep.subr.bf16.mxu0 0
    %7248 = vmatpush1.bf16.msra.mxu0 0
    %7249 = vmatprep.subr.bf16.mxu0 0
    %7250 = vmatpush1.bf16.msra.mxu0 0
    %7251 = vmatprep.subr.bf16.mxu0 0
    %7252 = vmatpush1.bf16.msra.mxu0 0
    %7253 = vmatprep.subr.bf16.mxu0 0
    %7254 = vmatpush1.bf16.msra.mxu0 0
    %7255 = vmatprep.subr.bf16.mxu0 0
    %7256 = vmatpush1.bf16.msra.mxu0 0
    %7257 = vmatprep.subr.bf16.mxu0 0
    %7258 = vmatpush1.bf16.msra.mxu0 0
    %7259 = vmatprep.subr.bf16.mxu0 0
    %7260 = vmatpush1.bf16.msra.mxu0 0
    %7261 = vmatprep.subr.bf16.mxu0 0
    %7262 = vmatpush1.bf16.msra.mxu0 0
    %7263 = vmatprep.mubr.bf16.mxu0 0
    %7264 = vmatmul.mubr.bf16.gmra.mrb[0].mxu0 %v7182
    %v7265 = vpop.f32.mrb[0].mxu0
    %v7266 = vadd.f32 0.0, %v7265
    %v7267 = vpop.f32.mrb[0].mxu0
    %v7268 = vpop.f32.mrb[0].mxu0
    %v7269 = vadd.f32 0.0, %v7268
    %v7270 = vpop.f32.mrb[0].mxu0
    %7271 = vdwg.mxu0
    %v7272 = vadd.f32 %v7122, %v7266
    %v7273 = vadd.f32 %v7123, %v7269
    %7274 = vmatprep.subr.bf16.mxu0 0
    %7275 = vmatpush1.bf16.msra.mxu0 %v7182
    %7276 = vmatprep.subr.bf16.mxu0 0
    %7277 = vmatpush1.bf16.msra.mxu0 0
    %7278 = vmatprep.subr.bf16.mxu0 0
    %7279 = vmatpush1.bf16.msra.mxu0 0
    %7280 = vmatprep.subr.bf16.mxu0 0
    %7281 = vmatpush1.bf16.msra.mxu0 0
    %7282 = vmatprep.subr.bf16.mxu0 0
    %7283 = vmatpush1.bf16.msra.mxu0 0
    %7284 = vmatprep.subr.bf16.mxu0 0
    %7285 = vmatpush1.bf16.msra.mxu0 0
    %7286 = vmatprep.subr.bf16.mxu0 0
    %7287 = vmatpush1.bf16.msra.mxu0 0
    %7288 = vmatprep.subr.bf16.mxu0 0
    %7289 = vmatpush1.bf16.msra.mxu0 0
    %7290 = vmatprep.subr.bf16.mxu0 0
    %7291 = vmatpush1.bf16.msra.mxu0 0
    %7292 = vmatprep.subr.bf16.mxu0 0
    %7293 = vmatpush1.bf16.msra.mxu0 0
    %7294 = vmatprep.subr.bf16.mxu0 0
    %7295 = vmatpush1.bf16.msra.mxu0 0
    %7296 = vmatprep.subr.bf16.mxu0 0
    %7297 = vmatpush1.bf16.msra.mxu0 0
    %7298 = vmatprep.subr.bf16.mxu0 0
    %7299 = vmatpush1.bf16.msra.mxu0 0
    %7300 = vmatprep.subr.bf16.mxu0 0
    %7301 = vmatpush1.bf16.msra.mxu0 0
    %7302 = vmatprep.subr.bf16.mxu0 0
    %7303 = vmatpush1.bf16.msra.mxu0 0
    %7304 = vmatprep.subr.bf16.mxu0 0
    %7305 = vmatpush1.bf16.msra.mxu0 0
    %7306 = vmatprep.mubr.bf16.mxu0 0
    %7307 = vmatmul.mubr.bf16.gmra.mrb[0].mxu0 %v6285
    %v7308 = vpop.f32.mrb[0].mxu0
    %v7309 = vadd.f32 0.0, %v7308
    %v7310 = vpop.f32.mrb[0].mxu0
    %v7311 = vpop.f32.mrb[0].mxu0
    %v7312 = vadd.f32 0.0, %v7311
    %v7313 = vpop.f32.mrb[0].mxu0
    %7314 = vdwg.mxu0
    %s7315 = scalar_lea.vmem [#allocation28], 448
    %v7316 = vld [vmem:[%s7315] sm:$0xf]
    %v7317 = vld [vmem:[%s7315 + $0x4] sm:$0xf]
    %v7318 = vld [vmem:[%s7315 + $0x8] sm:$0xf]
    %v7319 = vld [vmem:[%s7315 + $0xc] sm:$0xf]
    %v7320 = vld [vmem:[%s7315 + $0x10] sm:$0xf]
    %v7321 = vld [vmem:[%s7315 + $0x14] sm:$0xf]
    %v7322 = vld [vmem:[%s7315 + $0x18] sm:$0xf]
    %v7323 = vld [vmem:[%s7315 + $0x1c] sm:$0xf]
    %v7324 = vld [vmem:[%s7315 + $0x20] sm:$0xf]
    %v7325 = vld [vmem:[%s7315 + $0x24] sm:$0xf]
    %v7326 = vld [vmem:[%s7315 + $0x28] sm:$0xf]
    %v7327 = vld [vmem:[%s7315 + $0x2c] sm:$0xf]
    %v7328 = vld [vmem:[%s7315 + $0x30] sm:$0xf]
    %v7329 = vld [vmem:[%s7315 + $0x34] sm:$0xf]
    %v7330 = vld [vmem:[%s7315 + $0x38] sm:$0xf]
    %v7331 = vld [vmem:[%s7315 + $0x3c] sm:$0xf]
    %v7332 = vpack.c.bf16 %v7312, %v7309
    %v7349 = vunpack.c.l.b16 %v7316
    %v7350 = vunpack.c.l.b16 %v7317
    %v7351 = vunpack.c.l.b16 %v7318
    %v7352 = vunpack.c.l.b16 %v7319
    %v7353 = vunpack.c.l.b16 %v7320
    %v7354 = vunpack.c.l.b16 %v7321
    %v7355 = vunpack.c.l.b16 %v7322
    %v7356 = vunpack.c.l.b16 %v7323
    %v7357 = vunpack.c.l.b16 %v7324
    %v7358 = vunpack.c.l.b16 %v7325
    %v7359 = vunpack.c.l.b16 %v7326
    %v7360 = vunpack.c.l.b16 %v7327
    %v7361 = vunpack.c.l.b16 %v7328
    %v7362 = vunpack.c.l.b16 %v7329
    %v7363 = vunpack.c.l.b16 %v7330
    %v7364 = vunpack.c.l.b16 %v7331
    %v7365 = vpack.c.b16 %v7350, %v7349
    %v7366 = vpack.c.b16 %v7352, %v7351
    %v7367 = vpack.c.b16 %v7354, %v7353
    %v7368 = vpack.c.b16 %v7356, %v7355
    %v7369 = vpack.c.b16 %v7358, %v7357
    %v7370 = vpack.c.b16 %v7360, %v7359
    %v7371 = vpack.c.b16 %v7362, %v7361
    %v7372 = vpack.c.b16 %v7364, %v7363
    %7381 = vmatprep.subr.bf16.mxu0 0
    %7382 = vmatpush1.bf16.msra.mxu0 %v7365
    %7383 = vmatprep.subr.bf16.mxu0 0
    %7384 = vmatpush1.bf16.msra.mxu0 %v7366
    %7385 = vmatprep.subr.bf16.mxu0 0
    %7386 = vmatpush1.bf16.msra.mxu0 %v7367
    %7387 = vmatprep.subr.bf16.mxu0 0
    %7388 = vmatpush1.bf16.msra.mxu0 %v7368
    %7389 = vmatprep.subr.bf16.mxu0 0
    %7390 = vmatpush1.bf16.msra.mxu0 %v7369
    %7391 = vmatprep.subr.bf16.mxu0 0
    %7392 = vmatpush1.bf16.msra.mxu0 %v7370
    %7393 = vmatprep.subr.bf16.mxu0 0
    %7394 = vmatpush1.bf16.msra.mxu0 %v7371
    %7395 = vmatprep.subr.bf16.mxu0 0
    %7396 = vmatpush1.bf16.msra.mxu0 %v7372
    %7397 = vmatprep.subr.bf16.mxu0 0
    %7398 = vmatpush1.bf16.msra.mxu0 0
    %7399 = vmatprep.subr.bf16.mxu0 0
    %7400 = vmatpush1.bf16.msra.mxu0 0
    %7401 = vmatprep.subr.bf16.mxu0 0
    %7402 = vmatpush1.bf16.msra.mxu0 0
    %7403 = vmatprep.subr.bf16.mxu0 0
    %7404 = vmatpush1.bf16.msra.mxu0 0
    %7405 = vmatprep.subr.bf16.mxu0 0
    %7406 = vmatpush1.bf16.msra.mxu0 0
    %7407 = vmatprep.subr.bf16.mxu0 0
    %7408 = vmatpush1.bf16.msra.mxu0 0
    %7409 = vmatprep.subr.bf16.mxu0 0
    %7410 = vmatpush1.bf16.msra.mxu0 0
    %7411 = vmatprep.subr.bf16.mxu0 0
    %7412 = vmatpush1.bf16.msra.mxu0 0
    %7413 = vmatprep.mubr.bf16.mxu0 0
    %7414 = vmatmul.mubr.bf16.gmra.mrb[0].mxu0 %v7332
    %v7415 = vpop.f32.mrb[0].mxu0
    %v7416 = vadd.f32 0.0, %v7415
    %v7417 = vpop.f32.mrb[0].mxu0
    %v7418 = vpop.f32.mrb[0].mxu0
    %v7419 = vadd.f32 0.0, %v7418
    %v7420 = vpop.f32.mrb[0].mxu0
    %7421 = vdwg.mxu0
    %v7422 = vadd.f32 %v7272, %v7416
    %v7423 = vadd.f32 %v7273, %v7419
    %v7424 = vld [vmem:[%s45] sm:$0x1]
    %v7426 = vlaneseq
    %v7427 = vshrl.u32 %v7426, 7
    %v7428 = vsub.s32 0, %v7427
    %v7429 = vrot.slane %v7424, %v7428
    %v7431 = vadd.f32 %v7422, %v7429
    %v7432 = vadd.f32 %v7423, %v7429
    %v7433 = vld [vmem:[#allocation29] sm:$0xf]
    %v7434 = vld [vmem:[#allocation29 + $0x4] sm:$0xf]
    %v7435 = vld [vmem:[#allocation29 + $0x8] sm:$0xf]
    %v7436 = vld [vmem:[#allocation29 + $0xc] sm:$0xf]
    %v7437 = vld [vmem:[#allocation29 + $0x10] sm:$0xf]
    %v7438 = vld [vmem:[#allocation29 + $0x14] sm:$0xf]
    %v7439 = vld [vmem:[#allocation29 + $0x18] sm:$0xf]
    %v7440 = vld [vmem:[#allocation29 + $0x1c] sm:$0xf]
    %v7441 = vld [vmem:[#allocation29 + $0x20] sm:$0xf]
    %v7442 = vld [vmem:[#allocation29 + $0x24] sm:$0xf]
    %v7443 = vld [vmem:[#allocation29 + $0x28] sm:$0xf]
    %v7444 = vld [vmem:[#allocation29 + $0x2c] sm:$0xf]
    %v7445 = vld [vmem:[#allocation29 + $0x30] sm:$0xf]
    %v7446 = vld [vmem:[#allocation29 + $0x34] sm:$0xf]
    %v7447 = vld [vmem:[#allocation29 + $0x38] sm:$0xf]
    %v7448 = vld [vmem:[#allocation29 + $0x3c] sm:$0xf]
    %v7449 = vpack.c.bf16 %v7432, %v7431
    %v7450 = vld [vmem:[%s49] sm:$0x1]
    %v7452 = vlaneseq
    %v7453 = vshrl.u32 %v7452, 7
    %v7454 = vsub.s32 0, %v7453
    %v7455 = vrot.slane %v7450, %v7454
    %v7473 = vunpack.c.l.b16 %v7433
    %v7474 = vunpack.c.l.b16 %v7434
    %v7475 = vunpack.c.l.b16 %v7435
    %v7476 = vunpack.c.l.b16 %v7436
    %v7477 = vunpack.c.l.b16 %v7437
    %v7478 = vunpack.c.l.b16 %v7438
    %v7479 = vunpack.c.l.b16 %v7439
    %v7480 = vunpack.c.l.b16 %v7440
    %v7481 = vunpack.c.l.b16 %v7441
    %v7482 = vunpack.c.l.b16 %v7442
    %v7483 = vunpack.c.l.b16 %v7443
    %v7484 = vunpack.c.l.b16 %v7444
    %v7485 = vunpack.c.l.b16 %v7445
    %v7486 = vunpack.c.l.b16 %v7446
    %v7487 = vunpack.c.l.b16 %v7447
    %v7488 = vunpack.c.l.b16 %v7448
    %v7489 = vpack.c.b16 %v7474, %v7473
    %v7490 = vpack.c.b16 %v7476, %v7475
    %v7491 = vpack.c.b16 %v7478, %v7477
    %v7492 = vpack.c.b16 %v7480, %v7479
    %v7493 = vpack.c.b16 %v7482, %v7481
    %v7494 = vpack.c.b16 %v7484, %v7483
    %v7495 = vpack.c.b16 %v7486, %v7485
    %v7496 = vpack.c.b16 %v7488, %v7487
    %7505 = vmatprep.subr.bf16.mxu0 0
    %7506 = vmatpush1.bf16.msra.mxu0 %v7489
    %7507 = vmatprep.subr.bf16.mxu0 0
    %7508 = vmatpush1.bf16.msra.mxu0 %v7490
    %7509 = vmatprep.subr.bf16.mxu0 0
    %7510 = vmatpush1.bf16.msra.mxu0 %v7491
    %7511 = vmatprep.subr.bf16.mxu0 0
    %7512 = vmatpush1.bf16.msra.mxu0 %v7492
    %7513 = vmatprep.subr.bf16.mxu0 0
    %7514 = vmatpush1.bf16.msra.mxu0 %v7493
    %7515 = vmatprep.subr.bf16.mxu0 0
    %7516 = vmatpush1.bf16.msra.mxu0 %v7494
    %7517 = vmatprep.subr.bf16.mxu0 0
    %7518 = vmatpush1.bf16.msra.mxu0 %v7495
    %7519 = vmatprep.subr.bf16.mxu0 0
    %7520 = vmatpush1.bf16.msra.mxu0 %v7496
    %7521 = vmatprep.subr.bf16.mxu0 0
    %7522 = vmatpush1.bf16.msra.mxu0 0
    %7523 = vmatprep.subr.bf16.mxu0 0
    %7524 = vmatpush1.bf16.msra.mxu0 0
    %7525 = vmatprep.subr.bf16.mxu0 0
    %7526 = vmatpush1.bf16.msra.mxu0 0
    %7527 = vmatprep.subr.bf16.mxu0 0
    %7528 = vmatpush1.bf16.msra.mxu0 0
    %7529 = vmatprep.subr.bf16.mxu0 0
    %7530 = vmatpush1.bf16.msra.mxu0 0
    %7531 = vmatprep.subr.bf16.mxu0 0
    %7532 = vmatpush1.bf16.msra.mxu0 0
    %7533 = vmatprep.subr.bf16.mxu0 0
    %7534 = vmatpush1.bf16.msra.mxu0 0
    %7535 = vmatprep.subr.bf16.mxu0 0
    %7536 = vmatpush1.bf16.msra.mxu0 0
    %7537 = vmatprep.mubr.bf16.mxu0 0
    %7538 = vmatmul.mubr.bf16.gmra.mrb[0].mxu0 %v7449
    %v7539 = vpop.f32.mrb[0].mxu0
    %v7540 = vadd.f32 %v7455, %v7539
    %v7541 = vpop.f32.mrb[0].mxu0
    %v7542 = vpop.f32.mrb[0].mxu0
    %v7543 = vadd.f32 %v7455, %v7542
    %v7544 = vpop.f32.mrb[0].mxu0
    %7545 = vdwg.mxu0
    %v7546 = vmax.f32 %v7540, 0.0
    %v7547 = vmax.f32 %v7543, 0.0
    %v7548 = vand.u32 2147483647, %v7540
    %v7549 = vand.u32 2147483647, %v7543
    %v7550 = vsub.f32 0.0, %v7548
    %v7551 = vsub.f32 0.0, %v7549
    %v7552 = vmul.f32 %v7550, 1.442695
    %v7553 = vpow.pop %v7552
    %v7554 = vmul.f32 %v7551, 1.442695
    %v7555 = vpow.pop %v7554
    %v7556 = vadd.f32 %v7553, 1.0
    %v7557 = vadd.f32 %v7555, 1.0
    %v7558 = vlog2.pop %v7556
    %v7559 = vmul.f32 %v7558, 0.6931472
    %v7560 = vlog2.pop %v7557
    %v7561 = vmul.f32 %v7560, 0.6931472
    %v7562 = vadd.f32 %v7546, %v7559
    %v7563 = vadd.f32 %v7547, %v7561
    %v7564 = vmax.f32 %v436, 1.0
    %v7565 = vmax.f32 %v439, 1.0
    %v7566 = vrcp.pop %v7564
    %v7567 = vmul.f32 %v426, %v7566
    %v7568 = vrcp.pop %v7565
    %v7569 = vmul.f32 %v427, %v7568
    %v7570 = vpack.c.bf16 %v7569, %v7567
    %v7571 = vpack.c.bf16 %v7563, %v7562
    %v7573 = vsel %vm433, %v7570, 0
    %7575 = vmatprep.subr.bf16.mxu0 0
    %7576 = vmatpush1.bf16.msra.mxu0 %v7571
    %7577 = vmatprep.subr.bf16.mxu0 0
    %7578 = vmatpush1.bf16.msra.mxu0 0
    %7579 = vmatprep.subr.bf16.mxu0 0
    %7580 = vmatpush1.bf16.msra.mxu0 0
    %7581 = vmatprep.subr.bf16.mxu0 0
    %7582 = vmatpush1.bf16.msra.mxu0 0
    %7583 = vmatprep.subr.bf16.mxu0 0
    %7584 = vmatpush1.bf16.msra.mxu0 0
    %7585 = vmatprep.subr.bf16.mxu0 0
    %7586 = vmatpush1.bf16.msra.mxu0 0
    %7587 = vmatprep.subr.bf16.mxu0 0
    %7588 = vmatpush1.bf16.msra.mxu0 0
    %7589 = vmatprep.subr.bf16.mxu0 0
    %7590 = vmatpush1.bf16.msra.mxu0 0
    %7591 = vmatprep.subr.bf16.mxu0 0
    %7592 = vmatpush1.bf16.msra.mxu0 0
    %7593 = vmatprep.subr.bf16.mxu0 0
    %7594 = vmatpush1.bf16.msra.mxu0 0
    %7595 = vmatprep.subr.bf16.mxu0 0
    %7596 = vmatpush1.bf16.msra.mxu0 0
    %7597 = vmatprep.subr.bf16.mxu0 0
    %7598 = vmatpush1.bf16.msra.mxu0 0
    %7599 = vmatprep.subr.bf16.mxu0 0
    %7600 = vmatpush1.bf16.msra.mxu0 0
    %7601 = vmatprep.subr.bf16.mxu0 0
    %7602 = vmatpush1.bf16.msra.mxu0 0
    %7603 = vmatprep.subr.bf16.mxu0 0
    %7604 = vmatpush1.bf16.msra.mxu0 0
    %7605 = vmatprep.subr.bf16.mxu0 0
    %7606 = vmatpush1.bf16.msra.mxu0 0
    %7607 = vmatprep.mubr.bf16.mxu0 0
    %7608 = vmatmul.mubr.bf16.gmra.mrb[0].mxu0 %v7573
    %v7609 = vpop.f32.mrb[0].mxu0
    %v7610 = vadd.f32 0.0, %v7609
    %v7611 = vpop.f32.mrb[0].mxu0
    %v7612 = vpop.f32.mrb[0].mxu0
    %v7613 = vadd.f32 0.0, %v7612
    %v7614 = vpop.f32.mrb[0].mxu0
    %7615 = vdwg.mxu0
    %v7616 = vmul.f32 %v7562, %v7562
    %v7617 = vmul.f32 %v7563, %v7563
    %v7618 = vpack.c.bf16 %v7617, %v7616
    %7619 = vmatprep.subr.bf16.mxu0 0
    %7620 = vmatpush1.bf16.msra.mxu0 %v7618
    %7621 = vmatprep.subr.bf16.mxu0 0
    %7622 = vmatpush1.bf16.msra.mxu0 0
    %7623 = vmatprep.subr.bf16.mxu0 0
    %7624 = vmatpush1.bf16.msra.mxu0 0
    %7625 = vmatprep.subr.bf16.mxu0 0
    %7626 = vmatpush1.bf16.msra.mxu0 0
    %7627 = vmatprep.subr.bf16.mxu0 0
    %7628 = vmatpush1.bf16.msra.mxu0 0
    %7629 = vmatprep.subr.bf16.mxu0 0
    %7630 = vmatpush1.bf16.msra.mxu0 0
    %7631 = vmatprep.subr.bf16.mxu0 0
    %7632 = vmatpush1.bf16.msra.mxu0 0
    %7633 = vmatprep.subr.bf16.mxu0 0
    %7634 = vmatpush1.bf16.msra.mxu0 0
    %7635 = vmatprep.subr.bf16.mxu0 0
    %7636 = vmatpush1.bf16.msra.mxu0 0
    %7637 = vmatprep.subr.bf16.mxu0 0
    %7638 = vmatpush1.bf16.msra.mxu0 0
    %7639 = vmatprep.subr.bf16.mxu0 0
    %7640 = vmatpush1.bf16.msra.mxu0 0
    %7641 = vmatprep.subr.bf16.mxu0 0
    %7642 = vmatpush1.bf16.msra.mxu0 0
    %7643 = vmatprep.subr.bf16.mxu0 0
    %7644 = vmatpush1.bf16.msra.mxu0 0
    %7645 = vmatprep.subr.bf16.mxu0 0
    %7646 = vmatpush1.bf16.msra.mxu0 0
    %7647 = vmatprep.subr.bf16.mxu0 0
    %7648 = vmatpush1.bf16.msra.mxu0 0
    %7649 = vmatprep.subr.bf16.mxu0 0
    %7650 = vmatpush1.bf16.msra.mxu0 0
    %7651 = vmatprep.mubr.bf16.mxu0 0
    %7652 = vmatmul.mubr.bf16.gmra.mrb[0].mxu0 %v7573
    %v7653 = vpop.f32.mrb[0].mxu0
    %v7654 = vadd.f32 0.0, %v7653
    %v7655 = vpop.f32.mrb[0].mxu0
    %v7656 = vpop.f32.mrb[0].mxu0
    %v7657 = vadd.f32 0.0, %v7656
    %v7658 = vpop.f32.mrb[0].mxu0
    %7659 = vdwg.mxu0
    %v7660 = vmul.f32 %v7610, %v7610
    %v7661 = vmul.f32 %v7613, %v7613
    %v7662 = vsub.f32 %v7654, %v7660
    %v7663 = vsub.f32 %v7657, %v7661
    %v7664 = vld [vmem:[#allocation31] sm:$0xf]
    %v7665 = vld [vmem:[#allocation31 + $0x4] sm:$0xf]
    %v7666 = vld [vmem:[#allocation31 + $0x8] sm:$0xf]
    %v7667 = vld [vmem:[#allocation31 + $0xc] sm:$0xf]
    %v7668 = vld [vmem:[#allocation31 + $0x10] sm:$0xf]
    %v7669 = vld [vmem:[#allocation31 + $0x14] sm:$0xf]
    %v7670 = vld [vmem:[#allocation31 + $0x18] sm:$0xf]
    %v7671 = vld [vmem:[#allocation31 + $0x1c] sm:$0xf]
    %v7672 = vld [vmem:[#allocation31 + $0x20] sm:$0xf]
    %v7673 = vld [vmem:[#allocation31 + $0x24] sm:$0xf]
    %v7674 = vld [vmem:[#allocation31 + $0x28] sm:$0xf]
    %v7675 = vld [vmem:[#allocation31 + $0x2c] sm:$0xf]
    %v7676 = vld [vmem:[#allocation31 + $0x30] sm:$0xf]
    %v7677 = vld [vmem:[#allocation31 + $0x34] sm:$0xf]
    %v7678 = vld [vmem:[#allocation31 + $0x38] sm:$0xf]
    %v7679 = vld [vmem:[#allocation31 + $0x3c] sm:$0xf]
    %v7680 = vpack.c.bf16 %v7663, %v7662
    %v7681 = vld [vmem:[%s53] sm:$0x1]
    %v7683 = vlaneseq
    %v7684 = vshrl.u32 %v7683, 7
    %v7685 = vsub.s32 0, %v7684
    %v7686 = vrot.slane %v7681, %v7685
    %v7704 = vunpack.c.l.b16 %v7664
    %v7705 = vunpack.c.l.b16 %v7665
    %v7706 = vunpack.c.l.b16 %v7666
    %v7707 = vunpack.c.l.b16 %v7667
    %v7708 = vunpack.c.l.b16 %v7668
    %v7709 = vunpack.c.l.b16 %v7669
    %v7710 = vunpack.c.l.b16 %v7670
    %v7711 = vunpack.c.l.b16 %v7671
    %v7712 = vunpack.c.l.b16 %v7672
    %v7713 = vunpack.c.l.b16 %v7673
    %v7714 = vunpack.c.l.b16 %v7674
    %v7715 = vunpack.c.l.b16 %v7675
    %v7716 = vunpack.c.l.b16 %v7676
    %v7717 = vunpack.c.l.b16 %v7677
    %v7718 = vunpack.c.l.b16 %v7678
    %v7719 = vunpack.c.l.b16 %v7679
    %v7720 = vpack.c.b16 %v7705, %v7704
    %v7721 = vpack.c.b16 %v7707, %v7706
    %v7722 = vpack.c.b16 %v7709, %v7708
    %v7723 = vpack.c.b16 %v7711, %v7710
    %v7724 = vpack.c.b16 %v7713, %v7712
    %v7725 = vpack.c.b16 %v7715, %v7714
    %v7726 = vpack.c.b16 %v7717, %v7716
    %v7727 = vpack.c.b16 %v7719, %v7718
    %7736 = vmatprep.subr.bf16.mxu0 0
    %7737 = vmatpush1.bf16.msra.mxu0 %v7720
    %7738 = vmatprep.subr.bf16.mxu0 0
    %7739 = vmatpush1.bf16.msra.mxu0 %v7721
    %7740 = vmatprep.subr.bf16.mxu0 0
    %7741 = vmatpush1.bf16.msra.mxu0 %v7722
    %7742 = vmatprep.subr.bf16.mxu0 0
    %7743 = vmatpush1.bf16.msra.mxu0 %v7723
    %7744 = vmatprep.subr.bf16.mxu0 0
    %7745 = vmatpush1.bf16.msra.mxu0 %v7724
    %7746 = vmatprep.subr.bf16.mxu0 0
    %7747 = vmatpush1.bf16.msra.mxu0 %v7725
    %7748 = vmatprep.subr.bf16.mxu0 0
    %7749 = vmatpush1.bf16.msra.mxu0 %v7726
    %7750 = vmatprep.subr.bf16.mxu0 0
    %7751 = vmatpush1.bf16.msra.mxu0 %v7727
    %7752 = vmatprep.subr.bf16.mxu0 0
    %7753 = vmatpush1.bf16.msra.mxu0 0
    %7754 = vmatprep.subr.bf16.mxu0 0
    %7755 = vmatpush1.bf16.msra.mxu0 0
    %7756 = vmatprep.subr.bf16.mxu0 0
    %7757 = vmatpush1.bf16.msra.mxu0 0
    %7758 = vmatprep.subr.bf16.mxu0 0
    %7759 = vmatpush1.bf16.msra.mxu0 0
    %7760 = vmatprep.subr.bf16.mxu0 0
    %7761 = vmatpush1.bf16.msra.mxu0 0
    %7762 = vmatprep.subr.bf16.mxu0 0
    %7763 = vmatpush1.bf16.msra.mxu0 0
    %7764 = vmatprep.subr.bf16.mxu0 0
    %7765 = vmatpush1.bf16.msra.mxu0 0
    %7766 = vmatprep.subr.bf16.mxu0 0
    %7767 = vmatpush1.bf16.msra.mxu0 0
    %7768 = vmatprep.mubr.bf16.mxu0 0
    %7769 = vmatmul.mubr.bf16.gmra.mrb[0].mxu0 %v7680
    %v7770 = vpop.f32.mrb[0].mxu0
    %v7771 = vadd.f32 %v7686, %v7770
    %v7772 = vpop.f32.mrb[0].mxu0
    %v7773 = vpop.f32.mrb[0].mxu0
    %v7774 = vadd.f32 %v7686, %v7773
    %v7775 = vpop.f32.mrb[0].mxu0
    %7776 = vdwg.mxu0
    %v7777 = vld [vmem:[#allocation32] sm:$0xf]
    %v7778 = vld [vmem:[#allocation32 + $0x4] sm:$0xf]
    %v7779 = vld [vmem:[#allocation32 + $0x8] sm:$0xf]
    %v7780 = vld [vmem:[#allocation32 + $0xc] sm:$0xf]
    %v7781 = vld [vmem:[#allocation32 + $0x10] sm:$0xf]
    %v7782 = vld [vmem:[#allocation32 + $0x14] sm:$0xf]
    %v7783 = vld [vmem:[#allocation32 + $0x18] sm:$0xf]
    %v7784 = vld [vmem:[#allocation32 + $0x1c] sm:$0xf]
    %v7785 = vld [vmem:[#allocation32 + $0x20] sm:$0xf]
    %v7786 = vld [vmem:[#allocation32 + $0x24] sm:$0xf]
    %v7787 = vld [vmem:[#allocation32 + $0x28] sm:$0xf]
    %v7788 = vld [vmem:[#allocation32 + $0x2c] sm:$0xf]
    %v7789 = vld [vmem:[#allocation32 + $0x30] sm:$0xf]
    %v7790 = vld [vmem:[#allocation32 + $0x34] sm:$0xf]
    %v7791 = vld [vmem:[#allocation32 + $0x38] sm:$0xf]
    %v7792 = vld [vmem:[#allocation32 + $0x3c] sm:$0xf]
    %v7809 = vunpack.c.l.b16 %v7777
    %v7810 = vunpack.c.l.b16 %v7778
    %v7811 = vunpack.c.l.b16 %v7779
    %v7812 = vunpack.c.l.b16 %v7780
    %v7813 = vunpack.c.l.b16 %v7781
    %v7814 = vunpack.c.l.b16 %v7782
    %v7815 = vunpack.c.l.b16 %v7783
    %v7816 = vunpack.c.l.b16 %v7784
    %v7817 = vunpack.c.l.b16 %v7785
    %v7818 = vunpack.c.l.b16 %v7786
    %v7819 = vunpack.c.l.b16 %v7787
    %v7820 = vunpack.c.l.b16 %v7788
    %v7821 = vunpack.c.l.b16 %v7789
    %v7822 = vunpack.c.l.b16 %v7790
    %v7823 = vunpack.c.l.b16 %v7791
    %v7824 = vunpack.c.l.b16 %v7792
    %v7825 = vpack.c.b16 %v7810, %v7809
    %v7826 = vpack.c.b16 %v7812, %v7811
    %v7827 = vpack.c.b16 %v7814, %v7813
    %v7828 = vpack.c.b16 %v7816, %v7815
    %v7829 = vpack.c.b16 %v7818, %v7817
    %v7830 = vpack.c.b16 %v7820, %v7819
    %v7831 = vpack.c.b16 %v7822, %v7821
    %v7832 = vpack.c.b16 %v7824, %v7823
    %7841 = vmatprep.subr.bf16.mxu0 0
    %7842 = vmatpush1.bf16.msra.mxu0 %v7825
    %7843 = vmatprep.subr.bf16.mxu0 0
    %7844 = vmatpush1.bf16.msra.mxu0 %v7826
    %7845 = vmatprep.subr.bf16.mxu0 0
    %7846 = vmatpush1.bf16.msra.mxu0 %v7827
    %7847 = vmatprep.subr.bf16.mxu0 0
    %7848 = vmatpush1.bf16.msra.mxu0 %v7828
    %7849 = vmatprep.subr.bf16.mxu0 0
    %7850 = vmatpush1.bf16.msra.mxu0 %v7829
    %7851 = vmatprep.subr.bf16.mxu0 0
    %7852 = vmatpush1.bf16.msra.mxu0 %v7830
    %7853 = vmatprep.subr.bf16.mxu0 0
    %7854 = vmatpush1.bf16.msra.mxu0 %v7831
    %7855 = vmatprep.subr.bf16.mxu0 0
    %7856 = vmatpush1.bf16.msra.mxu0 %v7832
    %7857 = vmatprep.subr.bf16.mxu0 0
    %7858 = vmatpush1.bf16.msra.mxu0 0
    %7859 = vmatprep.subr.bf16.mxu0 0
    %7860 = vmatpush1.bf16.msra.mxu0 0
    %7861 = vmatprep.subr.bf16.mxu0 0
    %7862 = vmatpush1.bf16.msra.mxu0 0
    %7863 = vmatprep.subr.bf16.mxu0 0
    %7864 = vmatpush1.bf16.msra.mxu0 0
    %7865 = vmatprep.subr.bf16.mxu0 0
    %7866 = vmatpush1.bf16.msra.mxu0 0
    %7867 = vmatprep.subr.bf16.mxu0 0
    %7868 = vmatpush1.bf16.msra.mxu0 0
    %7869 = vmatprep.subr.bf16.mxu0 0
    %7870 = vmatpush1.bf16.msra.mxu0 0
    %7871 = vmatprep.subr.bf16.mxu0 0
    %7872 = vmatpush1.bf16.msra.mxu0 0
    %7873 = vmatprep.mubr.bf16.mxu0 0
    %7874 = vmatmul.mubr.bf16.gmra.mrb[0].mxu0 %v7571
    %v7875 = vpop.f32.mrb[0].mxu0
    %v7876 = vadd.f32 0.0, %v7875
    %v7877 = vpop.f32.mrb[0].mxu0
    %v7878 = vpop.f32.mrb[0].mxu0
    %v7879 = vadd.f32 0.0, %v7878
    %v7880 = vpop.f32.mrb[0].mxu0
    %7881 = vdwg.mxu0
    %v7882 = vadd.f32 %v7771, %v7876
    %v7883 = vadd.f32 %v7774, %v7879
    %v7884 = vld [vmem:[#allocation34] sm:$0xf]
    %v7885 = vld [vmem:[#allocation34 + $0x4] sm:$0xf]
    %v7886 = vld [vmem:[#allocation34 + $0x8] sm:$0xf]
    %v7887 = vld [vmem:[#allocation34 + $0xc] sm:$0xf]
    %v7888 = vld [vmem:[#allocation34 + $0x10] sm:$0xf]
    %v7889 = vld [vmem:[#allocation34 + $0x14] sm:$0xf]
    %v7890 = vld [vmem:[#allocation34 + $0x18] sm:$0xf]
    %v7891 = vld [vmem:[#allocation34 + $0x1c] sm:$0xf]
    %v7892 = vld [vmem:[#allocation34 + $0x20] sm:$0xf]
    %v7893 = vld [vmem:[#allocation34 + $0x24] sm:$0xf]
    %v7894 = vld [vmem:[#allocation34 + $0x28] sm:$0xf]
    %v7895 = vld [vmem:[#allocation34 + $0x2c] sm:$0xf]
    %v7896 = vld [vmem:[#allocation34 + $0x30] sm:$0xf]
    %v7897 = vld [vmem:[#allocation34 + $0x34] sm:$0xf]
    %v7898 = vld [vmem:[#allocation34 + $0x38] sm:$0xf]
    %v7899 = vld [vmem:[#allocation34 + $0x3c] sm:$0xf]
    %v7900 = vpack.c.bf16 %v7883, %v7882
    %v7901 = vld [vmem:[%s59] sm:$0x1]
    %v7903 = vlaneseq
    %v7904 = vshrl.u32 %v7903, 7
    %v7905 = vsub.s32 0, %v7904
    %v7906 = vrot.slane %v7901, %v7905
    %v7924 = vunpack.c.l.b16 %v7884
    %v7925 = vunpack.c.l.b16 %v7885
    %v7926 = vunpack.c.l.b16 %v7886
    %v7927 = vunpack.c.l.b16 %v7887
    %v7928 = vunpack.c.l.b16 %v7888
    %v7929 = vunpack.c.l.b16 %v7889
    %v7930 = vunpack.c.l.b16 %v7890
    %v7931 = vunpack.c.l.b16 %v7891
    %v7932 = vunpack.c.l.b16 %v7892
    %v7933 = vunpack.c.l.b16 %v7893
    %v7934 = vunpack.c.l.b16 %v7894
    %v7935 = vunpack.c.l.b16 %v7895
    %v7936 = vunpack.c.l.b16 %v7896
    %v7937 = vunpack.c.l.b16 %v7897
    %v7938 = vunpack.c.l.b16 %v7898
    %v7939 = vunpack.c.l.b16 %v7899
    %v7940 = vpack.c.b16 %v7925, %v7924
    %v7941 = vpack.c.b16 %v7927, %v7926
    %v7942 = vpack.c.b16 %v7929, %v7928
    %v7943 = vpack.c.b16 %v7931, %v7930
    %v7944 = vpack.c.b16 %v7933, %v7932
    %v7945 = vpack.c.b16 %v7935, %v7934
    %v7946 = vpack.c.b16 %v7937, %v7936
    %v7947 = vpack.c.b16 %v7939, %v7938
    %7956 = vmatprep.subr.bf16.mxu0 0
    %7957 = vmatpush1.bf16.msra.mxu0 %v7940
    %7958 = vmatprep.subr.bf16.mxu0 0
    %7959 = vmatpush1.bf16.msra.mxu0 %v7941
    %7960 = vmatprep.subr.bf16.mxu0 0
    %7961 = vmatpush1.bf16.msra.mxu0 %v7942
    %7962 = vmatprep.subr.bf16.mxu0 0
    %7963 = vmatpush1.bf16.msra.mxu0 %v7943
    %7964 = vmatprep.subr.bf16.mxu0 0
    %7965 = vmatpush1.bf16.msra.mxu0 %v7944
    %7966 = vmatprep.subr.bf16.mxu0 0
    %7967 = vmatpush1.bf16.msra.mxu0 %v7945
    %7968 = vmatprep.subr.bf16.mxu0 0
    %7969 = vmatpush1.bf16.msra.mxu0 %v7946
    %7970 = vmatprep.subr.bf16.mxu0 0
    %7971 = vmatpush1.bf16.msra.mxu0 %v7947
    %7972 = vmatprep.subr.bf16.mxu0 0
    %7973 = vmatpush1.bf16.msra.mxu0 0
    %7974 = vmatprep.subr.bf16.mxu0 0
    %7975 = vmatpush1.bf16.msra.mxu0 0
    %7976 = vmatprep.subr.bf16.mxu0 0
    %7977 = vmatpush1.bf16.msra.mxu0 0
    %7978 = vmatprep.subr.bf16.mxu0 0
    %7979 = vmatpush1.bf16.msra.mxu0 0
    %7980 = vmatprep.subr.bf16.mxu0 0
    %7981 = vmatpush1.bf16.msra.mxu0 0
    %7982 = vmatprep.subr.bf16.mxu0 0
    %7983 = vmatpush1.bf16.msra.mxu0 0
    %7984 = vmatprep.subr.bf16.mxu0 0
    %7985 = vmatpush1.bf16.msra.mxu0 0
    %7986 = vmatprep.subr.bf16.mxu0 0
    %7987 = vmatpush1.bf16.msra.mxu0 0
    %7988 = vmatprep.mubr.bf16.mxu0 0
    %7989 = vmatmul.mubr.bf16.gmra.mrb[0].mxu0 %v7900
    %v7990 = vpop.f32.mrb[0].mxu0
    %v7991 = vadd.f32 %v7906, %v7990
    %v7992 = vpop.f32.mrb[0].mxu0
    %v7993 = vpop.f32.mrb[0].mxu0
    %v7994 = vadd.f32 %v7906, %v7993
    %v7995 = vpop.f32.mrb[0].mxu0
    %7996 = vdwg.mxu0
    %v7997 = vmax.f32 %v7991, 0.0
    %v7998 = vmax.f32 %v7994, 0.0
    %v7999 = vand.u32 2147483647, %v7991
    %v8000 = vand.u32 2147483647, %v7994
    %v8001 = vsub.f32 0.0, %v7999
    %v8002 = vsub.f32 0.0, %v8000
    %v8003 = vmul.f32 %v8001, 1.442695
    %v8004 = vpow.pop %v8003
    %v8005 = vmul.f32 %v8002, 1.442695
    %v8006 = vpow.pop %v8005
    %v8007 = vadd.f32 %v8004, 1.0
    %v8008 = vadd.f32 %v8006, 1.0
    %v8009 = vlog2.pop %v8007
    %v8010 = vmul.f32 %v8009, 0.6931472
    %v8011 = vlog2.pop %v8008
    %v8012 = vmul.f32 %v8011, 0.6931472
    %v8013 = vadd.f32 %v7997, %v8010
    %v8014 = vadd.f32 %v7998, %v8012
    %v8015 = vadd.f32 %v8013, %v8014
    %v8016 = vrot.slane %v8015, 4
    %v8017 = vadd.f32 %v8015, %v8016
    %v8018 = vrot.slane %v8017, 2
    %v8019 = vadd.f32 %v8017, %v8018
    %v8020 = vrot.slane %v8019, 1
    %v8021 = vadd.f32 %v8019, %v8020
    %v8022 = vrcp.pop 16.0
    %v8023 = vmul.f32 %v8021, %v8022
    %v8024 = vsub.f32 %v8013, %v8023
    %v8025 = vsub.f32 %v8014, %v8023
    %v8026 = vmul.f32 %v8024, %v8024
    %v8027 = vmul.f32 %v8025, %v8025
    %v8028 = vadd.f32 %v8026, %v8027
    %v8029 = vrot.slane %v8028, 4
    %v8030 = vadd.f32 %v8028, %v8029
    %v8031 = vrot.slane %v8030, 2
    %v8032 = vadd.f32 %v8030, %v8031
    %v8033 = vrot.slane %v8032, 1
    %v8034 = vadd.f32 %v8032, %v8033
    %v8035 = vmul.f32 %v8034, %v8022
    %v8036 = vadd.f32 %v8035, 1e-05
    %v8037 = vrsqrt.pop %v8036
    %v8038 = vmul.f32 %v8024, %v8037
    %v8039 = vmul.f32 %v8025, %v8037
    %v8040 = vlaneseq
    %v8041 = vshrl.u32 %v8040, 7
    %v8042 = vsub.s32 0, %v8041
    %v8043 = vrot.slane %v430, %v8042
    %8045 = vbcast.lane.b32.xlu0 %v8043, 256
    %v8046 = vpop.permute.xlu0 %8045
    %s8048 = sor.u32 256, 8
    %8049 = vbcast.lane.b32.xlu0 %v8043, %s8048
    %v8050 = vpop.permute.xlu0 %8049
    %v8051 = vlaneseq
    %v8052 = vshrl.u32 %v8051, 7
    %v8053 = vsub.s32 1, %v8052
    %v8054 = vrot.slane %v430, %v8053
    %8056 = vbcast.lane.b32.xlu0 %v8054, 256
    %v8057 = vpop.permute.xlu0 %8056
    %s8059 = sor.u32 256, 8
    %8060 = vbcast.lane.b32.xlu0 %v8054, %s8059
    %v8061 = vpop.permute.xlu0 %8060
    %vm8062 = vcmp.gt.f32.partialorder %v8046, 0.0
    %vm8063 = vcmp.gt.f32.partialorder %v8050, 0.0
    %vm8064 = vcmp.gt.f32.partialorder %v8057, 0.0
    %vm8065 = vcmp.gt.f32.partialorder %v8061, 0.0
    %v8066 = vsel %vm8062, 1, 0
    %v8067 = vsel %vm8063, 1, 0
    %v8068 = vsel %vm8064, 1, 0
    %v8069 = vsel %vm8065, 1, 0
    %vm8070 = vcmp.eq.s32.totalorder %v8066, 1
    %vm8071 = vcmp.eq.s32.totalorder %v8067, 1
    %vm8072 = vcmp.eq.s32.totalorder %v8068, 1
    %vm8073 = vcmp.eq.s32.totalorder %v8069, 1
    %v8074 = vsel %vm8070, %v8038, -inf
    %v8075 = vsel %vm8071, %v8039, -inf
    %v8076 = vsel %vm8072, %v8038, -inf
    %v8077 = vsel %vm8073, %v8039, -inf
    %v8078 = vmax.f32 %v8074, %v8075
    %v8079 = vrot.slane %v8078, 4
    %v8080 = vmax.f32 %v8078, %v8079
    %v8081 = vrot.slane %v8080, 2
    %v8082 = vmax.f32 %v8080, %v8081
    %v8083 = vrot.slane %v8082, 1
    %v8084 = vmax.f32 %v8082, %v8083
    %v8085 = vmax.f32 %v8076, %v8077
    %v8086 = vrot.slane %v8085, 4
    %v8087 = vmax.f32 %v8085, %v8086
    %v8088 = vrot.slane %v8087, 2
    %v8089 = vmax.f32 %v8087, %v8088
    %v8090 = vrot.slane %v8089, 1
    %v8091 = vmax.f32 %v8089, %v8090
    %vm8092 = vcmask 123904
    %v8093 = vsel %vm8092, %v430, 0.0
    %8094 = vadd.xlane.f32.xlu0 %v8093
    %v8095 = vpop.xlane.xlu0 %8094
    %vm8096 = vcmp.gt.f32.partialorder %v8095, 0.0
    %v8097 = vsel %vm8096, 1, 0
    %vm8098 = vcmp.eq.s32.totalorder %v8097, 1
    %v8101 = vsel %vm1050, %v8091, %v8084
    %v8103 = vsel %vm8098, %v8101, 0.0
    %v8104 = vld [vmem:[#allocation35] sm:$0xf]
    %v8105 = vld [vmem:[#allocation35 + $0x4] sm:$0xf]
    %v8106 = vld [vmem:[#allocation35 + $0x8] sm:$0xf]
    %v8107 = vld [vmem:[#allocation35 + $0xc] sm:$0xf]
    %v8108 = vld [vmem:[#allocation35 + $0x10] sm:$0xf]
    %v8109 = vld [vmem:[#allocation35 + $0x14] sm:$0xf]
    %v8110 = vld [vmem:[#allocation35 + $0x18] sm:$0xf]
    %v8111 = vld [vmem:[#allocation35 + $0x1c] sm:$0xf]
    %v8112 = vld [vmem:[#allocation35 + $0x20] sm:$0xf]
    %v8113 = vld [vmem:[#allocation35 + $0x24] sm:$0xf]
    %v8114 = vld [vmem:[#allocation35 + $0x28] sm:$0xf]
    %v8115 = vld [vmem:[#allocation35 + $0x2c] sm:$0xf]
    %v8116 = vld [vmem:[#allocation35 + $0x30] sm:$0xf]
    %v8117 = vld [vmem:[#allocation35 + $0x34] sm:$0xf]
    %v8118 = vld [vmem:[#allocation35 + $0x38] sm:$0xf]
    %v8119 = vld [vmem:[#allocation35 + $0x3c] sm:$0xf]
    %v8120 = vpack.c.bf16 %v8103, %v8103
    %v8121 = vld [vmem:[%s63] sm:$0x1]
    %v8123 = vlaneseq
    %v8124 = vshrl.u32 %v8123, 7
    %v8125 = vsub.s32 0, %v8124
    %v8126 = vrot.slane %v8121, %v8125
    %v8144 = vunpack.c.l.b16 %v8104
    %v8145 = vunpack.c.l.b16 %v8105
    %v8146 = vunpack.c.l.b16 %v8106
    %v8147 = vunpack.c.l.b16 %v8107
    %v8148 = vunpack.c.l.b16 %v8108
    %v8149 = vunpack.c.l.b16 %v8109
    %v8150 = vunpack.c.l.b16 %v8110
    %v8151 = vunpack.c.l.b16 %v8111
    %v8152 = vunpack.c.l.b16 %v8112
    %v8153 = vunpack.c.l.b16 %v8113
    %v8154 = vunpack.c.l.b16 %v8114
    %v8155 = vunpack.c.l.b16 %v8115
    %v8156 = vunpack.c.l.b16 %v8116
    %v8157 = vunpack.c.l.b16 %v8117
    %v8158 = vunpack.c.l.b16 %v8118
    %v8159 = vunpack.c.l.b16 %v8119
    %v8160 = vpack.c.b16 %v8145, %v8144
    %v8161 = vpack.c.b16 %v8147, %v8146
    %v8162 = vpack.c.b16 %v8149, %v8148
    %v8163 = vpack.c.b16 %v8151, %v8150
    %v8164 = vpack.c.b16 %v8153, %v8152
    %v8165 = vpack.c.b16 %v8155, %v8154
    %v8166 = vpack.c.b16 %v8157, %v8156
    %v8167 = vpack.c.b16 %v8159, %v8158
    %8176 = vmatprep.subr.bf16.mxu0 0
    %8177 = vmatpush1.bf16.msra.mxu0 %v8160
    %8178 = vmatprep.subr.bf16.mxu0 0
    %8179 = vmatpush1.bf16.msra.mxu0 %v8161
    %8180 = vmatprep.subr.bf16.mxu0 0
    %8181 = vmatpush1.bf16.msra.mxu0 %v8162
    %8182 = vmatprep.subr.bf16.mxu0 0
    %8183 = vmatpush1.bf16.msra.mxu0 %v8163
    %8184 = vmatprep.subr.bf16.mxu0 0
    %8185 = vmatpush1.bf16.msra.mxu0 %v8164
    %8186 = vmatprep.subr.bf16.mxu0 0
    %8187 = vmatpush1.bf16.msra.mxu0 %v8165
    %8188 = vmatprep.subr.bf16.mxu0 0
    %8189 = vmatpush1.bf16.msra.mxu0 %v8166
    %8190 = vmatprep.subr.bf16.mxu0 0
    %8191 = vmatpush1.bf16.msra.mxu0 %v8167
    %8192 = vmatprep.subr.bf16.mxu0 0
    %8193 = vmatpush1.bf16.msra.mxu0 0
    %8194 = vmatprep.subr.bf16.mxu0 0
    %8195 = vmatpush1.bf16.msra.mxu0 0
    %8196 = vmatprep.subr.bf16.mxu0 0
    %8197 = vmatpush1.bf16.msra.mxu0 0
    %8198 = vmatprep.subr.bf16.mxu0 0
    %8199 = vmatpush1.bf16.msra.mxu0 0
    %8200 = vmatprep.subr.bf16.mxu0 0
    %8201 = vmatpush1.bf16.msra.mxu0 0
    %8202 = vmatprep.subr.bf16.mxu0 0
    %8203 = vmatpush1.bf16.msra.mxu0 0
    %8204 = vmatprep.subr.bf16.mxu0 0
    %8205 = vmatpush1.bf16.msra.mxu0 0
    %8206 = vmatprep.subr.bf16.mxu0 0
    %8207 = vmatpush1.bf16.msra.mxu0 0
    %8208 = vmatprep.mubr.bf16.mxu0 0
    %8209 = vmatmul.mubr.bf16.gmra.mrb[0].mxu0 %v8120
    %v8210 = vpop.f32.mrb[0].mxu0
    %v8211 = vadd.f32 %v8126, %v8210
    %v8212 = vpop.f32.mrb[0].mxu0
    %v8213 = vpop.f32.mrb[0].mxu0
    %v8214 = vpop.f32.mrb[0].mxu0
    %8215 = vdwg.mxu0
    %8216 = vst [vmem:[#allocation37] sm:$0x3] %v8211
    // Predicated region
    $region218: #{tpu_custom_call.1} parent=1 // pred_check
      _
    $region219: #{tpu_custom_call.1} parent=1 // pred_check_branch
      %8218 = sbr.rel (0) target = $region221
    $region220: #{tpu_custom_call.1} parent=1 // pred_region
      %s8220 = ssub.s32 32, 32
      %8221 = vsyncadd [#allocation4], %s8220
      %s8223 = sshll.u32 [#allocation37], 4
      %s8224 = int_to_ptr.vmem [resolvable:$true] %s8223
      %8226 = dma.vmem_to_hbm [thread:$0]  %s8224, 32, %s65, [#allocation4]
    $region221: #{tpu_custom_call.1} parent=1 // pred_fallthru
      _
    // Predicated region
    $region222: #{tpu_custom_call.1} parent=1 // pred_check
      _
    $region223: #{tpu_custom_call.1} parent=1 // pred_check_branch
      %8228 = sbr.rel (0) target = $region225
    $region224: #{tpu_custom_call.1} parent=1 // pred_region
      %8229 = dma.done [#allocation4], 32
    $region225: #{tpu_custom_call.1} parent=1 // pred_fallthru
      _
    %8230 = vsyncpa [#allocation3], 1
    %8231 = vsyncpa [#allocation6], 1
    %8232 = vsyncpa [#allocation9], 1
    %8233 = vsyncpa [#allocation12], 1
    %8234 = vsyncpa [#allocation15], 1
    %8235 = vsyncpa [#allocation18], 1
    %8236 = vsyncpa [#allocation21], 1
    %8237 = vsyncpa [#allocation24], 1
    %8238 = vsyncpa [#allocation27], 1
    %8239 = vsyncpa [#allocation30], 1
    %8240 = vsyncpa [#allocation33], 1
    %8241 = vsyncpa [#allocation36], 1
    %8242 = vsyncpa [#allocation4], 1

</llo_original>
